<compile_context>
chip_gen: v7x
topology: tpu7x:2x2x1
jax: 0.10.0
libtpu: 0.0.40
codegen_flags: <defaults>
</compile_context>

<pallas_src>
import jax
import jax.numpy as jnp
from jax import lax
from jax.experimental import pallas as pl
from jax.experimental.pallas import tpu as pltpu

RATIO = 4
LN_EPS = 1e-5  # nn.LayerNorm default


def _gelu_tanh(x):
    # tanh-form GELU: routes the transcendental to the EUP slot instead of spending
    # ~10 VALU multiplies/element on an erf polynomial.  |err| vs exact erf <~1e-3.
    c = 0.7978845608028654  # sqrt(2/pi)
    return 0.5 * x * (1.0 + jnp.tanh(c * (x + 0.044715 * x * x * x)))


def _make_kernel(Ho, Wo, Wop, Hh, C, masked):
    """Static-shape closure so the kernel knows the real (unpadded) pixel count."""
    Pp = Ho * Wop                 # padded pixel count (rows of the compute slab)
    inv_P = 1.0 / float(Ho * Wo)  # LN divides by the REAL pixel count

    def kernel(xq_ref, w1_ref, b1_ref, aff_ref, w2_ref, b2_ref,
               w3_ref, b3_ref, wr_ref, br_ref, out_ref, col_ref):
        # ---- conv1 via in-VMEM im2col: copy the 49 shifted stride-2 windows into a
        # bf16 (Pp, 49C) scratch, then a single (Pp,49C)x(49C,C) MXU matmul, f32 acc.
        # xq holds the zero-padded input split into 4 stride-2 parity planes stacked
        # along rows:  xq[0, (2*ph + pw)*Hh + i, j, :] = x_pad[2*i + ph, 2*j + pw, :]
        for kh in range(7):
            for kw in range(7):
                plane = 2 * (kh % 2) + (kw % 2)
                a, b = kh // 2, kw // 2
                row0 = plane * Hh + a
                t = kh * 7 + kw
                col_ref[:, t * C:(t + 1) * C] = (
                    xq_ref[0, row0:row0 + Ho, b:b + Wop, :].reshape(Pp, C))

        y = jnp.dot(col_ref[...], w1_ref[...],
                    preferred_element_type=jnp.float32) + b1_ref[...]

        # ---- LayerNorm over spatial positions (rows), per channel; one-pass stats.
        # aff_ref columns: 0 = gamma (per position), 1 = beta, 2 = validity mask.
        if masked:
            ym = y * aff_ref[:, 2:3]   # zero out pad rows so they don't bias stats
        else:
            ym = y
        s1 = jnp.sum(ym, axis=0, keepdims=True)
        s2 = jnp.sum(ym * ym, axis=0, keepdims=True)
        mean = s1 * inv_P
        var = s2 * inv_P - mean * mean
        y = (y - mean) * lax.rsqrt(var + LN_EPS)
        y = y * aff_ref[:, 0:1] + aff_ref[:, 1:2]       # per-position affine

        # ---- conv2 (1x1) + GELU, conv3 (1x1) + GELU (bf16 matmuls, f32 accumulate)
        y = jnp.dot(y.astype(jnp.bfloat16), w2_ref[...],
                    preferred_element_type=jnp.float32) + b2_ref[...]
        y = _gelu_tanh(y)
        y = jnp.dot(y.astype(jnp.bfloat16), w3_ref[...],
                    preferred_element_type=jnp.float32) + b3_ref[...]
        y = _gelu_tanh(y)

        # ---- residual 1x1 stride-2 conv: its input pixels x[2ho, 2wo] are exactly
        # the centre tap (kh=3, kw=3) of the im2col slab -> reuse that column block.
        xs = col_ref[:, 24 * C:25 * C]
        res = jnp.dot(xs, wr_ref[...],
                      preferred_element_type=jnp.float32) + br_ref[...]

        out_ref[0] = (y + res).astype(out_ref.dtype)

    return kernel


@jax.jit
def convnext_block_forward(x, params):
    """x: (N, C, H, W) float32, params in PyTorch layout. Returns (N, 2C, H//2, W//2)."""
    w1, b1, g, beta, w2, b2, w3, b3, wr, br = params
    N, C, H, W = x.shape
    assert H % 2 == 0 and W % 2 == 0
    Ho, Wo = H // 2, W // 2
    C4, C2 = C * RATIO, C * 2
    Hh, Wh = Ho + 3, Wo + 3
    Wop = ((Wo + 15) // 16) * 16          # pad output width -> bf16-trivial reshapes
    Whp = Wop + 3
    Pp = Ho * Wop
    masked = Wop != Wo

    # ---- layout glue only (no 49x im2col in HBM): pad by 3, go NHWC, split the
    # padded input into its 4 stride-2 parity planes stacked along rows, pad the
    # width to Wop+3 and cast to bf16.
    xp = jnp.pad(x, ((0, 0), (0, 0), (3, 3), (3, 3)))            # (N, C, H+6, W+6)
    xp = xp.transpose(0, 2, 3, 1)                                # (N, H+6, W+6, C)
    xq = xp.reshape(N, Hh, 2, Wh, 2, C).transpose(0, 2, 4, 1, 3, 5)
    xq = xq.reshape(N, 4 * Hh, Wh, C)                            # planes on rows
    xq = jnp.pad(xq, ((0, 0), (0, 0), (0, Whp - Wh), (0, 0))).astype(jnp.bfloat16)

    # ---- PyTorch-layout params -> matmul form (bf16 weights, f32 bias/LN affine)
    w1m = jnp.transpose(w1, (2, 3, 1, 0)).reshape(49 * C, C).astype(jnp.bfloat16)
    w2m = w2.reshape(C4, C).T.astype(jnp.bfloat16)               # (C, 4C)
    w3m = w3.reshape(C2, C4).T.astype(jnp.bfloat16)              # (4C, 2C)
    wrm = wr.reshape(C2, C).T.astype(jnp.bfloat16)               # (C, 2C)
    b1m = b1.reshape(1, C).astype(jnp.float32)
    b2m = b2.reshape(1, C4).astype(jnp.float32)
    b3m = b3.reshape(1, C2).astype(jnp.float32)
    brm = br.reshape(1, C2).astype(jnp.float32)

    # per-position LN affine + validity mask packed into one lane-dense (Pp, 8) slab
    padw = ((0, 0), (0, Wop - Wo))
    aff = jnp.zeros((Pp, 8), jnp.float32)
    aff = aff.at[:, 0].set(jnp.pad(g.astype(jnp.float32), padw).reshape(Pp))
    aff = aff.at[:, 1].set(jnp.pad(beta.astype(jnp.float32), padw).reshape(Pp))
    aff = aff.at[:, 2].set(jnp.pad(jnp.ones((Ho, Wo), jnp.float32), padw).reshape(Pp))

    def const_spec(arr):
        zeros = (0,) * arr.ndim
        # Constant block index over the batch grid -> single-buffer (halves VMEM).
        return pl.BlockSpec(arr.shape, lambda n: zeros,
                            pipeline_mode=pl.Buffered(1))

    # ---- VMEM budget (input tile + output double-buffered, constants single,
    # plus the im2col scratch), with headroom.
    const_bytes = (2 * (w1m.size + w2m.size + w3m.size + wrm.size)
                   + 4 * (b1m.size + b2m.size + b3m.size + brm.size + aff.size))
    footprint = (2 * (4 * Hh * Whp * C * 2)      # bf16 input tile, 2 buffers
                 + 2 * (Pp * C2 * 4)             # f32 output tile, 2 buffers
                 + Pp * 49 * C * 2               # bf16 im2col scratch
                 + const_bytes)
    vmem_limit = int(min(100 * 2**20, max(32 * 2**20, int(1.25 * footprint) + 2 * 2**20)))

    flops = 2 * N * Pp * (49 * C * C + C * C4 + C4 * C2 + C * C2)
    transcendentals = N * Pp * (C4 + C2)         # one tanh per GELU element
    bytes_accessed = (2 * xq.size
                      + 2 * (w1m.size + w2m.size + w3m.size + wrm.size)
                      + 4 * (b1m.size + b2m.size + b3m.size + brm.size + aff.size)
                      + 4 * N * Pp * C2)

    out = pl.pallas_call(
        _make_kernel(Ho, Wo, Wop, Hh, C, masked),
        out_shape=jax.ShapeDtypeStruct((N, Pp, C2), jnp.float32),
        grid_spec=pltpu.PrefetchScalarGridSpec(
            num_scalar_prefetch=0,
            grid=(N,),
            in_specs=[
                pl.BlockSpec((1, 4 * Hh, Whp, C), lambda n: (n, 0, 0, 0)),  # input
                const_spec(w1m), const_spec(b1m), const_spec(aff),          # conv1+LN
                const_spec(w2m), const_spec(b2m),                           # conv2
                const_spec(w3m), const_spec(b3m),                           # conv3
                const_spec(wrm), const_spec(brm),                           # conv_res
            ],
            out_specs=pl.BlockSpec((1, Pp, C2), lambda n: (n, 0, 0)),
            scratch_shapes=[pltpu.VMEM((Pp, 49 * C), jnp.bfloat16)],        # im2col
        ),
        compiler_params=pltpu.CompilerParams(
            dimension_semantics=("parallel",),
            vmem_limit_bytes=vmem_limit),
        cost_estimate=pl.CostEstimate(flops=flops,
                                      transcendentals=transcendentals,
                                      bytes_accessed=bytes_accessed),
    )(xq, w1m, b1m, aff, w2m, b2m, w3m, b3m, wrm, brm)

    out = out.reshape(N, Ho, Wop, C2)[:, :, :Wo, :]              # drop pad columns
    return out.transpose(0, 3, 1, 2)                             # back to NCHW


def ref_forward(x, params):
    """Pure-JAX/XLA reference matching the PyTorch module semantics (exact-erf GELU)."""
    w1, b1, g, beta, w2, b2, w3, b3, wr, br = params
    dn = ("NCHW", "OIHW", "NCHW")
    gelu = lambda t: 0.5 * t * (1.0 + jax.scipy.special.erf(t / jnp.sqrt(2.0)))

    y = lax.conv_general_dilated(x, w1, (2, 2), ((3, 3), (3, 3)), dimension_numbers=dn)
    y = y + b1[None, :, None, None]
    mean = y.mean(axis=(2, 3), keepdims=True)
    var = ((y - mean) ** 2).mean(axis=(2, 3), keepdims=True)
    y = (y - mean) / jnp.sqrt(var + LN_EPS) * g[None, None] + beta[None, None]
    y = lax.conv_general_dilated(y, w2, (1, 1), ((0, 0), (0, 0)), dimension_numbers=dn)
    y = gelu(y + b2[None, :, None, None])
    y = lax.conv_general_dilated(y, w3, (1, 1), ((0, 0), (0, 0)), dimension_numbers=dn)
    y = gelu(y + b3[None, :, None, None])
    r = lax.conv_general_dilated(x, wr, (2, 2), ((0, 0), (0, 0)), dimension_numbers=dn)
    r = r + br[None, :, None, None]
    return y + r


def _make_params(key, dim, Ho, Wo):
    ks = jax.random.split(key, 10)
    return (
        0.05 * jax.random.normal(ks[0], (dim, dim, 7, 7), jnp.float32),          # conv1.w
        0.05 * jax.random.normal(ks[1], (dim,), jnp.float32),                    # conv1.b
        1.0 + 0.05 * jax.random.normal(ks[2], (Ho, Wo), jnp.float32),            # ln.w
        0.05 * jax.random.normal(ks[3], (Ho, Wo), jnp.float32),                  # ln.b
        0.1 * jax.random.normal(ks[4], (dim * RATIO, dim, 1, 1), jnp.float32),   # conv2.w
        0.05 * jax.random.normal(ks[5], (dim * RATIO,), jnp.float32),            # conv2.b
        0.1 * jax.random.normal(ks[6], (dim * 2, dim * RATIO, 1, 1), jnp.float32),  # conv3.w
        0.05 * jax.random.normal(ks[7], (dim * 2,), jnp.float32),                # conv3.b
        0.1 * jax.random.normal(ks[8], (dim * 2, dim, 1, 1), jnp.float32),       # conv_res.w
        0.05 * jax.random.normal(ks[9], (dim * 2,), jnp.float32),                # conv_res.b
    )


def _check(x, params, tag):
    out = jax.block_until_ready(convnext_block_forward(x, params))
    N, C, H, W = x.shape
    assert out.shape == (N, 2 * C, H // 2, W // 2), (tag, out.shape)
    ref = ref_forward(x, params)
    # bf16 MXU inputs + tanh-form GELU -> expect ~1e-3 abs deviation at these scales.
    if not jnp.allclose(out, ref, atol=2e-2, rtol=2e-2):
        err = float(jnp.max(jnp.abs(out - ref)))
        raise AssertionError(f"[{tag}] kernel mismatch vs reference, max abs err {err}")


if __name__ == "__main__":
    key = jax.random.PRNGKey(0)
    kx1, kp1, kx2, kp2 = jax.random.split(key, 4)

    # Test A: Wo=8 -> padded to Wop=16 (exercises the masked-LayerNorm path).
    dim, N, H, W = 4, 2, 16, 16
    x_a = jax.random.normal(kx1, (N, dim, H, W), jnp.float32)
    p_a = _make_params(kp1, dim, H // 2, W // 2)
    _check(x_a, p_a, "masked")

    # Test B: Wo=16 (already a multiple of 16 -> unmasked path).
    dim, N, H, W = 4, 1, 32, 32
    x_b = jax.random.normal(kx2, (N, dim, H, W), jnp.float32)
    p_b = _make_params(kp2, dim, H // 2, W // 2)
    _check(x_b, p_b, "unpadded")

    print("KERNEL_OK")
</pallas_src>

<mosaic_0001>
module attributes {stable_mosaic.version = 11 : i64} {
  func.func @kernel(%arg0: i32, %arg1: memref<1x44x19x4xbf16, #tpu.memory_space<vmem>>, %arg2: memref<196x4xbf16, #tpu.memory_space<vmem>>, %arg3: memref<1x4xf32, #tpu.memory_space<vmem>>, %arg4: memref<128x8xf32, #tpu.memory_space<vmem>>, %arg5: memref<4x16xbf16, #tpu.memory_space<vmem>>, %arg6: memref<1x16xf32, #tpu.memory_space<vmem>>, %arg7: memref<16x8xbf16, #tpu.memory_space<vmem>>, %arg8: memref<1x8xf32, #tpu.memory_space<vmem>>, %arg9: memref<4x8xbf16, #tpu.memory_space<vmem>>, %arg10: memref<1x8xf32, #tpu.memory_space<vmem>>, %arg11: memref<1x128x8xf32, #tpu.memory_space<vmem>>, %arg12: memref<128x196xbf16, #tpu.memory_space<vmem>>) attributes {dimension_semantics = [#tpu.dimension_semantics<parallel>], iteration_bounds = array<i64: 2>, scalar_prefetch = 0 : i64, scratch_operands = 1 : i64, tpu.core_type = #tpu.core_type<tc>, window_params = [{transform_indices = @transform_0, window_bounds = array<i64: 1, 44, 19, 4>}, {pipeline_mode = #tpu.pipeline_mode<synchronous>, transform_indices = @transform_1, window_bounds = array<i64: 196, 4>}, {pipeline_mode = #tpu.pipeline_mode<synchronous>, transform_indices = @transform_2, window_bounds = array<i64: 1, 4>}, {pipeline_mode = #tpu.pipeline_mode<synchronous>, transform_indices = @transform_3, window_bounds = array<i64: 128, 8>}, {pipeline_mode = #tpu.pipeline_mode<synchronous>, transform_indices = @transform_4, window_bounds = array<i64: 4, 16>}, {pipeline_mode = #tpu.pipeline_mode<synchronous>, transform_indices = @transform_5, window_bounds = array<i64: 1, 16>}, {pipeline_mode = #tpu.pipeline_mode<synchronous>, transform_indices = @transform_6, window_bounds = array<i64: 16, 8>}, {pipeline_mode = #tpu.pipeline_mode<synchronous>, transform_indices = @transform_7, window_bounds = array<i64: 1, 8>}, {pipeline_mode = #tpu.pipeline_mode<synchronous>, transform_indices = @transform_8, window_bounds = array<i64: 4, 8>}, {pipeline_mode = #tpu.pipeline_mode<synchronous>, transform_indices = @transform_9, window_bounds = array<i64: 1, 8>}, {transform_indices = @transform_10, window_bounds = array<i64: 1, 128, 8>}]} {
    %c0 = arith.constant 0 : index
    %c0_0 = arith.constant 0 : index
    %c0_1 = arith.constant 0 : index
    %c0_2 = arith.constant 0 : index
    %0 = vector.load %arg1[%c0, %c0_0, %c0_1, %c0_2] : memref<1x44x19x4xbf16, #tpu.memory_space<vmem>>, vector<1x8x16x4xbf16>
    %1 = vector.shape_cast %0 : vector<1x8x16x4xbf16> to vector<8x16x4xbf16>
    %2 = vector.shape_cast %1 : vector<8x16x4xbf16> to vector<128x4xbf16>
    %c0_3 = arith.constant 0 : index
    %c0_4 = arith.constant 0 : index
    %3 = vector.load %arg12[%c0_3, %c0_4] : memref<128x196xbf16, #tpu.memory_space<vmem>>, vector<128x4xbf16>
    tpu.vector_store %arg12[%c0_3, %c0_4], %2 {strides = array<i32>} : memref<128x196xbf16, #tpu.memory_space<vmem>>, vector<128x4xbf16>,
    %c0_5 = arith.constant 0 : index
    %c11 = arith.constant 11 : index
    %c0_6 = arith.constant 0 : index
    %c0_7 = arith.constant 0 : index
    %4 = vector.load %arg1[%c0_5, %c11, %c0_6, %c0_7] : memref<1x44x19x4xbf16, #tpu.memory_space<vmem>>, vector<1x8x16x4xbf16>
    %5 = vector.shape_cast %4 : vector<1x8x16x4xbf16> to vector<8x16x4xbf16>
    %6 = vector.shape_cast %5 : vector<8x16x4xbf16> to vector<128x4xbf16>
    %c0_8 = arith.constant 0 : index
    %c4 = arith.constant 4 : index
    %7 = vector.load %arg12[%c0_8, %c4] : memref<128x196xbf16, #tpu.memory_space<vmem>>, vector<128x4xbf16>
    tpu.vector_store %arg12[%c0_8, %c4], %6 {strides = array<i32>} : memref<128x196xbf16, #tpu.memory_space<vmem>>, vector<128x4xbf16>,
    %c0_9 = arith.constant 0 : index
    %c0_10 = arith.constant 0 : index
    %c1 = arith.constant 1 : index
    %c0_11 = arith.constant 0 : index
    %8 = vector.load %arg1[%c0_9, %c0_10, %c1, %c0_11] : memref<1x44x19x4xbf16, #tpu.memory_space<vmem>>, vector<1x8x16x4xbf16>
    %9 = vector.shape_cast %8 : vector<1x8x16x4xbf16> to vector<8x16x4xbf16>
    %10 = vector.shape_cast %9 : vector<8x16x4xbf16> to vector<128x4xbf16>
    %c0_12 = arith.constant 0 : index
    %c8 = arith.constant 8 : index
    %11 = vector.load %arg12[%c0_12, %c8] : memref<128x196xbf16, #tpu.memory_space<vmem>>, vector<128x4xbf16>
    tpu.vector_store %arg12[%c0_12, %c8], %10 {strides = array<i32>} : memref<128x196xbf16, #tpu.memory_space<vmem>>, vector<128x4xbf16>,
    %c0_13 = arith.constant 0 : index
    %c11_14 = arith.constant 11 : index
    %c1_15 = arith.constant 1 : index
    %c0_16 = arith.constant 0 : index
    %12 = vector.load %arg1[%c0_13, %c11_14, %c1_15, %c0_16] : memref<1x44x19x4xbf16, #tpu.memory_space<vmem>>, vector<1x8x16x4xbf16>
    %13 = vector.shape_cast %12 : vector<1x8x16x4xbf16> to vector<8x16x4xbf16>
    %14 = vector.shape_cast %13 : vector<8x16x4xbf16> to vector<128x4xbf16>
    %c0_17 = arith.constant 0 : index
    %c12 = arith.constant 12 : index
    %15 = vector.load %arg12[%c0_17, %c12] : memref<128x196xbf16, #tpu.memory_space<vmem>>, vector<128x4xbf16>
    tpu.vector_store %arg12[%c0_17, %c12], %14 {strides = array<i32>} : memref<128x196xbf16, #tpu.memory_space<vmem>>, vector<128x4xbf16>,
    %c0_18 = arith.constant 0 : index
    %c0_19 = arith.constant 0 : index
    %c2 = arith.constant 2 : index
    %c0_20 = arith.constant 0 : index
    %16 = vector.load %arg1[%c0_18, %c0_19, %c2, %c0_20] : memref<1x44x19x4xbf16, #tpu.memory_space<vmem>>, vector<1x8x16x4xbf16>
    %17 = vector.shape_cast %16 : vector<1x8x16x4xbf16> to vector<8x16x4xbf16>
    %18 = vector.shape_cast %17 : vector<8x16x4xbf16> to vector<128x4xbf16>
    %c0_21 = arith.constant 0 : index
    %c16 = arith.constant 16 : index
    %19 = vector.load %arg12[%c0_21, %c16] : memref<128x196xbf16, #tpu.memory_space<vmem>>, vector<128x4xbf16>
    tpu.vector_store %arg12[%c0_21, %c16], %18 {strides = array<i32>} : memref<128x196xbf16, #tpu.memory_space<vmem>>, vector<128x4xbf16>,
    %c0_22 = arith.constant 0 : index
    %c11_23 = arith.constant 11 : index
    %c2_24 = arith.constant 2 : index
    %c0_25 = arith.constant 0 : index
    %20 = vector.load %arg1[%c0_22, %c11_23, %c2_24, %c0_25] : memref<1x44x19x4xbf16, #tpu.memory_space<vmem>>, vector<1x8x16x4xbf16>
    %21 = vector.shape_cast %20 : vector<1x8x16x4xbf16> to vector<8x16x4xbf16>
    %22 = vector.shape_cast %21 : vector<8x16x4xbf16> to vector<128x4xbf16>
    %c0_26 = arith.constant 0 : index
    %c20 = arith.constant 20 : index
    %23 = vector.load %arg12[%c0_26, %c20] : memref<128x196xbf16, #tpu.memory_space<vmem>>, vector<128x4xbf16>
    tpu.vector_store %arg12[%c0_26, %c20], %22 {strides = array<i32>} : memref<128x196xbf16, #tpu.memory_space<vmem>>, vector<128x4xbf16>,
    %c0_27 = arith.constant 0 : index
    %c0_28 = arith.constant 0 : index
    %c3 = arith.constant 3 : index
    %c0_29 = arith.constant 0 : index
    %24 = vector.load %arg1[%c0_27, %c0_28, %c3, %c0_29] : memref<1x44x19x4xbf16, #tpu.memory_space<vmem>>, vector<1x8x16x4xbf16>
    %25 = vector.shape_cast %24 : vector<1x8x16x4xbf16> to vector<8x16x4xbf16>
    %26 = vector.shape_cast %25 : vector<8x16x4xbf16> to vector<128x4xbf16>
    %c0_30 = arith.constant 0 : index
    %c24 = arith.constant 24 : index
    %27 = vector.load %arg12[%c0_30, %c24] : memref<128x196xbf16, #tpu.memory_space<vmem>>, vector<128x4xbf16>
    tpu.vector_store %arg12[%c0_30, %c24], %26 {strides = array<i32>} : memref<128x196xbf16, #tpu.memory_space<vmem>>, vector<128x4xbf16>,
    %c0_31 = arith.constant 0 : index
    %c22 = arith.constant 22 : index
    %c0_32 = arith.constant 0 : index
    %c0_33 = arith.constant 0 : index
    %28 = vector.load %arg1[%c0_31, %c22, %c0_32, %c0_33] : memref<1x44x19x4xbf16, #tpu.memory_space<vmem>>, vector<1x8x16x4xbf16>
    %29 = vector.shape_cast %28 : vector<1x8x16x4xbf16> to vector<8x16x4xbf16>
    %30 = vector.shape_cast %29 : vector<8x16x4xbf16> to vector<128x4xbf16>
    %c0_34 = arith.constant 0 : index
    %c28 = arith.constant 28 : index
    %31 = vector.load %arg12[%c0_34, %c28] : memref<128x196xbf16, #tpu.memory_space<vmem>>, vector<128x4xbf16>
    tpu.vector_store %arg12[%c0_34, %c28], %30 {strides = array<i32>} : memref<128x196xbf16, #tpu.memory_space<vmem>>, vector<128x4xbf16>,
    %c0_35 = arith.constant 0 : index
    %c33 = arith.constant 33 : index
    %c0_36 = arith.constant 0 : index
    %c0_37 = arith.constant 0 : index
    %32 = vector.load %arg1[%c0_35, %c33, %c0_36, %c0_37] : memref<1x44x19x4xbf16, #tpu.memory_space<vmem>>, vector<1x8x16x4xbf16>
    %33 = vector.shape_cast %32 : vector<1x8x16x4xbf16> to vector<8x16x4xbf16>
    %34 = vector.shape_cast %33 : vector<8x16x4xbf16> to vector<128x4xbf16>
    %c0_38 = arith.constant 0 : index
    %c32 = arith.constant 32 : index
    %35 = vector.load %arg12[%c0_38, %c32] : memref<128x196xbf16, #tpu.memory_space<vmem>>, vector<128x4xbf16>
    tpu.vector_store %arg12[%c0_38, %c32], %34 {strides = array<i32>} : memref<128x196xbf16, #tpu.memory_space<vmem>>, vector<128x4xbf16>,
    %c0_39 = arith.constant 0 : index
    %c22_40 = arith.constant 22 : index
    %c1_41 = arith.constant 1 : index
    %c0_42 = arith.constant 0 : index
    %36 = vector.load %arg1[%c0_39, %c22_40, %c1_41, %c0_42] : memref<1x44x19x4xbf16, #tpu.memory_space<vmem>>, vector<1x8x16x4xbf16>
    %37 = vector.shape_cast %36 : vector<1x8x16x4xbf16> to vector<8x16x4xbf16>
    %38 = vector.shape_cast %37 : vector<8x16x4xbf16> to vector<128x4xbf16>
    %c0_43 = arith.constant 0 : index
    %c36 = arith.constant 36 : index
    %39 = vector.load %arg12[%c0_43, %c36] : memref<128x196xbf16, #tpu.memory_space<vmem>>, vector<128x4xbf16>
    tpu.vector_store %arg12[%c0_43, %c36], %38 {strides = array<i32>} : memref<128x196xbf16, #tpu.memory_space<vmem>>, vector<128x4xbf16>,
    %c0_44 = arith.constant 0 : index
    %c33_45 = arith.constant 33 : index
    %c1_46 = arith.constant 1 : index
    %c0_47 = arith.constant 0 : index
    %40 = vector.load %arg1[%c0_44, %c33_45, %c1_46, %c0_47] : memref<1x44x19x4xbf16, #tpu.memory_space<vmem>>, vector<1x8x16x4xbf16>
    %41 = vector.shape_cast %40 : vector<1x8x16x4xbf16> to vector<8x16x4xbf16>
    %42 = vector.shape_cast %41 : vector<8x16x4xbf16> to vector<128x4xbf16>
    %c0_48 = arith.constant 0 : index
    %c40 = arith.constant 40 : index
    %43 = vector.load %arg12[%c0_48, %c40] : memref<128x196xbf16, #tpu.memory_space<vmem>>, vector<128x4xbf16>
    tpu.vector_store %arg12[%c0_48, %c40], %42 {strides = array<i32>} : memref<128x196xbf16, #tpu.memory_space<vmem>>, vector<128x4xbf16>,
    %c0_49 = arith.constant 0 : index
    %c22_50 = arith.constant 22 : index
    %c2_51 = arith.constant 2 : index
    %c0_52 = arith.constant 0 : index
    %44 = vector.load %arg1[%c0_49, %c22_50, %c2_51, %c0_52] : memref<1x44x19x4xbf16, #tpu.memory_space<vmem>>, vector<1x8x16x4xbf16>
    %45 = vector.shape_cast %44 : vector<1x8x16x4xbf16> to vector<8x16x4xbf16>
    %46 = vector.shape_cast %45 : vector<8x16x4xbf16> to vector<128x4xbf16>
    %c0_53 = arith.constant 0 : index
    %c44 = arith.constant 44 : index
    %47 = vector.load %arg12[%c0_53, %c44] : memref<128x196xbf16, #tpu.memory_space<vmem>>, vector<128x4xbf16>
    tpu.vector_store %arg12[%c0_53, %c44], %46 {strides = array<i32>} : memref<128x196xbf16, #tpu.memory_space<vmem>>, vector<128x4xbf16>,
    %c0_54 = arith.constant 0 : index
    %c33_55 = arith.constant 33 : index
    %c2_56 = arith.constant 2 : index
    %c0_57 = arith.constant 0 : index
    %48 = vector.load %arg1[%c0_54, %c33_55, %c2_56, %c0_57] : memref<1x44x19x4xbf16, #tpu.memory_space<vmem>>, vector<1x8x16x4xbf16>
    %49 = vector.shape_cast %48 : vector<1x8x16x4xbf16> to vector<8x16x4xbf16>
    %50 = vector.shape_cast %49 : vector<8x16x4xbf16> to vector<128x4xbf16>
    %c0_58 = arith.constant 0 : index
    %c48 = arith.constant 48 : index
    %51 = vector.load %arg12[%c0_58, %c48] : memref<128x196xbf16, #tpu.memory_space<vmem>>, vector<128x4xbf16>
    tpu.vector_store %arg12[%c0_58, %c48], %50 {strides = array<i32>} : memref<128x196xbf16, #tpu.memory_space<vmem>>, vector<128x4xbf16>,
    %c0_59 = arith.constant 0 : index
    %c22_60 = arith.constant 22 : index
    %c3_61 = arith.constant 3 : index
    %c0_62 = arith.constant 0 : index
    %52 = vector.load %arg1[%c0_59, %c22_60, %c3_61, %c0_62] : memref<1x44x19x4xbf16, #tpu.memory_space<vmem>>, vector<1x8x16x4xbf16>
    %53 = vector.shape_cast %52 : vector<1x8x16x4xbf16> to vector<8x16x4xbf16>
    %54 = vector.shape_cast %53 : vector<8x16x4xbf16> to vector<128x4xbf16>
    %c0_63 = arith.constant 0 : index
    %c52 = arith.constant 52 : index
    %55 = vector.load %arg12[%c0_63, %c52] : memref<128x196xbf16, #tpu.memory_space<vmem>>, vector<128x4xbf16>
    tpu.vector_store %arg12[%c0_63, %c52], %54 {strides = array<i32>} : memref<128x196xbf16, #tpu.memory_space<vmem>>, vector<128x4xbf16>,
    %c0_64 = arith.constant 0 : index
    %c1_65 = arith.constant 1 : index
    %c0_66 = arith.constant 0 : index
    %c0_67 = arith.constant 0 : index
    %56 = vector.load %arg1[%c0_64, %c1_65, %c0_66, %c0_67] : memref<1x44x19x4xbf16, #tpu.memory_space<vmem>>, vector<1x8x16x4xbf16>
    %57 = vector.shape_cast %56 : vector<1x8x16x4xbf16> to vector<8x16x4xbf16>
    %58 = vector.shape_cast %57 : vector<8x16x4xbf16> to vector<128x4xbf16>
    %c0_68 = arith.constant 0 : index
    %c56 = arith.constant 56 : index
    %59 = vector.load %arg12[%c0_68, %c56] : memref<128x196xbf16, #tpu.memory_space<vmem>>, vector<128x4xbf16>
    tpu.vector_store %arg12[%c0_68, %c56], %58 {strides = array<i32>} : memref<128x196xbf16, #tpu.memory_space<vmem>>, vector<128x4xbf16>,
    %c0_69 = arith.constant 0 : index
    %c12_70 = arith.constant 12 : index
    %c0_71 = arith.constant 0 : index
    %c0_72 = arith.constant 0 : index
    %60 = vector.load %arg1[%c0_69, %c12_70, %c0_71, %c0_72] : memref<1x44x19x4xbf16, #tpu.memory_space<vmem>>, vector<1x8x16x4xbf16>
    %61 = vector.shape_cast %60 : vector<1x8x16x4xbf16> to vector<8x16x4xbf16>
    %62 = vector.shape_cast %61 : vector<8x16x4xbf16> to vector<128x4xbf16>
    %c0_73 = arith.constant 0 : index
    %c60 = arith.constant 60 : index
    %63 = vector.load %arg12[%c0_73, %c60] : memref<128x196xbf16, #tpu.memory_space<vmem>>, vector<128x4xbf16>
    tpu.vector_store %arg12[%c0_73, %c60], %62 {strides = array<i32>} : memref<128x196xbf16, #tpu.memory_space<vmem>>, vector<128x4xbf16>,
    %c0_74 = arith.constant 0 : index
    %c1_75 = arith.constant 1 : index
    %c1_76 = arith.constant 1 : index
    %c0_77 = arith.constant 0 : index
    %64 = vector.load %arg1[%c0_74, %c1_75, %c1_76, %c0_77] : memref<1x44x19x4xbf16, #tpu.memory_space<vmem>>, vector<1x8x16x4xbf16>
    %65 = vector.shape_cast %64 : vector<1x8x16x4xbf16> to vector<8x16x4xbf16>
    %66 = vector.shape_cast %65 : vector<8x16x4xbf16> to vector<128x4xbf16>
    %c0_78 = arith.constant 0 : index
    %c64 = arith.constant 64 : index
    %67 = vector.load %arg12[%c0_78, %c64] : memref<128x196xbf16, #tpu.memory_space<vmem>>, vector<128x4xbf16>
    tpu.vector_store %arg12[%c0_78, %c64], %66 {strides = array<i32>} : memref<128x196xbf16, #tpu.memory_space<vmem>>, vector<128x4xbf16>,
    %c0_79 = arith.constant 0 : index
    %c12_80 = arith.constant 12 : index
    %c1_81 = arith.constant 1 : index
    %c0_82 = arith.constant 0 : index
    %68 = vector.load %arg1[%c0_79, %c12_80, %c1_81, %c0_82] : memref<1x44x19x4xbf16, #tpu.memory_space<vmem>>, vector<1x8x16x4xbf16>
    %69 = vector.shape_cast %68 : vector<1x8x16x4xbf16> to vector<8x16x4xbf16>
    %70 = vector.shape_cast %69 : vector<8x16x4xbf16> to vector<128x4xbf16>
    %c0_83 = arith.constant 0 : index
    %c68 = arith.constant 68 : index
    %71 = vector.load %arg12[%c0_83, %c68] : memref<128x196xbf16, #tpu.memory_space<vmem>>, vector<128x4xbf16>
    tpu.vector_store %arg12[%c0_83, %c68], %70 {strides = array<i32>} : memref<128x196xbf16, #tpu.memory_space<vmem>>, vector<128x4xbf16>,
    %c0_84 = arith.constant 0 : index
    %c1_85 = arith.constant 1 : index
    %c2_86 = arith.constant 2 : index
    %c0_87 = arith.constant 0 : index
    %72 = vector.load %arg1[%c0_84, %c1_85, %c2_86, %c0_87] : memref<1x44x19x4xbf16, #tpu.memory_space<vmem>>, vector<1x8x16x4xbf16>
    %73 = vector.shape_cast %72 : vector<1x8x16x4xbf16> to vector<8x16x4xbf16>
    %74 = vector.shape_cast %73 : vector<8x16x4xbf16> to vector<128x4xbf16>
    %c0_88 = arith.constant 0 : index
    %c72 = arith.constant 72 : index
    %75 = vector.load %arg12[%c0_88, %c72] : memref<128x196xbf16, #tpu.memory_space<vmem>>, vector<128x4xbf16>
    tpu.vector_store %arg12[%c0_88, %c72], %74 {strides = array<i32>} : memref<128x196xbf16, #tpu.memory_space<vmem>>, vector<128x4xbf16>,
    %c0_89 = arith.constant 0 : index
    %c12_90 = arith.constant 12 : index
    %c2_91 = arith.constant 2 : index
    %c0_92 = arith.constant 0 : index
    %76 = vector.load %arg1[%c0_89, %c12_90, %c2_91, %c0_92] : memref<1x44x19x4xbf16, #tpu.memory_space<vmem>>, vector<1x8x16x4xbf16>
    %77 = vector.shape_cast %76 : vector<1x8x16x4xbf16> to vector<8x16x4xbf16>
    %78 = vector.shape_cast %77 : vector<8x16x4xbf16> to vector<128x4xbf16>
    %c0_93 = arith.constant 0 : index
    %c76 = arith.constant 76 : index
    %79 = vector.load %arg12[%c0_93, %c76] : memref<128x196xbf16, #tpu.memory_space<vmem>>, vector<128x4xbf16>
    tpu.vector_store %arg12[%c0_93, %c76], %78 {strides = array<i32>} : memref<128x196xbf16, #tpu.memory_space<vmem>>, vector<128x4xbf16>,
    %c0_94 = arith.constant 0 : index
    %c1_95 = arith.constant 1 : index
    %c3_96 = arith.constant 3 : index
    %c0_97 = arith.constant 0 : index
    %80 = vector.load %arg1[%c0_94, %c1_95, %c3_96, %c0_97] : memref<1x44x19x4xbf16, #tpu.memory_space<vmem>>, vector<1x8x16x4xbf16>
    %81 = vector.shape_cast %80 : vector<1x8x16x4xbf16> to vector<8x16x4xbf16>
    %82 = vector.shape_cast %81 : vector<8x16x4xbf16> to vector<128x4xbf16>
    %c0_98 = arith.constant 0 : index
    %c80 = arith.constant 80 : index
    %83 = vector.load %arg12[%c0_98, %c80] : memref<128x196xbf16, #tpu.memory_space<vmem>>, vector<128x4xbf16>
    tpu.vector_store %arg12[%c0_98, %c80], %82 {strides = array<i32>} : memref<128x196xbf16, #tpu.memory_space<vmem>>, vector<128x4xbf16>,
    %c0_99 = arith.constant 0 : index
    %c23 = arith.constant 23 : index
    %c0_100 = arith.constant 0 : index
    %c0_101 = arith.constant 0 : index
    %84 = vector.load %arg1[%c0_99, %c23, %c0_100, %c0_101] : memref<1x44x19x4xbf16, #tpu.memory_space<vmem>>, vector<1x8x16x4xbf16>
    %85 = vector.shape_cast %84 : vector<1x8x16x4xbf16> to vector<8x16x4xbf16>
    %86 = vector.shape_cast %85 : vector<8x16x4xbf16> to vector<128x4xbf16>
    %c0_102 = arith.constant 0 : index
    %c84 = arith.constant 84 : index
    %87 = vector.load %arg12[%c0_102, %c84] : memref<128x196xbf16, #tpu.memory_space<vmem>>, vector<128x4xbf16>
    tpu.vector_store %arg12[%c0_102, %c84], %86 {strides = array<i32>} : memref<128x196xbf16, #tpu.memory_space<vmem>>, vector<128x4xbf16>,
    %c0_103 = arith.constant 0 : index
    %c34 = arith.constant 34 : index
    %c0_104 = arith.constant 0 : index
    %c0_105 = arith.constant 0 : index
    %88 = vector.load %arg1[%c0_103, %c34, %c0_104, %c0_105] : memref<1x44x19x4xbf16, #tpu.memory_space<vmem>>, vector<1x8x16x4xbf16>
    %89 = vector.shape_cast %88 : vector<1x8x16x4xbf16> to vector<8x16x4xbf16>
    %90 = vector.shape_cast %89 : vector<8x16x4xbf16> to vector<128x4xbf16>
    %c0_106 = arith.constant 0 : index
    %c88 = arith.constant 88 : index
    %91 = vector.load %arg12[%c0_106, %c88] : memref<128x196xbf16, #tpu.memory_space<vmem>>, vector<128x4xbf16>
    tpu.vector_store %arg12[%c0_106, %c88], %90 {strides = array<i32>} : memref<128x196xbf16, #tpu.memory_space<vmem>>, vector<128x4xbf16>,
    %c0_107 = arith.constant 0 : index
    %c23_108 = arith.constant 23 : index
    %c1_109 = arith.constant 1 : index
    %c0_110 = arith.constant 0 : index
    %92 = vector.load %arg1[%c0_107, %c23_108, %c1_109, %c0_110] : memref<1x44x19x4xbf16, #tpu.memory_space<vmem>>, vector<1x8x16x4xbf16>
    %93 = vector.shape_cast %92 : vector<1x8x16x4xbf16> to vector<8x16x4xbf16>
    %94 = vector.shape_cast %93 : vector<8x16x4xbf16> to vector<128x4xbf16>
    %c0_111 = arith.constant 0 : index
    %c92 = arith.constant 92 : index
    %95 = vector.load %arg12[%c0_111, %c92] : memref<128x196xbf16, #tpu.memory_space<vmem>>, vector<128x4xbf16>
    tpu.vector_store %arg12[%c0_111, %c92], %94 {strides = array<i32>} : memref<128x196xbf16, #tpu.memory_space<vmem>>, vector<128x4xbf16>,
    %c0_112 = arith.constant 0 : index
    %c34_113 = arith.constant 34 : index
    %c1_114 = arith.constant 1 : index
    %c0_115 = arith.constant 0 : index
    %96 = vector.load %arg1[%c0_112, %c34_113, %c1_114, %c0_115] : memref<1x44x19x4xbf16, #tpu.memory_space<vmem>>, vector<1x8x16x4xbf16>
    %97 = vector.shape_cast %96 : vector<1x8x16x4xbf16> to vector<8x16x4xbf16>
    %98 = vector.shape_cast %97 : vector<8x16x4xbf16> to vector<128x4xbf16>
    %c0_116 = arith.constant 0 : index
    %c96 = arith.constant 96 : index
    %99 = vector.load %arg12[%c0_116, %c96] : memref<128x196xbf16, #tpu.memory_space<vmem>>, vector<128x4xbf16>
    tpu.vector_store %arg12[%c0_116, %c96], %98 {strides = array<i32>} : memref<128x196xbf16, #tpu.memory_space<vmem>>, vector<128x4xbf16>,
    %c0_117 = arith.constant 0 : index
    %c23_118 = arith.constant 23 : index
    %c2_119 = arith.constant 2 : index
    %c0_120 = arith.constant 0 : index
    %100 = vector.load %arg1[%c0_117, %c23_118, %c2_119, %c0_120] : memref<1x44x19x4xbf16, #tpu.memory_space<vmem>>, vector<1x8x16x4xbf16>
    %101 = vector.shape_cast %100 : vector<1x8x16x4xbf16> to vector<8x16x4xbf16>
    %102 = vector.shape_cast %101 : vector<8x16x4xbf16> to vector<128x4xbf16>
    %c0_121 = arith.constant 0 : index
    %c100 = arith.constant 100 : index
    %103 = vector.load %arg12[%c0_121, %c100] : memref<128x196xbf16, #tpu.memory_space<vmem>>, vector<128x4xbf16>
    tpu.vector_store %arg12[%c0_121, %c100], %102 {strides = array<i32>} : memref<128x196xbf16, #tpu.memory_space<vmem>>, vector<128x4xbf16>,
    %c0_122 = arith.constant 0 : index
    %c34_123 = arith.constant 34 : index
    %c2_124 = arith.constant 2 : index
    %c0_125 = arith.constant 0 : index
    %104 = vector.load %arg1[%c0_122, %c34_123, %c2_124, %c0_125] : memref<1x44x19x4xbf16, #tpu.memory_space<vmem>>, vector<1x8x16x4xbf16>
    %105 = vector.shape_cast %104 : vector<1x8x16x4xbf16> to vector<8x16x4xbf16>
    %106 = vector.shape_cast %105 : vector<8x16x4xbf16> to vector<128x4xbf16>
    %c0_126 = arith.constant 0 : index
    %c104 = arith.constant 104 : index
    %107 = vector.load %arg12[%c0_126, %c104] : memref<128x196xbf16, #tpu.memory_space<vmem>>, vector<128x4xbf16>
    tpu.vector_store %arg12[%c0_126, %c104], %106 {strides = array<i32>} : memref<128x196xbf16, #tpu.memory_space<vmem>>, vector<128x4xbf16>,
    %c0_127 = arith.constant 0 : index
    %c23_128 = arith.constant 23 : index
    %c3_129 = arith.constant 3 : index
    %c0_130 = arith.constant 0 : index
    %108 = vector.load %arg1[%c0_127, %c23_128, %c3_129, %c0_130] : memref<1x44x19x4xbf16, #tpu.memory_space<vmem>>, vector<1x8x16x4xbf16>
    %109 = vector.shape_cast %108 : vector<1x8x16x4xbf16> to vector<8x16x4xbf16>
    %110 = vector.shape_cast %109 : vector<8x16x4xbf16> to vector<128x4xbf16>
    %c0_131 = arith.constant 0 : index
    %c108 = arith.constant 108 : index
    %111 = vector.load %arg12[%c0_131, %c108] : memref<128x196xbf16, #tpu.memory_space<vmem>>, vector<128x4xbf16>
    tpu.vector_store %arg12[%c0_131, %c108], %110 {strides = array<i32>} : memref<128x196xbf16, #tpu.memory_space<vmem>>, vector<128x4xbf16>,
    %c0_132 = arith.constant 0 : index
    %c2_133 = arith.constant 2 : index
    %c0_134 = arith.constant 0 : index
    %c0_135 = arith.constant 0 : index
    %112 = vector.load %arg1[%c0_132, %c2_133, %c0_134, %c0_135] : memref<1x44x19x4xbf16, #tpu.memory_space<vmem>>, vector<1x8x16x4xbf16>
    %113 = vector.shape_cast %112 : vector<1x8x16x4xbf16> to vector<8x16x4xbf16>
    %114 = vector.shape_cast %113 : vector<8x16x4xbf16> to vector<128x4xbf16>
    %c0_136 = arith.constant 0 : index
    %c112 = arith.constant 112 : index
    %115 = vector.load %arg12[%c0_136, %c112] : memref<128x196xbf16, #tpu.memory_space<vmem>>, vector<128x4xbf16>
    tpu.vector_store %arg12[%c0_136, %c112], %114 {strides = array<i32>} : memref<128x196xbf16, #tpu.memory_space<vmem>>, vector<128x4xbf16>,
    %c0_137 = arith.constant 0 : index
    %c13 = arith.constant 13 : index
    %c0_138 = arith.constant 0 : index
    %c0_139 = arith.constant 0 : index
    %116 = vector.load %arg1[%c0_137, %c13, %c0_138, %c0_139] : memref<1x44x19x4xbf16, #tpu.memory_space<vmem>>, vector<1x8x16x4xbf16>
    %117 = vector.shape_cast %116 : vector<1x8x16x4xbf16> to vector<8x16x4xbf16>
    %118 = vector.shape_cast %117 : vector<8x16x4xbf16> to vector<128x4xbf16>
    %c0_140 = arith.constant 0 : index
    %c116 = arith.constant 116 : index
    %119 = vector.load %arg12[%c0_140, %c116] : memref<128x196xbf16, #tpu.memory_space<vmem>>, vector<128x4xbf16>
    tpu.vector_store %arg12[%c0_140, %c116], %118 {strides = array<i32>} : memref<128x196xbf16, #tpu.memory_space<vmem>>, vector<128x4xbf16>,
    %c0_141 = arith.constant 0 : index
    %c2_142 = arith.constant 2 : index
    %c1_143 = arith.constant 1 : index
    %c0_144 = arith.constant 0 : index
    %120 = vector.load %arg1[%c0_141, %c2_142, %c1_143, %c0_144] : memref<1x44x19x4xbf16, #tpu.memory_space<vmem>>, vector<1x8x16x4xbf16>
    %121 = vector.shape_cast %120 : vector<1x8x16x4xbf16> to vector<8x16x4xbf16>
    %122 = vector.shape_cast %121 : vector<8x16x4xbf16> to vector<128x4xbf16>
    %c0_145 = arith.constant 0 : index
    %c120 = arith.constant 120 : index
    %123 = vector.load %arg12[%c0_145, %c120] : memref<128x196xbf16, #tpu.memory_space<vmem>>, vector<128x4xbf16>
    tpu.vector_store %arg12[%c0_145, %c120], %122 {strides = array<i32>} : memref<128x196xbf16, #tpu.memory_space<vmem>>, vector<128x4xbf16>,
    %c0_146 = arith.constant 0 : index
    %c13_147 = arith.constant 13 : index
    %c1_148 = arith.constant 1 : index
    %c0_149 = arith.constant 0 : index
    %124 = vector.load %arg1[%c0_146, %c13_147, %c1_148, %c0_149] : memref<1x44x19x4xbf16, #tpu.memory_space<vmem>>, vector<1x8x16x4xbf16>
    %125 = vector.shape_cast %124 : vector<1x8x16x4xbf16> to vector<8x16x4xbf16>
    %126 = vector.shape_cast %125 : vector<8x16x4xbf16> to vector<128x4xbf16>
    %c0_150 = arith.constant 0 : index
    %c124 = arith.constant 124 : index
    %127 = vector.load %arg12[%c0_150, %c124] : memref<128x196xbf16, #tpu.memory_space<vmem>>, vector<128x4xbf16>
    tpu.vector_store %arg12[%c0_150, %c124], %126 {strides = array<i32>} : memref<128x196xbf16, #tpu.memory_space<vmem>>, vector<128x4xbf16>,
    %c0_151 = arith.constant 0 : index
    %c2_152 = arith.constant 2 : index
    %c2_153 = arith.constant 2 : index
    %c0_154 = arith.constant 0 : index
    %128 = vector.load %arg1[%c0_151, %c2_152, %c2_153, %c0_154] : memref<1x44x19x4xbf16, #tpu.memory_space<vmem>>, vector<1x8x16x4xbf16>
    %129 = vector.shape_cast %128 : vector<1x8x16x4xbf16> to vector<8x16x4xbf16>
    %130 = vector.shape_cast %129 : vector<8x16x4xbf16> to vector<128x4xbf16>
    %c0_155 = arith.constant 0 : index
    %c128 = arith.constant 128 : index
    %131 = vector.load %arg12[%c0_155, %c128] : memref<128x196xbf16, #tpu.memory_space<vmem>>, vector<128x4xbf16>
    tpu.vector_store %arg12[%c0_155, %c128], %130 {strides = array<i32>} : memref<128x196xbf16, #tpu.memory_space<vmem>>, vector<128x4xbf16>,
    %c0_156 = arith.constant 0 : index
    %c13_157 = arith.constant 13 : index
    %c2_158 = arith.constant 2 : index
    %c0_159 = arith.constant 0 : index
    %132 = vector.load %arg1[%c0_156, %c13_157, %c2_158, %c0_159] : memref<1x44x19x4xbf16, #tpu.memory_space<vmem>>, vector<1x8x16x4xbf16>
    %133 = vector.shape_cast %132 : vector<1x8x16x4xbf16> to vector<8x16x4xbf16>
    %134 = vector.shape_cast %133 : vector<8x16x4xbf16> to vector<128x4xbf16>
    %c0_160 = arith.constant 0 : index
    %c132 = arith.constant 132 : index
    %135 = vector.load %arg12[%c0_160, %c132] : memref<128x196xbf16, #tpu.memory_space<vmem>>, vector<128x4xbf16>
    tpu.vector_store %arg12[%c0_160, %c132], %134 {strides = array<i32>} : memref<128x196xbf16, #tpu.memory_space<vmem>>, vector<128x4xbf16>,
    %c0_161 = arith.constant 0 : index
    %c2_162 = arith.constant 2 : index
    %c3_163 = arith.constant 3 : index
    %c0_164 = arith.constant 0 : index
    %136 = vector.load %arg1[%c0_161, %c2_162, %c3_163, %c0_164] : memref<1x44x19x4xbf16, #tpu.memory_space<vmem>>, vector<1x8x16x4xbf16>
    %137 = vector.shape_cast %136 : vector<1x8x16x4xbf16> to vector<8x16x4xbf16>
    %138 = vector.shape_cast %137 : vector<8x16x4xbf16> to vector<128x4xbf16>
    %c0_165 = arith.constant 0 : index
    %c136 = arith.constant 136 : index
    %139 = vector.load %arg12[%c0_165, %c136] : memref<128x196xbf16, #tpu.memory_space<vmem>>, vector<128x4xbf16>
    tpu.vector_store %arg12[%c0_165, %c136], %138 {strides = array<i32>} : memref<128x196xbf16, #tpu.memory_space<vmem>>, vector<128x4xbf16>,
    %c0_166 = arith.constant 0 : index
    %c24_167 = arith.constant 24 : index
    %c0_168 = arith.constant 0 : index
    %c0_169 = arith.constant 0 : index
    %140 = vector.load %arg1[%c0_166, %c24_167, %c0_168, %c0_169] : memref<1x44x19x4xbf16, #tpu.memory_space<vmem>>, vector<1x8x16x4xbf16>
    %141 = vector.shape_cast %140 : vector<1x8x16x4xbf16> to vector<8x16x4xbf16>
    %142 = vector.shape_cast %141 : vector<8x16x4xbf16> to vector<128x4xbf16>
    %c0_170 = arith.constant 0 : index
    %c140 = arith.constant 140 : index
    %143 = vector.load %arg12[%c0_170, %c140] : memref<128x196xbf16, #tpu.memory_space<vmem>>, vector<128x4xbf16>
    tpu.vector_store %arg12[%c0_170, %c140], %142 {strides = array<i32>} : memref<128x196xbf16, #tpu.memory_space<vmem>>, vector<128x4xbf16>,
    %c0_171 = arith.constant 0 : index
    %c35 = arith.constant 35 : index
    %c0_172 = arith.constant 0 : index
    %c0_173 = arith.constant 0 : index
    %144 = vector.load %arg1[%c0_171, %c35, %c0_172, %c0_173] : memref<1x44x19x4xbf16, #tpu.memory_space<vmem>>, vector<1x8x16x4xbf16>
    %145 = vector.shape_cast %144 : vector<1x8x16x4xbf16> to vector<8x16x4xbf16>
    %146 = vector.shape_cast %145 : vector<8x16x4xbf16> to vector<128x4xbf16>
    %c0_174 = arith.constant 0 : index
    %c144 = arith.constant 144 : index
    %147 = vector.load %arg12[%c0_174, %c144] : memref<128x196xbf16, #tpu.memory_space<vmem>>, vector<128x4xbf16>
    tpu.vector_store %arg12[%c0_174, %c144], %146 {strides = array<i32>} : memref<128x196xbf16, #tpu.memory_space<vmem>>, vector<128x4xbf16>,
    %c0_175 = arith.constant 0 : index
    %c24_176 = arith.constant 24 : index
    %c1_177 = arith.constant 1 : index
    %c0_178 = arith.constant 0 : index
    %148 = vector.load %arg1[%c0_175, %c24_176, %c1_177, %c0_178] : memref<1x44x19x4xbf16, #tpu.memory_space<vmem>>, vector<1x8x16x4xbf16>
    %149 = vector.shape_cast %148 : vector<1x8x16x4xbf16> to vector<8x16x4xbf16>
    %150 = vector.shape_cast %149 : vector<8x16x4xbf16> to vector<128x4xbf16>
    %c0_179 = arith.constant 0 : index
    %c148 = arith.constant 148 : index
    %151 = vector.load %arg12[%c0_179, %c148] : memref<128x196xbf16, #tpu.memory_space<vmem>>, vector<128x4xbf16>
    tpu.vector_store %arg12[%c0_179, %c148], %150 {strides = array<i32>} : memref<128x196xbf16, #tpu.memory_space<vmem>>, vector<128x4xbf16>,
    %c0_180 = arith.constant 0 : index
    %c35_181 = arith.constant 35 : index
    %c1_182 = arith.constant 1 : index
    %c0_183 = arith.constant 0 : index
    %152 = vector.load %arg1[%c0_180, %c35_181, %c1_182, %c0_183] : memref<1x44x19x4xbf16, #tpu.memory_space<vmem>>, vector<1x8x16x4xbf16>
    %153 = vector.shape_cast %152 : vector<1x8x16x4xbf16> to vector<8x16x4xbf16>
    %154 = vector.shape_cast %153 : vector<8x16x4xbf16> to vector<128x4xbf16>
    %c0_184 = arith.constant 0 : index
    %c152 = arith.constant 152 : index
    %155 = vector.load %arg12[%c0_184, %c152] : memref<128x196xbf16, #tpu.memory_space<vmem>>, vector<128x4xbf16>
    tpu.vector_store %arg12[%c0_184, %c152], %154 {strides = array<i32>} : memref<128x196xbf16, #tpu.memory_space<vmem>>, vector<128x4xbf16>,
    %c0_185 = arith.constant 0 : index
    %c24_186 = arith.constant 24 : index
    %c2_187 = arith.constant 2 : index
    %c0_188 = arith.constant 0 : index
    %156 = vector.load %arg1[%c0_185, %c24_186, %c2_187, %c0_188] : memref<1x44x19x4xbf16, #tpu.memory_space<vmem>>, vector<1x8x16x4xbf16>
    %157 = vector.shape_cast %156 : vector<1x8x16x4xbf16> to vector<8x16x4xbf16>
    %158 = vector.shape_cast %157 : vector<8x16x4xbf16> to vector<128x4xbf16>
    %c0_189 = arith.constant 0 : index
    %c156 = arith.constant 156 : index
    %159 = vector.load %arg12[%c0_189, %c156] : memref<128x196xbf16, #tpu.memory_space<vmem>>, vector<128x4xbf16>
    tpu.vector_store %arg12[%c0_189, %c156], %158 {strides = array<i32>} : memref<128x196xbf16, #tpu.memory_space<vmem>>, vector<128x4xbf16>,
    %c0_190 = arith.constant 0 : index
    %c35_191 = arith.constant 35 : index
    %c2_192 = arith.constant 2 : index
    %c0_193 = arith.constant 0 : index
    %160 = vector.load %arg1[%c0_190, %c35_191, %c2_192, %c0_193] : memref<1x44x19x4xbf16, #tpu.memory_space<vmem>>, vector<1x8x16x4xbf16>
    %161 = vector.shape_cast %160 : vector<1x8x16x4xbf16> to vector<8x16x4xbf16>
    %162 = vector.shape_cast %161 : vector<8x16x4xbf16> to vector<128x4xbf16>
    %c0_194 = arith.constant 0 : index
    %c160 = arith.constant 160 : index
    %163 = vector.load %arg12[%c0_194, %c160] : memref<128x196xbf16, #tpu.memory_space<vmem>>, vector<128x4xbf16>
    tpu.vector_store %arg12[%c0_194, %c160], %162 {strides = array<i32>} : memref<128x196xbf16, #tpu.memory_space<vmem>>, vector<128x4xbf16>,
    %c0_195 = arith.constant 0 : index
    %c24_196 = arith.constant 24 : index
    %c3_197 = arith.constant 3 : index
    %c0_198 = arith.constant 0 : index
    %164 = vector.load %arg1[%c0_195, %c24_196, %c3_197, %c0_198] : memref<1x44x19x4xbf16, #tpu.memory_space<vmem>>, vector<1x8x16x4xbf16>
    %165 = vector.shape_cast %164 : vector<1x8x16x4xbf16> to vector<8x16x4xbf16>
    %166 = vector.shape_cast %165 : vector<8x16x4xbf16> to vector<128x4xbf16>
    %c0_199 = arith.constant 0 : index
    %c164 = arith.constant 164 : index
    %167 = vector.load %arg12[%c0_199, %c164] : memref<128x196xbf16, #tpu.memory_space<vmem>>, vector<128x4xbf16>
    tpu.vector_store %arg12[%c0_199, %c164], %166 {strides = array<i32>} : memref<128x196xbf16, #tpu.memory_space<vmem>>, vector<128x4xbf16>,
    %c0_200 = arith.constant 0 : index
    %c3_201 = arith.constant 3 : index
    %c0_202 = arith.constant 0 : index
    %c0_203 = arith.constant 0 : index
    %168 = vector.load %arg1[%c0_200, %c3_201, %c0_202, %c0_203] : memref<1x44x19x4xbf16, #tpu.memory_space<vmem>>, vector<1x8x16x4xbf16>
    %169 = vector.shape_cast %168 : vector<1x8x16x4xbf16> to vector<8x16x4xbf16>
    %170 = vector.shape_cast %169 : vector<8x16x4xbf16> to vector<128x4xbf16>
    %c0_204 = arith.constant 0 : index
    %c168 = arith.constant 168 : index
    %171 = vector.load %arg12[%c0_204, %c168] : memref<128x196xbf16, #tpu.memory_space<vmem>>, vector<128x4xbf16>
    tpu.vector_store %arg12[%c0_204, %c168], %170 {strides = array<i32>} : memref<128x196xbf16, #tpu.memory_space<vmem>>, vector<128x4xbf16>,
    %c0_205 = arith.constant 0 : index
    %c14 = arith.constant 14 : index
    %c0_206 = arith.constant 0 : index
    %c0_207 = arith.constant 0 : index
    %172 = vector.load %arg1[%c0_205, %c14, %c0_206, %c0_207] : memref<1x44x19x4xbf16, #tpu.memory_space<vmem>>, vector<1x8x16x4xbf16>
    %173 = vector.shape_cast %172 : vector<1x8x16x4xbf16> to vector<8x16x4xbf16>
    %174 = vector.shape_cast %173 : vector<8x16x4xbf16> to vector<128x4xbf16>
    %c0_208 = arith.constant 0 : index
    %c172 = arith.constant 172 : index
    %175 = vector.load %arg12[%c0_208, %c172] : memref<128x196xbf16, #tpu.memory_space<vmem>>, vector<128x4xbf16>
    tpu.vector_store %arg12[%c0_208, %c172], %174 {strides = array<i32>} : memref<128x196xbf16, #tpu.memory_space<vmem>>, vector<128x4xbf16>,
    %c0_209 = arith.constant 0 : index
    %c3_210 = arith.constant 3 : index
    %c1_211 = arith.constant 1 : index
    %c0_212 = arith.constant 0 : index
    %176 = vector.load %arg1[%c0_209, %c3_210, %c1_211, %c0_212] : memref<1x44x19x4xbf16, #tpu.memory_space<vmem>>, vector<1x8x16x4xbf16>
    %177 = vector.shape_cast %176 : vector<1x8x16x4xbf16> to vector<8x16x4xbf16>
    %178 = vector.shape_cast %177 : vector<8x16x4xbf16> to vector<128x4xbf16>
    %c0_213 = arith.constant 0 : index
    %c176 = arith.constant 176 : index
    %179 = vector.load %arg12[%c0_213, %c176] : memref<128x196xbf16, #tpu.memory_space<vmem>>, vector<128x4xbf16>
    tpu.vector_store %arg12[%c0_213, %c176], %178 {strides = array<i32>} : memref<128x196xbf16, #tpu.memory_space<vmem>>, vector<128x4xbf16>,
    %c0_214 = arith.constant 0 : index
    %c14_215 = arith.constant 14 : index
    %c1_216 = arith.constant 1 : index
    %c0_217 = arith.constant 0 : index
    %180 = vector.load %arg1[%c0_214, %c14_215, %c1_216, %c0_217] : memref<1x44x19x4xbf16, #tpu.memory_space<vmem>>, vector<1x8x16x4xbf16>
    %181 = vector.shape_cast %180 : vector<1x8x16x4xbf16> to vector<8x16x4xbf16>
    %182 = vector.shape_cast %181 : vector<8x16x4xbf16> to vector<128x4xbf16>
    %c0_218 = arith.constant 0 : index
    %c180 = arith.constant 180 : index
    %183 = vector.load %arg12[%c0_218, %c180] : memref<128x196xbf16, #tpu.memory_space<vmem>>, vector<128x4xbf16>
    tpu.vector_store %arg12[%c0_218, %c180], %182 {strides = array<i32>} : memref<128x196xbf16, #tpu.memory_space<vmem>>, vector<128x4xbf16>,
    %c0_219 = arith.constant 0 : index
    %c3_220 = arith.constant 3 : index
    %c2_221 = arith.constant 2 : index
    %c0_222 = arith.constant 0 : index
    %184 = vector.load %arg1[%c0_219, %c3_220, %c2_221, %c0_222] : memref<1x44x19x4xbf16, #tpu.memory_space<vmem>>, vector<1x8x16x4xbf16>
    %185 = vector.shape_cast %184 : vector<1x8x16x4xbf16> to vector<8x16x4xbf16>
    %186 = vector.shape_cast %185 : vector<8x16x4xbf16> to vector<128x4xbf16>
    %c0_223 = arith.constant 0 : index
    %c184 = arith.constant 184 : index
    %187 = vector.load %arg12[%c0_223, %c184] : memref<128x196xbf16, #tpu.memory_space<vmem>>, vector<128x4xbf16>
    tpu.vector_store %arg12[%c0_223, %c184], %186 {strides = array<i32>} : memref<128x196xbf16, #tpu.memory_space<vmem>>, vector<128x4xbf16>,
    %c0_224 = arith.constant 0 : index
    %c14_225 = arith.constant 14 : index
    %c2_226 = arith.constant 2 : index
    %c0_227 = arith.constant 0 : index
    %188 = vector.load %arg1[%c0_224, %c14_225, %c2_226, %c0_227] : memref<1x44x19x4xbf16, #tpu.memory_space<vmem>>, vector<1x8x16x4xbf16>
    %189 = vector.shape_cast %188 : vector<1x8x16x4xbf16> to vector<8x16x4xbf16>
    %190 = vector.shape_cast %189 : vector<8x16x4xbf16> to vector<128x4xbf16>
    %c0_228 = arith.constant 0 : index
    %c188 = arith.constant 188 : index
    %191 = vector.load %arg12[%c0_228, %c188] : memref<128x196xbf16, #tpu.memory_space<vmem>>, vector<128x4xbf16>
    tpu.vector_store %arg12[%c0_228, %c188], %190 {strides = array<i32>} : memref<128x196xbf16, #tpu.memory_space<vmem>>, vector<128x4xbf16>,
    %c0_229 = arith.constant 0 : index
    %c3_230 = arith.constant 3 : index
    %c3_231 = arith.constant 3 : index
    %c0_232 = arith.constant 0 : index
    %192 = vector.load %arg1[%c0_229, %c3_230, %c3_231, %c0_232] : memref<1x44x19x4xbf16, #tpu.memory_space<vmem>>, vector<1x8x16x4xbf16>
    %193 = vector.shape_cast %192 : vector<1x8x16x4xbf16> to vector<8x16x4xbf16>
    %194 = vector.shape_cast %193 : vector<8x16x4xbf16> to vector<128x4xbf16>
    %c0_233 = arith.constant 0 : index
    %c192 = arith.constant 192 : index
    %195 = vector.load %arg12[%c0_233, %c192] : memref<128x196xbf16, #tpu.memory_space<vmem>>, vector<128x4xbf16>
    tpu.vector_store %arg12[%c0_233, %c192], %194 {strides = array<i32>} : memref<128x196xbf16, #tpu.memory_space<vmem>>, vector<128x4xbf16>,
    %c0_234 = arith.constant 0 : index
    %c0_235 = arith.constant 0 : index
    %196 = vector.load %arg12[%c0_234, %c0_235] : memref<128x196xbf16, #tpu.memory_space<vmem>>, vector<128x196xbf16>
    %c0_236 = arith.constant 0 : index
    %c0_237 = arith.constant 0 : index
    %197 = vector.load %arg2[%c0_236, %c0_237] : memref<196x4xbf16, #tpu.memory_space<vmem>>, vector<196x4xbf16>
    %cst = arith.constant dense<0.000000e+00> : vector<128x4xf32>
    %198 = tpu.matmul %196, %197, %cst {dimension_numbers = #tpu.dot_dimension_numbers<[1], [0], [0], [1], [0, 0, 1, 1], [], []>} : vector<128x196xbf16>, vector<196x4xbf16>, vector<128x4xf32> -> vector<128x4xf32>
    %c0_238 = arith.constant 0 : index
    %c0_239 = arith.constant 0 : index
    %199 = vector.load %arg3[%c0_238, %c0_239] : memref<1x4xf32, #tpu.memory_space<vmem>>, vector<1x4xf32>
    %200 = vector.broadcast %199 : vector<1x4xf32> to vector<128x4xf32>
    %201 = arith.addf %198, %200 : vector<128x4xf32>
    %c0_240 = arith.constant 0 : index
    %c2_241 = arith.constant 2 : index
    %202 = vector.load %arg4[%c0_240, %c2_241] : memref<128x8xf32, #tpu.memory_space<vmem>>, vector<128x1xf32>
    %203 = vector.broadcast %202 : vector<128x1xf32> to vector<128x4xf32>
    %204 = arith.mulf %201, %203 : vector<128x4xf32>
    %cst_242 = arith.constant dense<0.000000e+00> : vector<4xf32>
    %205 = vector.multi_reduction <add>, %204, %cst_242 [0] : vector<128x4xf32> to vector<4xf32>
    %206 = vector.shape_cast %205 : vector<4xf32> to vector<1x4xf32>
    %207 = arith.mulf %204, %204 : vector<128x4xf32>
    %cst_243 = arith.constant dense<0.000000e+00> : vector<4xf32>
    %208 = vector.multi_reduction <add>, %207, %cst_243 [0] : vector<128x4xf32> to vector<4xf32>
    %209 = vector.shape_cast %208 : vector<4xf32> to vector<1x4xf32>
    %cst_244 = arith.constant 1.562500e-02 : f32
    %210 = vector.broadcast %cst_244 : f32 to vector<1x4xf32>
    %211 = arith.mulf %206, %210 : vector<1x4xf32>
    %cst_245 = arith.constant 1.562500e-02 : f32
    %212 = vector.broadcast %cst_245 : f32 to vector<1x4xf32>
    %213 = arith.mulf %209, %212 : vector<1x4xf32>
    %214 = arith.mulf %211, %211 : vector<1x4xf32>
    %215 = arith.subf %213, %214 : vector<1x4xf32>
    %216 = vector.broadcast %211 : vector<1x4xf32> to vector<128x4xf32>
    %217 = arith.subf %201, %216 : vector<128x4xf32>
    %cst_246 = arith.constant 9.99999974E-6 : f32
    %218 = vector.broadcast %cst_246 : f32 to vector<1x4xf32>
    %219 = arith.addf %215, %218 : vector<1x4xf32>
    %220 = math.rsqrt %219 : vector<1x4xf32>
    %221 = vector.broadcast %220 : vector<1x4xf32> to vector<128x4xf32>
    %222 = arith.mulf %217, %221 : vector<128x4xf32>
    %c0_247 = arith.constant 0 : index
    %c0_248 = arith.constant 0 : index
    %223 = vector.load %arg4[%c0_247, %c0_248] : memref<128x8xf32, #tpu.memory_space<vmem>>, vector<128x1xf32>
    %224 = vector.broadcast %223 : vector<128x1xf32> to vector<128x4xf32>
    %225 = arith.mulf %222, %224 : vector<128x4xf32>
    %c0_249 = arith.constant 0 : index
    %c1_250 = arith.constant 1 : index
    %226 = vector.load %arg4[%c0_249, %c1_250] : memref<128x8xf32, #tpu.memory_space<vmem>>, vector<128x1xf32>
    %227 = vector.broadcast %226 : vector<128x1xf32> to vector<128x4xf32>
    %228 = arith.addf %225, %227 : vector<128x4xf32>
    %229 = arith.truncf %228 : vector<128x4xf32> to vector<128x4xbf16>
    %c0_251 = arith.constant 0 : index
    %c0_252 = arith.constant 0 : index
    %230 = vector.load %arg5[%c0_251, %c0_252] : memref<4x16xbf16, #tpu.memory_space<vmem>>, vector<4x16xbf16>
    %cst_253 = arith.constant dense<0.000000e+00> : vector<128x16xf32>
    %231 = tpu.matmul %229, %230, %cst_253 {dimension_numbers = #tpu.dot_dimension_numbers<[1], [0], [0], [1], [0, 0, 1, 1], [], []>} : vector<128x4xbf16>, vector<4x16xbf16>, vector<128x16xf32> -> vector<128x16xf32>
    %c0_254 = arith.constant 0 : index
    %c0_255 = arith.constant 0 : index
    %232 = vector.load %arg6[%c0_254, %c0_255] : memref<1x16xf32, #tpu.memory_space<vmem>>, vector<1x16xf32>
    %233 = vector.broadcast %232 : vector<1x16xf32> to vector<128x16xf32>
    %234 = arith.addf %231, %233 : vector<128x16xf32>
    %cst_256 = arith.constant 5.000000e-01 : f32
    %235 = vector.broadcast %cst_256 : f32 to vector<128x16xf32>
    %236 = arith.mulf %235, %234 : vector<128x16xf32>
    %cst_257 = arith.constant 4.471500e-02 : f32
    %237 = vector.broadcast %cst_257 : f32 to vector<128x16xf32>
    %238 = arith.mulf %237, %234 : vector<128x16xf32>
    %239 = arith.mulf %238, %234 : vector<128x16xf32>
    %240 = arith.mulf %239, %234 : vector<128x16xf32>
    %241 = arith.addf %234, %240 : vector<128x16xf32>
    %cst_258 = arith.constant 0.797884583 : f32
    %242 = vector.broadcast %cst_258 : f32 to vector<128x16xf32>
    %243 = arith.mulf %242, %241 : vector<128x16xf32>
    %244 = math.tanh %243 : vector<128x16xf32>
    %cst_259 = arith.constant 1.000000e+00 : f32
    %245 = vector.broadcast %cst_259 : f32 to vector<128x16xf32>
    %246 = arith.addf %245, %244 : vector<128x16xf32>
    %247 = arith.mulf %236, %246 : vector<128x16xf32>
    %248 = arith.truncf %247 : vector<128x16xf32> to vector<128x16xbf16>
    %c0_260 = arith.constant 0 : index
    %c0_261 = arith.constant 0 : index
    %249 = vector.load %arg7[%c0_260, %c0_261] : memref<16x8xbf16, #tpu.memory_space<vmem>>, vector<16x8xbf16>
    %cst_262 = arith.constant dense<0.000000e+00> : vector<128x8xf32>
    %250 = tpu.matmul %248, %249, %cst_262 {dimension_numbers = #tpu.dot_dimension_numbers<[1], [0], [0], [1], [0, 0, 1, 1], [], []>} : vector<128x16xbf16>, vector<16x8xbf16>, vector<128x8xf32> -> vector<128x8xf32>
    %c0_263 = arith.constant 0 : index
    %c0_264 = arith.constant 0 : index
    %251 = vector.load %arg8[%c0_263, %c0_264] : memref<1x8xf32, #tpu.memory_space<vmem>>, vector<1x8xf32>
    %252 = vector.broadcast %251 : vector<1x8xf32> to vector<128x8xf32>
    %253 = arith.addf %250, %252 : vector<128x8xf32>
    %cst_265 = arith.constant 5.000000e-01 : f32
    %254 = vector.broadcast %cst_265 : f32 to vector<128x8xf32>
    %255 = arith.mulf %254, %253 : vector<128x8xf32>
    %cst_266 = arith.constant 4.471500e-02 : f32
    %256 = vector.broadcast %cst_266 : f32 to vector<128x8xf32>
    %257 = arith.mulf %256, %253 : vector<128x8xf32>
    %258 = arith.mulf %257, %253 : vector<128x8xf32>
    %259 = arith.mulf %258, %253 : vector<128x8xf32>
    %260 = arith.addf %253, %259 : vector<128x8xf32>
    %cst_267 = arith.constant 0.797884583 : f32
    %261 = vector.broadcast %cst_267 : f32 to vector<128x8xf32>
    %262 = arith.mulf %261, %260 : vector<128x8xf32>
    %263 = math.tanh %262 : vector<128x8xf32>
    %cst_268 = arith.constant 1.000000e+00 : f32
    %264 = vector.broadcast %cst_268 : f32 to vector<128x8xf32>
    %265 = arith.addf %264, %263 : vector<128x8xf32>
    %266 = arith.mulf %255, %265 : vector<128x8xf32>
    %c0_269 = arith.constant 0 : index
    %c96_270 = arith.constant 96 : index
    %267 = vector.load %arg12[%c0_269, %c96_270] : memref<128x196xbf16, #tpu.memory_space<vmem>>, vector<128x4xbf16>
    %c0_271 = arith.constant 0 : index
    %c0_272 = arith.constant 0 : index
    %268 = vector.load %arg9[%c0_271, %c0_272] : memref<4x8xbf16, #tpu.memory_space<vmem>>, vector<4x8xbf16>
    %cst_273 = arith.constant dense<0.000000e+00> : vector<128x8xf32>
    %269 = tpu.matmul %267, %268, %cst_273 {dimension_numbers = #tpu.dot_dimension_numbers<[1], [0], [0], [1], [0, 0, 1, 1], [], []>} : vector<128x4xbf16>, vector<4x8xbf16>, vector<128x8xf32> -> vector<128x8xf32>
    %c0_274 = arith.constant 0 : index
    %c0_275 = arith.constant 0 : index
    %270 = vector.load %arg10[%c0_274, %c0_275] : memref<1x8xf32, #tpu.memory_space<vmem>>, vector<1x8xf32>
    %271 = vector.broadcast %270 : vector<1x8xf32> to vector<128x8xf32>
    %272 = arith.addf %269, %271 : vector<128x8xf32>
    %273 = arith.addf %266, %272 : vector<128x8xf32>
    %c0_276 = arith.constant 0 : index
    %c0_277 = arith.constant 0 : index
    %c0_278 = arith.constant 0 : index
    %274 = vector.load %arg11[%c0_276, %c0_277, %c0_278] : memref<1x128x8xf32, #tpu.memory_space<vmem>>, vector<1x128x8xf32>
    %275 = vector.shape_cast %274 : vector<1x128x8xf32> to vector<128x8xf32>
    %276 = vector.shape_cast %273 : vector<128x8xf32> to vector<1x128x8xf32>
    tpu.vector_store %arg11[%c0_276, %c0_277, %c0_278], %276 {strides = array<i32>} : memref<1x128x8xf32, #tpu.memory_space<vmem>>, vector<1x128x8xf32>,
    return
  }
  func.func @transform_0(%arg0: i32) -> (i32, i32, i32, i32) {
    %c0_i32 = arith.constant 0 : i32
    %c0_i32_0 = arith.constant 0 : i32
    %c0_i32_1 = arith.constant 0 : i32
    %c0_i32_2 = arith.constant 0 : i32
    return %arg0, %c0_i32, %c0_i32_0, %c0_i32_1 : i32, i32, i32, i32
  }
  func.func @transform_1(%arg0: i32) -> (i32, i32) {
    %c0_i32 = arith.constant 0 : i32
    %c0_i32_0 = arith.constant 0 : i32
    %c0_i32_1 = arith.constant 0 : i32
    return %c0_i32, %c0_i32_0 : i32, i32
  }
  func.func @transform_2(%arg0: i32) -> (i32, i32) {
    %c0_i32 = arith.constant 0 : i32
    %c0_i32_0 = arith.constant 0 : i32
    %c0_i32_1 = arith.constant 0 : i32
    return %c0_i32, %c0_i32_0 : i32, i32
  }
  func.func @transform_3(%arg0: i32) -> (i32, i32) {
    %c0_i32 = arith.constant 0 : i32
    %c0_i32_0 = arith.constant 0 : i32
    %c0_i32_1 = arith.constant 0 : i32
    return %c0_i32, %c0_i32_0 : i32, i32
  }
  func.func @transform_4(%arg0: i32) -> (i32, i32) {
    %c0_i32 = arith.constant 0 : i32
    %c0_i32_0 = arith.constant 0 : i32
    %c0_i32_1 = arith.constant 0 : i32
    return %c0_i32, %c0_i32_0 : i32, i32
  }
  func.func @transform_5(%arg0: i32) -> (i32, i32) {
    %c0_i32 = arith.constant 0 : i32
    %c0_i32_0 = arith.constant 0 : i32
    %c0_i32_1 = arith.constant 0 : i32
    return %c0_i32, %c0_i32_0 : i32, i32
  }
  func.func @transform_6(%arg0: i32) -> (i32, i32) {
    %c0_i32 = arith.constant 0 : i32
    %c0_i32_0 = arith.constant 0 : i32
    %c0_i32_1 = arith.constant 0 : i32
    return %c0_i32, %c0_i32_0 : i32, i32
  }
  func.func @transform_7(%arg0: i32) -> (i32, i32) {
    %c0_i32 = arith.constant 0 : i32
    %c0_i32_0 = arith.constant 0 : i32
    %c0_i32_1 = arith.constant 0 : i32
    return %c0_i32, %c0_i32_0 : i32, i32
  }
  func.func @transform_8(%arg0: i32) -> (i32, i32) {
    %c0_i32 = arith.constant 0 : i32
    %c0_i32_0 = arith.constant 0 : i32
    %c0_i32_1 = arith.constant 0 : i32
    return %c0_i32, %c0_i32_0 : i32, i32
  }
  func.func @transform_9(%arg0: i32) -> (i32, i32) {
    %c0_i32 = arith.constant 0 : i32
    %c0_i32_0 = arith.constant 0 : i32
    %c0_i32_1 = arith.constant 0 : i32
    return %c0_i32, %c0_i32_0 : i32, i32
  }
  func.func @transform_10(%arg0: i32) -> (i32, i32, i32) {
    %c0_i32 = arith.constant 0 : i32
    %c0_i32_0 = arith.constant 0 : i32
    %c0_i32_1 = arith.constant 0 : i32
    return %arg0, %c0_i32, %c0_i32_0 : i32, i32, i32
  }
}

</mosaic_0001>

<llo_original>
// kernel: convnext_block_forward.1
$region0: #{convnext_block_forward.1}
  #allocation0 [shape = 'u32[]', space=smem, size = 0x4, offset = 0x4, fixed_abs, tag = 'smem constant byte address 0x4 - core index']
  #allocation1 [shape = 'u32[144,128]{1,0:T(1,128)}', space=vmem, size = 0x12000, scoped, tag = 'internal scratch']
  #allocation2 [shape = 'bf16[128,196]{1,0:T(16,128)(2,1)}', space=vmem, size = 0x10000, scoped, tag = 'scratch operand']
  %s0 = inlined_call_operand.vmem [shape: bf16[2,44,19,4], index: 0, kind: input, shape index: {}]
  %s1 = inlined_call_operand.vmem [shape: bf16[196,4], index: 1, kind: input, shape index: {}]
  %s2 = inlined_call_operand.vmem [shape: f32[1,4], index: 2, kind: input, shape index: {}]
  %s3 = inlined_call_operand.vmem [shape: f32[128,8], index: 3, kind: input, shape index: {}]
  %s4 = inlined_call_operand.vmem [shape: bf16[4,16], index: 4, kind: input, shape index: {}]
  %s5 = inlined_call_operand.vmem [shape: f32[1,16], index: 5, kind: input, shape index: {}]
  %s6 = inlined_call_operand.vmem [shape: bf16[16,8], index: 6, kind: input, shape index: {}]
  %s7 = inlined_call_operand.vmem [shape: f32[1,8], index: 7, kind: input, shape index: {}]
  %s8 = inlined_call_operand.vmem [shape: bf16[4,8], index: 8, kind: input, shape index: {}]
  %s9 = inlined_call_operand.vmem [shape: f32[1,8], index: 9, kind: input, shape index: {}]
  %s10 = inlined_call_operand.vmem [shape: f32[2,128,8], index: 10, kind: output, shape index: {}]
  %s11 = sld [smem:[#allocation0]]
  $region73: #{convnext_block_forward.1} parent=0
    _
  %s13 = ssub.s32 1, %s11
  %s14 = scalar_select 0, %s13, %s11
  loop: start=0, step=1, limit=4
  $region2: #{convnext_block_forward.1} parent=0 // loop_pre_header
    _
  $region3: #{convnext_block_forward.1} parent=0 // loop_header
    %s16 = sphi 0, %s20
    %p17 = scmp.ge.s32.totalorder %s16, 4
    %s26 = sphi 0, %s28
    %s29 = sphi 0, %s26
    %s30 = sphi 0, %s29
    %s46 = sphi 0, %s30
    %s50 = sphi 0, %s50
    %s52 = sphi 0, %s50
    %s53 = sphi 0, %s52
    %s67 = sphi 0, %s53
    %s71 = sphi 0, %s71
    %s73 = sphi 0, %s71
    %s74 = sphi 0, %s73
    %s88 = sphi 0, %s74
    %s92 = sphi 0, %s92
    %s94 = sphi 0, %s92
    %s95 = sphi 0, %s94
    %s109 = sphi 0, %s95
    %s113 = sphi 0, %s113
    %s115 = sphi 0, %s113
    %s116 = sphi 0, %s115
    %s130 = sphi 0, %s116
    %s134 = sphi 0, %s134
    %s136 = sphi 0, %s134
    %s137 = sphi 0, %s136
    %s151 = sphi 0, %s137
    %s155 = sphi 0, %s155
    %s157 = sphi 0, %s155
    %s158 = sphi 0, %s157
    %s172 = sphi 0, %s158
    %s176 = sphi 0, %s176
    %s178 = sphi 0, %s176
    %s179 = sphi 0, %s178
    %s193 = sphi 0, %s179
    %s197 = sphi 0, %s197
    %s199 = sphi 0, %s197
    %s200 = sphi 0, %s199
    %s214 = sphi 0, %s200
    %s218 = sphi 0, %s218
    %s220 = sphi 0, %s218
    %s221 = sphi 0, %s220
    %s235 = sphi 0, %s221
    %s241 = sphi 0, %s243
    %s244 = sphi 0, %s241
    %s245 = sphi 0, %s244
    %s261 = sphi 0, %s245
  $region4: #{convnext_block_forward.1} parent=0 // loop_header_branch
    %19 = sbr.rel (%p17) target = $region8
  $region5: #{convnext_block_forward.1} parent=0 // loop_body
    %s21 = ssub.s32 %s16, 1
    %s22 = ssub.s32 %s16, 2
    %s23 = sadd.s32 %s16, 1
    %s24 = ssub.s32 %s16, %s23
    %p25 = scmp.eq.s32.totalorder %s24, 0
    %s27 = sadd.s32 %s26, 1
    %s28 = scalar_select %p25, %s26, %s27
    %p31 = pneg %p25
    %p32 = scmp.eq.s32.totalorder %s16, 1
    %p33 = por %p31, %p32
    %p34 = scmp.ne.s32.totalorder %s26, %s29
    %p35 = scmp.eq.s32.totalorder %s16, 0
    %p36 = por %p34, %p35
    %p37 = scmp.ne.s32.totalorder %s26, %s29
    %p38 = scmp.eq.s32.totalorder %s21, 1
    %p39 = por %p37, %p38
    %p40 = scmp.ne.s32.totalorder %s29, %s30
    %p41 = scmp.eq.s32.totalorder %s21, 0
    %p42 = por %p40, %p41
    %p43 = scmp.ne.s32.totalorder %s29, %s30
    %p44 = scmp.eq.s32.totalorder %s22, 1
    %p45 = por %p43, %p44
    %p47 = scmp.ne.s32.totalorder %s30, %s46
    %p48 = scmp.eq.s32.totalorder %s22, 0
    %p49 = por %p47, %p48
    %s51 = sadd.s32 %s50, 1
    %p54 = scmp.eq.s32.totalorder %s16, 1
    %p55 = scmp.ne.s32.totalorder %s50, %s52
    %p56 = scmp.eq.s32.totalorder %s16, 0
    %p57 = por %p55, %p56
    %p58 = scmp.ne.s32.totalorder %s50, %s52
    %p59 = scmp.eq.s32.totalorder %s21, 1
    %p60 = por %p58, %p59
    %p61 = scmp.ne.s32.totalorder %s52, %s53
    %p62 = scmp.eq.s32.totalorder %s21, 0
    %p63 = por %p61, %p62
    %p64 = scmp.ne.s32.totalorder %s52, %s53
    %p65 = scmp.eq.s32.totalorder %s22, 1
    %p66 = por %p64, %p65
    %p68 = scmp.ne.s32.totalorder %s53, %s67
    %p69 = scmp.eq.s32.totalorder %s22, 0
    %p70 = por %p68, %p69
    %s72 = sadd.s32 %s71, 1
    %p75 = scmp.eq.s32.totalorder %s16, 1
    %p76 = scmp.ne.s32.totalorder %s71, %s73
    %p77 = scmp.eq.s32.totalorder %s16, 0
    %p78 = por %p76, %p77
    %p79 = scmp.ne.s32.totalorder %s71, %s73
    %p80 = scmp.eq.s32.totalorder %s21, 1
    %p81 = por %p79, %p80
    %p82 = scmp.ne.s32.totalorder %s73, %s74
    %p83 = scmp.eq.s32.totalorder %s21, 0
    %p84 = por %p82, %p83
    %p85 = scmp.ne.s32.totalorder %s73, %s74
    %p86 = scmp.eq.s32.totalorder %s22, 1
    %p87 = por %p85, %p86
    %p89 = scmp.ne.s32.totalorder %s74, %s88
    %p90 = scmp.eq.s32.totalorder %s22, 0
    %p91 = por %p89, %p90
    %s93 = sadd.s32 %s92, 1
    %p96 = scmp.eq.s32.totalorder %s16, 1
    %p97 = scmp.ne.s32.totalorder %s92, %s94
    %p98 = scmp.eq.s32.totalorder %s16, 0
    %p99 = por %p97, %p98
    %p100 = scmp.ne.s32.totalorder %s92, %s94
    %p101 = scmp.eq.s32.totalorder %s21, 1
    %p102 = por %p100, %p101
    %p103 = scmp.ne.s32.totalorder %s94, %s95
    %p104 = scmp.eq.s32.totalorder %s21, 0
    %p105 = por %p103, %p104
    %p106 = scmp.ne.s32.totalorder %s94, %s95
    %p107 = scmp.eq.s32.totalorder %s22, 1
    %p108 = por %p106, %p107
    %p110 = scmp.ne.s32.totalorder %s95, %s109
    %p111 = scmp.eq.s32.totalorder %s22, 0
    %p112 = por %p110, %p111
    %s114 = sadd.s32 %s113, 1
    %p117 = scmp.eq.s32.totalorder %s16, 1
    %p118 = scmp.ne.s32.totalorder %s113, %s115
    %p119 = scmp.eq.s32.totalorder %s16, 0
    %p120 = por %p118, %p119
    %p121 = scmp.ne.s32.totalorder %s113, %s115
    %p122 = scmp.eq.s32.totalorder %s21, 1
    %p123 = por %p121, %p122
    %p124 = scmp.ne.s32.totalorder %s115, %s116
    %p125 = scmp.eq.s32.totalorder %s21, 0
    %p126 = por %p124, %p125
    %p127 = scmp.ne.s32.totalorder %s115, %s116
    %p128 = scmp.eq.s32.totalorder %s22, 1
    %p129 = por %p127, %p128
    %p131 = scmp.ne.s32.totalorder %s116, %s130
    %p132 = scmp.eq.s32.totalorder %s22, 0
    %p133 = por %p131, %p132
    %s135 = sadd.s32 %s134, 1
    %p138 = scmp.eq.s32.totalorder %s16, 1
    %p139 = scmp.ne.s32.totalorder %s134, %s136
    %p140 = scmp.eq.s32.totalorder %s16, 0
    %p141 = por %p139, %p140
    %p142 = scmp.ne.s32.totalorder %s134, %s136
    %p143 = scmp.eq.s32.totalorder %s21, 1
    %p144 = por %p142, %p143
    %p145 = scmp.ne.s32.totalorder %s136, %s137
    %p146 = scmp.eq.s32.totalorder %s21, 0
    %p147 = por %p145, %p146
    %p148 = scmp.ne.s32.totalorder %s136, %s137
    %p149 = scmp.eq.s32.totalorder %s22, 1
    %p150 = por %p148, %p149
    %p152 = scmp.ne.s32.totalorder %s137, %s151
    %p153 = scmp.eq.s32.totalorder %s22, 0
    %p154 = por %p152, %p153
    %s156 = sadd.s32 %s155, 1
    %p159 = scmp.eq.s32.totalorder %s16, 1
    %p160 = scmp.ne.s32.totalorder %s155, %s157
    %p161 = scmp.eq.s32.totalorder %s16, 0
    %p162 = por %p160, %p161
    %p163 = scmp.ne.s32.totalorder %s155, %s157
    %p164 = scmp.eq.s32.totalorder %s21, 1
    %p165 = por %p163, %p164
    %p166 = scmp.ne.s32.totalorder %s157, %s158
    %p167 = scmp.eq.s32.totalorder %s21, 0
    %p168 = por %p166, %p167
    %p169 = scmp.ne.s32.totalorder %s157, %s158
    %p170 = scmp.eq.s32.totalorder %s22, 1
    %p171 = por %p169, %p170
    %p173 = scmp.ne.s32.totalorder %s158, %s172
    %p174 = scmp.eq.s32.totalorder %s22, 0
    %p175 = por %p173, %p174
    %s177 = sadd.s32 %s176, 1
    %p180 = scmp.eq.s32.totalorder %s16, 1
    %p181 = scmp.ne.s32.totalorder %s176, %s178
    %p182 = scmp.eq.s32.totalorder %s16, 0
    %p183 = por %p181, %p182
    %p184 = scmp.ne.s32.totalorder %s176, %s178
    %p185 = scmp.eq.s32.totalorder %s21, 1
    %p186 = por %p184, %p185
    %p187 = scmp.ne.s32.totalorder %s178, %s179
    %p188 = scmp.eq.s32.totalorder %s21, 0
    %p189 = por %p187, %p188
    %p190 = scmp.ne.s32.totalorder %s178, %s179
    %p191 = scmp.eq.s32.totalorder %s22, 1
    %p192 = por %p190, %p191
    %p194 = scmp.ne.s32.totalorder %s179, %s193
    %p195 = scmp.eq.s32.totalorder %s22, 0
    %p196 = por %p194, %p195
    %s198 = sadd.s32 %s197, 1
    %p201 = scmp.eq.s32.totalorder %s16, 1
    %p202 = scmp.ne.s32.totalorder %s197, %s199
    %p203 = scmp.eq.s32.totalorder %s16, 0
    %p204 = por %p202, %p203
    %p205 = scmp.ne.s32.totalorder %s197, %s199
    %p206 = scmp.eq.s32.totalorder %s21, 1
    %p207 = por %p205, %p206
    %p208 = scmp.ne.s32.totalorder %s199, %s200
    %p209 = scmp.eq.s32.totalorder %s21, 0
    %p210 = por %p208, %p209
    %p211 = scmp.ne.s32.totalorder %s199, %s200
    %p212 = scmp.eq.s32.totalorder %s22, 1
    %p213 = por %p211, %p212
    %p215 = scmp.ne.s32.totalorder %s200, %s214
    %p216 = scmp.eq.s32.totalorder %s22, 0
    %p217 = por %p215, %p216
    %s219 = sadd.s32 %s218, 1
    %p222 = scmp.eq.s32.totalorder %s16, 1
    %p223 = scmp.ne.s32.totalorder %s218, %s220
    %p224 = scmp.eq.s32.totalorder %s16, 0
    %p225 = por %p223, %p224
    %p226 = scmp.ne.s32.totalorder %s218, %s220
    %p227 = scmp.eq.s32.totalorder %s21, 1
    %p228 = por %p226, %p227
    %p229 = scmp.ne.s32.totalorder %s220, %s221
    %p230 = scmp.eq.s32.totalorder %s21, 0
    %p231 = por %p229, %p230
    %p232 = scmp.ne.s32.totalorder %s220, %s221
    %p233 = scmp.eq.s32.totalorder %s22, 1
    %p234 = por %p232, %p233
    %p236 = scmp.ne.s32.totalorder %s221, %s235
    %p237 = scmp.eq.s32.totalorder %s22, 0
    %p238 = por %p236, %p237
    %s239 = ssub.s32 %s16, %s23
    %p240 = scmp.eq.s32.totalorder %s239, 0
    %s242 = sadd.s32 %s241, 1
    %s243 = scalar_select %p240, %s241, %s242
    %p246 = pneg %p240
    %p247 = scmp.eq.s32.totalorder %s16, 1
    %p248 = por %p246, %p247
    %p249 = scmp.ne.s32.totalorder %s241, %s244
    %p250 = scmp.eq.s32.totalorder %s16, 0
    %p251 = por %p249, %p250
    %p252 = scmp.ne.s32.totalorder %s241, %s244
    %p253 = scmp.eq.s32.totalorder %s21, 1
    %p254 = por %p252, %p253
    %p255 = scmp.ne.s32.totalorder %s244, %s245
    %p256 = scmp.eq.s32.totalorder %s21, 0
    %p257 = por %p255, %p256
    %p258 = scmp.ne.s32.totalorder %s244, %s245
    %p259 = scmp.eq.s32.totalorder %s22, 1
    %p260 = por %p258, %p259
    %p262 = scmp.ne.s32.totalorder %s245, %s261
    %p263 = scmp.eq.s32.totalorder %s22, 0
    %p264 = por %p262, %p263
    %p265 = scmp.le.s32.totalorder 1, %s16
    %p266 = scmp.lt.s32.totalorder %s16, 3
    %p267 = pnand %p265, %p266
    %p268 = pneg %p267
    // Predicated region
    $region9: #{convnext_block_forward.1} parent=5 // pred_check
      _
    $region10: #{convnext_block_forward.1} parent=5 // pred_check_branch
      %270 = sbr.rel (%p267) target = $region12
    $region11: #{convnext_block_forward.1} parent=5 // pred_region
      %s271 = ssub.s32 %s16, 1
      // Predicated region
      $region13: #{convnext_block_forward.1} parent=11 // pred_check
        %p272 = pneg %p63
      $region14: #{convnext_block_forward.1} parent=11 // pred_check_branch
        %274 = sbr.rel (%p272) target = $region16
      $region15: #{convnext_block_forward.1} parent=11 // pred_region
        _
      $region16: #{convnext_block_forward.1} parent=11 // pred_fallthru
        _
      // Predicated region
      $region17: #{convnext_block_forward.1} parent=11 // pred_check
        %p275 = pneg %p84
      $region18: #{convnext_block_forward.1} parent=11 // pred_check_branch
        %277 = sbr.rel (%p275) target = $region20
      $region19: #{convnext_block_forward.1} parent=11 // pred_region
        _
      $region20: #{convnext_block_forward.1} parent=11 // pred_fallthru
        _
      // Predicated region
      $region21: #{convnext_block_forward.1} parent=11 // pred_check
        %p278 = pneg %p105
      $region22: #{convnext_block_forward.1} parent=11 // pred_check_branch
        %280 = sbr.rel (%p278) target = $region24
      $region23: #{convnext_block_forward.1} parent=11 // pred_region
        _
      $region24: #{convnext_block_forward.1} parent=11 // pred_fallthru
        _
      // Predicated region
      $region25: #{convnext_block_forward.1} parent=11 // pred_check
        %p281 = pneg %p126
      $region26: #{convnext_block_forward.1} parent=11 // pred_check_branch
        %283 = sbr.rel (%p281) target = $region28
      $region27: #{convnext_block_forward.1} parent=11 // pred_region
        _
      $region28: #{convnext_block_forward.1} parent=11 // pred_fallthru
        _
      // Predicated region
      $region29: #{convnext_block_forward.1} parent=11 // pred_check
        %p284 = pneg %p147
      $region30: #{convnext_block_forward.1} parent=11 // pred_check_branch
        %286 = sbr.rel (%p284) target = $region32
      $region31: #{convnext_block_forward.1} parent=11 // pred_region
        _
      $region32: #{convnext_block_forward.1} parent=11 // pred_fallthru
        _
      // Predicated region
      $region33: #{convnext_block_forward.1} parent=11 // pred_check
        %p287 = pneg %p168
      $region34: #{convnext_block_forward.1} parent=11 // pred_check_branch
        %289 = sbr.rel (%p287) target = $region36
      $region35: #{convnext_block_forward.1} parent=11 // pred_region
        _
      $region36: #{convnext_block_forward.1} parent=11 // pred_fallthru
        _
      // Predicated region
      $region37: #{convnext_block_forward.1} parent=11 // pred_check
        %p290 = pneg %p189
      $region38: #{convnext_block_forward.1} parent=11 // pred_check_branch
        %292 = sbr.rel (%p290) target = $region40
      $region39: #{convnext_block_forward.1} parent=11 // pred_region
        _
      $region40: #{convnext_block_forward.1} parent=11 // pred_fallthru
        _
      // Predicated region
      $region41: #{convnext_block_forward.1} parent=11 // pred_check
        %p293 = pneg %p210
      $region42: #{convnext_block_forward.1} parent=11 // pred_check_branch
        %295 = sbr.rel (%p293) target = $region44
      $region43: #{convnext_block_forward.1} parent=11 // pred_region
        _
      $region44: #{convnext_block_forward.1} parent=11 // pred_fallthru
        _
      // Predicated region
      $region45: #{convnext_block_forward.1} parent=11 // pred_check
        %p296 = pneg %p231
      $region46: #{convnext_block_forward.1} parent=11 // pred_check_branch
        %298 = sbr.rel (%p296) target = $region48
      $region47: #{convnext_block_forward.1} parent=11 // pred_region
        _
      $region48: #{convnext_block_forward.1} parent=11 // pred_fallthru
        _
    $region12: #{convnext_block_forward.1} parent=5 // pred_fallthru
      _
    %p299 = scmp.lt.s32.totalorder %s16, 2
    // Predicated region
    $region49: #{convnext_block_forward.1} parent=5 // pred_check
      %p300 = pneg %p299
    $region50: #{convnext_block_forward.1} parent=5 // pred_check_branch
      %302 = sbr.rel (%p300) target = $region52
    $region51: #{convnext_block_forward.1} parent=5 // pred_region
      // Predicated region
      $region53: #{convnext_block_forward.1} parent=51 // pred_check
        %p303 = pneg %p36
      $region54: #{convnext_block_forward.1} parent=51 // pred_check_branch
        %305 = sbr.rel (%p303) target = $region56
      $region55: #{convnext_block_forward.1} parent=51 // pred_region
        %p306 = scmp.lt.s32.totalorder %s16, 1
        %s307 = scalar_select %p306, %s16, 1
        %s308 = smul.addr %s307, 132
        %s309 = smul.addr %s308, 4
        %s310 = scalar_lea.vmem %s0, %s309
      $region56: #{convnext_block_forward.1} parent=51 // pred_fallthru
        _
    $region52: #{convnext_block_forward.1} parent=5 // pred_fallthru
      _
    %p311 = scmp.le.s32.totalorder 1, %s16
    %p312 = scmp.lt.s32.totalorder %s16, 3
    %p313 = pnand %p311, %p312
    %p314 = pneg %p313
    // Predicated region
    $region57: #{convnext_block_forward.1} parent=5 // pred_check
      _
    $region58: #{convnext_block_forward.1} parent=5 // pred_check_branch
      %316 = sbr.rel (%p313) target = $region60
    $region59: #{convnext_block_forward.1} parent=5 // pred_region
      %s317 = ssub.s32 %s16, 1
      %p318 = scmp.lt.s32.totalorder %s21, 1
      %s319 = scalar_select %p318, %s21, 1
      %s320 = smul.addr %s319, 132
      %s321 = smul.addr %s320, 4
      %s322 = scalar_lea.vmem %s0, %s321
      %p323 = pneg %p42
      %p324 = pneg %p39
      %p325 = pneg %p63
      %p326 = pneg %p60
      %p327 = pneg %p84
      %p328 = pneg %p81
      %p329 = pneg %p105
      %p330 = pneg %p102
      %p331 = pneg %p126
      %p332 = pneg %p123
      %p333 = pneg %p147
      %p334 = pneg %p144
      %p335 = pneg %p168
      %p336 = pneg %p165
      %p337 = pneg %p189
      %p338 = pneg %p186
      %p339 = pneg %p210
      %p340 = pneg %p207
      %p341 = pneg %p231
      %p342 = pneg %p228
      %p343 = pneg %p257
      %p344 = pneg %p254
      %p345 = scmp.lt.s32.totalorder %s21, 1
      %s346 = scalar_select %p345, %s21, 1
      %s347 = smul.addr %s346, 16
      %s348 = smul.addr %s347, 8
      %s349 = scalar_lea.vmem %s10, %s348
      %p350 = scmp.lt.s32.totalorder %s21, 1
      %s351 = scalar_select %p350, %s21, 1
      %s352 = smul.addr %s351, 132
      %s353 = smul.addr %s352, 4
      %s354 = scalar_lea.vmem %s0, %s353
      %p355 = scmp.lt.s32.totalorder %s21, 1
      %s356 = scalar_select %p355, %s21, 1
      %s357 = smul.addr %s356, 16
      %s358 = smul.addr %s357, 8
      %s359 = scalar_lea.vmem %s10, %s358
      %v361 = vld [vmem:[%s354] sm:$0xf]
      %v362 = vld [vmem:[%s354 + $0x4] sm:$0xf]
      %v363 = vld [vmem:[%s354 + $0xc] sm:$0xf]
      %v364 = vld [vmem:[%s354 + $0x10] sm:$0xf]
      %v365 = vld [vmem:[%s354 + $0x18] sm:$0xf]
      %v366 = vld [vmem:[%s354 + $0x1c] sm:$0xf]
      %v367 = vld [vmem:[%s354 + $0x24] sm:$0xf]
      %v368 = vld [vmem:[%s354 + $0x28] sm:$0xf]
      %v369 = vld [vmem:[%s354 + $0x30] sm:$0xf]
      %v370 = vld [vmem:[%s354 + $0x34] sm:$0xf]
      %v371 = vld [vmem:[%s354 + $0x3c] sm:$0xf]
      %v372 = vld [vmem:[%s354 + $0x40] sm:$0xf]
      %v373 = vld [vmem:[%s354 + $0x48] sm:$0xf]
      %v374 = vld [vmem:[%s354 + $0x4c] sm:$0xf]
      %v375 = vld [vmem:[%s354 + $0x54] sm:$0xf]
      %v376 = vld [vmem:[%s354 + $0x58] sm:$0xf]
      %v393 = vunpack.c.l.b16 %v361
      %v394 = vunpack.c.l.b16 %v362
      %v395 = vunpack.c.l.b16 %v363
      %v396 = vunpack.c.l.b16 %v364
      %v397 = vunpack.c.l.b16 %v365
      %v398 = vunpack.c.l.b16 %v366
      %v399 = vunpack.c.l.b16 %v367
      %v400 = vunpack.c.l.b16 %v368
      %v401 = vunpack.c.l.b16 %v369
      %v402 = vunpack.c.l.b16 %v370
      %v403 = vunpack.c.l.b16 %v371
      %v404 = vunpack.c.l.b16 %v372
      %v405 = vunpack.c.l.b16 %v373
      %v406 = vunpack.c.l.b16 %v374
      %v407 = vunpack.c.l.b16 %v375
      %v408 = vunpack.c.l.b16 %v376
      %v409 = vpack.c.b16 %v394, %v393
      %v410 = vpack.c.b16 %v396, %v395
      %v411 = vpack.c.b16 %v398, %v397
      %v412 = vpack.c.b16 %v400, %v399
      %v413 = vpack.c.b16 %v402, %v401
      %v414 = vpack.c.b16 %v404, %v403
      %v415 = vpack.c.b16 %v406, %v405
      %v416 = vpack.c.b16 %v408, %v407
      %vm425 = vcmask 31744
      %426 = vst.msk [vmem:[#allocation2] sm:$0xff] %vm425, %v409
      %427 = vst.msk [vmem:[#allocation2 + $0x10] sm:$0xff] %vm425, %v410
      %428 = vst.msk [vmem:[#allocation2 + $0x20] sm:$0xff] %vm425, %v411
      %429 = vst.msk [vmem:[#allocation2 + $0x30] sm:$0xff] %vm425, %v412
      %430 = vst.msk [vmem:[#allocation2 + $0x40] sm:$0xff] %vm425, %v413
      %431 = vst.msk [vmem:[#allocation2 + $0x50] sm:$0xff] %vm425, %v414
      %432 = vst.msk [vmem:[#allocation2 + $0x60] sm:$0xff] %vm425, %v415
      %433 = vst.msk [vmem:[#allocation2 + $0x70] sm:$0xff] %vm425, %v416
      %s434 = scalar_lea.vmem %s354, 132
      %v435 = vld [vmem:[%s434] sm:$0xf]
      %v436 = vld [vmem:[%s434 + $0x4] sm:$0xf]
      %v437 = vld [vmem:[%s434 + $0xc] sm:$0xf]
      %v438 = vld [vmem:[%s434 + $0x10] sm:$0xf]
      %v439 = vld [vmem:[%s434 + $0x18] sm:$0xf]
      %v440 = vld [vmem:[%s434 + $0x1c] sm:$0xf]
      %v441 = vld [vmem:[%s434 + $0x24] sm:$0xf]
      %v442 = vld [vmem:[%s434 + $0x28] sm:$0xf]
      %v443 = vld [vmem:[%s434 + $0x30] sm:$0xf]
      %v444 = vld [vmem:[%s434 + $0x34] sm:$0xf]
      %v445 = vld [vmem:[%s434 + $0x3c] sm:$0xf]
      %v446 = vld [vmem:[%s434 + $0x40] sm:$0xf]
      %v447 = vld [vmem:[%s434 + $0x48] sm:$0xf]
      %v448 = vld [vmem:[%s434 + $0x4c] sm:$0xf]
      %v449 = vld [vmem:[%s434 + $0x54] sm:$0xf]
      %v450 = vld [vmem:[%s434 + $0x58] sm:$0xf]
      %v467 = vunpack.c.l.b16 %v435
      %v468 = vunpack.c.l.b16 %v436
      %v469 = vunpack.c.l.b16 %v437
      %v470 = vunpack.c.l.b16 %v438
      %v471 = vunpack.c.l.b16 %v439
      %v472 = vunpack.c.l.b16 %v440
      %v473 = vunpack.c.l.b16 %v441
      %v474 = vunpack.c.l.b16 %v442
      %v475 = vunpack.c.l.b16 %v443
      %v476 = vunpack.c.l.b16 %v444
      %v477 = vunpack.c.l.b16 %v445
      %v478 = vunpack.c.l.b16 %v446
      %v479 = vunpack.c.l.b16 %v447
      %v480 = vunpack.c.l.b16 %v448
      %v481 = vunpack.c.l.b16 %v449
      %v482 = vunpack.c.l.b16 %v450
      %v483 = vpack.c.b16 %v468, %v467
      %v484 = vpack.c.b16 %v470, %v469
      %v485 = vpack.c.b16 %v472, %v471
      %v486 = vpack.c.b16 %v474, %v473
      %v487 = vpack.c.b16 %v476, %v475
      %v488 = vpack.c.b16 %v478, %v477
      %v489 = vpack.c.b16 %v480, %v479
      %v490 = vpack.c.b16 %v482, %v481
      %491 = vrot.lane.b32.xlu0 %v483, 4
      %v492 = vpop.permute.xlu0 %491
      %493 = vrot.lane.b32.xlu0 %v484, 4
      %v494 = vpop.permute.xlu0 %493
      %495 = vrot.lane.b32.xlu0 %v485, 4
      %v496 = vpop.permute.xlu0 %495
      %497 = vrot.lane.b32.xlu0 %v486, 4
      %v498 = vpop.permute.xlu0 %497
      %499 = vrot.lane.b32.xlu0 %v487, 4
      %v500 = vpop.permute.xlu0 %499
      %501 = vrot.lane.b32.xlu0 %v488, 4
      %v502 = vpop.permute.xlu0 %501
      %503 = vrot.lane.b32.xlu0 %v489, 4
      %v504 = vpop.permute.xlu0 %503
      %505 = vrot.lane.b32.xlu0 %v490, 4
      %v506 = vpop.permute.xlu0 %505
      %vm515 = vcmask 64544
      %516 = vst.msk [vmem:[#allocation2] sm:$0xff] %vm515, %v492
      %517 = vst.msk [vmem:[#allocation2 + $0x10] sm:$0xff] %vm515, %v494
      %518 = vst.msk [vmem:[#allocation2 + $0x20] sm:$0xff] %vm515, %v496
      %519 = vst.msk [vmem:[#allocation2 + $0x30] sm:$0xff] %vm515, %v498
      %520 = vst.msk [vmem:[#allocation2 + $0x40] sm:$0xff] %vm515, %v500
      %521 = vst.msk [vmem:[#allocation2 + $0x50] sm:$0xff] %vm515, %v502
      %522 = vst.msk [vmem:[#allocation2 + $0x60] sm:$0xff] %vm515, %v504
      %523 = vst.msk [vmem:[#allocation2 + $0x70] sm:$0xff] %vm515, %v506
      %v524 = vld [vmem:[%s354] sm:$0xf]
      %v525 = vld [vmem:[%s354 + $0x4] sm:$0xf]
      %v526 = vld [vmem:[%s354 + $0x8] sm:$0x1]
      %v527 = vld [vmem:[%s354 + $0xc] sm:$0xf]
      %v528 = vld [vmem:[%s354 + $0x10] sm:$0xf]
      %v529 = vld [vmem:[%s354 + $0x14] sm:$0x1]
      %v530 = vld [vmem:[%s354 + $0x18] sm:$0xf]
      %v531 = vld [vmem:[%s354 + $0x1c] sm:$0xf]
      %v532 = vld [vmem:[%s354 + $0x20] sm:$0x1]
      %v533 = vld [vmem:[%s354 + $0x24] sm:$0xf]
      %v534 = vld [vmem:[%s354 + $0x28] sm:$0xf]
      %v535 = vld [vmem:[%s354 + $0x2c] sm:$0x1]
      %v536 = vld [vmem:[%s354 + $0x30] sm:$0xf]
      %v537 = vld [vmem:[%s354 + $0x34] sm:$0xf]
      %v538 = vld [vmem:[%s354 + $0x38] sm:$0x1]
      %v539 = vld [vmem:[%s354 + $0x3c] sm:$0xf]
      %v540 = vld [vmem:[%s354 + $0x40] sm:$0xf]
      %v541 = vld [vmem:[%s354 + $0x44] sm:$0x1]
      %v542 = vld [vmem:[%s354 + $0x48] sm:$0xf]
      %v543 = vld [vmem:[%s354 + $0x4c] sm:$0xf]
      %v544 = vld [vmem:[%s354 + $0x50] sm:$0x1]
      %v545 = vld [vmem:[%s354 + $0x54] sm:$0xf]
      %v546 = vld [vmem:[%s354 + $0x58] sm:$0xf]
      %v547 = vld [vmem:[%s354 + $0x5c] sm:$0x1]
      %vm548 = vsmask.f32 3328
      %vm549 = vsmask.f32 7440
      %vm550 = vmor %vm548, %vm549
      %v552 = vshrl.u32 %v524, 16
      %v554 = vrot.slane %v552, 4
      %v555 = vshll.u32 %v524, 16
      %v557 = vrot.slane %v555, 5
      %v558 = vor.u32 %v554, %v557
      %v559 = vrot.slane %v558, 4
      %v561 = vshll.u32 %v525, 16
      %v563 = vrot.slane %v561, 5
      %v564 = vsel %vm550, %v559, %v563
      %v565 = vshrl.u32 %v525, 16
      %v567 = vrot.slane %v565, 4
      %v568 = vor.u32 %v567, %v563
      %v569 = vrot.slane %v568, 4
      %v571 = vshll.u32 %v526, 16
      %v573 = vrot.slane %v571, 5
      %v574 = vsel %vm550, %v569, %v573
      %v576 = vshrl.u32 %v527, 16
      %v578 = vrot.slane %v576, 4
      %v579 = vshll.u32 %v527, 16
      %v581 = vrot.slane %v579, 5
      %v582 = vor.u32 %v578, %v581
      %v583 = vrot.slane %v582, 4
      %v585 = vshll.u32 %v528, 16
      %v587 = vrot.slane %v585, 5
      %v588 = vsel %vm550, %v583, %v587
      %v589 = vshrl.u32 %v528, 16
      %v591 = vrot.slane %v589, 4
      %v592 = vor.u32 %v591, %v587
      %v593 = vrot.slane %v592, 4
      %v595 = vshll.u32 %v529, 16
      %v597 = vrot.slane %v595, 5
      %v598 = vsel %vm550, %v593, %v597
      %v600 = vshrl.u32 %v530, 16
      %v602 = vrot.slane %v600, 4
      %v603 = vshll.u32 %v530, 16
      %v605 = vrot.slane %v603, 5
      %v606 = vor.u32 %v602, %v605
      %v607 = vrot.slane %v606, 4
      %v609 = vshll.u32 %v531, 16
      %v611 = vrot.slane %v609, 5
      %v612 = vsel %vm550, %v607, %v611
      %v613 = vshrl.u32 %v531, 16
      %v615 = vrot.slane %v613, 4
      %v616 = vor.u32 %v615, %v611
      %v617 = vrot.slane %v616, 4
      %v619 = vshll.u32 %v532, 16
      %v621 = vrot.slane %v619, 5
      %v622 = vsel %vm550, %v617, %v621
      %v624 = vshrl.u32 %v533, 16
      %v626 = vrot.slane %v624, 4
      %v627 = vshll.u32 %v533, 16
      %v629 = vrot.slane %v627, 5
      %v630 = vor.u32 %v626, %v629
      %v631 = vrot.slane %v630, 4
      %v633 = vshll.u32 %v534, 16
      %v635 = vrot.slane %v633, 5
      %v636 = vsel %vm550, %v631, %v635
      %v637 = vshrl.u32 %v534, 16
      %v639 = vrot.slane %v637, 4
      %v640 = vor.u32 %v639, %v635
      %v641 = vrot.slane %v640, 4
      %v643 = vshll.u32 %v535, 16
      %v645 = vrot.slane %v643, 5
      %v646 = vsel %vm550, %v641, %v645
      %v648 = vshrl.u32 %v536, 16
      %v650 = vrot.slane %v648, 4
      %v651 = vshll.u32 %v536, 16
      %v653 = vrot.slane %v651, 5
      %v654 = vor.u32 %v650, %v653
      %v655 = vrot.slane %v654, 4
      %v657 = vshll.u32 %v537, 16
      %v659 = vrot.slane %v657, 5
      %v660 = vsel %vm550, %v655, %v659
      %v661 = vshrl.u32 %v537, 16
      %v663 = vrot.slane %v661, 4
      %v664 = vor.u32 %v663, %v659
      %v665 = vrot.slane %v664, 4
      %v667 = vshll.u32 %v538, 16
      %v669 = vrot.slane %v667, 5
      %v670 = vsel %vm550, %v665, %v669
      %v672 = vshrl.u32 %v539, 16
      %v674 = vrot.slane %v672, 4
      %v675 = vshll.u32 %v539, 16
      %v677 = vrot.slane %v675, 5
      %v678 = vor.u32 %v674, %v677
      %v679 = vrot.slane %v678, 4
      %v681 = vshll.u32 %v540, 16
      %v683 = vrot.slane %v681, 5
      %v684 = vsel %vm550, %v679, %v683
      %v685 = vshrl.u32 %v540, 16
      %v687 = vrot.slane %v685, 4
      %v688 = vor.u32 %v687, %v683
      %v689 = vrot.slane %v688, 4
      %v691 = vshll.u32 %v541, 16
      %v693 = vrot.slane %v691, 5
      %v694 = vsel %vm550, %v689, %v693
      %v696 = vshrl.u32 %v542, 16
      %v698 = vrot.slane %v696, 4
      %v699 = vshll.u32 %v542, 16
      %v701 = vrot.slane %v699, 5
      %v702 = vor.u32 %v698, %v701
      %v703 = vrot.slane %v702, 4
      %v705 = vshll.u32 %v543, 16
      %v707 = vrot.slane %v705, 5
      %v708 = vsel %vm550, %v703, %v707
      %v709 = vshrl.u32 %v543, 16
      %v711 = vrot.slane %v709, 4
      %v712 = vor.u32 %v711, %v707
      %v713 = vrot.slane %v712, 4
      %v715 = vshll.u32 %v544, 16
      %v717 = vrot.slane %v715, 5
      %v718 = vsel %vm550, %v713, %v717
      %v720 = vshrl.u32 %v545, 16
      %v722 = vrot.slane %v720, 4
      %v723 = vshll.u32 %v545, 16
      %v725 = vrot.slane %v723, 5
      %v726 = vor.u32 %v722, %v725
      %v727 = vrot.slane %v726, 4
      %v729 = vshll.u32 %v546, 16
      %v731 = vrot.slane %v729, 5
      %v732 = vsel %vm550, %v727, %v731
      %v733 = vshrl.u32 %v546, 16
      %v735 = vrot.slane %v733, 4
      %v736 = vor.u32 %v735, %v731
      %v737 = vrot.slane %v736, 4
      %v739 = vshll.u32 %v547, 16
      %v741 = vrot.slane %v739, 5
      %v742 = vsel %vm550, %v737, %v741
      %v743 = vunpack.c.l.b16 %v564
      %v744 = vunpack.c.l.b16 %v574
      %v745 = vunpack.c.l.b16 %v588
      %v746 = vunpack.c.l.b16 %v598
      %v747 = vunpack.c.l.b16 %v612
      %v748 = vunpack.c.l.b16 %v622
      %v749 = vunpack.c.l.b16 %v636
      %v750 = vunpack.c.l.b16 %v646
      %v751 = vunpack.c.l.b16 %v660
      %v752 = vunpack.c.l.b16 %v670
      %v753 = vunpack.c.l.b16 %v684
      %v754 = vunpack.c.l.b16 %v694
      %v755 = vunpack.c.l.b16 %v708
      %v756 = vunpack.c.l.b16 %v718
      %v757 = vunpack.c.l.b16 %v732
      %v758 = vunpack.c.l.b16 %v742
      %v759 = vpack.c.b16 %v744, %v743
      %v760 = vpack.c.b16 %v746, %v745
      %v761 = vpack.c.b16 %v748, %v747
      %v762 = vpack.c.b16 %v750, %v749
      %v763 = vpack.c.b16 %v752, %v751
      %v764 = vpack.c.b16 %v754, %v753
      %v765 = vpack.c.b16 %v756, %v755
      %v766 = vpack.c.b16 %v758, %v757
      %767 = vrot.lane.b32.xlu0 %v759, 8
      %v768 = vpop.permute.xlu0 %767
      %769 = vrot.lane.b32.xlu0 %v760, 8
      %v770 = vpop.permute.xlu0 %769
      %771 = vrot.lane.b32.xlu0 %v761, 8
      %v772 = vpop.permute.xlu0 %771
      %773 = vrot.lane.b32.xlu0 %v762, 8
      %v774 = vpop.permute.xlu0 %773
      %775 = vrot.lane.b32.xlu0 %v763, 8
      %v776 = vpop.permute.xlu0 %775
      %777 = vrot.lane.b32.xlu0 %v764, 8
      %v778 = vpop.permute.xlu0 %777
      %779 = vrot.lane.b32.xlu0 %v765, 8
      %v780 = vpop.permute.xlu0 %779
      %781 = vrot.lane.b32.xlu0 %v766, 8
      %v782 = vpop.permute.xlu0 %781
      %vm791 = vcmask 97344
      %792 = vst.msk [vmem:[#allocation2] sm:$0xff] %vm791, %v768
      %793 = vst.msk [vmem:[#allocation2 + $0x10] sm:$0xff] %vm791, %v770
      %794 = vst.msk [vmem:[#allocation2 + $0x20] sm:$0xff] %vm791, %v772
      %795 = vst.msk [vmem:[#allocation2 + $0x30] sm:$0xff] %vm791, %v774
      %796 = vst.msk [vmem:[#allocation2 + $0x40] sm:$0xff] %vm791, %v776
      %797 = vst.msk [vmem:[#allocation2 + $0x50] sm:$0xff] %vm791, %v778
      %798 = vst.msk [vmem:[#allocation2 + $0x60] sm:$0xff] %vm791, %v780
      %799 = vst.msk [vmem:[#allocation2 + $0x70] sm:$0xff] %vm791, %v782
      %v800 = vld [vmem:[%s434] sm:$0xf]
      %v801 = vld [vmem:[%s434 + $0x4] sm:$0xf]
      %v802 = vld [vmem:[%s434 + $0x8] sm:$0x1]
      %v803 = vld [vmem:[%s434 + $0xc] sm:$0xf]
      %v804 = vld [vmem:[%s434 + $0x10] sm:$0xf]
      %v805 = vld [vmem:[%s434 + $0x14] sm:$0x1]
      %v806 = vld [vmem:[%s434 + $0x18] sm:$0xf]
      %v807 = vld [vmem:[%s434 + $0x1c] sm:$0xf]
      %v808 = vld [vmem:[%s434 + $0x20] sm:$0x1]
      %v809 = vld [vmem:[%s434 + $0x24] sm:$0xf]
      %v810 = vld [vmem:[%s434 + $0x28] sm:$0xf]
      %v811 = vld [vmem:[%s434 + $0x2c] sm:$0x1]
      %v812 = vld [vmem:[%s434 + $0x30] sm:$0xf]
      %v813 = vld [vmem:[%s434 + $0x34] sm:$0xf]
      %v814 = vld [vmem:[%s434 + $0x38] sm:$0x1]
      %v815 = vld [vmem:[%s434 + $0x3c] sm:$0xf]
      %v816 = vld [vmem:[%s434 + $0x40] sm:$0xf]
      %v817 = vld [vmem:[%s434 + $0x44] sm:$0x1]
      %v818 = vld [vmem:[%s434 + $0x48] sm:$0xf]
      %v819 = vld [vmem:[%s434 + $0x4c] sm:$0xf]
      %v820 = vld [vmem:[%s434 + $0x50] sm:$0x1]
      %v821 = vld [vmem:[%s434 + $0x54] sm:$0xf]
      %v822 = vld [vmem:[%s434 + $0x58] sm:$0xf]
      %v823 = vld [vmem:[%s434 + $0x5c] sm:$0x1]
      %v825 = vshrl.u32 %v800, 16
      %v827 = vrot.slane %v825, 4
      %v828 = vshll.u32 %v800, 16
      %v830 = vrot.slane %v828, 5
      %v831 = vor.u32 %v827, %v830
      %v832 = vrot.slane %v831, 4
      %v834 = vshll.u32 %v801, 16
      %v836 = vrot.slane %v834, 5
      %v837 = vsel %vm550, %v832, %v836
      %v838 = vshrl.u32 %v801, 16
      %v840 = vrot.slane %v838, 4
      %v841 = vor.u32 %v840, %v836
      %v842 = vrot.slane %v841, 4
      %v844 = vshll.u32 %v802, 16
      %v846 = vrot.slane %v844, 5
      %v847 = vsel %vm550, %v842, %v846
      %v849 = vshrl.u32 %v803, 16
      %v851 = vrot.slane %v849, 4
      %v852 = vshll.u32 %v803, 16
      %v854 = vrot.slane %v852, 5
      %v855 = vor.u32 %v851, %v854
      %v856 = vrot.slane %v855, 4
      %v858 = vshll.u32 %v804, 16
      %v860 = vrot.slane %v858, 5
      %v861 = vsel %vm550, %v856, %v860
      %v862 = vshrl.u32 %v804, 16
      %v864 = vrot.slane %v862, 4
      %v865 = vor.u32 %v864, %v860
      %v866 = vrot.slane %v865, 4
      %v868 = vshll.u32 %v805, 16
      %v870 = vrot.slane %v868, 5
      %v871 = vsel %vm550, %v866, %v870
      %v873 = vshrl.u32 %v806, 16
      %v875 = vrot.slane %v873, 4
      %v876 = vshll.u32 %v806, 16
      %v878 = vrot.slane %v876, 5
      %v879 = vor.u32 %v875, %v878
      %v880 = vrot.slane %v879, 4
      %v882 = vshll.u32 %v807, 16
      %v884 = vrot.slane %v882, 5
      %v885 = vsel %vm550, %v880, %v884
      %v886 = vshrl.u32 %v807, 16
      %v888 = vrot.slane %v886, 4
      %v889 = vor.u32 %v888, %v884
      %v890 = vrot.slane %v889, 4
      %v892 = vshll.u32 %v808, 16
      %v894 = vrot.slane %v892, 5
      %v895 = vsel %vm550, %v890, %v894
      %v897 = vshrl.u32 %v809, 16
      %v899 = vrot.slane %v897, 4
      %v900 = vshll.u32 %v809, 16
      %v902 = vrot.slane %v900, 5
      %v903 = vor.u32 %v899, %v902
      %v904 = vrot.slane %v903, 4
      %v906 = vshll.u32 %v810, 16
      %v908 = vrot.slane %v906, 5
      %v909 = vsel %vm550, %v904, %v908
      %v910 = vshrl.u32 %v810, 16
      %v912 = vrot.slane %v910, 4
      %v913 = vor.u32 %v912, %v908
      %v914 = vrot.slane %v913, 4
      %v916 = vshll.u32 %v811, 16
      %v918 = vrot.slane %v916, 5
      %v919 = vsel %vm550, %v914, %v918
      %v921 = vshrl.u32 %v812, 16
      %v923 = vrot.slane %v921, 4
      %v924 = vshll.u32 %v812, 16
      %v926 = vrot.slane %v924, 5
      %v927 = vor.u32 %v923, %v926
      %v928 = vrot.slane %v927, 4
      %v930 = vshll.u32 %v813, 16
      %v932 = vrot.slane %v930, 5
      %v933 = vsel %vm550, %v928, %v932
      %v934 = vshrl.u32 %v813, 16
      %v936 = vrot.slane %v934, 4
      %v937 = vor.u32 %v936, %v932
      %v938 = vrot.slane %v937, 4
      %v940 = vshll.u32 %v814, 16
      %v942 = vrot.slane %v940, 5
      %v943 = vsel %vm550, %v938, %v942
      %v945 = vshrl.u32 %v815, 16
      %v947 = vrot.slane %v945, 4
      %v948 = vshll.u32 %v815, 16
      %v950 = vrot.slane %v948, 5
      %v951 = vor.u32 %v947, %v950
      %v952 = vrot.slane %v951, 4
      %v954 = vshll.u32 %v816, 16
      %v956 = vrot.slane %v954, 5
      %v957 = vsel %vm550, %v952, %v956
      %v958 = vshrl.u32 %v816, 16
      %v960 = vrot.slane %v958, 4
      %v961 = vor.u32 %v960, %v956
      %v962 = vrot.slane %v961, 4
      %v964 = vshll.u32 %v817, 16
      %v966 = vrot.slane %v964, 5
      %v967 = vsel %vm550, %v962, %v966
      %v969 = vshrl.u32 %v818, 16
      %v971 = vrot.slane %v969, 4
      %v972 = vshll.u32 %v818, 16
      %v974 = vrot.slane %v972, 5
      %v975 = vor.u32 %v971, %v974
      %v976 = vrot.slane %v975, 4
      %v978 = vshll.u32 %v819, 16
      %v980 = vrot.slane %v978, 5
      %v981 = vsel %vm550, %v976, %v980
      %v982 = vshrl.u32 %v819, 16
      %v984 = vrot.slane %v982, 4
      %v985 = vor.u32 %v984, %v980
      %v986 = vrot.slane %v985, 4
      %v988 = vshll.u32 %v820, 16
      %v990 = vrot.slane %v988, 5
      %v991 = vsel %vm550, %v986, %v990
      %v993 = vshrl.u32 %v821, 16
      %v995 = vrot.slane %v993, 4
      %v996 = vshll.u32 %v821, 16
      %v998 = vrot.slane %v996, 5
      %v999 = vor.u32 %v995, %v998
      %v1000 = vrot.slane %v999, 4
      %v1002 = vshll.u32 %v822, 16
      %v1004 = vrot.slane %v1002, 5
      %v1005 = vsel %vm550, %v1000, %v1004
      %v1006 = vshrl.u32 %v822, 16
      %v1008 = vrot.slane %v1006, 4
      %v1009 = vor.u32 %v1008, %v1004
      %v1010 = vrot.slane %v1009, 4
      %v1012 = vshll.u32 %v823, 16
      %v1014 = vrot.slane %v1012, 5
      %v1015 = vsel %vm550, %v1010, %v1014
      %v1016 = vunpack.c.l.b16 %v837
      %v1017 = vunpack.c.l.b16 %v847
      %v1018 = vunpack.c.l.b16 %v861
      %v1019 = vunpack.c.l.b16 %v871
      %v1020 = vunpack.c.l.b16 %v885
      %v1021 = vunpack.c.l.b16 %v895
      %v1022 = vunpack.c.l.b16 %v909
      %v1023 = vunpack.c.l.b16 %v919
      %v1024 = vunpack.c.l.b16 %v933
      %v1025 = vunpack.c.l.b16 %v943
      %v1026 = vunpack.c.l.b16 %v957
      %v1027 = vunpack.c.l.b16 %v967
      %v1028 = vunpack.c.l.b16 %v981
      %v1029 = vunpack.c.l.b16 %v991
      %v1030 = vunpack.c.l.b16 %v1005
      %v1031 = vunpack.c.l.b16 %v1015
      %v1032 = vpack.c.b16 %v1017, %v1016
      %v1033 = vpack.c.b16 %v1019, %v1018
      %v1034 = vpack.c.b16 %v1021, %v1020
      %v1035 = vpack.c.b16 %v1023, %v1022
      %v1036 = vpack.c.b16 %v1025, %v1024
      %v1037 = vpack.c.b16 %v1027, %v1026
      %v1038 = vpack.c.b16 %v1029, %v1028
      %v1039 = vpack.c.b16 %v1031, %v1030
      %1040 = vrot.lane.b32.xlu0 %v1032, 12
      %v1041 = vpop.permute.xlu0 %1040
      %1042 = vrot.lane.b32.xlu0 %v1033, 12
      %v1043 = vpop.permute.xlu0 %1042
      %1044 = vrot.lane.b32.xlu0 %v1034, 12
      %v1045 = vpop.permute.xlu0 %1044
      %1046 = vrot.lane.b32.xlu0 %v1035, 12
      %v1047 = vpop.permute.xlu0 %1046
      %1048 = vrot.lane.b32.xlu0 %v1036, 12
      %v1049 = vpop.permute.xlu0 %1048
      %1050 = vrot.lane.b32.xlu0 %v1037, 12
      %v1051 = vpop.permute.xlu0 %1050
      %1052 = vrot.lane.b32.xlu0 %v1038, 12
      %v1053 = vpop.permute.xlu0 %1052
      %1054 = vrot.lane.b32.xlu0 %v1039, 12
      %v1055 = vpop.permute.xlu0 %1054
      %vm1064 = vcmask 130144
      %1065 = vst.msk [vmem:[#allocation2] sm:$0xff] %vm1064, %v1041
      %1066 = vst.msk [vmem:[#allocation2 + $0x10] sm:$0xff] %vm1064, %v1043
      %1067 = vst.msk [vmem:[#allocation2 + $0x20] sm:$0xff] %vm1064, %v1045
      %1068 = vst.msk [vmem:[#allocation2 + $0x30] sm:$0xff] %vm1064, %v1047
      %1069 = vst.msk [vmem:[#allocation2 + $0x40] sm:$0xff] %vm1064, %v1049
      %1070 = vst.msk [vmem:[#allocation2 + $0x50] sm:$0xff] %vm1064, %v1051
      %1071 = vst.msk [vmem:[#allocation2 + $0x60] sm:$0xff] %vm1064, %v1053
      %1072 = vst.msk [vmem:[#allocation2 + $0x70] sm:$0xff] %vm1064, %v1055
      %v1073 = vld [vmem:[%s354] sm:$0xe]
      %v1074 = vld [vmem:[%s354 + $0x4] sm:$0xf]
      %v1075 = vld [vmem:[%s354 + $0x8] sm:$0x1]
      %v1076 = vld [vmem:[%s354 + $0xc] sm:$0xe]
      %v1077 = vld [vmem:[%s354 + $0x10] sm:$0xf]
      %v1078 = vld [vmem:[%s354 + $0x14] sm:$0x1]
      %v1079 = vld [vmem:[%s354 + $0x18] sm:$0xe]
      %v1080 = vld [vmem:[%s354 + $0x1c] sm:$0xf]
      %v1081 = vld [vmem:[%s354 + $0x20] sm:$0x1]
      %v1082 = vld [vmem:[%s354 + $0x24] sm:$0xe]
      %v1083 = vld [vmem:[%s354 + $0x28] sm:$0xf]
      %v1084 = vld [vmem:[%s354 + $0x2c] sm:$0x1]
      %v1085 = vld [vmem:[%s354 + $0x30] sm:$0xe]
      %v1086 = vld [vmem:[%s354 + $0x34] sm:$0xf]
      %v1087 = vld [vmem:[%s354 + $0x38] sm:$0x1]
      %v1088 = vld [vmem:[%s354 + $0x3c] sm:$0xe]
      %v1089 = vld [vmem:[%s354 + $0x40] sm:$0xf]
      %v1090 = vld [vmem:[%s354 + $0x44] sm:$0x1]
      %v1091 = vld [vmem:[%s354 + $0x48] sm:$0xe]
      %v1092 = vld [vmem:[%s354 + $0x4c] sm:$0xf]
      %v1093 = vld [vmem:[%s354 + $0x50] sm:$0x1]
      %v1094 = vld [vmem:[%s354 + $0x54] sm:$0xe]
      %v1095 = vld [vmem:[%s354 + $0x58] sm:$0xf]
      %v1096 = vld [vmem:[%s354 + $0x5c] sm:$0x1]
      %vm1121 = vcmask 1042432
      %vm1122 = vcmask 1046532
      %vm1123 = vmor %vm1121, %vm1122
      %v1124 = vrot.slane %v1073, 5
      %v1125 = vrot.slane %v1124, 4
      %v1126 = vrot.slane %v1074, 5
      %v1127 = vsel %vm1123, %v1125, %v1126
      %v1128 = vrot.slane %v1126, 4
      %v1129 = vrot.slane %v1075, 5
      %v1130 = vsel %vm1123, %v1128, %v1129
      %v1131 = vrot.slane %v1076, 5
      %v1132 = vrot.slane %v1131, 4
      %v1133 = vrot.slane %v1077, 5
      %v1134 = vsel %vm1123, %v1132, %v1133
      %v1135 = vrot.slane %v1133, 4
      %v1136 = vrot.slane %v1078, 5
      %v1137 = vsel %vm1123, %v1135, %v1136
      %v1138 = vrot.slane %v1079, 5
      %v1139 = vrot.slane %v1138, 4
      %v1140 = vrot.slane %v1080, 5
      %v1141 = vsel %vm1123, %v1139, %v1140
      %v1142 = vrot.slane %v1140, 4
      %v1143 = vrot.slane %v1081, 5
      %v1144 = vsel %vm1123, %v1142, %v1143
      %v1145 = vrot.slane %v1082, 5
      %v1146 = vrot.slane %v1145, 4
      %v1147 = vrot.slane %v1083, 5
      %v1148 = vsel %vm1123, %v1146, %v1147
      %v1149 = vrot.slane %v1147, 4
      %v1150 = vrot.slane %v1084, 5
      %v1151 = vsel %vm1123, %v1149, %v1150
      %v1152 = vrot.slane %v1085, 5
      %v1153 = vrot.slane %v1152, 4
      %v1154 = vrot.slane %v1086, 5
      %v1155 = vsel %vm1123, %v1153, %v1154
      %v1156 = vrot.slane %v1154, 4
      %v1157 = vrot.slane %v1087, 5
      %v1158 = vsel %vm1123, %v1156, %v1157
      %v1159 = vrot.slane %v1088, 5
      %v1160 = vrot.slane %v1159, 4
      %v1161 = vrot.slane %v1089, 5
      %v1162 = vsel %vm1123, %v1160, %v1161
      %v1163 = vrot.slane %v1161, 4
      %v1164 = vrot.slane %v1090, 5
      %v1165 = vsel %vm1123, %v1163, %v1164
      %v1166 = vrot.slane %v1091, 5
      %v1167 = vrot.slane %v1166, 4
      %v1168 = vrot.slane %v1092, 5
      %v1169 = vsel %vm1123, %v1167, %v1168
      %v1170 = vrot.slane %v1168, 4
      %v1171 = vrot.slane %v1093, 5
      %v1172 = vsel %vm1123, %v1170, %v1171
      %v1173 = vrot.slane %v1094, 5
      %v1174 = vrot.slane %v1173, 4
      %v1175 = vrot.slane %v1095, 5
      %v1176 = vsel %vm1123, %v1174, %v1175
      %v1177 = vrot.slane %v1175, 4
      %v1178 = vrot.slane %v1096, 5
      %v1179 = vsel %vm1123, %v1177, %v1178
      %v1180 = vunpack.c.l.b16 %v1127
      %v1181 = vunpack.c.l.b16 %v1130
      %v1182 = vunpack.c.l.b16 %v1134
      %v1183 = vunpack.c.l.b16 %v1137
      %v1184 = vunpack.c.l.b16 %v1141
      %v1185 = vunpack.c.l.b16 %v1144
      %v1186 = vunpack.c.l.b16 %v1148
      %v1187 = vunpack.c.l.b16 %v1151
      %v1188 = vunpack.c.l.b16 %v1155
      %v1189 = vunpack.c.l.b16 %v1158
      %v1190 = vunpack.c.l.b16 %v1162
      %v1191 = vunpack.c.l.b16 %v1165
      %v1192 = vunpack.c.l.b16 %v1169
      %v1193 = vunpack.c.l.b16 %v1172
      %v1194 = vunpack.c.l.b16 %v1176
      %v1195 = vunpack.c.l.b16 %v1179
      %v1196 = vpack.c.b16 %v1181, %v1180
      %v1197 = vpack.c.b16 %v1183, %v1182
      %v1198 = vpack.c.b16 %v1185, %v1184
      %v1199 = vpack.c.b16 %v1187, %v1186
      %v1200 = vpack.c.b16 %v1189, %v1188
      %v1201 = vpack.c.b16 %v1191, %v1190
      %v1202 = vpack.c.b16 %v1193, %v1192
      %v1203 = vpack.c.b16 %v1195, %v1194
      %1204 = vrot.lane.b32.xlu0 %v1196, 16
      %v1205 = vpop.permute.xlu0 %1204
      %1206 = vrot.lane.b32.xlu0 %v1197, 16
      %v1207 = vpop.permute.xlu0 %1206
      %1208 = vrot.lane.b32.xlu0 %v1198, 16
      %v1209 = vpop.permute.xlu0 %1208
      %1210 = vrot.lane.b32.xlu0 %v1199, 16
      %v1211 = vpop.permute.xlu0 %1210
      %1212 = vrot.lane.b32.xlu0 %v1200, 16
      %v1213 = vpop.permute.xlu0 %1212
      %1214 = vrot.lane.b32.xlu0 %v1201, 16
      %v1215 = vpop.permute.xlu0 %1214
      %1216 = vrot.lane.b32.xlu0 %v1202, 16
      %v1217 = vpop.permute.xlu0 %1216
      %1218 = vrot.lane.b32.xlu0 %v1203, 16
      %v1219 = vpop.permute.xlu0 %1218
      %vm1228 = vcmask 162944
      %1229 = vst.msk [vmem:[#allocation2] sm:$0xff] %vm1228, %v1205
      %1230 = vst.msk [vmem:[#allocation2 + $0x10] sm:$0xff] %vm1228, %v1207
      %1231 = vst.msk [vmem:[#allocation2 + $0x20] sm:$0xff] %vm1228, %v1209
      %1232 = vst.msk [vmem:[#allocation2 + $0x30] sm:$0xff] %vm1228, %v1211
      %1233 = vst.msk [vmem:[#allocation2 + $0x40] sm:$0xff] %vm1228, %v1213
      %1234 = vst.msk [vmem:[#allocation2 + $0x50] sm:$0xff] %vm1228, %v1215
      %1235 = vst.msk [vmem:[#allocation2 + $0x60] sm:$0xff] %vm1228, %v1217
      %1236 = vst.msk [vmem:[#allocation2 + $0x70] sm:$0xff] %vm1228, %v1219
      %v1237 = vld [vmem:[%s434] sm:$0xe]
      %v1238 = vld [vmem:[%s434 + $0x4] sm:$0xf]
      %v1239 = vld [vmem:[%s434 + $0x8] sm:$0x1]
      %v1240 = vld [vmem:[%s434 + $0xc] sm:$0xe]
      %v1241 = vld [vmem:[%s434 + $0x10] sm:$0xf]
      %v1242 = vld [vmem:[%s434 + $0x14] sm:$0x1]
      %v1243 = vld [vmem:[%s434 + $0x18] sm:$0xe]
      %v1244 = vld [vmem:[%s434 + $0x1c] sm:$0xf]
      %v1245 = vld [vmem:[%s434 + $0x20] sm:$0x1]
      %v1246 = vld [vmem:[%s434 + $0x24] sm:$0xe]
      %v1247 = vld [vmem:[%s434 + $0x28] sm:$0xf]
      %v1248 = vld [vmem:[%s434 + $0x2c] sm:$0x1]
      %v1249 = vld [vmem:[%s434 + $0x30] sm:$0xe]
      %v1250 = vld [vmem:[%s434 + $0x34] sm:$0xf]
      %v1251 = vld [vmem:[%s434 + $0x38] sm:$0x1]
      %v1252 = vld [vmem:[%s434 + $0x3c] sm:$0xe]
      %v1253 = vld [vmem:[%s434 + $0x40] sm:$0xf]
      %v1254 = vld [vmem:[%s434 + $0x44] sm:$0x1]
      %v1255 = vld [vmem:[%s434 + $0x48] sm:$0xe]
      %v1256 = vld [vmem:[%s434 + $0x4c] sm:$0xf]
      %v1257 = vld [vmem:[%s434 + $0x50] sm:$0x1]
      %v1258 = vld [vmem:[%s434 + $0x54] sm:$0xe]
      %v1259 = vld [vmem:[%s434 + $0x58] sm:$0xf]
      %v1260 = vld [vmem:[%s434 + $0x5c] sm:$0x1]
      %v1285 = vrot.slane %v1237, 5
      %v1286 = vrot.slane %v1285, 4
      %v1287 = vrot.slane %v1238, 5
      %v1288 = vsel %vm1123, %v1286, %v1287
      %v1289 = vrot.slane %v1287, 4
      %v1290 = vrot.slane %v1239, 5
      %v1291 = vsel %vm1123, %v1289, %v1290
      %v1292 = vrot.slane %v1240, 5
      %v1293 = vrot.slane %v1292, 4
      %v1294 = vrot.slane %v1241, 5
      %v1295 = vsel %vm1123, %v1293, %v1294
      %v1296 = vrot.slane %v1294, 4
      %v1297 = vrot.slane %v1242, 5
      %v1298 = vsel %vm1123, %v1296, %v1297
      %v1299 = vrot.slane %v1243, 5
      %v1300 = vrot.slane %v1299, 4
      %v1301 = vrot.slane %v1244, 5
      %v1302 = vsel %vm1123, %v1300, %v1301
      %v1303 = vrot.slane %v1301, 4
      %v1304 = vrot.slane %v1245, 5
      %v1305 = vsel %vm1123, %v1303, %v1304
      %v1306 = vrot.slane %v1246, 5
      %v1307 = vrot.slane %v1306, 4
      %v1308 = vrot.slane %v1247, 5
      %v1309 = vsel %vm1123, %v1307, %v1308
      %v1310 = vrot.slane %v1308, 4
      %v1311 = vrot.slane %v1248, 5
      %v1312 = vsel %vm1123, %v1310, %v1311
      %v1313 = vrot.slane %v1249, 5
      %v1314 = vrot.slane %v1313, 4
      %v1315 = vrot.slane %v1250, 5
      %v1316 = vsel %vm1123, %v1314, %v1315
      %v1317 = vrot.slane %v1315, 4
      %v1318 = vrot.slane %v1251, 5
      %v1319 = vsel %vm1123, %v1317, %v1318
      %v1320 = vrot.slane %v1252, 5
      %v1321 = vrot.slane %v1320, 4
      %v1322 = vrot.slane %v1253, 5
      %v1323 = vsel %vm1123, %v1321, %v1322
      %v1324 = vrot.slane %v1322, 4
      %v1325 = vrot.slane %v1254, 5
      %v1326 = vsel %vm1123, %v1324, %v1325
      %v1327 = vrot.slane %v1255, 5
      %v1328 = vrot.slane %v1327, 4
      %v1329 = vrot.slane %v1256, 5
      %v1330 = vsel %vm1123, %v1328, %v1329
      %v1331 = vrot.slane %v1329, 4
      %v1332 = vrot.slane %v1257, 5
      %v1333 = vsel %vm1123, %v1331, %v1332
      %v1334 = vrot.slane %v1258, 5
      %v1335 = vrot.slane %v1334, 4
      %v1336 = vrot.slane %v1259, 5
      %v1337 = vsel %vm1123, %v1335, %v1336
      %v1338 = vrot.slane %v1336, 4
      %v1339 = vrot.slane %v1260, 5
      %v1340 = vsel %vm1123, %v1338, %v1339
      %v1341 = vunpack.c.l.b16 %v1288
      %v1342 = vunpack.c.l.b16 %v1291
      %v1343 = vunpack.c.l.b16 %v1295
      %v1344 = vunpack.c.l.b16 %v1298
      %v1345 = vunpack.c.l.b16 %v1302
      %v1346 = vunpack.c.l.b16 %v1305
      %v1347 = vunpack.c.l.b16 %v1309
      %v1348 = vunpack.c.l.b16 %v1312
      %v1349 = vunpack.c.l.b16 %v1316
      %v1350 = vunpack.c.l.b16 %v1319
      %v1351 = vunpack.c.l.b16 %v1323
      %v1352 = vunpack.c.l.b16 %v1326
      %v1353 = vunpack.c.l.b16 %v1330
      %v1354 = vunpack.c.l.b16 %v1333
      %v1355 = vunpack.c.l.b16 %v1337
      %v1356 = vunpack.c.l.b16 %v1340
      %v1357 = vpack.c.b16 %v1342, %v1341
      %v1358 = vpack.c.b16 %v1344, %v1343
      %v1359 = vpack.c.b16 %v1346, %v1345
      %v1360 = vpack.c.b16 %v1348, %v1347
      %v1361 = vpack.c.b16 %v1350, %v1349
      %v1362 = vpack.c.b16 %v1352, %v1351
      %v1363 = vpack.c.b16 %v1354, %v1353
      %v1364 = vpack.c.b16 %v1356, %v1355
      %1365 = vrot.lane.b32.xlu0 %v1357, 20
      %v1366 = vpop.permute.xlu0 %1365
      %1367 = vrot.lane.b32.xlu0 %v1358, 20
      %v1368 = vpop.permute.xlu0 %1367
      %1369 = vrot.lane.b32.xlu0 %v1359, 20
      %v1370 = vpop.permute.xlu0 %1369
      %1371 = vrot.lane.b32.xlu0 %v1360, 20
      %v1372 = vpop.permute.xlu0 %1371
      %1373 = vrot.lane.b32.xlu0 %v1361, 20
      %v1374 = vpop.permute.xlu0 %1373
      %1375 = vrot.lane.b32.xlu0 %v1362, 20
      %v1376 = vpop.permute.xlu0 %1375
      %1377 = vrot.lane.b32.xlu0 %v1363, 20
      %v1378 = vpop.permute.xlu0 %1377
      %1379 = vrot.lane.b32.xlu0 %v1364, 20
      %v1380 = vpop.permute.xlu0 %1379
      %vm1389 = vcmask 195744
      %1390 = vst.msk [vmem:[#allocation2] sm:$0xff] %vm1389, %v1366
      %1391 = vst.msk [vmem:[#allocation2 + $0x10] sm:$0xff] %vm1389, %v1368
      %1392 = vst.msk [vmem:[#allocation2 + $0x20] sm:$0xff] %vm1389, %v1370
      %1393 = vst.msk [vmem:[#allocation2 + $0x30] sm:$0xff] %vm1389, %v1372
      %1394 = vst.msk [vmem:[#allocation2 + $0x40] sm:$0xff] %vm1389, %v1374
      %1395 = vst.msk [vmem:[#allocation2 + $0x50] sm:$0xff] %vm1389, %v1376
      %1396 = vst.msk [vmem:[#allocation2 + $0x60] sm:$0xff] %vm1389, %v1378
      %1397 = vst.msk [vmem:[#allocation2 + $0x70] sm:$0xff] %vm1389, %v1380
      %v1398 = vld [vmem:[%s354] sm:$0xe]
      %v1399 = vld [vmem:[%s354 + $0x4] sm:$0xf]
      %v1400 = vld [vmem:[%s354 + $0x8] sm:$0x3]
      %v1401 = vld [vmem:[%s354 + $0xc] sm:$0xe]
      %v1402 = vld [vmem:[%s354 + $0x10] sm:$0xf]
      %v1403 = vld [vmem:[%s354 + $0x14] sm:$0x3]
      %v1404 = vld [vmem:[%s354 + $0x18] sm:$0xe]
      %v1405 = vld [vmem:[%s354 + $0x1c] sm:$0xf]
      %v1406 = vld [vmem:[%s354 + $0x20] sm:$0x3]
      %v1407 = vld [vmem:[%s354 + $0x24] sm:$0xe]
      %v1408 = vld [vmem:[%s354 + $0x28] sm:$0xf]
      %v1409 = vld [vmem:[%s354 + $0x2c] sm:$0x3]
      %v1410 = vld [vmem:[%s354 + $0x30] sm:$0xe]
      %v1411 = vld [vmem:[%s354 + $0x34] sm:$0xf]
      %v1412 = vld [vmem:[%s354 + $0x38] sm:$0x3]
      %v1413 = vld [vmem:[%s354 + $0x3c] sm:$0xe]
      %v1414 = vld [vmem:[%s354 + $0x40] sm:$0xf]
      %v1415 = vld [vmem:[%s354 + $0x44] sm:$0x3]
      %v1416 = vld [vmem:[%s354 + $0x48] sm:$0xe]
      %v1417 = vld [vmem:[%s354 + $0x4c] sm:$0xf]
      %v1418 = vld [vmem:[%s354 + $0x50] sm:$0x3]
      %v1419 = vld [vmem:[%s354 + $0x54] sm:$0xe]
      %v1420 = vld [vmem:[%s354 + $0x58] sm:$0xf]
      %v1421 = vld [vmem:[%s354 + $0x5c] sm:$0x3]
      %vm1422 = vsmask.f32 2304
      %vm1423 = vsmask.f32 6416
      %vm1424 = vmor %vm1422, %vm1423
      %v1426 = vshrl.u32 %v1398, 16
      %v1428 = vrot.slane %v1426, 5
      %v1429 = vshll.u32 %v1398, 16
      %v1431 = vrot.slane %v1429, 6
      %v1432 = vor.u32 %v1428, %v1431
      %v1433 = vrot.slane %v1432, 4
      %v1435 = vshrl.u32 %v1399, 16
      %v1437 = vrot.slane %v1435, 5
      %v1438 = vshll.u32 %v1399, 16
      %v1440 = vrot.slane %v1438, 6
      %v1441 = vor.u32 %v1437, %v1440
      %v1442 = vsel %vm1424, %v1433, %v1441
      %v1443 = vrot.slane %v1441, 4
      %v1445 = vshrl.u32 %v1400, 16
      %v1447 = vrot.slane %v1445, 5
      %v1448 = vshll.u32 %v1400, 16
      %v1450 = vrot.slane %v1448, 6
      %v1451 = vor.u32 %v1447, %v1450
      %v1452 = vsel %vm1424, %v1443, %v1451
      %v1454 = vshrl.u32 %v1401, 16
      %v1456 = vrot.slane %v1454, 5
      %v1457 = vshll.u32 %v1401, 16
      %v1459 = vrot.slane %v1457, 6
      %v1460 = vor.u32 %v1456, %v1459
      %v1461 = vrot.slane %v1460, 4
      %v1463 = vshrl.u32 %v1402, 16
      %v1465 = vrot.slane %v1463, 5
      %v1466 = vshll.u32 %v1402, 16
      %v1468 = vrot.slane %v1466, 6
      %v1469 = vor.u32 %v1465, %v1468
      %v1470 = vsel %vm1424, %v1461, %v1469
      %v1471 = vrot.slane %v1469, 4
      %v1473 = vshrl.u32 %v1403, 16
      %v1475 = vrot.slane %v1473, 5
      %v1476 = vshll.u32 %v1403, 16
      %v1478 = vrot.slane %v1476, 6
      %v1479 = vor.u32 %v1475, %v1478
      %v1480 = vsel %vm1424, %v1471, %v1479
      %v1482 = vshrl.u32 %v1404, 16
      %v1484 = vrot.slane %v1482, 5
      %v1485 = vshll.u32 %v1404, 16
      %v1487 = vrot.slane %v1485, 6
      %v1488 = vor.u32 %v1484, %v1487
      %v1489 = vrot.slane %v1488, 4
      %v1491 = vshrl.u32 %v1405, 16
      %v1493 = vrot.slane %v1491, 5
      %v1494 = vshll.u32 %v1405, 16
      %v1496 = vrot.slane %v1494, 6
      %v1497 = vor.u32 %v1493, %v1496
      %v1498 = vsel %vm1424, %v1489, %v1497
      %v1499 = vrot.slane %v1497, 4
      %v1501 = vshrl.u32 %v1406, 16
      %v1503 = vrot.slane %v1501, 5
      %v1504 = vshll.u32 %v1406, 16
      %v1506 = vrot.slane %v1504, 6
      %v1507 = vor.u32 %v1503, %v1506
      %v1508 = vsel %vm1424, %v1499, %v1507
      %v1510 = vshrl.u32 %v1407, 16
      %v1512 = vrot.slane %v1510, 5
      %v1513 = vshll.u32 %v1407, 16
      %v1515 = vrot.slane %v1513, 6
      %v1516 = vor.u32 %v1512, %v1515
      %v1517 = vrot.slane %v1516, 4
      %v1519 = vshrl.u32 %v1408, 16
      %v1521 = vrot.slane %v1519, 5
      %v1522 = vshll.u32 %v1408, 16
      %v1524 = vrot.slane %v1522, 6
      %v1525 = vor.u32 %v1521, %v1524
      %v1526 = vsel %vm1424, %v1517, %v1525
      %v1527 = vrot.slane %v1525, 4
      %v1529 = vshrl.u32 %v1409, 16
      %v1531 = vrot.slane %v1529, 5
      %v1532 = vshll.u32 %v1409, 16
      %v1534 = vrot.slane %v1532, 6
      %v1535 = vor.u32 %v1531, %v1534
      %v1536 = vsel %vm1424, %v1527, %v1535
      %v1538 = vshrl.u32 %v1410, 16
      %v1540 = vrot.slane %v1538, 5
      %v1541 = vshll.u32 %v1410, 16
      %v1543 = vrot.slane %v1541, 6
      %v1544 = vor.u32 %v1540, %v1543
      %v1545 = vrot.slane %v1544, 4
      %v1547 = vshrl.u32 %v1411, 16
      %v1549 = vrot.slane %v1547, 5
      %v1550 = vshll.u32 %v1411, 16
      %v1552 = vrot.slane %v1550, 6
      %v1553 = vor.u32 %v1549, %v1552
      %v1554 = vsel %vm1424, %v1545, %v1553
      %v1555 = vrot.slane %v1553, 4
      %v1557 = vshrl.u32 %v1412, 16
      %v1559 = vrot.slane %v1557, 5
      %v1560 = vshll.u32 %v1412, 16
      %v1562 = vrot.slane %v1560, 6
      %v1563 = vor.u32 %v1559, %v1562
      %v1564 = vsel %vm1424, %v1555, %v1563
      %v1566 = vshrl.u32 %v1413, 16
      %v1568 = vrot.slane %v1566, 5
      %v1569 = vshll.u32 %v1413, 16
      %v1571 = vrot.slane %v1569, 6
      %v1572 = vor.u32 %v1568, %v1571
      %v1573 = vrot.slane %v1572, 4
      %v1575 = vshrl.u32 %v1414, 16
      %v1577 = vrot.slane %v1575, 5
      %v1578 = vshll.u32 %v1414, 16
      %v1580 = vrot.slane %v1578, 6
      %v1581 = vor.u32 %v1577, %v1580
      %v1582 = vsel %vm1424, %v1573, %v1581
      %v1583 = vrot.slane %v1581, 4
      %v1585 = vshrl.u32 %v1415, 16
      %v1587 = vrot.slane %v1585, 5
      %v1588 = vshll.u32 %v1415, 16
      %v1590 = vrot.slane %v1588, 6
      %v1591 = vor.u32 %v1587, %v1590
      %v1592 = vsel %vm1424, %v1583, %v1591
      %v1594 = vshrl.u32 %v1416, 16
      %v1596 = vrot.slane %v1594, 5
      %v1597 = vshll.u32 %v1416, 16
      %v1599 = vrot.slane %v1597, 6
      %v1600 = vor.u32 %v1596, %v1599
      %v1601 = vrot.slane %v1600, 4
      %v1603 = vshrl.u32 %v1417, 16
      %v1605 = vrot.slane %v1603, 5
      %v1606 = vshll.u32 %v1417, 16
      %v1608 = vrot.slane %v1606, 6
      %v1609 = vor.u32 %v1605, %v1608
      %v1610 = vsel %vm1424, %v1601, %v1609
      %v1611 = vrot.slane %v1609, 4
      %v1613 = vshrl.u32 %v1418, 16
      %v1615 = vrot.slane %v1613, 5
      %v1616 = vshll.u32 %v1418, 16
      %v1618 = vrot.slane %v1616, 6
      %v1619 = vor.u32 %v1615, %v1618
      %v1620 = vsel %vm1424, %v1611, %v1619
      %v1622 = vshrl.u32 %v1419, 16
      %v1624 = vrot.slane %v1622, 5
      %v1625 = vshll.u32 %v1419, 16
      %v1627 = vrot.slane %v1625, 6
      %v1628 = vor.u32 %v1624, %v1627
      %v1629 = vrot.slane %v1628, 4
      %v1631 = vshrl.u32 %v1420, 16
      %v1633 = vrot.slane %v1631, 5
      %v1634 = vshll.u32 %v1420, 16
      %v1636 = vrot.slane %v1634, 6
      %v1637 = vor.u32 %v1633, %v1636
      %v1638 = vsel %vm1424, %v1629, %v1637
      %v1639 = vrot.slane %v1637, 4
      %v1641 = vshrl.u32 %v1421, 16
      %v1643 = vrot.slane %v1641, 5
      %v1644 = vshll.u32 %v1421, 16
      %v1646 = vrot.slane %v1644, 6
      %v1647 = vor.u32 %v1643, %v1646
      %v1648 = vsel %vm1424, %v1639, %v1647
      %v1649 = vunpack.c.l.b16 %v1442
      %v1650 = vunpack.c.l.b16 %v1452
      %v1651 = vunpack.c.l.b16 %v1470
      %v1652 = vunpack.c.l.b16 %v1480
      %v1653 = vunpack.c.l.b16 %v1498
      %v1654 = vunpack.c.l.b16 %v1508
      %v1655 = vunpack.c.l.b16 %v1526
      %v1656 = vunpack.c.l.b16 %v1536
      %v1657 = vunpack.c.l.b16 %v1554
      %v1658 = vunpack.c.l.b16 %v1564
      %v1659 = vunpack.c.l.b16 %v1582
      %v1660 = vunpack.c.l.b16 %v1592
      %v1661 = vunpack.c.l.b16 %v1610
      %v1662 = vunpack.c.l.b16 %v1620
      %v1663 = vunpack.c.l.b16 %v1638
      %v1664 = vunpack.c.l.b16 %v1648
      %v1665 = vpack.c.b16 %v1650, %v1649
      %v1666 = vpack.c.b16 %v1652, %v1651
      %v1667 = vpack.c.b16 %v1654, %v1653
      %v1668 = vpack.c.b16 %v1656, %v1655
      %v1669 = vpack.c.b16 %v1658, %v1657
      %v1670 = vpack.c.b16 %v1660, %v1659
      %v1671 = vpack.c.b16 %v1662, %v1661
      %v1672 = vpack.c.b16 %v1664, %v1663
      %1673 = vrot.lane.b32.xlu0 %v1665, 24
      %v1674 = vpop.permute.xlu0 %1673
      %1675 = vrot.lane.b32.xlu0 %v1666, 24
      %v1676 = vpop.permute.xlu0 %1675
      %1677 = vrot.lane.b32.xlu0 %v1667, 24
      %v1678 = vpop.permute.xlu0 %1677
      %1679 = vrot.lane.b32.xlu0 %v1668, 24
      %v1680 = vpop.permute.xlu0 %1679
      %1681 = vrot.lane.b32.xlu0 %v1669, 24
      %v1682 = vpop.permute.xlu0 %1681
      %1683 = vrot.lane.b32.xlu0 %v1670, 24
      %v1684 = vpop.permute.xlu0 %1683
      %1685 = vrot.lane.b32.xlu0 %v1671, 24
      %v1686 = vpop.permute.xlu0 %1685
      %1687 = vrot.lane.b32.xlu0 %v1672, 24
      %v1688 = vpop.permute.xlu0 %1687
      %vm1697 = vcmask 228544
      %1698 = vst.msk [vmem:[#allocation2] sm:$0xff] %vm1697, %v1674
      %1699 = vst.msk [vmem:[#allocation2 + $0x10] sm:$0xff] %vm1697, %v1676
      %1700 = vst.msk [vmem:[#allocation2 + $0x20] sm:$0xff] %vm1697, %v1678
      %1701 = vst.msk [vmem:[#allocation2 + $0x30] sm:$0xff] %vm1697, %v1680
      %1702 = vst.msk [vmem:[#allocation2 + $0x40] sm:$0xff] %vm1697, %v1682
      %1703 = vst.msk [vmem:[#allocation2 + $0x50] sm:$0xff] %vm1697, %v1684
      %1704 = vst.msk [vmem:[#allocation2 + $0x60] sm:$0xff] %vm1697, %v1686
      %1705 = vst.msk [vmem:[#allocation2 + $0x70] sm:$0xff] %vm1697, %v1688
      %s1706 = scalar_lea.vmem %s354, 264
      %v1707 = vld [vmem:[%s1706] sm:$0xf]
      %v1708 = vld [vmem:[%s1706 + $0x4] sm:$0xf]
      %v1709 = vld [vmem:[%s1706 + $0xc] sm:$0xf]
      %v1710 = vld [vmem:[%s1706 + $0x10] sm:$0xf]
      %v1711 = vld [vmem:[%s1706 + $0x18] sm:$0xf]
      %v1712 = vld [vmem:[%s1706 + $0x1c] sm:$0xf]
      %v1713 = vld [vmem:[%s1706 + $0x24] sm:$0xf]
      %v1714 = vld [vmem:[%s1706 + $0x28] sm:$0xf]
      %v1715 = vld [vmem:[%s1706 + $0x30] sm:$0xf]
      %v1716 = vld [vmem:[%s1706 + $0x34] sm:$0xf]
      %v1717 = vld [vmem:[%s1706 + $0x3c] sm:$0xf]
      %v1718 = vld [vmem:[%s1706 + $0x40] sm:$0xf]
      %v1719 = vld [vmem:[%s1706 + $0x48] sm:$0xf]
      %v1720 = vld [vmem:[%s1706 + $0x4c] sm:$0xf]
      %v1721 = vld [vmem:[%s1706 + $0x54] sm:$0xf]
      %v1722 = vld [vmem:[%s1706 + $0x58] sm:$0xf]
      %v1739 = vunpack.c.l.b16 %v1707
      %v1740 = vunpack.c.l.b16 %v1708
      %v1741 = vunpack.c.l.b16 %v1709
      %v1742 = vunpack.c.l.b16 %v1710
      %v1743 = vunpack.c.l.b16 %v1711
      %v1744 = vunpack.c.l.b16 %v1712
      %v1745 = vunpack.c.l.b16 %v1713
      %v1746 = vunpack.c.l.b16 %v1714
      %v1747 = vunpack.c.l.b16 %v1715
      %v1748 = vunpack.c.l.b16 %v1716
      %v1749 = vunpack.c.l.b16 %v1717
      %v1750 = vunpack.c.l.b16 %v1718
      %v1751 = vunpack.c.l.b16 %v1719
      %v1752 = vunpack.c.l.b16 %v1720
      %v1753 = vunpack.c.l.b16 %v1721
      %v1754 = vunpack.c.l.b16 %v1722
      %v1755 = vpack.c.b16 %v1740, %v1739
      %v1756 = vpack.c.b16 %v1742, %v1741
      %v1757 = vpack.c.b16 %v1744, %v1743
      %v1758 = vpack.c.b16 %v1746, %v1745
      %v1759 = vpack.c.b16 %v1748, %v1747
      %v1760 = vpack.c.b16 %v1750, %v1749
      %v1761 = vpack.c.b16 %v1752, %v1751
      %v1762 = vpack.c.b16 %v1754, %v1753
      %1763 = vrot.lane.b32.xlu0 %v1755, 28
      %v1764 = vpop.permute.xlu0 %1763
      %1765 = vrot.lane.b32.xlu0 %v1756, 28
      %v1766 = vpop.permute.xlu0 %1765
      %1767 = vrot.lane.b32.xlu0 %v1757, 28
      %v1768 = vpop.permute.xlu0 %1767
      %1769 = vrot.lane.b32.xlu0 %v1758, 28
      %v1770 = vpop.permute.xlu0 %1769
      %1771 = vrot.lane.b32.xlu0 %v1759, 28
      %v1772 = vpop.permute.xlu0 %1771
      %1773 = vrot.lane.b32.xlu0 %v1760, 28
      %v1774 = vpop.permute.xlu0 %1773
      %1775 = vrot.lane.b32.xlu0 %v1761, 28
      %v1776 = vpop.permute.xlu0 %1775
      %1777 = vrot.lane.b32.xlu0 %v1762, 28
      %v1778 = vpop.permute.xlu0 %1777
      %vm1787 = vcmask 261344
      %1788 = vst.msk [vmem:[#allocation2] sm:$0xff] %vm1787, %v1764
      %1789 = vst.msk [vmem:[#allocation2 + $0x10] sm:$0xff] %vm1787, %v1766
      %1790 = vst.msk [vmem:[#allocation2 + $0x20] sm:$0xff] %vm1787, %v1768
      %1791 = vst.msk [vmem:[#allocation2 + $0x30] sm:$0xff] %vm1787, %v1770
      %1792 = vst.msk [vmem:[#allocation2 + $0x40] sm:$0xff] %vm1787, %v1772
      %1793 = vst.msk [vmem:[#allocation2 + $0x50] sm:$0xff] %vm1787, %v1774
      %1794 = vst.msk [vmem:[#allocation2 + $0x60] sm:$0xff] %vm1787, %v1776
      %1795 = vst.msk [vmem:[#allocation2 + $0x70] sm:$0xff] %vm1787, %v1778
      %s1796 = scalar_lea.vmem %s354, 396
      %v1797 = vld [vmem:[%s1796] sm:$0xf]
      %v1798 = vld [vmem:[%s1796 + $0x4] sm:$0xf]
      %v1799 = vld [vmem:[%s1796 + $0xc] sm:$0xf]
      %v1800 = vld [vmem:[%s1796 + $0x10] sm:$0xf]
      %v1801 = vld [vmem:[%s1796 + $0x18] sm:$0xf]
      %v1802 = vld [vmem:[%s1796 + $0x1c] sm:$0xf]
      %v1803 = vld [vmem:[%s1796 + $0x24] sm:$0xf]
      %v1804 = vld [vmem:[%s1796 + $0x28] sm:$0xf]
      %v1805 = vld [vmem:[%s1796 + $0x30] sm:$0xf]
      %v1806 = vld [vmem:[%s1796 + $0x34] sm:$0xf]
      %v1807 = vld [vmem:[%s1796 + $0x3c] sm:$0xf]
      %v1808 = vld [vmem:[%s1796 + $0x40] sm:$0xf]
      %v1809 = vld [vmem:[%s1796 + $0x48] sm:$0xf]
      %v1810 = vld [vmem:[%s1796 + $0x4c] sm:$0xf]
      %v1811 = vld [vmem:[%s1796 + $0x54] sm:$0xf]
      %v1812 = vld [vmem:[%s1796 + $0x58] sm:$0xf]
      %v1829 = vunpack.c.l.b16 %v1797
      %v1830 = vunpack.c.l.b16 %v1798
      %v1831 = vunpack.c.l.b16 %v1799
      %v1832 = vunpack.c.l.b16 %v1800
      %v1833 = vunpack.c.l.b16 %v1801
      %v1834 = vunpack.c.l.b16 %v1802
      %v1835 = vunpack.c.l.b16 %v1803
      %v1836 = vunpack.c.l.b16 %v1804
      %v1837 = vunpack.c.l.b16 %v1805
      %v1838 = vunpack.c.l.b16 %v1806
      %v1839 = vunpack.c.l.b16 %v1807
      %v1840 = vunpack.c.l.b16 %v1808
      %v1841 = vunpack.c.l.b16 %v1809
      %v1842 = vunpack.c.l.b16 %v1810
      %v1843 = vunpack.c.l.b16 %v1811
      %v1844 = vunpack.c.l.b16 %v1812
      %v1845 = vpack.c.b16 %v1830, %v1829
      %v1846 = vpack.c.b16 %v1832, %v1831
      %v1847 = vpack.c.b16 %v1834, %v1833
      %v1848 = vpack.c.b16 %v1836, %v1835
      %v1849 = vpack.c.b16 %v1838, %v1837
      %v1850 = vpack.c.b16 %v1840, %v1839
      %v1851 = vpack.c.b16 %v1842, %v1841
      %v1852 = vpack.c.b16 %v1844, %v1843
      %1853 = vrot.lane.b32.xlu0 %v1845, 32
      %v1854 = vpop.permute.xlu0 %1853
      %1855 = vrot.lane.b32.xlu0 %v1846, 32
      %v1856 = vpop.permute.xlu0 %1855
      %1857 = vrot.lane.b32.xlu0 %v1847, 32
      %v1858 = vpop.permute.xlu0 %1857
      %1859 = vrot.lane.b32.xlu0 %v1848, 32
      %v1860 = vpop.permute.xlu0 %1859
      %1861 = vrot.lane.b32.xlu0 %v1849, 32
      %v1862 = vpop.permute.xlu0 %1861
      %1863 = vrot.lane.b32.xlu0 %v1850, 32
      %v1864 = vpop.permute.xlu0 %1863
      %1865 = vrot.lane.b32.xlu0 %v1851, 32
      %v1866 = vpop.permute.xlu0 %1865
      %1867 = vrot.lane.b32.xlu0 %v1852, 32
      %v1868 = vpop.permute.xlu0 %1867
      %vm1877 = vcmask 294144
      %1878 = vst.msk [vmem:[#allocation2] sm:$0xff] %vm1877, %v1854
      %1879 = vst.msk [vmem:[#allocation2 + $0x10] sm:$0xff] %vm1877, %v1856
      %1880 = vst.msk [vmem:[#allocation2 + $0x20] sm:$0xff] %vm1877, %v1858
      %1881 = vst.msk [vmem:[#allocation2 + $0x30] sm:$0xff] %vm1877, %v1860
      %1882 = vst.msk [vmem:[#allocation2 + $0x40] sm:$0xff] %vm1877, %v1862
      %1883 = vst.msk [vmem:[#allocation2 + $0x50] sm:$0xff] %vm1877, %v1864
      %1884 = vst.msk [vmem:[#allocation2 + $0x60] sm:$0xff] %vm1877, %v1866
      %1885 = vst.msk [vmem:[#allocation2 + $0x70] sm:$0xff] %vm1877, %v1868
      %v1886 = vld [vmem:[%s1706] sm:$0xf]
      %v1887 = vld [vmem:[%s1706 + $0x4] sm:$0xf]
      %v1888 = vld [vmem:[%s1706 + $0x8] sm:$0x1]
      %v1889 = vld [vmem:[%s1706 + $0xc] sm:$0xf]
      %v1890 = vld [vmem:[%s1706 + $0x10] sm:$0xf]
      %v1891 = vld [vmem:[%s1706 + $0x14] sm:$0x1]
      %v1892 = vld [vmem:[%s1706 + $0x18] sm:$0xf]
      %v1893 = vld [vmem:[%s1706 + $0x1c] sm:$0xf]
      %v1894 = vld [vmem:[%s1706 + $0x20] sm:$0x1]
      %v1895 = vld [vmem:[%s1706 + $0x24] sm:$0xf]
      %v1896 = vld [vmem:[%s1706 + $0x28] sm:$0xf]
      %v1897 = vld [vmem:[%s1706 + $0x2c] sm:$0x1]
      %v1898 = vld [vmem:[%s1706 + $0x30] sm:$0xf]
      %v1899 = vld [vmem:[%s1706 + $0x34] sm:$0xf]
      %v1900 = vld [vmem:[%s1706 + $0x38] sm:$0x1]
      %v1901 = vld [vmem:[%s1706 + $0x3c] sm:$0xf]
      %v1902 = vld [vmem:[%s1706 + $0x40] sm:$0xf]
      %v1903 = vld [vmem:[%s1706 + $0x44] sm:$0x1]
      %v1904 = vld [vmem:[%s1706 + $0x48] sm:$0xf]
      %v1905 = vld [vmem:[%s1706 + $0x4c] sm:$0xf]
      %v1906 = vld [vmem:[%s1706 + $0x50] sm:$0x1]
      %v1907 = vld [vmem:[%s1706 + $0x54] sm:$0xf]
      %v1908 = vld [vmem:[%s1706 + $0x58] sm:$0xf]
      %v1909 = vld [vmem:[%s1706 + $0x5c] sm:$0x1]
      %v1911 = vshrl.u32 %v1886, 16
      %v1913 = vrot.slane %v1911, 4
      %v1914 = vshll.u32 %v1886, 16
      %v1916 = vrot.slane %v1914, 5
      %v1917 = vor.u32 %v1913, %v1916
      %v1918 = vrot.slane %v1917, 4
      %v1920 = vshll.u32 %v1887, 16
      %v1922 = vrot.slane %v1920, 5
      %v1923 = vsel %vm550, %v1918, %v1922
      %v1924 = vshrl.u32 %v1887, 16
      %v1926 = vrot.slane %v1924, 4
      %v1927 = vor.u32 %v1926, %v1922
      %v1928 = vrot.slane %v1927, 4
      %v1930 = vshll.u32 %v1888, 16
      %v1932 = vrot.slane %v1930, 5
      %v1933 = vsel %vm550, %v1928, %v1932
      %v1935 = vshrl.u32 %v1889, 16
      %v1937 = vrot.slane %v1935, 4
      %v1938 = vshll.u32 %v1889, 16
      %v1940 = vrot.slane %v1938, 5
      %v1941 = vor.u32 %v1937, %v1940
      %v1942 = vrot.slane %v1941, 4
      %v1944 = vshll.u32 %v1890, 16
      %v1946 = vrot.slane %v1944, 5
      %v1947 = vsel %vm550, %v1942, %v1946
      %v1948 = vshrl.u32 %v1890, 16
      %v1950 = vrot.slane %v1948, 4
      %v1951 = vor.u32 %v1950, %v1946
      %v1952 = vrot.slane %v1951, 4
      %v1954 = vshll.u32 %v1891, 16
      %v1956 = vrot.slane %v1954, 5
      %v1957 = vsel %vm550, %v1952, %v1956
      %v1959 = vshrl.u32 %v1892, 16
      %v1961 = vrot.slane %v1959, 4
      %v1962 = vshll.u32 %v1892, 16
      %v1964 = vrot.slane %v1962, 5
      %v1965 = vor.u32 %v1961, %v1964
      %v1966 = vrot.slane %v1965, 4
      %v1968 = vshll.u32 %v1893, 16
      %v1970 = vrot.slane %v1968, 5
      %v1971 = vsel %vm550, %v1966, %v1970
      %v1972 = vshrl.u32 %v1893, 16
      %v1974 = vrot.slane %v1972, 4
      %v1975 = vor.u32 %v1974, %v1970
      %v1976 = vrot.slane %v1975, 4
      %v1978 = vshll.u32 %v1894, 16
      %v1980 = vrot.slane %v1978, 5
      %v1981 = vsel %vm550, %v1976, %v1980
      %v1983 = vshrl.u32 %v1895, 16
      %v1985 = vrot.slane %v1983, 4
      %v1986 = vshll.u32 %v1895, 16
      %v1988 = vrot.slane %v1986, 5
      %v1989 = vor.u32 %v1985, %v1988
      %v1990 = vrot.slane %v1989, 4
      %v1992 = vshll.u32 %v1896, 16
      %v1994 = vrot.slane %v1992, 5
      %v1995 = vsel %vm550, %v1990, %v1994
      %v1996 = vshrl.u32 %v1896, 16
      %v1998 = vrot.slane %v1996, 4
      %v1999 = vor.u32 %v1998, %v1994
      %v2000 = vrot.slane %v1999, 4
      %v2002 = vshll.u32 %v1897, 16
      %v2004 = vrot.slane %v2002, 5
      %v2005 = vsel %vm550, %v2000, %v2004
      %v2007 = vshrl.u32 %v1898, 16
      %v2009 = vrot.slane %v2007, 4
      %v2010 = vshll.u32 %v1898, 16
      %v2012 = vrot.slane %v2010, 5
      %v2013 = vor.u32 %v2009, %v2012
      %v2014 = vrot.slane %v2013, 4
      %v2016 = vshll.u32 %v1899, 16
      %v2018 = vrot.slane %v2016, 5
      %v2019 = vsel %vm550, %v2014, %v2018
      %v2020 = vshrl.u32 %v1899, 16
      %v2022 = vrot.slane %v2020, 4
      %v2023 = vor.u32 %v2022, %v2018
      %v2024 = vrot.slane %v2023, 4
      %v2026 = vshll.u32 %v1900, 16
      %v2028 = vrot.slane %v2026, 5
      %v2029 = vsel %vm550, %v2024, %v2028
      %v2031 = vshrl.u32 %v1901, 16
      %v2033 = vrot.slane %v2031, 4
      %v2034 = vshll.u32 %v1901, 16
      %v2036 = vrot.slane %v2034, 5
      %v2037 = vor.u32 %v2033, %v2036
      %v2038 = vrot.slane %v2037, 4
      %v2040 = vshll.u32 %v1902, 16
      %v2042 = vrot.slane %v2040, 5
      %v2043 = vsel %vm550, %v2038, %v2042
      %v2044 = vshrl.u32 %v1902, 16
      %v2046 = vrot.slane %v2044, 4
      %v2047 = vor.u32 %v2046, %v2042
      %v2048 = vrot.slane %v2047, 4
      %v2050 = vshll.u32 %v1903, 16
      %v2052 = vrot.slane %v2050, 5
      %v2053 = vsel %vm550, %v2048, %v2052
      %v2055 = vshrl.u32 %v1904, 16
      %v2057 = vrot.slane %v2055, 4
      %v2058 = vshll.u32 %v1904, 16
      %v2060 = vrot.slane %v2058, 5
      %v2061 = vor.u32 %v2057, %v2060
      %v2062 = vrot.slane %v2061, 4
      %v2064 = vshll.u32 %v1905, 16
      %v2066 = vrot.slane %v2064, 5
      %v2067 = vsel %vm550, %v2062, %v2066
      %v2068 = vshrl.u32 %v1905, 16
      %v2070 = vrot.slane %v2068, 4
      %v2071 = vor.u32 %v2070, %v2066
      %v2072 = vrot.slane %v2071, 4
      %v2074 = vshll.u32 %v1906, 16
      %v2076 = vrot.slane %v2074, 5
      %v2077 = vsel %vm550, %v2072, %v2076
      %v2079 = vshrl.u32 %v1907, 16
      %v2081 = vrot.slane %v2079, 4
      %v2082 = vshll.u32 %v1907, 16
      %v2084 = vrot.slane %v2082, 5
      %v2085 = vor.u32 %v2081, %v2084
      %v2086 = vrot.slane %v2085, 4
      %v2088 = vshll.u32 %v1908, 16
      %v2090 = vrot.slane %v2088, 5
      %v2091 = vsel %vm550, %v2086, %v2090
      %v2092 = vshrl.u32 %v1908, 16
      %v2094 = vrot.slane %v2092, 4
      %v2095 = vor.u32 %v2094, %v2090
      %v2096 = vrot.slane %v2095, 4
      %v2098 = vshll.u32 %v1909, 16
      %v2100 = vrot.slane %v2098, 5
      %v2101 = vsel %vm550, %v2096, %v2100
      %v2102 = vunpack.c.l.b16 %v1923
      %v2103 = vunpack.c.l.b16 %v1933
      %v2104 = vunpack.c.l.b16 %v1947
      %v2105 = vunpack.c.l.b16 %v1957
      %v2106 = vunpack.c.l.b16 %v1971
      %v2107 = vunpack.c.l.b16 %v1981
      %v2108 = vunpack.c.l.b16 %v1995
      %v2109 = vunpack.c.l.b16 %v2005
      %v2110 = vunpack.c.l.b16 %v2019
      %v2111 = vunpack.c.l.b16 %v2029
      %v2112 = vunpack.c.l.b16 %v2043
      %v2113 = vunpack.c.l.b16 %v2053
      %v2114 = vunpack.c.l.b16 %v2067
      %v2115 = vunpack.c.l.b16 %v2077
      %v2116 = vunpack.c.l.b16 %v2091
      %v2117 = vunpack.c.l.b16 %v2101
      %v2118 = vpack.c.b16 %v2103, %v2102
      %v2119 = vpack.c.b16 %v2105, %v2104
      %v2120 = vpack.c.b16 %v2107, %v2106
      %v2121 = vpack.c.b16 %v2109, %v2108
      %v2122 = vpack.c.b16 %v2111, %v2110
      %v2123 = vpack.c.b16 %v2113, %v2112
      %v2124 = vpack.c.b16 %v2115, %v2114
      %v2125 = vpack.c.b16 %v2117, %v2116
      %2126 = vrot.lane.b32.xlu0 %v2118, 36
      %v2127 = vpop.permute.xlu0 %2126
      %2128 = vrot.lane.b32.xlu0 %v2119, 36
      %v2129 = vpop.permute.xlu0 %2128
      %2130 = vrot.lane.b32.xlu0 %v2120, 36
      %v2131 = vpop.permute.xlu0 %2130
      %2132 = vrot.lane.b32.xlu0 %v2121, 36
      %v2133 = vpop.permute.xlu0 %2132
      %2134 = vrot.lane.b32.xlu0 %v2122, 36
      %v2135 = vpop.permute.xlu0 %2134
      %2136 = vrot.lane.b32.xlu0 %v2123, 36
      %v2137 = vpop.permute.xlu0 %2136
      %2138 = vrot.lane.b32.xlu0 %v2124, 36
      %v2139 = vpop.permute.xlu0 %2138
      %2140 = vrot.lane.b32.xlu0 %v2125, 36
      %v2141 = vpop.permute.xlu0 %2140
      %vm2150 = vcmask 326944
      %2151 = vst.msk [vmem:[#allocation2] sm:$0xff] %vm2150, %v2127
      %2152 = vst.msk [vmem:[#allocation2 + $0x10] sm:$0xff] %vm2150, %v2129
      %2153 = vst.msk [vmem:[#allocation2 + $0x20] sm:$0xff] %vm2150, %v2131
      %2154 = vst.msk [vmem:[#allocation2 + $0x30] sm:$0xff] %vm2150, %v2133
      %2155 = vst.msk [vmem:[#allocation2 + $0x40] sm:$0xff] %vm2150, %v2135
      %2156 = vst.msk [vmem:[#allocation2 + $0x50] sm:$0xff] %vm2150, %v2137
      %2157 = vst.msk [vmem:[#allocation2 + $0x60] sm:$0xff] %vm2150, %v2139
      %2158 = vst.msk [vmem:[#allocation2 + $0x70] sm:$0xff] %vm2150, %v2141
      %v2159 = vld [vmem:[%s1796] sm:$0xf]
      %v2160 = vld [vmem:[%s1796 + $0x4] sm:$0xf]
      %v2161 = vld [vmem:[%s1796 + $0x8] sm:$0x1]
      %v2162 = vld [vmem:[%s1796 + $0xc] sm:$0xf]
      %v2163 = vld [vmem:[%s1796 + $0x10] sm:$0xf]
      %v2164 = vld [vmem:[%s1796 + $0x14] sm:$0x1]
      %v2165 = vld [vmem:[%s1796 + $0x18] sm:$0xf]
      %v2166 = vld [vmem:[%s1796 + $0x1c] sm:$0xf]
      %v2167 = vld [vmem:[%s1796 + $0x20] sm:$0x1]
      %v2168 = vld [vmem:[%s1796 + $0x24] sm:$0xf]
      %v2169 = vld [vmem:[%s1796 + $0x28] sm:$0xf]
      %v2170 = vld [vmem:[%s1796 + $0x2c] sm:$0x1]
      %v2171 = vld [vmem:[%s1796 + $0x30] sm:$0xf]
      %v2172 = vld [vmem:[%s1796 + $0x34] sm:$0xf]
      %v2173 = vld [vmem:[%s1796 + $0x38] sm:$0x1]
      %v2174 = vld [vmem:[%s1796 + $0x3c] sm:$0xf]
      %v2175 = vld [vmem:[%s1796 + $0x40] sm:$0xf]
      %v2176 = vld [vmem:[%s1796 + $0x44] sm:$0x1]
      %v2177 = vld [vmem:[%s1796 + $0x48] sm:$0xf]
      %v2178 = vld [vmem:[%s1796 + $0x4c] sm:$0xf]
      %v2179 = vld [vmem:[%s1796 + $0x50] sm:$0x1]
      %v2180 = vld [vmem:[%s1796 + $0x54] sm:$0xf]
      %v2181 = vld [vmem:[%s1796 + $0x58] sm:$0xf]
      %v2182 = vld [vmem:[%s1796 + $0x5c] sm:$0x1]
      %v2184 = vshrl.u32 %v2159, 16
      %v2186 = vrot.slane %v2184, 4
      %v2187 = vshll.u32 %v2159, 16
      %v2189 = vrot.slane %v2187, 5
      %v2190 = vor.u32 %v2186, %v2189
      %v2191 = vrot.slane %v2190, 4
      %v2193 = vshll.u32 %v2160, 16
      %v2195 = vrot.slane %v2193, 5
      %v2196 = vsel %vm550, %v2191, %v2195
      %v2197 = vshrl.u32 %v2160, 16
      %v2199 = vrot.slane %v2197, 4
      %v2200 = vor.u32 %v2199, %v2195
      %v2201 = vrot.slane %v2200, 4
      %v2203 = vshll.u32 %v2161, 16
      %v2205 = vrot.slane %v2203, 5
      %v2206 = vsel %vm550, %v2201, %v2205
      %v2208 = vshrl.u32 %v2162, 16
      %v2210 = vrot.slane %v2208, 4
      %v2211 = vshll.u32 %v2162, 16
      %v2213 = vrot.slane %v2211, 5
      %v2214 = vor.u32 %v2210, %v2213
      %v2215 = vrot.slane %v2214, 4
      %v2217 = vshll.u32 %v2163, 16
      %v2219 = vrot.slane %v2217, 5
      %v2220 = vsel %vm550, %v2215, %v2219
      %v2221 = vshrl.u32 %v2163, 16
      %v2223 = vrot.slane %v2221, 4
      %v2224 = vor.u32 %v2223, %v2219
      %v2225 = vrot.slane %v2224, 4
      %v2227 = vshll.u32 %v2164, 16
      %v2229 = vrot.slane %v2227, 5
      %v2230 = vsel %vm550, %v2225, %v2229
      %v2232 = vshrl.u32 %v2165, 16
      %v2234 = vrot.slane %v2232, 4
      %v2235 = vshll.u32 %v2165, 16
      %v2237 = vrot.slane %v2235, 5
      %v2238 = vor.u32 %v2234, %v2237
      %v2239 = vrot.slane %v2238, 4
      %v2241 = vshll.u32 %v2166, 16
      %v2243 = vrot.slane %v2241, 5
      %v2244 = vsel %vm550, %v2239, %v2243
      %v2245 = vshrl.u32 %v2166, 16
      %v2247 = vrot.slane %v2245, 4
      %v2248 = vor.u32 %v2247, %v2243
      %v2249 = vrot.slane %v2248, 4
      %v2251 = vshll.u32 %v2167, 16
      %v2253 = vrot.slane %v2251, 5
      %v2254 = vsel %vm550, %v2249, %v2253
      %v2256 = vshrl.u32 %v2168, 16
      %v2258 = vrot.slane %v2256, 4
      %v2259 = vshll.u32 %v2168, 16
      %v2261 = vrot.slane %v2259, 5
      %v2262 = vor.u32 %v2258, %v2261
      %v2263 = vrot.slane %v2262, 4
      %v2265 = vshll.u32 %v2169, 16
      %v2267 = vrot.slane %v2265, 5
      %v2268 = vsel %vm550, %v2263, %v2267
      %v2269 = vshrl.u32 %v2169, 16
      %v2271 = vrot.slane %v2269, 4
      %v2272 = vor.u32 %v2271, %v2267
      %v2273 = vrot.slane %v2272, 4
      %v2275 = vshll.u32 %v2170, 16
      %v2277 = vrot.slane %v2275, 5
      %v2278 = vsel %vm550, %v2273, %v2277
      %v2280 = vshrl.u32 %v2171, 16
      %v2282 = vrot.slane %v2280, 4
      %v2283 = vshll.u32 %v2171, 16
      %v2285 = vrot.slane %v2283, 5
      %v2286 = vor.u32 %v2282, %v2285
      %v2287 = vrot.slane %v2286, 4
      %v2289 = vshll.u32 %v2172, 16
      %v2291 = vrot.slane %v2289, 5
      %v2292 = vsel %vm550, %v2287, %v2291
      %v2293 = vshrl.u32 %v2172, 16
      %v2295 = vrot.slane %v2293, 4
      %v2296 = vor.u32 %v2295, %v2291
      %v2297 = vrot.slane %v2296, 4
      %v2299 = vshll.u32 %v2173, 16
      %v2301 = vrot.slane %v2299, 5
      %v2302 = vsel %vm550, %v2297, %v2301
      %v2304 = vshrl.u32 %v2174, 16
      %v2306 = vrot.slane %v2304, 4
      %v2307 = vshll.u32 %v2174, 16
      %v2309 = vrot.slane %v2307, 5
      %v2310 = vor.u32 %v2306, %v2309
      %v2311 = vrot.slane %v2310, 4
      %v2313 = vshll.u32 %v2175, 16
      %v2315 = vrot.slane %v2313, 5
      %v2316 = vsel %vm550, %v2311, %v2315
      %v2317 = vshrl.u32 %v2175, 16
      %v2319 = vrot.slane %v2317, 4
      %v2320 = vor.u32 %v2319, %v2315
      %v2321 = vrot.slane %v2320, 4
      %v2323 = vshll.u32 %v2176, 16
      %v2325 = vrot.slane %v2323, 5
      %v2326 = vsel %vm550, %v2321, %v2325
      %v2328 = vshrl.u32 %v2177, 16
      %v2330 = vrot.slane %v2328, 4
      %v2331 = vshll.u32 %v2177, 16
      %v2333 = vrot.slane %v2331, 5
      %v2334 = vor.u32 %v2330, %v2333
      %v2335 = vrot.slane %v2334, 4
      %v2337 = vshll.u32 %v2178, 16
      %v2339 = vrot.slane %v2337, 5
      %v2340 = vsel %vm550, %v2335, %v2339
      %v2341 = vshrl.u32 %v2178, 16
      %v2343 = vrot.slane %v2341, 4
      %v2344 = vor.u32 %v2343, %v2339
      %v2345 = vrot.slane %v2344, 4
      %v2347 = vshll.u32 %v2179, 16
      %v2349 = vrot.slane %v2347, 5
      %v2350 = vsel %vm550, %v2345, %v2349
      %v2352 = vshrl.u32 %v2180, 16
      %v2354 = vrot.slane %v2352, 4
      %v2355 = vshll.u32 %v2180, 16
      %v2357 = vrot.slane %v2355, 5
      %v2358 = vor.u32 %v2354, %v2357
      %v2359 = vrot.slane %v2358, 4
      %v2361 = vshll.u32 %v2181, 16
      %v2363 = vrot.slane %v2361, 5
      %v2364 = vsel %vm550, %v2359, %v2363
      %v2365 = vshrl.u32 %v2181, 16
      %v2367 = vrot.slane %v2365, 4
      %v2368 = vor.u32 %v2367, %v2363
      %v2369 = vrot.slane %v2368, 4
      %v2371 = vshll.u32 %v2182, 16
      %v2373 = vrot.slane %v2371, 5
      %v2374 = vsel %vm550, %v2369, %v2373
      %v2375 = vunpack.c.l.b16 %v2196
      %v2376 = vunpack.c.l.b16 %v2206
      %v2377 = vunpack.c.l.b16 %v2220
      %v2378 = vunpack.c.l.b16 %v2230
      %v2379 = vunpack.c.l.b16 %v2244
      %v2380 = vunpack.c.l.b16 %v2254
      %v2381 = vunpack.c.l.b16 %v2268
      %v2382 = vunpack.c.l.b16 %v2278
      %v2383 = vunpack.c.l.b16 %v2292
      %v2384 = vunpack.c.l.b16 %v2302
      %v2385 = vunpack.c.l.b16 %v2316
      %v2386 = vunpack.c.l.b16 %v2326
      %v2387 = vunpack.c.l.b16 %v2340
      %v2388 = vunpack.c.l.b16 %v2350
      %v2389 = vunpack.c.l.b16 %v2364
      %v2390 = vunpack.c.l.b16 %v2374
      %v2391 = vpack.c.b16 %v2376, %v2375
      %v2392 = vpack.c.b16 %v2378, %v2377
      %v2393 = vpack.c.b16 %v2380, %v2379
      %v2394 = vpack.c.b16 %v2382, %v2381
      %v2395 = vpack.c.b16 %v2384, %v2383
      %v2396 = vpack.c.b16 %v2386, %v2385
      %v2397 = vpack.c.b16 %v2388, %v2387
      %v2398 = vpack.c.b16 %v2390, %v2389
      %2399 = vrot.lane.b32.xlu0 %v2391, 40
      %v2400 = vpop.permute.xlu0 %2399
      %2401 = vrot.lane.b32.xlu0 %v2392, 40
      %v2402 = vpop.permute.xlu0 %2401
      %2403 = vrot.lane.b32.xlu0 %v2393, 40
      %v2404 = vpop.permute.xlu0 %2403
      %2405 = vrot.lane.b32.xlu0 %v2394, 40
      %v2406 = vpop.permute.xlu0 %2405
      %2407 = vrot.lane.b32.xlu0 %v2395, 40
      %v2408 = vpop.permute.xlu0 %2407
      %2409 = vrot.lane.b32.xlu0 %v2396, 40
      %v2410 = vpop.permute.xlu0 %2409
      %2411 = vrot.lane.b32.xlu0 %v2397, 40
      %v2412 = vpop.permute.xlu0 %2411
      %2413 = vrot.lane.b32.xlu0 %v2398, 40
      %v2414 = vpop.permute.xlu0 %2413
      %vm2423 = vcmask 359744
      %2424 = vst.msk [vmem:[#allocation2] sm:$0xff] %vm2423, %v2400
      %2425 = vst.msk [vmem:[#allocation2 + $0x10] sm:$0xff] %vm2423, %v2402
      %2426 = vst.msk [vmem:[#allocation2 + $0x20] sm:$0xff] %vm2423, %v2404
      %2427 = vst.msk [vmem:[#allocation2 + $0x30] sm:$0xff] %vm2423, %v2406
      %2428 = vst.msk [vmem:[#allocation2 + $0x40] sm:$0xff] %vm2423, %v2408
      %2429 = vst.msk [vmem:[#allocation2 + $0x50] sm:$0xff] %vm2423, %v2410
      %2430 = vst.msk [vmem:[#allocation2 + $0x60] sm:$0xff] %vm2423, %v2412
      %2431 = vst.msk [vmem:[#allocation2 + $0x70] sm:$0xff] %vm2423, %v2414
      %v2432 = vld [vmem:[%s1706] sm:$0xe]
      %v2433 = vld [vmem:[%s1706 + $0x4] sm:$0xf]
      %v2434 = vld [vmem:[%s1706 + $0x8] sm:$0x1]
      %v2435 = vld [vmem:[%s1706 + $0xc] sm:$0xe]
      %v2436 = vld [vmem:[%s1706 + $0x10] sm:$0xf]
      %v2437 = vld [vmem:[%s1706 + $0x14] sm:$0x1]
      %v2438 = vld [vmem:[%s1706 + $0x18] sm:$0xe]
      %v2439 = vld [vmem:[%s1706 + $0x1c] sm:$0xf]
      %v2440 = vld [vmem:[%s1706 + $0x20] sm:$0x1]
      %v2441 = vld [vmem:[%s1706 + $0x24] sm:$0xe]
      %v2442 = vld [vmem:[%s1706 + $0x28] sm:$0xf]
      %v2443 = vld [vmem:[%s1706 + $0x2c] sm:$0x1]
      %v2444 = vld [vmem:[%s1706 + $0x30] sm:$0xe]
      %v2445 = vld [vmem:[%s1706 + $0x34] sm:$0xf]
      %v2446 = vld [vmem:[%s1706 + $0x38] sm:$0x1]
      %v2447 = vld [vmem:[%s1706 + $0x3c] sm:$0xe]
      %v2448 = vld [vmem:[%s1706 + $0x40] sm:$0xf]
      %v2449 = vld [vmem:[%s1706 + $0x44] sm:$0x1]
      %v2450 = vld [vmem:[%s1706 + $0x48] sm:$0xe]
      %v2451 = vld [vmem:[%s1706 + $0x4c] sm:$0xf]
      %v2452 = vld [vmem:[%s1706 + $0x50] sm:$0x1]
      %v2453 = vld [vmem:[%s1706 + $0x54] sm:$0xe]
      %v2454 = vld [vmem:[%s1706 + $0x58] sm:$0xf]
      %v2455 = vld [vmem:[%s1706 + $0x5c] sm:$0x1]
      %v2480 = vrot.slane %v2432, 5
      %v2481 = vrot.slane %v2480, 4
      %v2482 = vrot.slane %v2433, 5
      %v2483 = vsel %vm1123, %v2481, %v2482
      %v2484 = vrot.slane %v2482, 4
      %v2485 = vrot.slane %v2434, 5
      %v2486 = vsel %vm1123, %v2484, %v2485
      %v2487 = vrot.slane %v2435, 5
      %v2488 = vrot.slane %v2487, 4
      %v2489 = vrot.slane %v2436, 5
      %v2490 = vsel %vm1123, %v2488, %v2489
      %v2491 = vrot.slane %v2489, 4
      %v2492 = vrot.slane %v2437, 5
      %v2493 = vsel %vm1123, %v2491, %v2492
      %v2494 = vrot.slane %v2438, 5
      %v2495 = vrot.slane %v2494, 4
      %v2496 = vrot.slane %v2439, 5
      %v2497 = vsel %vm1123, %v2495, %v2496
      %v2498 = vrot.slane %v2496, 4
      %v2499 = vrot.slane %v2440, 5
      %v2500 = vsel %vm1123, %v2498, %v2499
      %v2501 = vrot.slane %v2441, 5
      %v2502 = vrot.slane %v2501, 4
      %v2503 = vrot.slane %v2442, 5
      %v2504 = vsel %vm1123, %v2502, %v2503
      %v2505 = vrot.slane %v2503, 4
      %v2506 = vrot.slane %v2443, 5
      %v2507 = vsel %vm1123, %v2505, %v2506
      %v2508 = vrot.slane %v2444, 5
      %v2509 = vrot.slane %v2508, 4
      %v2510 = vrot.slane %v2445, 5
      %v2511 = vsel %vm1123, %v2509, %v2510
      %v2512 = vrot.slane %v2510, 4
      %v2513 = vrot.slane %v2446, 5
      %v2514 = vsel %vm1123, %v2512, %v2513
      %v2515 = vrot.slane %v2447, 5
      %v2516 = vrot.slane %v2515, 4
      %v2517 = vrot.slane %v2448, 5
      %v2518 = vsel %vm1123, %v2516, %v2517
      %v2519 = vrot.slane %v2517, 4
      %v2520 = vrot.slane %v2449, 5
      %v2521 = vsel %vm1123, %v2519, %v2520
      %v2522 = vrot.slane %v2450, 5
      %v2523 = vrot.slane %v2522, 4
      %v2524 = vrot.slane %v2451, 5
      %v2525 = vsel %vm1123, %v2523, %v2524
      %v2526 = vrot.slane %v2524, 4
      %v2527 = vrot.slane %v2452, 5
      %v2528 = vsel %vm1123, %v2526, %v2527
      %v2529 = vrot.slane %v2453, 5
      %v2530 = vrot.slane %v2529, 4
      %v2531 = vrot.slane %v2454, 5
      %v2532 = vsel %vm1123, %v2530, %v2531
      %v2533 = vrot.slane %v2531, 4
      %v2534 = vrot.slane %v2455, 5
      %v2535 = vsel %vm1123, %v2533, %v2534
      %v2536 = vunpack.c.l.b16 %v2483
      %v2537 = vunpack.c.l.b16 %v2486
      %v2538 = vunpack.c.l.b16 %v2490
      %v2539 = vunpack.c.l.b16 %v2493
      %v2540 = vunpack.c.l.b16 %v2497
      %v2541 = vunpack.c.l.b16 %v2500
      %v2542 = vunpack.c.l.b16 %v2504
      %v2543 = vunpack.c.l.b16 %v2507
      %v2544 = vunpack.c.l.b16 %v2511
      %v2545 = vunpack.c.l.b16 %v2514
      %v2546 = vunpack.c.l.b16 %v2518
      %v2547 = vunpack.c.l.b16 %v2521
      %v2548 = vunpack.c.l.b16 %v2525
      %v2549 = vunpack.c.l.b16 %v2528
      %v2550 = vunpack.c.l.b16 %v2532
      %v2551 = vunpack.c.l.b16 %v2535
      %v2552 = vpack.c.b16 %v2537, %v2536
      %v2553 = vpack.c.b16 %v2539, %v2538
      %v2554 = vpack.c.b16 %v2541, %v2540
      %v2555 = vpack.c.b16 %v2543, %v2542
      %v2556 = vpack.c.b16 %v2545, %v2544
      %v2557 = vpack.c.b16 %v2547, %v2546
      %v2558 = vpack.c.b16 %v2549, %v2548
      %v2559 = vpack.c.b16 %v2551, %v2550
      %2560 = vrot.lane.b32.xlu0 %v2552, 44
      %v2561 = vpop.permute.xlu0 %2560
      %2562 = vrot.lane.b32.xlu0 %v2553, 44
      %v2563 = vpop.permute.xlu0 %2562
      %2564 = vrot.lane.b32.xlu0 %v2554, 44
      %v2565 = vpop.permute.xlu0 %2564
      %2566 = vrot.lane.b32.xlu0 %v2555, 44
      %v2567 = vpop.permute.xlu0 %2566
      %2568 = vrot.lane.b32.xlu0 %v2556, 44
      %v2569 = vpop.permute.xlu0 %2568
      %2570 = vrot.lane.b32.xlu0 %v2557, 44
      %v2571 = vpop.permute.xlu0 %2570
      %2572 = vrot.lane.b32.xlu0 %v2558, 44
      %v2573 = vpop.permute.xlu0 %2572
      %2574 = vrot.lane.b32.xlu0 %v2559, 44
      %v2575 = vpop.permute.xlu0 %2574
      %vm2584 = vcmask 392544
      %2585 = vst.msk [vmem:[#allocation2] sm:$0xff] %vm2584, %v2561
      %2586 = vst.msk [vmem:[#allocation2 + $0x10] sm:$0xff] %vm2584, %v2563
      %2587 = vst.msk [vmem:[#allocation2 + $0x20] sm:$0xff] %vm2584, %v2565
      %2588 = vst.msk [vmem:[#allocation2 + $0x30] sm:$0xff] %vm2584, %v2567
      %2589 = vst.msk [vmem:[#allocation2 + $0x40] sm:$0xff] %vm2584, %v2569
      %2590 = vst.msk [vmem:[#allocation2 + $0x50] sm:$0xff] %vm2584, %v2571
      %2591 = vst.msk [vmem:[#allocation2 + $0x60] sm:$0xff] %vm2584, %v2573
      %2592 = vst.msk [vmem:[#allocation2 + $0x70] sm:$0xff] %vm2584, %v2575
      %v2593 = vld [vmem:[%s1796] sm:$0xe]
      %v2594 = vld [vmem:[%s1796 + $0x4] sm:$0xf]
      %v2595 = vld [vmem:[%s1796 + $0x8] sm:$0x1]
      %v2596 = vld [vmem:[%s1796 + $0xc] sm:$0xe]
      %v2597 = vld [vmem:[%s1796 + $0x10] sm:$0xf]
      %v2598 = vld [vmem:[%s1796 + $0x14] sm:$0x1]
      %v2599 = vld [vmem:[%s1796 + $0x18] sm:$0xe]
      %v2600 = vld [vmem:[%s1796 + $0x1c] sm:$0xf]
      %v2601 = vld [vmem:[%s1796 + $0x20] sm:$0x1]
      %v2602 = vld [vmem:[%s1796 + $0x24] sm:$0xe]
      %v2603 = vld [vmem:[%s1796 + $0x28] sm:$0xf]
      %v2604 = vld [vmem:[%s1796 + $0x2c] sm:$0x1]
      %v2605 = vld [vmem:[%s1796 + $0x30] sm:$0xe]
      %v2606 = vld [vmem:[%s1796 + $0x34] sm:$0xf]
      %v2607 = vld [vmem:[%s1796 + $0x38] sm:$0x1]
      %v2608 = vld [vmem:[%s1796 + $0x3c] sm:$0xe]
      %v2609 = vld [vmem:[%s1796 + $0x40] sm:$0xf]
      %v2610 = vld [vmem:[%s1796 + $0x44] sm:$0x1]
      %v2611 = vld [vmem:[%s1796 + $0x48] sm:$0xe]
      %v2612 = vld [vmem:[%s1796 + $0x4c] sm:$0xf]
      %v2613 = vld [vmem:[%s1796 + $0x50] sm:$0x1]
      %v2614 = vld [vmem:[%s1796 + $0x54] sm:$0xe]
      %v2615 = vld [vmem:[%s1796 + $0x58] sm:$0xf]
      %v2616 = vld [vmem:[%s1796 + $0x5c] sm:$0x1]
      %v2641 = vrot.slane %v2593, 5
      %v2642 = vrot.slane %v2641, 4
      %v2643 = vrot.slane %v2594, 5
      %v2644 = vsel %vm1123, %v2642, %v2643
      %v2645 = vrot.slane %v2643, 4
      %v2646 = vrot.slane %v2595, 5
      %v2647 = vsel %vm1123, %v2645, %v2646
      %v2648 = vrot.slane %v2596, 5
      %v2649 = vrot.slane %v2648, 4
      %v2650 = vrot.slane %v2597, 5
      %v2651 = vsel %vm1123, %v2649, %v2650
      %v2652 = vrot.slane %v2650, 4
      %v2653 = vrot.slane %v2598, 5
      %v2654 = vsel %vm1123, %v2652, %v2653
      %v2655 = vrot.slane %v2599, 5
      %v2656 = vrot.slane %v2655, 4
      %v2657 = vrot.slane %v2600, 5
      %v2658 = vsel %vm1123, %v2656, %v2657
      %v2659 = vrot.slane %v2657, 4
      %v2660 = vrot.slane %v2601, 5
      %v2661 = vsel %vm1123, %v2659, %v2660
      %v2662 = vrot.slane %v2602, 5
      %v2663 = vrot.slane %v2662, 4
      %v2664 = vrot.slane %v2603, 5
      %v2665 = vsel %vm1123, %v2663, %v2664
      %v2666 = vrot.slane %v2664, 4
      %v2667 = vrot.slane %v2604, 5
      %v2668 = vsel %vm1123, %v2666, %v2667
      %v2669 = vrot.slane %v2605, 5
      %v2670 = vrot.slane %v2669, 4
      %v2671 = vrot.slane %v2606, 5
      %v2672 = vsel %vm1123, %v2670, %v2671
      %v2673 = vrot.slane %v2671, 4
      %v2674 = vrot.slane %v2607, 5
      %v2675 = vsel %vm1123, %v2673, %v2674
      %v2676 = vrot.slane %v2608, 5
      %v2677 = vrot.slane %v2676, 4
      %v2678 = vrot.slane %v2609, 5
      %v2679 = vsel %vm1123, %v2677, %v2678
      %v2680 = vrot.slane %v2678, 4
      %v2681 = vrot.slane %v2610, 5
      %v2682 = vsel %vm1123, %v2680, %v2681
      %v2683 = vrot.slane %v2611, 5
      %v2684 = vrot.slane %v2683, 4
      %v2685 = vrot.slane %v2612, 5
      %v2686 = vsel %vm1123, %v2684, %v2685
      %v2687 = vrot.slane %v2685, 4
      %v2688 = vrot.slane %v2613, 5
      %v2689 = vsel %vm1123, %v2687, %v2688
      %v2690 = vrot.slane %v2614, 5
      %v2691 = vrot.slane %v2690, 4
      %v2692 = vrot.slane %v2615, 5
      %v2693 = vsel %vm1123, %v2691, %v2692
      %v2694 = vrot.slane %v2692, 4
      %v2695 = vrot.slane %v2616, 5
      %v2696 = vsel %vm1123, %v2694, %v2695
      %v2697 = vunpack.c.l.b16 %v2644
      %v2698 = vunpack.c.l.b16 %v2647
      %v2699 = vunpack.c.l.b16 %v2651
      %v2700 = vunpack.c.l.b16 %v2654
      %v2701 = vunpack.c.l.b16 %v2658
      %v2702 = vunpack.c.l.b16 %v2661
      %v2703 = vunpack.c.l.b16 %v2665
      %v2704 = vunpack.c.l.b16 %v2668
      %v2705 = vunpack.c.l.b16 %v2672
      %v2706 = vunpack.c.l.b16 %v2675
      %v2707 = vunpack.c.l.b16 %v2679
      %v2708 = vunpack.c.l.b16 %v2682
      %v2709 = vunpack.c.l.b16 %v2686
      %v2710 = vunpack.c.l.b16 %v2689
      %v2711 = vunpack.c.l.b16 %v2693
      %v2712 = vunpack.c.l.b16 %v2696
      %v2713 = vpack.c.b16 %v2698, %v2697
      %v2714 = vpack.c.b16 %v2700, %v2699
      %v2715 = vpack.c.b16 %v2702, %v2701
      %v2716 = vpack.c.b16 %v2704, %v2703
      %v2717 = vpack.c.b16 %v2706, %v2705
      %v2718 = vpack.c.b16 %v2708, %v2707
      %v2719 = vpack.c.b16 %v2710, %v2709
      %v2720 = vpack.c.b16 %v2712, %v2711
      %2721 = vrot.lane.b32.xlu0 %v2713, 48
      %v2722 = vpop.permute.xlu0 %2721
      %2723 = vrot.lane.b32.xlu0 %v2714, 48
      %v2724 = vpop.permute.xlu0 %2723
      %2725 = vrot.lane.b32.xlu0 %v2715, 48
      %v2726 = vpop.permute.xlu0 %2725
      %2727 = vrot.lane.b32.xlu0 %v2716, 48
      %v2728 = vpop.permute.xlu0 %2727
      %2729 = vrot.lane.b32.xlu0 %v2717, 48
      %v2730 = vpop.permute.xlu0 %2729
      %2731 = vrot.lane.b32.xlu0 %v2718, 48
      %v2732 = vpop.permute.xlu0 %2731
      %2733 = vrot.lane.b32.xlu0 %v2719, 48
      %v2734 = vpop.permute.xlu0 %2733
      %2735 = vrot.lane.b32.xlu0 %v2720, 48
      %v2736 = vpop.permute.xlu0 %2735
      %vm2745 = vcmask 425344
      %2746 = vst.msk [vmem:[#allocation2] sm:$0xff] %vm2745, %v2722
      %2747 = vst.msk [vmem:[#allocation2 + $0x10] sm:$0xff] %vm2745, %v2724
      %2748 = vst.msk [vmem:[#allocation2 + $0x20] sm:$0xff] %vm2745, %v2726
      %2749 = vst.msk [vmem:[#allocation2 + $0x30] sm:$0xff] %vm2745, %v2728
      %2750 = vst.msk [vmem:[#allocation2 + $0x40] sm:$0xff] %vm2745, %v2730
      %2751 = vst.msk [vmem:[#allocation2 + $0x50] sm:$0xff] %vm2745, %v2732
      %2752 = vst.msk [vmem:[#allocation2 + $0x60] sm:$0xff] %vm2745, %v2734
      %2753 = vst.msk [vmem:[#allocation2 + $0x70] sm:$0xff] %vm2745, %v2736
      %v2754 = vld [vmem:[%s1706] sm:$0xe]
      %v2755 = vld [vmem:[%s1706 + $0x4] sm:$0xf]
      %v2756 = vld [vmem:[%s1706 + $0x8] sm:$0x3]
      %v2757 = vld [vmem:[%s1706 + $0xc] sm:$0xe]
      %v2758 = vld [vmem:[%s1706 + $0x10] sm:$0xf]
      %v2759 = vld [vmem:[%s1706 + $0x14] sm:$0x3]
      %v2760 = vld [vmem:[%s1706 + $0x18] sm:$0xe]
      %v2761 = vld [vmem:[%s1706 + $0x1c] sm:$0xf]
      %v2762 = vld [vmem:[%s1706 + $0x20] sm:$0x3]
      %v2763 = vld [vmem:[%s1706 + $0x24] sm:$0xe]
      %v2764 = vld [vmem:[%s1706 + $0x28] sm:$0xf]
      %v2765 = vld [vmem:[%s1706 + $0x2c] sm:$0x3]
      %v2766 = vld [vmem:[%s1706 + $0x30] sm:$0xe]
      %v2767 = vld [vmem:[%s1706 + $0x34] sm:$0xf]
      %v2768 = vld [vmem:[%s1706 + $0x38] sm:$0x3]
      %v2769 = vld [vmem:[%s1706 + $0x3c] sm:$0xe]
      %v2770 = vld [vmem:[%s1706 + $0x40] sm:$0xf]
      %v2771 = vld [vmem:[%s1706 + $0x44] sm:$0x3]
      %v2772 = vld [vmem:[%s1706 + $0x48] sm:$0xe]
      %v2773 = vld [vmem:[%s1706 + $0x4c] sm:$0xf]
      %v2774 = vld [vmem:[%s1706 + $0x50] sm:$0x3]
      %v2775 = vld [vmem:[%s1706 + $0x54] sm:$0xe]
      %v2776 = vld [vmem:[%s1706 + $0x58] sm:$0xf]
      %v2777 = vld [vmem:[%s1706 + $0x5c] sm:$0x3]
      %v2779 = vshrl.u32 %v2754, 16
      %v2781 = vrot.slane %v2779, 5
      %v2782 = vshll.u32 %v2754, 16
      %v2784 = vrot.slane %v2782, 6
      %v2785 = vor.u32 %v2781, %v2784
      %v2786 = vrot.slane %v2785, 4
      %v2788 = vshrl.u32 %v2755, 16
      %v2790 = vrot.slane %v2788, 5
      %v2791 = vshll.u32 %v2755, 16
      %v2793 = vrot.slane %v2791, 6
      %v2794 = vor.u32 %v2790, %v2793
      %v2795 = vsel %vm1424, %v2786, %v2794
      %v2796 = vrot.slane %v2794, 4
      %v2798 = vshrl.u32 %v2756, 16
      %v2800 = vrot.slane %v2798, 5
      %v2801 = vshll.u32 %v2756, 16
      %v2803 = vrot.slane %v2801, 6
      %v2804 = vor.u32 %v2800, %v2803
      %v2805 = vsel %vm1424, %v2796, %v2804
      %v2807 = vshrl.u32 %v2757, 16
      %v2809 = vrot.slane %v2807, 5
      %v2810 = vshll.u32 %v2757, 16
      %v2812 = vrot.slane %v2810, 6
      %v2813 = vor.u32 %v2809, %v2812
      %v2814 = vrot.slane %v2813, 4
      %v2816 = vshrl.u32 %v2758, 16
      %v2818 = vrot.slane %v2816, 5
      %v2819 = vshll.u32 %v2758, 16
      %v2821 = vrot.slane %v2819, 6
      %v2822 = vor.u32 %v2818, %v2821
      %v2823 = vsel %vm1424, %v2814, %v2822
      %v2824 = vrot.slane %v2822, 4
      %v2826 = vshrl.u32 %v2759, 16
      %v2828 = vrot.slane %v2826, 5
      %v2829 = vshll.u32 %v2759, 16
      %v2831 = vrot.slane %v2829, 6
      %v2832 = vor.u32 %v2828, %v2831
      %v2833 = vsel %vm1424, %v2824, %v2832
      %v2835 = vshrl.u32 %v2760, 16
      %v2837 = vrot.slane %v2835, 5
      %v2838 = vshll.u32 %v2760, 16
      %v2840 = vrot.slane %v2838, 6
      %v2841 = vor.u32 %v2837, %v2840
      %v2842 = vrot.slane %v2841, 4
      %v2844 = vshrl.u32 %v2761, 16
      %v2846 = vrot.slane %v2844, 5
      %v2847 = vshll.u32 %v2761, 16
      %v2849 = vrot.slane %v2847, 6
      %v2850 = vor.u32 %v2846, %v2849
      %v2851 = vsel %vm1424, %v2842, %v2850
      %v2852 = vrot.slane %v2850, 4
      %v2854 = vshrl.u32 %v2762, 16
      %v2856 = vrot.slane %v2854, 5
      %v2857 = vshll.u32 %v2762, 16
      %v2859 = vrot.slane %v2857, 6
      %v2860 = vor.u32 %v2856, %v2859
      %v2861 = vsel %vm1424, %v2852, %v2860
      %v2863 = vshrl.u32 %v2763, 16
      %v2865 = vrot.slane %v2863, 5
      %v2866 = vshll.u32 %v2763, 16
      %v2868 = vrot.slane %v2866, 6
      %v2869 = vor.u32 %v2865, %v2868
      %v2870 = vrot.slane %v2869, 4
      %v2872 = vshrl.u32 %v2764, 16
      %v2874 = vrot.slane %v2872, 5
      %v2875 = vshll.u32 %v2764, 16
      %v2877 = vrot.slane %v2875, 6
      %v2878 = vor.u32 %v2874, %v2877
      %v2879 = vsel %vm1424, %v2870, %v2878
      %v2880 = vrot.slane %v2878, 4
      %v2882 = vshrl.u32 %v2765, 16
      %v2884 = vrot.slane %v2882, 5
      %v2885 = vshll.u32 %v2765, 16
      %v2887 = vrot.slane %v2885, 6
      %v2888 = vor.u32 %v2884, %v2887
      %v2889 = vsel %vm1424, %v2880, %v2888
      %v2891 = vshrl.u32 %v2766, 16
      %v2893 = vrot.slane %v2891, 5
      %v2894 = vshll.u32 %v2766, 16
      %v2896 = vrot.slane %v2894, 6
      %v2897 = vor.u32 %v2893, %v2896
      %v2898 = vrot.slane %v2897, 4
      %v2900 = vshrl.u32 %v2767, 16
      %v2902 = vrot.slane %v2900, 5
      %v2903 = vshll.u32 %v2767, 16
      %v2905 = vrot.slane %v2903, 6
      %v2906 = vor.u32 %v2902, %v2905
      %v2907 = vsel %vm1424, %v2898, %v2906
      %v2908 = vrot.slane %v2906, 4
      %v2910 = vshrl.u32 %v2768, 16
      %v2912 = vrot.slane %v2910, 5
      %v2913 = vshll.u32 %v2768, 16
      %v2915 = vrot.slane %v2913, 6
      %v2916 = vor.u32 %v2912, %v2915
      %v2917 = vsel %vm1424, %v2908, %v2916
      %v2919 = vshrl.u32 %v2769, 16
      %v2921 = vrot.slane %v2919, 5
      %v2922 = vshll.u32 %v2769, 16
      %v2924 = vrot.slane %v2922, 6
      %v2925 = vor.u32 %v2921, %v2924
      %v2926 = vrot.slane %v2925, 4
      %v2928 = vshrl.u32 %v2770, 16
      %v2930 = vrot.slane %v2928, 5
      %v2931 = vshll.u32 %v2770, 16
      %v2933 = vrot.slane %v2931, 6
      %v2934 = vor.u32 %v2930, %v2933
      %v2935 = vsel %vm1424, %v2926, %v2934
      %v2936 = vrot.slane %v2934, 4
      %v2938 = vshrl.u32 %v2771, 16
      %v2940 = vrot.slane %v2938, 5
      %v2941 = vshll.u32 %v2771, 16
      %v2943 = vrot.slane %v2941, 6
      %v2944 = vor.u32 %v2940, %v2943
      %v2945 = vsel %vm1424, %v2936, %v2944
      %v2947 = vshrl.u32 %v2772, 16
      %v2949 = vrot.slane %v2947, 5
      %v2950 = vshll.u32 %v2772, 16
      %v2952 = vrot.slane %v2950, 6
      %v2953 = vor.u32 %v2949, %v2952
      %v2954 = vrot.slane %v2953, 4
      %v2956 = vshrl.u32 %v2773, 16
      %v2958 = vrot.slane %v2956, 5
      %v2959 = vshll.u32 %v2773, 16
      %v2961 = vrot.slane %v2959, 6
      %v2962 = vor.u32 %v2958, %v2961
      %v2963 = vsel %vm1424, %v2954, %v2962
      %v2964 = vrot.slane %v2962, 4
      %v2966 = vshrl.u32 %v2774, 16
      %v2968 = vrot.slane %v2966, 5
      %v2969 = vshll.u32 %v2774, 16
      %v2971 = vrot.slane %v2969, 6
      %v2972 = vor.u32 %v2968, %v2971
      %v2973 = vsel %vm1424, %v2964, %v2972
      %v2975 = vshrl.u32 %v2775, 16
      %v2977 = vrot.slane %v2975, 5
      %v2978 = vshll.u32 %v2775, 16
      %v2980 = vrot.slane %v2978, 6
      %v2981 = vor.u32 %v2977, %v2980
      %v2982 = vrot.slane %v2981, 4
      %v2984 = vshrl.u32 %v2776, 16
      %v2986 = vrot.slane %v2984, 5
      %v2987 = vshll.u32 %v2776, 16
      %v2989 = vrot.slane %v2987, 6
      %v2990 = vor.u32 %v2986, %v2989
      %v2991 = vsel %vm1424, %v2982, %v2990
      %v2992 = vrot.slane %v2990, 4
      %v2994 = vshrl.u32 %v2777, 16
      %v2996 = vrot.slane %v2994, 5
      %v2997 = vshll.u32 %v2777, 16
      %v2999 = vrot.slane %v2997, 6
      %v3000 = vor.u32 %v2996, %v2999
      %v3001 = vsel %vm1424, %v2992, %v3000
      %v3002 = vunpack.c.l.b16 %v2795
      %v3003 = vunpack.c.l.b16 %v2805
      %v3004 = vunpack.c.l.b16 %v2823
      %v3005 = vunpack.c.l.b16 %v2833
      %v3006 = vunpack.c.l.b16 %v2851
      %v3007 = vunpack.c.l.b16 %v2861
      %v3008 = vunpack.c.l.b16 %v2879
      %v3009 = vunpack.c.l.b16 %v2889
      %v3010 = vunpack.c.l.b16 %v2907
      %v3011 = vunpack.c.l.b16 %v2917
      %v3012 = vunpack.c.l.b16 %v2935
      %v3013 = vunpack.c.l.b16 %v2945
      %v3014 = vunpack.c.l.b16 %v2963
      %v3015 = vunpack.c.l.b16 %v2973
      %v3016 = vunpack.c.l.b16 %v2991
      %v3017 = vunpack.c.l.b16 %v3001
      %v3018 = vpack.c.b16 %v3003, %v3002
      %v3019 = vpack.c.b16 %v3005, %v3004
      %v3020 = vpack.c.b16 %v3007, %v3006
      %v3021 = vpack.c.b16 %v3009, %v3008
      %v3022 = vpack.c.b16 %v3011, %v3010
      %v3023 = vpack.c.b16 %v3013, %v3012
      %v3024 = vpack.c.b16 %v3015, %v3014
      %v3025 = vpack.c.b16 %v3017, %v3016
      %3026 = vrot.lane.b32.xlu0 %v3018, 52
      %v3027 = vpop.permute.xlu0 %3026
      %3028 = vrot.lane.b32.xlu0 %v3019, 52
      %v3029 = vpop.permute.xlu0 %3028
      %3030 = vrot.lane.b32.xlu0 %v3020, 52
      %v3031 = vpop.permute.xlu0 %3030
      %3032 = vrot.lane.b32.xlu0 %v3021, 52
      %v3033 = vpop.permute.xlu0 %3032
      %3034 = vrot.lane.b32.xlu0 %v3022, 52
      %v3035 = vpop.permute.xlu0 %3034
      %3036 = vrot.lane.b32.xlu0 %v3023, 52
      %v3037 = vpop.permute.xlu0 %3036
      %3038 = vrot.lane.b32.xlu0 %v3024, 52
      %v3039 = vpop.permute.xlu0 %3038
      %3040 = vrot.lane.b32.xlu0 %v3025, 52
      %v3041 = vpop.permute.xlu0 %3040
      %vm3050 = vcmask 458144
      %3051 = vst.msk [vmem:[#allocation2] sm:$0xff] %vm3050, %v3027
      %3052 = vst.msk [vmem:[#allocation2 + $0x10] sm:$0xff] %vm3050, %v3029
      %3053 = vst.msk [vmem:[#allocation2 + $0x20] sm:$0xff] %vm3050, %v3031
      %3054 = vst.msk [vmem:[#allocation2 + $0x30] sm:$0xff] %vm3050, %v3033
      %3055 = vst.msk [vmem:[#allocation2 + $0x40] sm:$0xff] %vm3050, %v3035
      %3056 = vst.msk [vmem:[#allocation2 + $0x50] sm:$0xff] %vm3050, %v3037
      %3057 = vst.msk [vmem:[#allocation2 + $0x60] sm:$0xff] %vm3050, %v3039
      %3058 = vst.msk [vmem:[#allocation2 + $0x70] sm:$0xff] %vm3050, %v3041
      %s3059 = scalar_lea.vmem %s354, 12
      %v3060 = vld [vmem:[%s3059] sm:$0xf]
      %v3061 = vld [vmem:[%s3059 + $0x4] sm:$0xf]
      %v3062 = vld [vmem:[%s3059 + $0xc] sm:$0xf]
      %v3063 = vld [vmem:[%s3059 + $0x10] sm:$0xf]
      %v3064 = vld [vmem:[%s3059 + $0x18] sm:$0xf]
      %v3065 = vld [vmem:[%s3059 + $0x1c] sm:$0xf]
      %v3066 = vld [vmem:[%s3059 + $0x24] sm:$0xf]
      %v3067 = vld [vmem:[%s3059 + $0x28] sm:$0xf]
      %v3068 = vld [vmem:[%s3059 + $0x30] sm:$0xf]
      %v3069 = vld [vmem:[%s3059 + $0x34] sm:$0xf]
      %v3070 = vld [vmem:[%s3059 + $0x3c] sm:$0xf]
      %v3071 = vld [vmem:[%s3059 + $0x40] sm:$0xf]
      %v3072 = vld [vmem:[%s3059 + $0x48] sm:$0xf]
      %v3073 = vld [vmem:[%s3059 + $0x4c] sm:$0xf]
      %v3074 = vld [vmem:[%s3059 + $0x54] sm:$0xf]
      %v3075 = vld [vmem:[%s3059 + $0x58] sm:$0xf]
      %v3092 = vunpack.c.l.b16 %v3060
      %v3093 = vunpack.c.l.b16 %v3061
      %v3094 = vunpack.c.l.b16 %v3062
      %v3095 = vunpack.c.l.b16 %v3063
      %v3096 = vunpack.c.l.b16 %v3064
      %v3097 = vunpack.c.l.b16 %v3065
      %v3098 = vunpack.c.l.b16 %v3066
      %v3099 = vunpack.c.l.b16 %v3067
      %v3100 = vunpack.c.l.b16 %v3068
      %v3101 = vunpack.c.l.b16 %v3069
      %v3102 = vunpack.c.l.b16 %v3070
      %v3103 = vunpack.c.l.b16 %v3071
      %v3104 = vunpack.c.l.b16 %v3072
      %v3105 = vunpack.c.l.b16 %v3073
      %v3106 = vunpack.c.l.b16 %v3074
      %v3107 = vunpack.c.l.b16 %v3075
      %v3108 = vpack.c.b16 %v3093, %v3092
      %v3109 = vpack.c.b16 %v3095, %v3094
      %v3110 = vpack.c.b16 %v3097, %v3096
      %v3111 = vpack.c.b16 %v3099, %v3098
      %v3112 = vpack.c.b16 %v3101, %v3100
      %v3113 = vpack.c.b16 %v3103, %v3102
      %v3114 = vpack.c.b16 %v3105, %v3104
      %v3115 = vpack.c.b16 %v3107, %v3106
      %3116 = vrot.lane.b32.xlu0 %v3108, 56
      %v3117 = vpop.permute.xlu0 %3116
      %3118 = vrot.lane.b32.xlu0 %v3109, 56
      %v3119 = vpop.permute.xlu0 %3118
      %3120 = vrot.lane.b32.xlu0 %v3110, 56
      %v3121 = vpop.permute.xlu0 %3120
      %3122 = vrot.lane.b32.xlu0 %v3111, 56
      %v3123 = vpop.permute.xlu0 %3122
      %3124 = vrot.lane.b32.xlu0 %v3112, 56
      %v3125 = vpop.permute.xlu0 %3124
      %3126 = vrot.lane.b32.xlu0 %v3113, 56
      %v3127 = vpop.permute.xlu0 %3126
      %3128 = vrot.lane.b32.xlu0 %v3114, 56
      %v3129 = vpop.permute.xlu0 %3128
      %3130 = vrot.lane.b32.xlu0 %v3115, 56
      %v3131 = vpop.permute.xlu0 %3130
      %vm3140 = vcmask 490944
      %3141 = vst.msk [vmem:[#allocation2] sm:$0xff] %vm3140, %v3117
      %3142 = vst.msk [vmem:[#allocation2 + $0x10] sm:$0xff] %vm3140, %v3119
      %3143 = vst.msk [vmem:[#allocation2 + $0x20] sm:$0xff] %vm3140, %v3121
      %3144 = vst.msk [vmem:[#allocation2 + $0x30] sm:$0xff] %vm3140, %v3123
      %3145 = vst.msk [vmem:[#allocation2 + $0x40] sm:$0xff] %vm3140, %v3125
      %3146 = vst.msk [vmem:[#allocation2 + $0x50] sm:$0xff] %vm3140, %v3127
      %3147 = vst.msk [vmem:[#allocation2 + $0x60] sm:$0xff] %vm3140, %v3129
      %3148 = vst.msk [vmem:[#allocation2 + $0x70] sm:$0xff] %vm3140, %v3131
      %s3149 = scalar_lea.vmem %s354, 144
      %v3150 = vld [vmem:[%s3149] sm:$0xf]
      %v3151 = vld [vmem:[%s3149 + $0x4] sm:$0xf]
      %v3152 = vld [vmem:[%s3149 + $0xc] sm:$0xf]
      %v3153 = vld [vmem:[%s3149 + $0x10] sm:$0xf]
      %v3154 = vld [vmem:[%s3149 + $0x18] sm:$0xf]
      %v3155 = vld [vmem:[%s3149 + $0x1c] sm:$0xf]
      %v3156 = vld [vmem:[%s3149 + $0x24] sm:$0xf]
      %v3157 = vld [vmem:[%s3149 + $0x28] sm:$0xf]
      %v3158 = vld [vmem:[%s3149 + $0x30] sm:$0xf]
      %v3159 = vld [vmem:[%s3149 + $0x34] sm:$0xf]
      %v3160 = vld [vmem:[%s3149 + $0x3c] sm:$0xf]
      %v3161 = vld [vmem:[%s3149 + $0x40] sm:$0xf]
      %v3162 = vld [vmem:[%s3149 + $0x48] sm:$0xf]
      %v3163 = vld [vmem:[%s3149 + $0x4c] sm:$0xf]
      %v3164 = vld [vmem:[%s3149 + $0x54] sm:$0xf]
      %v3165 = vld [vmem:[%s3149 + $0x58] sm:$0xf]
      %v3182 = vunpack.c.l.b16 %v3150
      %v3183 = vunpack.c.l.b16 %v3151
      %v3184 = vunpack.c.l.b16 %v3152
      %v3185 = vunpack.c.l.b16 %v3153
      %v3186 = vunpack.c.l.b16 %v3154
      %v3187 = vunpack.c.l.b16 %v3155
      %v3188 = vunpack.c.l.b16 %v3156
      %v3189 = vunpack.c.l.b16 %v3157
      %v3190 = vunpack.c.l.b16 %v3158
      %v3191 = vunpack.c.l.b16 %v3159
      %v3192 = vunpack.c.l.b16 %v3160
      %v3193 = vunpack.c.l.b16 %v3161
      %v3194 = vunpack.c.l.b16 %v3162
      %v3195 = vunpack.c.l.b16 %v3163
      %v3196 = vunpack.c.l.b16 %v3164
      %v3197 = vunpack.c.l.b16 %v3165
      %v3198 = vpack.c.b16 %v3183, %v3182
      %v3199 = vpack.c.b16 %v3185, %v3184
      %v3200 = vpack.c.b16 %v3187, %v3186
      %v3201 = vpack.c.b16 %v3189, %v3188
      %v3202 = vpack.c.b16 %v3191, %v3190
      %v3203 = vpack.c.b16 %v3193, %v3192
      %v3204 = vpack.c.b16 %v3195, %v3194
      %v3205 = vpack.c.b16 %v3197, %v3196
      %3206 = vrot.lane.b32.xlu0 %v3198, 60
      %v3207 = vpop.permute.xlu0 %3206
      %3208 = vrot.lane.b32.xlu0 %v3199, 60
      %v3209 = vpop.permute.xlu0 %3208
      %3210 = vrot.lane.b32.xlu0 %v3200, 60
      %v3211 = vpop.permute.xlu0 %3210
      %3212 = vrot.lane.b32.xlu0 %v3201, 60
      %v3213 = vpop.permute.xlu0 %3212
      %3214 = vrot.lane.b32.xlu0 %v3202, 60
      %v3215 = vpop.permute.xlu0 %3214
      %3216 = vrot.lane.b32.xlu0 %v3203, 60
      %v3217 = vpop.permute.xlu0 %3216
      %3218 = vrot.lane.b32.xlu0 %v3204, 60
      %v3219 = vpop.permute.xlu0 %3218
      %3220 = vrot.lane.b32.xlu0 %v3205, 60
      %v3221 = vpop.permute.xlu0 %3220
      %vm3230 = vcmask 523744
      %3231 = vst.msk [vmem:[#allocation2] sm:$0xff] %vm3230, %v3207
      %3232 = vst.msk [vmem:[#allocation2 + $0x10] sm:$0xff] %vm3230, %v3209
      %3233 = vst.msk [vmem:[#allocation2 + $0x20] sm:$0xff] %vm3230, %v3211
      %3234 = vst.msk [vmem:[#allocation2 + $0x30] sm:$0xff] %vm3230, %v3213
      %3235 = vst.msk [vmem:[#allocation2 + $0x40] sm:$0xff] %vm3230, %v3215
      %3236 = vst.msk [vmem:[#allocation2 + $0x50] sm:$0xff] %vm3230, %v3217
      %3237 = vst.msk [vmem:[#allocation2 + $0x60] sm:$0xff] %vm3230, %v3219
      %3238 = vst.msk [vmem:[#allocation2 + $0x70] sm:$0xff] %vm3230, %v3221
      %v3239 = vld [vmem:[%s3059] sm:$0xf]
      %v3240 = vld [vmem:[%s3059 + $0x4] sm:$0xf]
      %v3241 = vld [vmem:[%s3059 + $0x8] sm:$0x1]
      %v3242 = vld [vmem:[%s3059 + $0xc] sm:$0xf]
      %v3243 = vld [vmem:[%s3059 + $0x10] sm:$0xf]
      %v3244 = vld [vmem:[%s3059 + $0x14] sm:$0x1]
      %v3245 = vld [vmem:[%s3059 + $0x18] sm:$0xf]
      %v3246 = vld [vmem:[%s3059 + $0x1c] sm:$0xf]
      %v3247 = vld [vmem:[%s3059 + $0x20] sm:$0x1]
      %v3248 = vld [vmem:[%s3059 + $0x24] sm:$0xf]
      %v3249 = vld [vmem:[%s3059 + $0x28] sm:$0xf]
      %v3250 = vld [vmem:[%s3059 + $0x2c] sm:$0x1]
      %v3251 = vld [vmem:[%s3059 + $0x30] sm:$0xf]
      %v3252 = vld [vmem:[%s3059 + $0x34] sm:$0xf]
      %v3253 = vld [vmem:[%s3059 + $0x38] sm:$0x1]
      %v3254 = vld [vmem:[%s3059 + $0x3c] sm:$0xf]
      %v3255 = vld [vmem:[%s3059 + $0x40] sm:$0xf]
      %v3256 = vld [vmem:[%s3059 + $0x44] sm:$0x1]
      %v3257 = vld [vmem:[%s3059 + $0x48] sm:$0xf]
      %v3258 = vld [vmem:[%s3059 + $0x4c] sm:$0xf]
      %v3259 = vld [vmem:[%s3059 + $0x50] sm:$0x1]
      %v3260 = vld [vmem:[%s3059 + $0x54] sm:$0xf]
      %v3261 = vld [vmem:[%s3059 + $0x58] sm:$0xf]
      %v3262 = vld [vmem:[%s3059 + $0x5c] sm:$0x1]
      %v3264 = vshrl.u32 %v3239, 16
      %v3266 = vrot.slane %v3264, 4
      %v3267 = vshll.u32 %v3239, 16
      %v3269 = vrot.slane %v3267, 5
      %v3270 = vor.u32 %v3266, %v3269
      %v3271 = vrot.slane %v3270, 4
      %v3273 = vshll.u32 %v3240, 16
      %v3275 = vrot.slane %v3273, 5
      %v3276 = vsel %vm550, %v3271, %v3275
      %v3277 = vshrl.u32 %v3240, 16
      %v3279 = vrot.slane %v3277, 4
      %v3280 = vor.u32 %v3279, %v3275
      %v3281 = vrot.slane %v3280, 4
      %v3283 = vshll.u32 %v3241, 16
      %v3285 = vrot.slane %v3283, 5
      %v3286 = vsel %vm550, %v3281, %v3285
      %v3288 = vshrl.u32 %v3242, 16
      %v3290 = vrot.slane %v3288, 4
      %v3291 = vshll.u32 %v3242, 16
      %v3293 = vrot.slane %v3291, 5
      %v3294 = vor.u32 %v3290, %v3293
      %v3295 = vrot.slane %v3294, 4
      %v3297 = vshll.u32 %v3243, 16
      %v3299 = vrot.slane %v3297, 5
      %v3300 = vsel %vm550, %v3295, %v3299
      %v3301 = vshrl.u32 %v3243, 16
      %v3303 = vrot.slane %v3301, 4
      %v3304 = vor.u32 %v3303, %v3299
      %v3305 = vrot.slane %v3304, 4
      %v3307 = vshll.u32 %v3244, 16
      %v3309 = vrot.slane %v3307, 5
      %v3310 = vsel %vm550, %v3305, %v3309
      %v3312 = vshrl.u32 %v3245, 16
      %v3314 = vrot.slane %v3312, 4
      %v3315 = vshll.u32 %v3245, 16
      %v3317 = vrot.slane %v3315, 5
      %v3318 = vor.u32 %v3314, %v3317
      %v3319 = vrot.slane %v3318, 4
      %v3321 = vshll.u32 %v3246, 16
      %v3323 = vrot.slane %v3321, 5
      %v3324 = vsel %vm550, %v3319, %v3323
      %v3325 = vshrl.u32 %v3246, 16
      %v3327 = vrot.slane %v3325, 4
      %v3328 = vor.u32 %v3327, %v3323
      %v3329 = vrot.slane %v3328, 4
      %v3331 = vshll.u32 %v3247, 16
      %v3333 = vrot.slane %v3331, 5
      %v3334 = vsel %vm550, %v3329, %v3333
      %v3336 = vshrl.u32 %v3248, 16
      %v3338 = vrot.slane %v3336, 4
      %v3339 = vshll.u32 %v3248, 16
      %v3341 = vrot.slane %v3339, 5
      %v3342 = vor.u32 %v3338, %v3341
      %v3343 = vrot.slane %v3342, 4
      %v3345 = vshll.u32 %v3249, 16
      %v3347 = vrot.slane %v3345, 5
      %v3348 = vsel %vm550, %v3343, %v3347
      %v3349 = vshrl.u32 %v3249, 16
      %v3351 = vrot.slane %v3349, 4
      %v3352 = vor.u32 %v3351, %v3347
      %v3353 = vrot.slane %v3352, 4
      %v3355 = vshll.u32 %v3250, 16
      %v3357 = vrot.slane %v3355, 5
      %v3358 = vsel %vm550, %v3353, %v3357
      %v3360 = vshrl.u32 %v3251, 16
      %v3362 = vrot.slane %v3360, 4
      %v3363 = vshll.u32 %v3251, 16
      %v3365 = vrot.slane %v3363, 5
      %v3366 = vor.u32 %v3362, %v3365
      %v3367 = vrot.slane %v3366, 4
      %v3369 = vshll.u32 %v3252, 16
      %v3371 = vrot.slane %v3369, 5
      %v3372 = vsel %vm550, %v3367, %v3371
      %v3373 = vshrl.u32 %v3252, 16
      %v3375 = vrot.slane %v3373, 4
      %v3376 = vor.u32 %v3375, %v3371
      %v3377 = vrot.slane %v3376, 4
      %v3379 = vshll.u32 %v3253, 16
      %v3381 = vrot.slane %v3379, 5
      %v3382 = vsel %vm550, %v3377, %v3381
      %v3384 = vshrl.u32 %v3254, 16
      %v3386 = vrot.slane %v3384, 4
      %v3387 = vshll.u32 %v3254, 16
      %v3389 = vrot.slane %v3387, 5
      %v3390 = vor.u32 %v3386, %v3389
      %v3391 = vrot.slane %v3390, 4
      %v3393 = vshll.u32 %v3255, 16
      %v3395 = vrot.slane %v3393, 5
      %v3396 = vsel %vm550, %v3391, %v3395
      %v3397 = vshrl.u32 %v3255, 16
      %v3399 = vrot.slane %v3397, 4
      %v3400 = vor.u32 %v3399, %v3395
      %v3401 = vrot.slane %v3400, 4
      %v3403 = vshll.u32 %v3256, 16
      %v3405 = vrot.slane %v3403, 5
      %v3406 = vsel %vm550, %v3401, %v3405
      %v3408 = vshrl.u32 %v3257, 16
      %v3410 = vrot.slane %v3408, 4
      %v3411 = vshll.u32 %v3257, 16
      %v3413 = vrot.slane %v3411, 5
      %v3414 = vor.u32 %v3410, %v3413
      %v3415 = vrot.slane %v3414, 4
      %v3417 = vshll.u32 %v3258, 16
      %v3419 = vrot.slane %v3417, 5
      %v3420 = vsel %vm550, %v3415, %v3419
      %v3421 = vshrl.u32 %v3258, 16
      %v3423 = vrot.slane %v3421, 4
      %v3424 = vor.u32 %v3423, %v3419
      %v3425 = vrot.slane %v3424, 4
      %v3427 = vshll.u32 %v3259, 16
      %v3429 = vrot.slane %v3427, 5
      %v3430 = vsel %vm550, %v3425, %v3429
      %v3432 = vshrl.u32 %v3260, 16
      %v3434 = vrot.slane %v3432, 4
      %v3435 = vshll.u32 %v3260, 16
      %v3437 = vrot.slane %v3435, 5
      %v3438 = vor.u32 %v3434, %v3437
      %v3439 = vrot.slane %v3438, 4
      %v3441 = vshll.u32 %v3261, 16
      %v3443 = vrot.slane %v3441, 5
      %v3444 = vsel %vm550, %v3439, %v3443
      %v3445 = vshrl.u32 %v3261, 16
      %v3447 = vrot.slane %v3445, 4
      %v3448 = vor.u32 %v3447, %v3443
      %v3449 = vrot.slane %v3448, 4
      %v3451 = vshll.u32 %v3262, 16
      %v3453 = vrot.slane %v3451, 5
      %v3454 = vsel %vm550, %v3449, %v3453
      %v3455 = vunpack.c.l.b16 %v3276
      %v3456 = vunpack.c.l.b16 %v3286
      %v3457 = vunpack.c.l.b16 %v3300
      %v3458 = vunpack.c.l.b16 %v3310
      %v3459 = vunpack.c.l.b16 %v3324
      %v3460 = vunpack.c.l.b16 %v3334
      %v3461 = vunpack.c.l.b16 %v3348
      %v3462 = vunpack.c.l.b16 %v3358
      %v3463 = vunpack.c.l.b16 %v3372
      %v3464 = vunpack.c.l.b16 %v3382
      %v3465 = vunpack.c.l.b16 %v3396
      %v3466 = vunpack.c.l.b16 %v3406
      %v3467 = vunpack.c.l.b16 %v3420
      %v3468 = vunpack.c.l.b16 %v3430
      %v3469 = vunpack.c.l.b16 %v3444
      %v3470 = vunpack.c.l.b16 %v3454
      %v3471 = vpack.c.b16 %v3456, %v3455
      %v3472 = vpack.c.b16 %v3458, %v3457
      %v3473 = vpack.c.b16 %v3460, %v3459
      %v3474 = vpack.c.b16 %v3462, %v3461
      %v3475 = vpack.c.b16 %v3464, %v3463
      %v3476 = vpack.c.b16 %v3466, %v3465
      %v3477 = vpack.c.b16 %v3468, %v3467
      %v3478 = vpack.c.b16 %v3470, %v3469
      %3479 = vrot.lane.b32.xlu0 %v3471, 64
      %v3480 = vpop.permute.xlu0 %3479
      %3481 = vrot.lane.b32.xlu0 %v3472, 64
      %v3482 = vpop.permute.xlu0 %3481
      %3483 = vrot.lane.b32.xlu0 %v3473, 64
      %v3484 = vpop.permute.xlu0 %3483
      %3485 = vrot.lane.b32.xlu0 %v3474, 64
      %v3486 = vpop.permute.xlu0 %3485
      %3487 = vrot.lane.b32.xlu0 %v3475, 64
      %v3488 = vpop.permute.xlu0 %3487
      %3489 = vrot.lane.b32.xlu0 %v3476, 64
      %v3490 = vpop.permute.xlu0 %3489
      %3491 = vrot.lane.b32.xlu0 %v3477, 64
      %v3492 = vpop.permute.xlu0 %3491
      %3493 = vrot.lane.b32.xlu0 %v3478, 64
      %v3494 = vpop.permute.xlu0 %3493
      %vm3503 = vcmask 556544
      %3504 = vst.msk [vmem:[#allocation2] sm:$0xff] %vm3503, %v3480
      %3505 = vst.msk [vmem:[#allocation2 + $0x10] sm:$0xff] %vm3503, %v3482
      %3506 = vst.msk [vmem:[#allocation2 + $0x20] sm:$0xff] %vm3503, %v3484
      %3507 = vst.msk [vmem:[#allocation2 + $0x30] sm:$0xff] %vm3503, %v3486
      %3508 = vst.msk [vmem:[#allocation2 + $0x40] sm:$0xff] %vm3503, %v3488
      %3509 = vst.msk [vmem:[#allocation2 + $0x50] sm:$0xff] %vm3503, %v3490
      %3510 = vst.msk [vmem:[#allocation2 + $0x60] sm:$0xff] %vm3503, %v3492
      %3511 = vst.msk [vmem:[#allocation2 + $0x70] sm:$0xff] %vm3503, %v3494
      %v3512 = vld [vmem:[%s3149] sm:$0xf]
      %v3513 = vld [vmem:[%s3149 + $0x4] sm:$0xf]
      %v3514 = vld [vmem:[%s3149 + $0x8] sm:$0x1]
      %v3515 = vld [vmem:[%s3149 + $0xc] sm:$0xf]
      %v3516 = vld [vmem:[%s3149 + $0x10] sm:$0xf]
      %v3517 = vld [vmem:[%s3149 + $0x14] sm:$0x1]
      %v3518 = vld [vmem:[%s3149 + $0x18] sm:$0xf]
      %v3519 = vld [vmem:[%s3149 + $0x1c] sm:$0xf]
      %v3520 = vld [vmem:[%s3149 + $0x20] sm:$0x1]
      %v3521 = vld [vmem:[%s3149 + $0x24] sm:$0xf]
      %v3522 = vld [vmem:[%s3149 + $0x28] sm:$0xf]
      %v3523 = vld [vmem:[%s3149 + $0x2c] sm:$0x1]
      %v3524 = vld [vmem:[%s3149 + $0x30] sm:$0xf]
      %v3525 = vld [vmem:[%s3149 + $0x34] sm:$0xf]
      %v3526 = vld [vmem:[%s3149 + $0x38] sm:$0x1]
      %v3527 = vld [vmem:[%s3149 + $0x3c] sm:$0xf]
      %v3528 = vld [vmem:[%s3149 + $0x40] sm:$0xf]
      %v3529 = vld [vmem:[%s3149 + $0x44] sm:$0x1]
      %v3530 = vld [vmem:[%s3149 + $0x48] sm:$0xf]
      %v3531 = vld [vmem:[%s3149 + $0x4c] sm:$0xf]
      %v3532 = vld [vmem:[%s3149 + $0x50] sm:$0x1]
      %v3533 = vld [vmem:[%s3149 + $0x54] sm:$0xf]
      %v3534 = vld [vmem:[%s3149 + $0x58] sm:$0xf]
      %v3535 = vld [vmem:[%s3149 + $0x5c] sm:$0x1]
      %v3537 = vshrl.u32 %v3512, 16
      %v3539 = vrot.slane %v3537, 4
      %v3540 = vshll.u32 %v3512, 16
      %v3542 = vrot.slane %v3540, 5
      %v3543 = vor.u32 %v3539, %v3542
      %v3544 = vrot.slane %v3543, 4
      %v3546 = vshll.u32 %v3513, 16
      %v3548 = vrot.slane %v3546, 5
      %v3549 = vsel %vm550, %v3544, %v3548
      %v3550 = vshrl.u32 %v3513, 16
      %v3552 = vrot.slane %v3550, 4
      %v3553 = vor.u32 %v3552, %v3548
      %v3554 = vrot.slane %v3553, 4
      %v3556 = vshll.u32 %v3514, 16
      %v3558 = vrot.slane %v3556, 5
      %v3559 = vsel %vm550, %v3554, %v3558
      %v3561 = vshrl.u32 %v3515, 16
      %v3563 = vrot.slane %v3561, 4
      %v3564 = vshll.u32 %v3515, 16
      %v3566 = vrot.slane %v3564, 5
      %v3567 = vor.u32 %v3563, %v3566
      %v3568 = vrot.slane %v3567, 4
      %v3570 = vshll.u32 %v3516, 16
      %v3572 = vrot.slane %v3570, 5
      %v3573 = vsel %vm550, %v3568, %v3572
      %v3574 = vshrl.u32 %v3516, 16
      %v3576 = vrot.slane %v3574, 4
      %v3577 = vor.u32 %v3576, %v3572
      %v3578 = vrot.slane %v3577, 4
      %v3580 = vshll.u32 %v3517, 16
      %v3582 = vrot.slane %v3580, 5
      %v3583 = vsel %vm550, %v3578, %v3582
      %v3585 = vshrl.u32 %v3518, 16
      %v3587 = vrot.slane %v3585, 4
      %v3588 = vshll.u32 %v3518, 16
      %v3590 = vrot.slane %v3588, 5
      %v3591 = vor.u32 %v3587, %v3590
      %v3592 = vrot.slane %v3591, 4
      %v3594 = vshll.u32 %v3519, 16
      %v3596 = vrot.slane %v3594, 5
      %v3597 = vsel %vm550, %v3592, %v3596
      %v3598 = vshrl.u32 %v3519, 16
      %v3600 = vrot.slane %v3598, 4
      %v3601 = vor.u32 %v3600, %v3596
      %v3602 = vrot.slane %v3601, 4
      %v3604 = vshll.u32 %v3520, 16
      %v3606 = vrot.slane %v3604, 5
      %v3607 = vsel %vm550, %v3602, %v3606
      %v3609 = vshrl.u32 %v3521, 16
      %v3611 = vrot.slane %v3609, 4
      %v3612 = vshll.u32 %v3521, 16
      %v3614 = vrot.slane %v3612, 5
      %v3615 = vor.u32 %v3611, %v3614
      %v3616 = vrot.slane %v3615, 4
      %v3618 = vshll.u32 %v3522, 16
      %v3620 = vrot.slane %v3618, 5
      %v3621 = vsel %vm550, %v3616, %v3620
      %v3622 = vshrl.u32 %v3522, 16
      %v3624 = vrot.slane %v3622, 4
      %v3625 = vor.u32 %v3624, %v3620
      %v3626 = vrot.slane %v3625, 4
      %v3628 = vshll.u32 %v3523, 16
      %v3630 = vrot.slane %v3628, 5
      %v3631 = vsel %vm550, %v3626, %v3630
      %v3633 = vshrl.u32 %v3524, 16
      %v3635 = vrot.slane %v3633, 4
      %v3636 = vshll.u32 %v3524, 16
      %v3638 = vrot.slane %v3636, 5
      %v3639 = vor.u32 %v3635, %v3638
      %v3640 = vrot.slane %v3639, 4
      %v3642 = vshll.u32 %v3525, 16
      %v3644 = vrot.slane %v3642, 5
      %v3645 = vsel %vm550, %v3640, %v3644
      %v3646 = vshrl.u32 %v3525, 16
      %v3648 = vrot.slane %v3646, 4
      %v3649 = vor.u32 %v3648, %v3644
      %v3650 = vrot.slane %v3649, 4
      %v3652 = vshll.u32 %v3526, 16
      %v3654 = vrot.slane %v3652, 5
      %v3655 = vsel %vm550, %v3650, %v3654
      %v3657 = vshrl.u32 %v3527, 16
      %v3659 = vrot.slane %v3657, 4
      %v3660 = vshll.u32 %v3527, 16
      %v3662 = vrot.slane %v3660, 5
      %v3663 = vor.u32 %v3659, %v3662
      %v3664 = vrot.slane %v3663, 4
      %v3666 = vshll.u32 %v3528, 16
      %v3668 = vrot.slane %v3666, 5
      %v3669 = vsel %vm550, %v3664, %v3668
      %v3670 = vshrl.u32 %v3528, 16
      %v3672 = vrot.slane %v3670, 4
      %v3673 = vor.u32 %v3672, %v3668
      %v3674 = vrot.slane %v3673, 4
      %v3676 = vshll.u32 %v3529, 16
      %v3678 = vrot.slane %v3676, 5
      %v3679 = vsel %vm550, %v3674, %v3678
      %v3681 = vshrl.u32 %v3530, 16
      %v3683 = vrot.slane %v3681, 4
      %v3684 = vshll.u32 %v3530, 16
      %v3686 = vrot.slane %v3684, 5
      %v3687 = vor.u32 %v3683, %v3686
      %v3688 = vrot.slane %v3687, 4
      %v3690 = vshll.u32 %v3531, 16
      %v3692 = vrot.slane %v3690, 5
      %v3693 = vsel %vm550, %v3688, %v3692
      %v3694 = vshrl.u32 %v3531, 16
      %v3696 = vrot.slane %v3694, 4
      %v3697 = vor.u32 %v3696, %v3692
      %v3698 = vrot.slane %v3697, 4
      %v3700 = vshll.u32 %v3532, 16
      %v3702 = vrot.slane %v3700, 5
      %v3703 = vsel %vm550, %v3698, %v3702
      %v3705 = vshrl.u32 %v3533, 16
      %v3707 = vrot.slane %v3705, 4
      %v3708 = vshll.u32 %v3533, 16
      %v3710 = vrot.slane %v3708, 5
      %v3711 = vor.u32 %v3707, %v3710
      %v3712 = vrot.slane %v3711, 4
      %v3714 = vshll.u32 %v3534, 16
      %v3716 = vrot.slane %v3714, 5
      %v3717 = vsel %vm550, %v3712, %v3716
      %v3718 = vshrl.u32 %v3534, 16
      %v3720 = vrot.slane %v3718, 4
      %v3721 = vor.u32 %v3720, %v3716
      %v3722 = vrot.slane %v3721, 4
      %v3724 = vshll.u32 %v3535, 16
      %v3726 = vrot.slane %v3724, 5
      %v3727 = vsel %vm550, %v3722, %v3726
      %v3728 = vunpack.c.l.b16 %v3549
      %v3729 = vunpack.c.l.b16 %v3559
      %v3730 = vunpack.c.l.b16 %v3573
      %v3731 = vunpack.c.l.b16 %v3583
      %v3732 = vunpack.c.l.b16 %v3597
      %v3733 = vunpack.c.l.b16 %v3607
      %v3734 = vunpack.c.l.b16 %v3621
      %v3735 = vunpack.c.l.b16 %v3631
      %v3736 = vunpack.c.l.b16 %v3645
      %v3737 = vunpack.c.l.b16 %v3655
      %v3738 = vunpack.c.l.b16 %v3669
      %v3739 = vunpack.c.l.b16 %v3679
      %v3740 = vunpack.c.l.b16 %v3693
      %v3741 = vunpack.c.l.b16 %v3703
      %v3742 = vunpack.c.l.b16 %v3717
      %v3743 = vunpack.c.l.b16 %v3727
      %v3744 = vpack.c.b16 %v3729, %v3728
      %v3745 = vpack.c.b16 %v3731, %v3730
      %v3746 = vpack.c.b16 %v3733, %v3732
      %v3747 = vpack.c.b16 %v3735, %v3734
      %v3748 = vpack.c.b16 %v3737, %v3736
      %v3749 = vpack.c.b16 %v3739, %v3738
      %v3750 = vpack.c.b16 %v3741, %v3740
      %v3751 = vpack.c.b16 %v3743, %v3742
      %3752 = vrot.lane.b32.xlu0 %v3744, 68
      %v3753 = vpop.permute.xlu0 %3752
      %3754 = vrot.lane.b32.xlu0 %v3745, 68
      %v3755 = vpop.permute.xlu0 %3754
      %3756 = vrot.lane.b32.xlu0 %v3746, 68
      %v3757 = vpop.permute.xlu0 %3756
      %3758 = vrot.lane.b32.xlu0 %v3747, 68
      %v3759 = vpop.permute.xlu0 %3758
      %3760 = vrot.lane.b32.xlu0 %v3748, 68
      %v3761 = vpop.permute.xlu0 %3760
      %3762 = vrot.lane.b32.xlu0 %v3749, 68
      %v3763 = vpop.permute.xlu0 %3762
      %3764 = vrot.lane.b32.xlu0 %v3750, 68
      %v3765 = vpop.permute.xlu0 %3764
      %3766 = vrot.lane.b32.xlu0 %v3751, 68
      %v3767 = vpop.permute.xlu0 %3766
      %vm3776 = vcmask 589344
      %3777 = vst.msk [vmem:[#allocation2] sm:$0xff] %vm3776, %v3753
      %3778 = vst.msk [vmem:[#allocation2 + $0x10] sm:$0xff] %vm3776, %v3755
      %3779 = vst.msk [vmem:[#allocation2 + $0x20] sm:$0xff] %vm3776, %v3757
      %3780 = vst.msk [vmem:[#allocation2 + $0x30] sm:$0xff] %vm3776, %v3759
      %3781 = vst.msk [vmem:[#allocation2 + $0x40] sm:$0xff] %vm3776, %v3761
      %3782 = vst.msk [vmem:[#allocation2 + $0x50] sm:$0xff] %vm3776, %v3763
      %3783 = vst.msk [vmem:[#allocation2 + $0x60] sm:$0xff] %vm3776, %v3765
      %3784 = vst.msk [vmem:[#allocation2 + $0x70] sm:$0xff] %vm3776, %v3767
      %v3785 = vld [vmem:[%s3059] sm:$0xe]
      %v3786 = vld [vmem:[%s3059 + $0x4] sm:$0xf]
      %v3787 = vld [vmem:[%s3059 + $0x8] sm:$0x1]
      %v3788 = vld [vmem:[%s3059 + $0xc] sm:$0xe]
      %v3789 = vld [vmem:[%s3059 + $0x10] sm:$0xf]
      %v3790 = vld [vmem:[%s3059 + $0x14] sm:$0x1]
      %v3791 = vld [vmem:[%s3059 + $0x18] sm:$0xe]
      %v3792 = vld [vmem:[%s3059 + $0x1c] sm:$0xf]
      %v3793 = vld [vmem:[%s3059 + $0x20] sm:$0x1]
      %v3794 = vld [vmem:[%s3059 + $0x24] sm:$0xe]
      %v3795 = vld [vmem:[%s3059 + $0x28] sm:$0xf]
      %v3796 = vld [vmem:[%s3059 + $0x2c] sm:$0x1]
      %v3797 = vld [vmem:[%s3059 + $0x30] sm:$0xe]
      %v3798 = vld [vmem:[%s3059 + $0x34] sm:$0xf]
      %v3799 = vld [vmem:[%s3059 + $0x38] sm:$0x1]
      %v3800 = vld [vmem:[%s3059 + $0x3c] sm:$0xe]
      %v3801 = vld [vmem:[%s3059 + $0x40] sm:$0xf]
      %v3802 = vld [vmem:[%s3059 + $0x44] sm:$0x1]
      %v3803 = vld [vmem:[%s3059 + $0x48] sm:$0xe]
      %v3804 = vld [vmem:[%s3059 + $0x4c] sm:$0xf]
      %v3805 = vld [vmem:[%s3059 + $0x50] sm:$0x1]
      %v3806 = vld [vmem:[%s3059 + $0x54] sm:$0xe]
      %v3807 = vld [vmem:[%s3059 + $0x58] sm:$0xf]
      %v3808 = vld [vmem:[%s3059 + $0x5c] sm:$0x1]
      %v3833 = vrot.slane %v3785, 5
      %v3834 = vrot.slane %v3833, 4
      %v3835 = vrot.slane %v3786, 5
      %v3836 = vsel %vm1123, %v3834, %v3835
      %v3837 = vrot.slane %v3835, 4
      %v3838 = vrot.slane %v3787, 5
      %v3839 = vsel %vm1123, %v3837, %v3838
      %v3840 = vrot.slane %v3788, 5
      %v3841 = vrot.slane %v3840, 4
      %v3842 = vrot.slane %v3789, 5
      %v3843 = vsel %vm1123, %v3841, %v3842
      %v3844 = vrot.slane %v3842, 4
      %v3845 = vrot.slane %v3790, 5
      %v3846 = vsel %vm1123, %v3844, %v3845
      %v3847 = vrot.slane %v3791, 5
      %v3848 = vrot.slane %v3847, 4
      %v3849 = vrot.slane %v3792, 5
      %v3850 = vsel %vm1123, %v3848, %v3849
      %v3851 = vrot.slane %v3849, 4
      %v3852 = vrot.slane %v3793, 5
      %v3853 = vsel %vm1123, %v3851, %v3852
      %v3854 = vrot.slane %v3794, 5
      %v3855 = vrot.slane %v3854, 4
      %v3856 = vrot.slane %v3795, 5
      %v3857 = vsel %vm1123, %v3855, %v3856
      %v3858 = vrot.slane %v3856, 4
      %v3859 = vrot.slane %v3796, 5
      %v3860 = vsel %vm1123, %v3858, %v3859
      %v3861 = vrot.slane %v3797, 5
      %v3862 = vrot.slane %v3861, 4
      %v3863 = vrot.slane %v3798, 5
      %v3864 = vsel %vm1123, %v3862, %v3863
      %v3865 = vrot.slane %v3863, 4
      %v3866 = vrot.slane %v3799, 5
      %v3867 = vsel %vm1123, %v3865, %v3866
      %v3868 = vrot.slane %v3800, 5
      %v3869 = vrot.slane %v3868, 4
      %v3870 = vrot.slane %v3801, 5
      %v3871 = vsel %vm1123, %v3869, %v3870
      %v3872 = vrot.slane %v3870, 4
      %v3873 = vrot.slane %v3802, 5
      %v3874 = vsel %vm1123, %v3872, %v3873
      %v3875 = vrot.slane %v3803, 5
      %v3876 = vrot.slane %v3875, 4
      %v3877 = vrot.slane %v3804, 5
      %v3878 = vsel %vm1123, %v3876, %v3877
      %v3879 = vrot.slane %v3877, 4
      %v3880 = vrot.slane %v3805, 5
      %v3881 = vsel %vm1123, %v3879, %v3880
      %v3882 = vrot.slane %v3806, 5
      %v3883 = vrot.slane %v3882, 4
      %v3884 = vrot.slane %v3807, 5
      %v3885 = vsel %vm1123, %v3883, %v3884
      %v3886 = vrot.slane %v3884, 4
      %v3887 = vrot.slane %v3808, 5
      %v3888 = vsel %vm1123, %v3886, %v3887
      %v3889 = vunpack.c.l.b16 %v3836
      %v3890 = vunpack.c.l.b16 %v3839
      %v3891 = vunpack.c.l.b16 %v3843
      %v3892 = vunpack.c.l.b16 %v3846
      %v3893 = vunpack.c.l.b16 %v3850
      %v3894 = vunpack.c.l.b16 %v3853
      %v3895 = vunpack.c.l.b16 %v3857
      %v3896 = vunpack.c.l.b16 %v3860
      %v3897 = vunpack.c.l.b16 %v3864
      %v3898 = vunpack.c.l.b16 %v3867
      %v3899 = vunpack.c.l.b16 %v3871
      %v3900 = vunpack.c.l.b16 %v3874
      %v3901 = vunpack.c.l.b16 %v3878
      %v3902 = vunpack.c.l.b16 %v3881
      %v3903 = vunpack.c.l.b16 %v3885
      %v3904 = vunpack.c.l.b16 %v3888
      %v3905 = vpack.c.b16 %v3890, %v3889
      %v3906 = vpack.c.b16 %v3892, %v3891
      %v3907 = vpack.c.b16 %v3894, %v3893
      %v3908 = vpack.c.b16 %v3896, %v3895
      %v3909 = vpack.c.b16 %v3898, %v3897
      %v3910 = vpack.c.b16 %v3900, %v3899
      %v3911 = vpack.c.b16 %v3902, %v3901
      %v3912 = vpack.c.b16 %v3904, %v3903
      %3913 = vrot.lane.b32.xlu0 %v3905, 72
      %v3914 = vpop.permute.xlu0 %3913
      %3915 = vrot.lane.b32.xlu0 %v3906, 72
      %v3916 = vpop.permute.xlu0 %3915
      %3917 = vrot.lane.b32.xlu0 %v3907, 72
      %v3918 = vpop.permute.xlu0 %3917
      %3919 = vrot.lane.b32.xlu0 %v3908, 72
      %v3920 = vpop.permute.xlu0 %3919
      %3921 = vrot.lane.b32.xlu0 %v3909, 72
      %v3922 = vpop.permute.xlu0 %3921
      %3923 = vrot.lane.b32.xlu0 %v3910, 72
      %v3924 = vpop.permute.xlu0 %3923
      %3925 = vrot.lane.b32.xlu0 %v3911, 72
      %v3926 = vpop.permute.xlu0 %3925
      %3927 = vrot.lane.b32.xlu0 %v3912, 72
      %v3928 = vpop.permute.xlu0 %3927
      %vm3937 = vcmask 622144
      %3938 = vst.msk [vmem:[#allocation2] sm:$0xff] %vm3937, %v3914
      %3939 = vst.msk [vmem:[#allocation2 + $0x10] sm:$0xff] %vm3937, %v3916
      %3940 = vst.msk [vmem:[#allocation2 + $0x20] sm:$0xff] %vm3937, %v3918
      %3941 = vst.msk [vmem:[#allocation2 + $0x30] sm:$0xff] %vm3937, %v3920
      %3942 = vst.msk [vmem:[#allocation2 + $0x40] sm:$0xff] %vm3937, %v3922
      %3943 = vst.msk [vmem:[#allocation2 + $0x50] sm:$0xff] %vm3937, %v3924
      %3944 = vst.msk [vmem:[#allocation2 + $0x60] sm:$0xff] %vm3937, %v3926
      %3945 = vst.msk [vmem:[#allocation2 + $0x70] sm:$0xff] %vm3937, %v3928
      %v3946 = vld [vmem:[%s3149] sm:$0xe]
      %v3947 = vld [vmem:[%s3149 + $0x4] sm:$0xf]
      %v3948 = vld [vmem:[%s3149 + $0x8] sm:$0x1]
      %v3949 = vld [vmem:[%s3149 + $0xc] sm:$0xe]
      %v3950 = vld [vmem:[%s3149 + $0x10] sm:$0xf]
      %v3951 = vld [vmem:[%s3149 + $0x14] sm:$0x1]
      %v3952 = vld [vmem:[%s3149 + $0x18] sm:$0xe]
      %v3953 = vld [vmem:[%s3149 + $0x1c] sm:$0xf]
      %v3954 = vld [vmem:[%s3149 + $0x20] sm:$0x1]
      %v3955 = vld [vmem:[%s3149 + $0x24] sm:$0xe]
      %v3956 = vld [vmem:[%s3149 + $0x28] sm:$0xf]
      %v3957 = vld [vmem:[%s3149 + $0x2c] sm:$0x1]
      %v3958 = vld [vmem:[%s3149 + $0x30] sm:$0xe]
      %v3959 = vld [vmem:[%s3149 + $0x34] sm:$0xf]
      %v3960 = vld [vmem:[%s3149 + $0x38] sm:$0x1]
      %v3961 = vld [vmem:[%s3149 + $0x3c] sm:$0xe]
      %v3962 = vld [vmem:[%s3149 + $0x40] sm:$0xf]
      %v3963 = vld [vmem:[%s3149 + $0x44] sm:$0x1]
      %v3964 = vld [vmem:[%s3149 + $0x48] sm:$0xe]
      %v3965 = vld [vmem:[%s3149 + $0x4c] sm:$0xf]
      %v3966 = vld [vmem:[%s3149 + $0x50] sm:$0x1]
      %v3967 = vld [vmem:[%s3149 + $0x54] sm:$0xe]
      %v3968 = vld [vmem:[%s3149 + $0x58] sm:$0xf]
      %v3969 = vld [vmem:[%s3149 + $0x5c] sm:$0x1]
      %v3994 = vrot.slane %v3946, 5
      %v3995 = vrot.slane %v3994, 4
      %v3996 = vrot.slane %v3947, 5
      %v3997 = vsel %vm1123, %v3995, %v3996
      %v3998 = vrot.slane %v3996, 4
      %v3999 = vrot.slane %v3948, 5
      %v4000 = vsel %vm1123, %v3998, %v3999
      %v4001 = vrot.slane %v3949, 5
      %v4002 = vrot.slane %v4001, 4
      %v4003 = vrot.slane %v3950, 5
      %v4004 = vsel %vm1123, %v4002, %v4003
      %v4005 = vrot.slane %v4003, 4
      %v4006 = vrot.slane %v3951, 5
      %v4007 = vsel %vm1123, %v4005, %v4006
      %v4008 = vrot.slane %v3952, 5
      %v4009 = vrot.slane %v4008, 4
      %v4010 = vrot.slane %v3953, 5
      %v4011 = vsel %vm1123, %v4009, %v4010
      %v4012 = vrot.slane %v4010, 4
      %v4013 = vrot.slane %v3954, 5
      %v4014 = vsel %vm1123, %v4012, %v4013
      %v4015 = vrot.slane %v3955, 5
      %v4016 = vrot.slane %v4015, 4
      %v4017 = vrot.slane %v3956, 5
      %v4018 = vsel %vm1123, %v4016, %v4017
      %v4019 = vrot.slane %v4017, 4
      %v4020 = vrot.slane %v3957, 5
      %v4021 = vsel %vm1123, %v4019, %v4020
      %v4022 = vrot.slane %v3958, 5
      %v4023 = vrot.slane %v4022, 4
      %v4024 = vrot.slane %v3959, 5
      %v4025 = vsel %vm1123, %v4023, %v4024
      %v4026 = vrot.slane %v4024, 4
      %v4027 = vrot.slane %v3960, 5
      %v4028 = vsel %vm1123, %v4026, %v4027
      %v4029 = vrot.slane %v3961, 5
      %v4030 = vrot.slane %v4029, 4
      %v4031 = vrot.slane %v3962, 5
      %v4032 = vsel %vm1123, %v4030, %v4031
      %v4033 = vrot.slane %v4031, 4
      %v4034 = vrot.slane %v3963, 5
      %v4035 = vsel %vm1123, %v4033, %v4034
      %v4036 = vrot.slane %v3964, 5
      %v4037 = vrot.slane %v4036, 4
      %v4038 = vrot.slane %v3965, 5
      %v4039 = vsel %vm1123, %v4037, %v4038
      %v4040 = vrot.slane %v4038, 4
      %v4041 = vrot.slane %v3966, 5
      %v4042 = vsel %vm1123, %v4040, %v4041
      %v4043 = vrot.slane %v3967, 5
      %v4044 = vrot.slane %v4043, 4
      %v4045 = vrot.slane %v3968, 5
      %v4046 = vsel %vm1123, %v4044, %v4045
      %v4047 = vrot.slane %v4045, 4
      %v4048 = vrot.slane %v3969, 5
      %v4049 = vsel %vm1123, %v4047, %v4048
      %v4050 = vunpack.c.l.b16 %v3997
      %v4051 = vunpack.c.l.b16 %v4000
      %v4052 = vunpack.c.l.b16 %v4004
      %v4053 = vunpack.c.l.b16 %v4007
      %v4054 = vunpack.c.l.b16 %v4011
      %v4055 = vunpack.c.l.b16 %v4014
      %v4056 = vunpack.c.l.b16 %v4018
      %v4057 = vunpack.c.l.b16 %v4021
      %v4058 = vunpack.c.l.b16 %v4025
      %v4059 = vunpack.c.l.b16 %v4028
      %v4060 = vunpack.c.l.b16 %v4032
      %v4061 = vunpack.c.l.b16 %v4035
      %v4062 = vunpack.c.l.b16 %v4039
      %v4063 = vunpack.c.l.b16 %v4042
      %v4064 = vunpack.c.l.b16 %v4046
      %v4065 = vunpack.c.l.b16 %v4049
      %v4066 = vpack.c.b16 %v4051, %v4050
      %v4067 = vpack.c.b16 %v4053, %v4052
      %v4068 = vpack.c.b16 %v4055, %v4054
      %v4069 = vpack.c.b16 %v4057, %v4056
      %v4070 = vpack.c.b16 %v4059, %v4058
      %v4071 = vpack.c.b16 %v4061, %v4060
      %v4072 = vpack.c.b16 %v4063, %v4062
      %v4073 = vpack.c.b16 %v4065, %v4064
      %4074 = vrot.lane.b32.xlu0 %v4066, 76
      %v4075 = vpop.permute.xlu0 %4074
      %4076 = vrot.lane.b32.xlu0 %v4067, 76
      %v4077 = vpop.permute.xlu0 %4076
      %4078 = vrot.lane.b32.xlu0 %v4068, 76
      %v4079 = vpop.permute.xlu0 %4078
      %4080 = vrot.lane.b32.xlu0 %v4069, 76
      %v4081 = vpop.permute.xlu0 %4080
      %4082 = vrot.lane.b32.xlu0 %v4070, 76
      %v4083 = vpop.permute.xlu0 %4082
      %4084 = vrot.lane.b32.xlu0 %v4071, 76
      %v4085 = vpop.permute.xlu0 %4084
      %4086 = vrot.lane.b32.xlu0 %v4072, 76
      %v4087 = vpop.permute.xlu0 %4086
      %4088 = vrot.lane.b32.xlu0 %v4073, 76
      %v4089 = vpop.permute.xlu0 %4088
      %vm4098 = vcmask 654944
      %4099 = vst.msk [vmem:[#allocation2] sm:$0xff] %vm4098, %v4075
      %4100 = vst.msk [vmem:[#allocation2 + $0x10] sm:$0xff] %vm4098, %v4077
      %4101 = vst.msk [vmem:[#allocation2 + $0x20] sm:$0xff] %vm4098, %v4079
      %4102 = vst.msk [vmem:[#allocation2 + $0x30] sm:$0xff] %vm4098, %v4081
      %4103 = vst.msk [vmem:[#allocation2 + $0x40] sm:$0xff] %vm4098, %v4083
      %4104 = vst.msk [vmem:[#allocation2 + $0x50] sm:$0xff] %vm4098, %v4085
      %4105 = vst.msk [vmem:[#allocation2 + $0x60] sm:$0xff] %vm4098, %v4087
      %4106 = vst.msk [vmem:[#allocation2 + $0x70] sm:$0xff] %vm4098, %v4089
      %v4107 = vld [vmem:[%s3059] sm:$0xe]
      %v4108 = vld [vmem:[%s3059 + $0x4] sm:$0xf]
      %v4109 = vld [vmem:[%s3059 + $0x8] sm:$0x3]
      %v4110 = vld [vmem:[%s3059 + $0xc] sm:$0xe]
      %v4111 = vld [vmem:[%s3059 + $0x10] sm:$0xf]
      %v4112 = vld [vmem:[%s3059 + $0x14] sm:$0x3]
      %v4113 = vld [vmem:[%s3059 + $0x18] sm:$0xe]
      %v4114 = vld [vmem:[%s3059 + $0x1c] sm:$0xf]
      %v4115 = vld [vmem:[%s3059 + $0x20] sm:$0x3]
      %v4116 = vld [vmem:[%s3059 + $0x24] sm:$0xe]
      %v4117 = vld [vmem:[%s3059 + $0x28] sm:$0xf]
      %v4118 = vld [vmem:[%s3059 + $0x2c] sm:$0x3]
      %v4119 = vld [vmem:[%s3059 + $0x30] sm:$0xe]
      %v4120 = vld [vmem:[%s3059 + $0x34] sm:$0xf]
      %v4121 = vld [vmem:[%s3059 + $0x38] sm:$0x3]
      %v4122 = vld [vmem:[%s3059 + $0x3c] sm:$0xe]
      %v4123 = vld [vmem:[%s3059 + $0x40] sm:$0xf]
      %v4124 = vld [vmem:[%s3059 + $0x44] sm:$0x3]
      %v4125 = vld [vmem:[%s3059 + $0x48] sm:$0xe]
      %v4126 = vld [vmem:[%s3059 + $0x4c] sm:$0xf]
      %v4127 = vld [vmem:[%s3059 + $0x50] sm:$0x3]
      %v4128 = vld [vmem:[%s3059 + $0x54] sm:$0xe]
      %v4129 = vld [vmem:[%s3059 + $0x58] sm:$0xf]
      %v4130 = vld [vmem:[%s3059 + $0x5c] sm:$0x3]
      %v4132 = vshrl.u32 %v4107, 16
      %v4134 = vrot.slane %v4132, 5
      %v4135 = vshll.u32 %v4107, 16
      %v4137 = vrot.slane %v4135, 6
      %v4138 = vor.u32 %v4134, %v4137
      %v4139 = vrot.slane %v4138, 4
      %v4141 = vshrl.u32 %v4108, 16
      %v4143 = vrot.slane %v4141, 5
      %v4144 = vshll.u32 %v4108, 16
      %v4146 = vrot.slane %v4144, 6
      %v4147 = vor.u32 %v4143, %v4146
      %v4148 = vsel %vm1424, %v4139, %v4147
      %v4149 = vrot.slane %v4147, 4
      %v4151 = vshrl.u32 %v4109, 16
      %v4153 = vrot.slane %v4151, 5
      %v4154 = vshll.u32 %v4109, 16
      %v4156 = vrot.slane %v4154, 6
      %v4157 = vor.u32 %v4153, %v4156
      %v4158 = vsel %vm1424, %v4149, %v4157
      %v4160 = vshrl.u32 %v4110, 16
      %v4162 = vrot.slane %v4160, 5
      %v4163 = vshll.u32 %v4110, 16
      %v4165 = vrot.slane %v4163, 6
      %v4166 = vor.u32 %v4162, %v4165
      %v4167 = vrot.slane %v4166, 4
      %v4169 = vshrl.u32 %v4111, 16
      %v4171 = vrot.slane %v4169, 5
      %v4172 = vshll.u32 %v4111, 16
      %v4174 = vrot.slane %v4172, 6
      %v4175 = vor.u32 %v4171, %v4174
      %v4176 = vsel %vm1424, %v4167, %v4175
      %v4177 = vrot.slane %v4175, 4
      %v4179 = vshrl.u32 %v4112, 16
      %v4181 = vrot.slane %v4179, 5
      %v4182 = vshll.u32 %v4112, 16
      %v4184 = vrot.slane %v4182, 6
      %v4185 = vor.u32 %v4181, %v4184
      %v4186 = vsel %vm1424, %v4177, %v4185
      %v4188 = vshrl.u32 %v4113, 16
      %v4190 = vrot.slane %v4188, 5
      %v4191 = vshll.u32 %v4113, 16
      %v4193 = vrot.slane %v4191, 6
      %v4194 = vor.u32 %v4190, %v4193
      %v4195 = vrot.slane %v4194, 4
      %v4197 = vshrl.u32 %v4114, 16
      %v4199 = vrot.slane %v4197, 5
      %v4200 = vshll.u32 %v4114, 16
      %v4202 = vrot.slane %v4200, 6
      %v4203 = vor.u32 %v4199, %v4202
      %v4204 = vsel %vm1424, %v4195, %v4203
      %v4205 = vrot.slane %v4203, 4
      %v4207 = vshrl.u32 %v4115, 16
      %v4209 = vrot.slane %v4207, 5
      %v4210 = vshll.u32 %v4115, 16
      %v4212 = vrot.slane %v4210, 6
      %v4213 = vor.u32 %v4209, %v4212
      %v4214 = vsel %vm1424, %v4205, %v4213
      %v4216 = vshrl.u32 %v4116, 16
      %v4218 = vrot.slane %v4216, 5
      %v4219 = vshll.u32 %v4116, 16
      %v4221 = vrot.slane %v4219, 6
      %v4222 = vor.u32 %v4218, %v4221
      %v4223 = vrot.slane %v4222, 4
      %v4225 = vshrl.u32 %v4117, 16
      %v4227 = vrot.slane %v4225, 5
      %v4228 = vshll.u32 %v4117, 16
      %v4230 = vrot.slane %v4228, 6
      %v4231 = vor.u32 %v4227, %v4230
      %v4232 = vsel %vm1424, %v4223, %v4231
      %v4233 = vrot.slane %v4231, 4
      %v4235 = vshrl.u32 %v4118, 16
      %v4237 = vrot.slane %v4235, 5
      %v4238 = vshll.u32 %v4118, 16
      %v4240 = vrot.slane %v4238, 6
      %v4241 = vor.u32 %v4237, %v4240
      %v4242 = vsel %vm1424, %v4233, %v4241
      %v4244 = vshrl.u32 %v4119, 16
      %v4246 = vrot.slane %v4244, 5
      %v4247 = vshll.u32 %v4119, 16
      %v4249 = vrot.slane %v4247, 6
      %v4250 = vor.u32 %v4246, %v4249
      %v4251 = vrot.slane %v4250, 4
      %v4253 = vshrl.u32 %v4120, 16
      %v4255 = vrot.slane %v4253, 5
      %v4256 = vshll.u32 %v4120, 16
      %v4258 = vrot.slane %v4256, 6
      %v4259 = vor.u32 %v4255, %v4258
      %v4260 = vsel %vm1424, %v4251, %v4259
      %v4261 = vrot.slane %v4259, 4
      %v4263 = vshrl.u32 %v4121, 16
      %v4265 = vrot.slane %v4263, 5
      %v4266 = vshll.u32 %v4121, 16
      %v4268 = vrot.slane %v4266, 6
      %v4269 = vor.u32 %v4265, %v4268
      %v4270 = vsel %vm1424, %v4261, %v4269
      %v4272 = vshrl.u32 %v4122, 16
      %v4274 = vrot.slane %v4272, 5
      %v4275 = vshll.u32 %v4122, 16
      %v4277 = vrot.slane %v4275, 6
      %v4278 = vor.u32 %v4274, %v4277
      %v4279 = vrot.slane %v4278, 4
      %v4281 = vshrl.u32 %v4123, 16
      %v4283 = vrot.slane %v4281, 5
      %v4284 = vshll.u32 %v4123, 16
      %v4286 = vrot.slane %v4284, 6
      %v4287 = vor.u32 %v4283, %v4286
      %v4288 = vsel %vm1424, %v4279, %v4287
      %v4289 = vrot.slane %v4287, 4
      %v4291 = vshrl.u32 %v4124, 16
      %v4293 = vrot.slane %v4291, 5
      %v4294 = vshll.u32 %v4124, 16
      %v4296 = vrot.slane %v4294, 6
      %v4297 = vor.u32 %v4293, %v4296
      %v4298 = vsel %vm1424, %v4289, %v4297
      %v4300 = vshrl.u32 %v4125, 16
      %v4302 = vrot.slane %v4300, 5
      %v4303 = vshll.u32 %v4125, 16
      %v4305 = vrot.slane %v4303, 6
      %v4306 = vor.u32 %v4302, %v4305
      %v4307 = vrot.slane %v4306, 4
      %v4309 = vshrl.u32 %v4126, 16
      %v4311 = vrot.slane %v4309, 5
      %v4312 = vshll.u32 %v4126, 16
      %v4314 = vrot.slane %v4312, 6
      %v4315 = vor.u32 %v4311, %v4314
      %v4316 = vsel %vm1424, %v4307, %v4315
      %v4317 = vrot.slane %v4315, 4
      %v4319 = vshrl.u32 %v4127, 16
      %v4321 = vrot.slane %v4319, 5
      %v4322 = vshll.u32 %v4127, 16
      %v4324 = vrot.slane %v4322, 6
      %v4325 = vor.u32 %v4321, %v4324
      %v4326 = vsel %vm1424, %v4317, %v4325
      %v4328 = vshrl.u32 %v4128, 16
      %v4330 = vrot.slane %v4328, 5
      %v4331 = vshll.u32 %v4128, 16
      %v4333 = vrot.slane %v4331, 6
      %v4334 = vor.u32 %v4330, %v4333
      %v4335 = vrot.slane %v4334, 4
      %v4337 = vshrl.u32 %v4129, 16
      %v4339 = vrot.slane %v4337, 5
      %v4340 = vshll.u32 %v4129, 16
      %v4342 = vrot.slane %v4340, 6
      %v4343 = vor.u32 %v4339, %v4342
      %v4344 = vsel %vm1424, %v4335, %v4343
      %v4345 = vrot.slane %v4343, 4
      %v4347 = vshrl.u32 %v4130, 16
      %v4349 = vrot.slane %v4347, 5
      %v4350 = vshll.u32 %v4130, 16
      %v4352 = vrot.slane %v4350, 6
      %v4353 = vor.u32 %v4349, %v4352
      %v4354 = vsel %vm1424, %v4345, %v4353
      %v4355 = vunpack.c.l.b16 %v4148
      %v4356 = vunpack.c.l.b16 %v4158
      %v4357 = vunpack.c.l.b16 %v4176
      %v4358 = vunpack.c.l.b16 %v4186
      %v4359 = vunpack.c.l.b16 %v4204
      %v4360 = vunpack.c.l.b16 %v4214
      %v4361 = vunpack.c.l.b16 %v4232
      %v4362 = vunpack.c.l.b16 %v4242
      %v4363 = vunpack.c.l.b16 %v4260
      %v4364 = vunpack.c.l.b16 %v4270
      %v4365 = vunpack.c.l.b16 %v4288
      %v4366 = vunpack.c.l.b16 %v4298
      %v4367 = vunpack.c.l.b16 %v4316
      %v4368 = vunpack.c.l.b16 %v4326
      %v4369 = vunpack.c.l.b16 %v4344
      %v4370 = vunpack.c.l.b16 %v4354
      %v4371 = vpack.c.b16 %v4356, %v4355
      %v4372 = vpack.c.b16 %v4358, %v4357
      %v4373 = vpack.c.b16 %v4360, %v4359
      %v4374 = vpack.c.b16 %v4362, %v4361
      %v4375 = vpack.c.b16 %v4364, %v4363
      %v4376 = vpack.c.b16 %v4366, %v4365
      %v4377 = vpack.c.b16 %v4368, %v4367
      %v4378 = vpack.c.b16 %v4370, %v4369
      %4379 = vrot.lane.b32.xlu0 %v4371, 80
      %v4380 = vpop.permute.xlu0 %4379
      %4381 = vrot.lane.b32.xlu0 %v4372, 80
      %v4382 = vpop.permute.xlu0 %4381
      %4383 = vrot.lane.b32.xlu0 %v4373, 80
      %v4384 = vpop.permute.xlu0 %4383
      %4385 = vrot.lane.b32.xlu0 %v4374, 80
      %v4386 = vpop.permute.xlu0 %4385
      %4387 = vrot.lane.b32.xlu0 %v4375, 80
      %v4388 = vpop.permute.xlu0 %4387
      %4389 = vrot.lane.b32.xlu0 %v4376, 80
      %v4390 = vpop.permute.xlu0 %4389
      %4391 = vrot.lane.b32.xlu0 %v4377, 80
      %v4392 = vpop.permute.xlu0 %4391
      %4393 = vrot.lane.b32.xlu0 %v4378, 80
      %v4394 = vpop.permute.xlu0 %4393
      %vm4403 = vcmask 687744
      %4404 = vst.msk [vmem:[#allocation2] sm:$0xff] %vm4403, %v4380
      %4405 = vst.msk [vmem:[#allocation2 + $0x10] sm:$0xff] %vm4403, %v4382
      %4406 = vst.msk [vmem:[#allocation2 + $0x20] sm:$0xff] %vm4403, %v4384
      %4407 = vst.msk [vmem:[#allocation2 + $0x30] sm:$0xff] %vm4403, %v4386
      %4408 = vst.msk [vmem:[#allocation2 + $0x40] sm:$0xff] %vm4403, %v4388
      %4409 = vst.msk [vmem:[#allocation2 + $0x50] sm:$0xff] %vm4403, %v4390
      %4410 = vst.msk [vmem:[#allocation2 + $0x60] sm:$0xff] %vm4403, %v4392
      %4411 = vst.msk [vmem:[#allocation2 + $0x70] sm:$0xff] %vm4403, %v4394
      %s4412 = scalar_lea.vmem %s354, 276
      %v4413 = vld [vmem:[%s4412] sm:$0xf]
      %v4414 = vld [vmem:[%s4412 + $0x4] sm:$0xf]
      %v4415 = vld [vmem:[%s4412 + $0xc] sm:$0xf]
      %v4416 = vld [vmem:[%s4412 + $0x10] sm:$0xf]
      %v4417 = vld [vmem:[%s4412 + $0x18] sm:$0xf]
      %v4418 = vld [vmem:[%s4412 + $0x1c] sm:$0xf]
      %v4419 = vld [vmem:[%s4412 + $0x24] sm:$0xf]
      %v4420 = vld [vmem:[%s4412 + $0x28] sm:$0xf]
      %v4421 = vld [vmem:[%s4412 + $0x30] sm:$0xf]
      %v4422 = vld [vmem:[%s4412 + $0x34] sm:$0xf]
      %v4423 = vld [vmem:[%s4412 + $0x3c] sm:$0xf]
      %v4424 = vld [vmem:[%s4412 + $0x40] sm:$0xf]
      %v4425 = vld [vmem:[%s4412 + $0x48] sm:$0xf]
      %v4426 = vld [vmem:[%s4412 + $0x4c] sm:$0xf]
      %v4427 = vld [vmem:[%s4412 + $0x54] sm:$0xf]
      %v4428 = vld [vmem:[%s4412 + $0x58] sm:$0xf]
      %v4445 = vunpack.c.l.b16 %v4413
      %v4446 = vunpack.c.l.b16 %v4414
      %v4447 = vunpack.c.l.b16 %v4415
      %v4448 = vunpack.c.l.b16 %v4416
      %v4449 = vunpack.c.l.b16 %v4417
      %v4450 = vunpack.c.l.b16 %v4418
      %v4451 = vunpack.c.l.b16 %v4419
      %v4452 = vunpack.c.l.b16 %v4420
      %v4453 = vunpack.c.l.b16 %v4421
      %v4454 = vunpack.c.l.b16 %v4422
      %v4455 = vunpack.c.l.b16 %v4423
      %v4456 = vunpack.c.l.b16 %v4424
      %v4457 = vunpack.c.l.b16 %v4425
      %v4458 = vunpack.c.l.b16 %v4426
      %v4459 = vunpack.c.l.b16 %v4427
      %v4460 = vunpack.c.l.b16 %v4428
      %v4461 = vpack.c.b16 %v4446, %v4445
      %v4462 = vpack.c.b16 %v4448, %v4447
      %v4463 = vpack.c.b16 %v4450, %v4449
      %v4464 = vpack.c.b16 %v4452, %v4451
      %v4465 = vpack.c.b16 %v4454, %v4453
      %v4466 = vpack.c.b16 %v4456, %v4455
      %v4467 = vpack.c.b16 %v4458, %v4457
      %v4468 = vpack.c.b16 %v4460, %v4459
      %4469 = vrot.lane.b32.xlu0 %v4461, 84
      %v4470 = vpop.permute.xlu0 %4469
      %4471 = vrot.lane.b32.xlu0 %v4462, 84
      %v4472 = vpop.permute.xlu0 %4471
      %4473 = vrot.lane.b32.xlu0 %v4463, 84
      %v4474 = vpop.permute.xlu0 %4473
      %4475 = vrot.lane.b32.xlu0 %v4464, 84
      %v4476 = vpop.permute.xlu0 %4475
      %4477 = vrot.lane.b32.xlu0 %v4465, 84
      %v4478 = vpop.permute.xlu0 %4477
      %4479 = vrot.lane.b32.xlu0 %v4466, 84
      %v4480 = vpop.permute.xlu0 %4479
      %4481 = vrot.lane.b32.xlu0 %v4467, 84
      %v4482 = vpop.permute.xlu0 %4481
      %4483 = vrot.lane.b32.xlu0 %v4468, 84
      %v4484 = vpop.permute.xlu0 %4483
      %vm4493 = vcmask 720544
      %4494 = vst.msk [vmem:[#allocation2] sm:$0xff] %vm4493, %v4470
      %4495 = vst.msk [vmem:[#allocation2 + $0x10] sm:$0xff] %vm4493, %v4472
      %4496 = vst.msk [vmem:[#allocation2 + $0x20] sm:$0xff] %vm4493, %v4474
      %4497 = vst.msk [vmem:[#allocation2 + $0x30] sm:$0xff] %vm4493, %v4476
      %4498 = vst.msk [vmem:[#allocation2 + $0x40] sm:$0xff] %vm4493, %v4478
      %4499 = vst.msk [vmem:[#allocation2 + $0x50] sm:$0xff] %vm4493, %v4480
      %4500 = vst.msk [vmem:[#allocation2 + $0x60] sm:$0xff] %vm4493, %v4482
      %4501 = vst.msk [vmem:[#allocation2 + $0x70] sm:$0xff] %vm4493, %v4484
      %s4502 = scalar_lea.vmem %s354, 408
      %v4503 = vld [vmem:[%s4502] sm:$0xf]
      %v4504 = vld [vmem:[%s4502 + $0x4] sm:$0xf]
      %v4505 = vld [vmem:[%s4502 + $0xc] sm:$0xf]
      %v4506 = vld [vmem:[%s4502 + $0x10] sm:$0xf]
      %v4507 = vld [vmem:[%s4502 + $0x18] sm:$0xf]
      %v4508 = vld [vmem:[%s4502 + $0x1c] sm:$0xf]
      %v4509 = vld [vmem:[%s4502 + $0x24] sm:$0xf]
      %v4510 = vld [vmem:[%s4502 + $0x28] sm:$0xf]
      %v4511 = vld [vmem:[%s4502 + $0x30] sm:$0xf]
      %v4512 = vld [vmem:[%s4502 + $0x34] sm:$0xf]
      %v4513 = vld [vmem:[%s4502 + $0x3c] sm:$0xf]
      %v4514 = vld [vmem:[%s4502 + $0x40] sm:$0xf]
      %v4515 = vld [vmem:[%s4502 + $0x48] sm:$0xf]
      %v4516 = vld [vmem:[%s4502 + $0x4c] sm:$0xf]
      %v4517 = vld [vmem:[%s4502 + $0x54] sm:$0xf]
      %v4518 = vld [vmem:[%s4502 + $0x58] sm:$0xf]
      %v4535 = vunpack.c.l.b16 %v4503
      %v4536 = vunpack.c.l.b16 %v4504
      %v4537 = vunpack.c.l.b16 %v4505
      %v4538 = vunpack.c.l.b16 %v4506
      %v4539 = vunpack.c.l.b16 %v4507
      %v4540 = vunpack.c.l.b16 %v4508
      %v4541 = vunpack.c.l.b16 %v4509
      %v4542 = vunpack.c.l.b16 %v4510
      %v4543 = vunpack.c.l.b16 %v4511
      %v4544 = vunpack.c.l.b16 %v4512
      %v4545 = vunpack.c.l.b16 %v4513
      %v4546 = vunpack.c.l.b16 %v4514
      %v4547 = vunpack.c.l.b16 %v4515
      %v4548 = vunpack.c.l.b16 %v4516
      %v4549 = vunpack.c.l.b16 %v4517
      %v4550 = vunpack.c.l.b16 %v4518
      %v4551 = vpack.c.b16 %v4536, %v4535
      %v4552 = vpack.c.b16 %v4538, %v4537
      %v4553 = vpack.c.b16 %v4540, %v4539
      %v4554 = vpack.c.b16 %v4542, %v4541
      %v4555 = vpack.c.b16 %v4544, %v4543
      %v4556 = vpack.c.b16 %v4546, %v4545
      %v4557 = vpack.c.b16 %v4548, %v4547
      %v4558 = vpack.c.b16 %v4550, %v4549
      %4559 = vrot.lane.b32.xlu0 %v4551, 88
      %v4560 = vpop.permute.xlu0 %4559
      %4561 = vrot.lane.b32.xlu0 %v4552, 88
      %v4562 = vpop.permute.xlu0 %4561
      %4563 = vrot.lane.b32.xlu0 %v4553, 88
      %v4564 = vpop.permute.xlu0 %4563
      %4565 = vrot.lane.b32.xlu0 %v4554, 88
      %v4566 = vpop.permute.xlu0 %4565
      %4567 = vrot.lane.b32.xlu0 %v4555, 88
      %v4568 = vpop.permute.xlu0 %4567
      %4569 = vrot.lane.b32.xlu0 %v4556, 88
      %v4570 = vpop.permute.xlu0 %4569
      %4571 = vrot.lane.b32.xlu0 %v4557, 88
      %v4572 = vpop.permute.xlu0 %4571
      %4573 = vrot.lane.b32.xlu0 %v4558, 88
      %v4574 = vpop.permute.xlu0 %4573
      %vm4583 = vcmask 753344
      %4584 = vst.msk [vmem:[#allocation2] sm:$0xff] %vm4583, %v4560
      %4585 = vst.msk [vmem:[#allocation2 + $0x10] sm:$0xff] %vm4583, %v4562
      %4586 = vst.msk [vmem:[#allocation2 + $0x20] sm:$0xff] %vm4583, %v4564
      %4587 = vst.msk [vmem:[#allocation2 + $0x30] sm:$0xff] %vm4583, %v4566
      %4588 = vst.msk [vmem:[#allocation2 + $0x40] sm:$0xff] %vm4583, %v4568
      %4589 = vst.msk [vmem:[#allocation2 + $0x50] sm:$0xff] %vm4583, %v4570
      %4590 = vst.msk [vmem:[#allocation2 + $0x60] sm:$0xff] %vm4583, %v4572
      %4591 = vst.msk [vmem:[#allocation2 + $0x70] sm:$0xff] %vm4583, %v4574
      %v4592 = vld [vmem:[%s4412] sm:$0xf]
      %v4593 = vld [vmem:[%s4412 + $0x4] sm:$0xf]
      %v4594 = vld [vmem:[%s4412 + $0x8] sm:$0x1]
      %v4595 = vld [vmem:[%s4412 + $0xc] sm:$0xf]
      %v4596 = vld [vmem:[%s4412 + $0x10] sm:$0xf]
      %v4597 = vld [vmem:[%s4412 + $0x14] sm:$0x1]
      %v4598 = vld [vmem:[%s4412 + $0x18] sm:$0xf]
      %v4599 = vld [vmem:[%s4412 + $0x1c] sm:$0xf]
      %v4600 = vld [vmem:[%s4412 + $0x20] sm:$0x1]
      %v4601 = vld [vmem:[%s4412 + $0x24] sm:$0xf]
      %v4602 = vld [vmem:[%s4412 + $0x28] sm:$0xf]
      %v4603 = vld [vmem:[%s4412 + $0x2c] sm:$0x1]
      %v4604 = vld [vmem:[%s4412 + $0x30] sm:$0xf]
      %v4605 = vld [vmem:[%s4412 + $0x34] sm:$0xf]
      %v4606 = vld [vmem:[%s4412 + $0x38] sm:$0x1]
      %v4607 = vld [vmem:[%s4412 + $0x3c] sm:$0xf]
      %v4608 = vld [vmem:[%s4412 + $0x40] sm:$0xf]
      %v4609 = vld [vmem:[%s4412 + $0x44] sm:$0x1]
      %v4610 = vld [vmem:[%s4412 + $0x48] sm:$0xf]
      %v4611 = vld [vmem:[%s4412 + $0x4c] sm:$0xf]
      %v4612 = vld [vmem:[%s4412 + $0x50] sm:$0x1]
      %v4613 = vld [vmem:[%s4412 + $0x54] sm:$0xf]
      %v4614 = vld [vmem:[%s4412 + $0x58] sm:$0xf]
      %v4615 = vld [vmem:[%s4412 + $0x5c] sm:$0x1]
      %v4617 = vshrl.u32 %v4592, 16
      %v4619 = vrot.slane %v4617, 4
      %v4620 = vshll.u32 %v4592, 16
      %v4622 = vrot.slane %v4620, 5
      %v4623 = vor.u32 %v4619, %v4622
      %v4624 = vrot.slane %v4623, 4
      %v4626 = vshll.u32 %v4593, 16
      %v4628 = vrot.slane %v4626, 5
      %v4629 = vsel %vm550, %v4624, %v4628
      %v4630 = vshrl.u32 %v4593, 16
      %v4632 = vrot.slane %v4630, 4
      %v4633 = vor.u32 %v4632, %v4628
      %v4634 = vrot.slane %v4633, 4
      %v4636 = vshll.u32 %v4594, 16
      %v4638 = vrot.slane %v4636, 5
      %v4639 = vsel %vm550, %v4634, %v4638
      %v4641 = vshrl.u32 %v4595, 16
      %v4643 = vrot.slane %v4641, 4
      %v4644 = vshll.u32 %v4595, 16
      %v4646 = vrot.slane %v4644, 5
      %v4647 = vor.u32 %v4643, %v4646
      %v4648 = vrot.slane %v4647, 4
      %v4650 = vshll.u32 %v4596, 16
      %v4652 = vrot.slane %v4650, 5
      %v4653 = vsel %vm550, %v4648, %v4652
      %v4654 = vshrl.u32 %v4596, 16
      %v4656 = vrot.slane %v4654, 4
      %v4657 = vor.u32 %v4656, %v4652
      %v4658 = vrot.slane %v4657, 4
      %v4660 = vshll.u32 %v4597, 16
      %v4662 = vrot.slane %v4660, 5
      %v4663 = vsel %vm550, %v4658, %v4662
      %v4665 = vshrl.u32 %v4598, 16
      %v4667 = vrot.slane %v4665, 4
      %v4668 = vshll.u32 %v4598, 16
      %v4670 = vrot.slane %v4668, 5
      %v4671 = vor.u32 %v4667, %v4670
      %v4672 = vrot.slane %v4671, 4
      %v4674 = vshll.u32 %v4599, 16
      %v4676 = vrot.slane %v4674, 5
      %v4677 = vsel %vm550, %v4672, %v4676
      %v4678 = vshrl.u32 %v4599, 16
      %v4680 = vrot.slane %v4678, 4
      %v4681 = vor.u32 %v4680, %v4676
      %v4682 = vrot.slane %v4681, 4
      %v4684 = vshll.u32 %v4600, 16
      %v4686 = vrot.slane %v4684, 5
      %v4687 = vsel %vm550, %v4682, %v4686
      %v4689 = vshrl.u32 %v4601, 16
      %v4691 = vrot.slane %v4689, 4
      %v4692 = vshll.u32 %v4601, 16
      %v4694 = vrot.slane %v4692, 5
      %v4695 = vor.u32 %v4691, %v4694
      %v4696 = vrot.slane %v4695, 4
      %v4698 = vshll.u32 %v4602, 16
      %v4700 = vrot.slane %v4698, 5
      %v4701 = vsel %vm550, %v4696, %v4700
      %v4702 = vshrl.u32 %v4602, 16
      %v4704 = vrot.slane %v4702, 4
      %v4705 = vor.u32 %v4704, %v4700
      %v4706 = vrot.slane %v4705, 4
      %v4708 = vshll.u32 %v4603, 16
      %v4710 = vrot.slane %v4708, 5
      %v4711 = vsel %vm550, %v4706, %v4710
      %v4713 = vshrl.u32 %v4604, 16
      %v4715 = vrot.slane %v4713, 4
      %v4716 = vshll.u32 %v4604, 16
      %v4718 = vrot.slane %v4716, 5
      %v4719 = vor.u32 %v4715, %v4718
      %v4720 = vrot.slane %v4719, 4
      %v4722 = vshll.u32 %v4605, 16
      %v4724 = vrot.slane %v4722, 5
      %v4725 = vsel %vm550, %v4720, %v4724
      %v4726 = vshrl.u32 %v4605, 16
      %v4728 = vrot.slane %v4726, 4
      %v4729 = vor.u32 %v4728, %v4724
      %v4730 = vrot.slane %v4729, 4
      %v4732 = vshll.u32 %v4606, 16
      %v4734 = vrot.slane %v4732, 5
      %v4735 = vsel %vm550, %v4730, %v4734
      %v4737 = vshrl.u32 %v4607, 16
      %v4739 = vrot.slane %v4737, 4
      %v4740 = vshll.u32 %v4607, 16
      %v4742 = vrot.slane %v4740, 5
      %v4743 = vor.u32 %v4739, %v4742
      %v4744 = vrot.slane %v4743, 4
      %v4746 = vshll.u32 %v4608, 16
      %v4748 = vrot.slane %v4746, 5
      %v4749 = vsel %vm550, %v4744, %v4748
      %v4750 = vshrl.u32 %v4608, 16
      %v4752 = vrot.slane %v4750, 4
      %v4753 = vor.u32 %v4752, %v4748
      %v4754 = vrot.slane %v4753, 4
      %v4756 = vshll.u32 %v4609, 16
      %v4758 = vrot.slane %v4756, 5
      %v4759 = vsel %vm550, %v4754, %v4758
      %v4761 = vshrl.u32 %v4610, 16
      %v4763 = vrot.slane %v4761, 4
      %v4764 = vshll.u32 %v4610, 16
      %v4766 = vrot.slane %v4764, 5
      %v4767 = vor.u32 %v4763, %v4766
      %v4768 = vrot.slane %v4767, 4
      %v4770 = vshll.u32 %v4611, 16
      %v4772 = vrot.slane %v4770, 5
      %v4773 = vsel %vm550, %v4768, %v4772
      %v4774 = vshrl.u32 %v4611, 16
      %v4776 = vrot.slane %v4774, 4
      %v4777 = vor.u32 %v4776, %v4772
      %v4778 = vrot.slane %v4777, 4
      %v4780 = vshll.u32 %v4612, 16
      %v4782 = vrot.slane %v4780, 5
      %v4783 = vsel %vm550, %v4778, %v4782
      %v4785 = vshrl.u32 %v4613, 16
      %v4787 = vrot.slane %v4785, 4
      %v4788 = vshll.u32 %v4613, 16
      %v4790 = vrot.slane %v4788, 5
      %v4791 = vor.u32 %v4787, %v4790
      %v4792 = vrot.slane %v4791, 4
      %v4794 = vshll.u32 %v4614, 16
      %v4796 = vrot.slane %v4794, 5
      %v4797 = vsel %vm550, %v4792, %v4796
      %v4798 = vshrl.u32 %v4614, 16
      %v4800 = vrot.slane %v4798, 4
      %v4801 = vor.u32 %v4800, %v4796
      %v4802 = vrot.slane %v4801, 4
      %v4804 = vshll.u32 %v4615, 16
      %v4806 = vrot.slane %v4804, 5
      %v4807 = vsel %vm550, %v4802, %v4806
      %v4808 = vunpack.c.l.b16 %v4629
      %v4809 = vunpack.c.l.b16 %v4639
      %v4810 = vunpack.c.l.b16 %v4653
      %v4811 = vunpack.c.l.b16 %v4663
      %v4812 = vunpack.c.l.b16 %v4677
      %v4813 = vunpack.c.l.b16 %v4687
      %v4814 = vunpack.c.l.b16 %v4701
      %v4815 = vunpack.c.l.b16 %v4711
      %v4816 = vunpack.c.l.b16 %v4725
      %v4817 = vunpack.c.l.b16 %v4735
      %v4818 = vunpack.c.l.b16 %v4749
      %v4819 = vunpack.c.l.b16 %v4759
      %v4820 = vunpack.c.l.b16 %v4773
      %v4821 = vunpack.c.l.b16 %v4783
      %v4822 = vunpack.c.l.b16 %v4797
      %v4823 = vunpack.c.l.b16 %v4807
      %v4824 = vpack.c.b16 %v4809, %v4808
      %v4825 = vpack.c.b16 %v4811, %v4810
      %v4826 = vpack.c.b16 %v4813, %v4812
      %v4827 = vpack.c.b16 %v4815, %v4814
      %v4828 = vpack.c.b16 %v4817, %v4816
      %v4829 = vpack.c.b16 %v4819, %v4818
      %v4830 = vpack.c.b16 %v4821, %v4820
      %v4831 = vpack.c.b16 %v4823, %v4822
      %4832 = vrot.lane.b32.xlu0 %v4824, 92
      %v4833 = vpop.permute.xlu0 %4832
      %4834 = vrot.lane.b32.xlu0 %v4825, 92
      %v4835 = vpop.permute.xlu0 %4834
      %4836 = vrot.lane.b32.xlu0 %v4826, 92
      %v4837 = vpop.permute.xlu0 %4836
      %4838 = vrot.lane.b32.xlu0 %v4827, 92
      %v4839 = vpop.permute.xlu0 %4838
      %4840 = vrot.lane.b32.xlu0 %v4828, 92
      %v4841 = vpop.permute.xlu0 %4840
      %4842 = vrot.lane.b32.xlu0 %v4829, 92
      %v4843 = vpop.permute.xlu0 %4842
      %4844 = vrot.lane.b32.xlu0 %v4830, 92
      %v4845 = vpop.permute.xlu0 %4844
      %4846 = vrot.lane.b32.xlu0 %v4831, 92
      %v4847 = vpop.permute.xlu0 %4846
      %vm4856 = vcmask 786144
      %4857 = vst.msk [vmem:[#allocation2] sm:$0xff] %vm4856, %v4833
      %4858 = vst.msk [vmem:[#allocation2 + $0x10] sm:$0xff] %vm4856, %v4835
      %4859 = vst.msk [vmem:[#allocation2 + $0x20] sm:$0xff] %vm4856, %v4837
      %4860 = vst.msk [vmem:[#allocation2 + $0x30] sm:$0xff] %vm4856, %v4839
      %4861 = vst.msk [vmem:[#allocation2 + $0x40] sm:$0xff] %vm4856, %v4841
      %4862 = vst.msk [vmem:[#allocation2 + $0x50] sm:$0xff] %vm4856, %v4843
      %4863 = vst.msk [vmem:[#allocation2 + $0x60] sm:$0xff] %vm4856, %v4845
      %4864 = vst.msk [vmem:[#allocation2 + $0x70] sm:$0xff] %vm4856, %v4847
      %v4865 = vld [vmem:[%s4502] sm:$0xf]
      %v4866 = vld [vmem:[%s4502 + $0x4] sm:$0xf]
      %v4867 = vld [vmem:[%s4502 + $0x8] sm:$0x1]
      %v4868 = vld [vmem:[%s4502 + $0xc] sm:$0xf]
      %v4869 = vld [vmem:[%s4502 + $0x10] sm:$0xf]
      %v4870 = vld [vmem:[%s4502 + $0x14] sm:$0x1]
      %v4871 = vld [vmem:[%s4502 + $0x18] sm:$0xf]
      %v4872 = vld [vmem:[%s4502 + $0x1c] sm:$0xf]
      %v4873 = vld [vmem:[%s4502 + $0x20] sm:$0x1]
      %v4874 = vld [vmem:[%s4502 + $0x24] sm:$0xf]
      %v4875 = vld [vmem:[%s4502 + $0x28] sm:$0xf]
      %v4876 = vld [vmem:[%s4502 + $0x2c] sm:$0x1]
      %v4877 = vld [vmem:[%s4502 + $0x30] sm:$0xf]
      %v4878 = vld [vmem:[%s4502 + $0x34] sm:$0xf]
      %v4879 = vld [vmem:[%s4502 + $0x38] sm:$0x1]
      %v4880 = vld [vmem:[%s4502 + $0x3c] sm:$0xf]
      %v4881 = vld [vmem:[%s4502 + $0x40] sm:$0xf]
      %v4882 = vld [vmem:[%s4502 + $0x44] sm:$0x1]
      %v4883 = vld [vmem:[%s4502 + $0x48] sm:$0xf]
      %v4884 = vld [vmem:[%s4502 + $0x4c] sm:$0xf]
      %v4885 = vld [vmem:[%s4502 + $0x50] sm:$0x1]
      %v4886 = vld [vmem:[%s4502 + $0x54] sm:$0xf]
      %v4887 = vld [vmem:[%s4502 + $0x58] sm:$0xf]
      %v4888 = vld [vmem:[%s4502 + $0x5c] sm:$0x1]
      %v4890 = vshrl.u32 %v4865, 16
      %v4892 = vrot.slane %v4890, 4
      %v4893 = vshll.u32 %v4865, 16
      %v4895 = vrot.slane %v4893, 5
      %v4896 = vor.u32 %v4892, %v4895
      %v4897 = vrot.slane %v4896, 4
      %v4899 = vshll.u32 %v4866, 16
      %v4901 = vrot.slane %v4899, 5
      %v4902 = vsel %vm550, %v4897, %v4901
      %v4903 = vshrl.u32 %v4866, 16
      %v4905 = vrot.slane %v4903, 4
      %v4906 = vor.u32 %v4905, %v4901
      %v4907 = vrot.slane %v4906, 4
      %v4909 = vshll.u32 %v4867, 16
      %v4911 = vrot.slane %v4909, 5
      %v4912 = vsel %vm550, %v4907, %v4911
      %v4914 = vshrl.u32 %v4868, 16
      %v4916 = vrot.slane %v4914, 4
      %v4917 = vshll.u32 %v4868, 16
      %v4919 = vrot.slane %v4917, 5
      %v4920 = vor.u32 %v4916, %v4919
      %v4921 = vrot.slane %v4920, 4
      %v4923 = vshll.u32 %v4869, 16
      %v4925 = vrot.slane %v4923, 5
      %v4926 = vsel %vm550, %v4921, %v4925
      %v4927 = vshrl.u32 %v4869, 16
      %v4929 = vrot.slane %v4927, 4
      %v4930 = vor.u32 %v4929, %v4925
      %v4931 = vrot.slane %v4930, 4
      %v4933 = vshll.u32 %v4870, 16
      %v4935 = vrot.slane %v4933, 5
      %v4936 = vsel %vm550, %v4931, %v4935
      %v4938 = vshrl.u32 %v4871, 16
      %v4940 = vrot.slane %v4938, 4
      %v4941 = vshll.u32 %v4871, 16
      %v4943 = vrot.slane %v4941, 5
      %v4944 = vor.u32 %v4940, %v4943
      %v4945 = vrot.slane %v4944, 4
      %v4947 = vshll.u32 %v4872, 16
      %v4949 = vrot.slane %v4947, 5
      %v4950 = vsel %vm550, %v4945, %v4949
      %v4951 = vshrl.u32 %v4872, 16
      %v4953 = vrot.slane %v4951, 4
      %v4954 = vor.u32 %v4953, %v4949
      %v4955 = vrot.slane %v4954, 4
      %v4957 = vshll.u32 %v4873, 16
      %v4959 = vrot.slane %v4957, 5
      %v4960 = vsel %vm550, %v4955, %v4959
      %v4962 = vshrl.u32 %v4874, 16
      %v4964 = vrot.slane %v4962, 4
      %v4965 = vshll.u32 %v4874, 16
      %v4967 = vrot.slane %v4965, 5
      %v4968 = vor.u32 %v4964, %v4967
      %v4969 = vrot.slane %v4968, 4
      %v4971 = vshll.u32 %v4875, 16
      %v4973 = vrot.slane %v4971, 5
      %v4974 = vsel %vm550, %v4969, %v4973
      %v4975 = vshrl.u32 %v4875, 16
      %v4977 = vrot.slane %v4975, 4
      %v4978 = vor.u32 %v4977, %v4973
      %v4979 = vrot.slane %v4978, 4
      %v4981 = vshll.u32 %v4876, 16
      %v4983 = vrot.slane %v4981, 5
      %v4984 = vsel %vm550, %v4979, %v4983
      %v4986 = vshrl.u32 %v4877, 16
      %v4988 = vrot.slane %v4986, 4
      %v4989 = vshll.u32 %v4877, 16
      %v4991 = vrot.slane %v4989, 5
      %v4992 = vor.u32 %v4988, %v4991
      %v4993 = vrot.slane %v4992, 4
      %v4995 = vshll.u32 %v4878, 16
      %v4997 = vrot.slane %v4995, 5
      %v4998 = vsel %vm550, %v4993, %v4997
      %v4999 = vshrl.u32 %v4878, 16
      %v5001 = vrot.slane %v4999, 4
      %v5002 = vor.u32 %v5001, %v4997
      %v5003 = vrot.slane %v5002, 4
      %v5005 = vshll.u32 %v4879, 16
      %v5007 = vrot.slane %v5005, 5
      %v5008 = vsel %vm550, %v5003, %v5007
      %v5010 = vshrl.u32 %v4880, 16
      %v5012 = vrot.slane %v5010, 4
      %v5013 = vshll.u32 %v4880, 16
      %v5015 = vrot.slane %v5013, 5
      %v5016 = vor.u32 %v5012, %v5015
      %v5017 = vrot.slane %v5016, 4
      %v5019 = vshll.u32 %v4881, 16
      %v5021 = vrot.slane %v5019, 5
      %v5022 = vsel %vm550, %v5017, %v5021
      %v5023 = vshrl.u32 %v4881, 16
      %v5025 = vrot.slane %v5023, 4
      %v5026 = vor.u32 %v5025, %v5021
      %v5027 = vrot.slane %v5026, 4
      %v5029 = vshll.u32 %v4882, 16
      %v5031 = vrot.slane %v5029, 5
      %v5032 = vsel %vm550, %v5027, %v5031
      %v5034 = vshrl.u32 %v4883, 16
      %v5036 = vrot.slane %v5034, 4
      %v5037 = vshll.u32 %v4883, 16
      %v5039 = vrot.slane %v5037, 5
      %v5040 = vor.u32 %v5036, %v5039
      %v5041 = vrot.slane %v5040, 4
      %v5043 = vshll.u32 %v4884, 16
      %v5045 = vrot.slane %v5043, 5
      %v5046 = vsel %vm550, %v5041, %v5045
      %v5047 = vshrl.u32 %v4884, 16
      %v5049 = vrot.slane %v5047, 4
      %v5050 = vor.u32 %v5049, %v5045
      %v5051 = vrot.slane %v5050, 4
      %v5053 = vshll.u32 %v4885, 16
      %v5055 = vrot.slane %v5053, 5
      %v5056 = vsel %vm550, %v5051, %v5055
      %v5058 = vshrl.u32 %v4886, 16
      %v5060 = vrot.slane %v5058, 4
      %v5061 = vshll.u32 %v4886, 16
      %v5063 = vrot.slane %v5061, 5
      %v5064 = vor.u32 %v5060, %v5063
      %v5065 = vrot.slane %v5064, 4
      %v5067 = vshll.u32 %v4887, 16
      %v5069 = vrot.slane %v5067, 5
      %v5070 = vsel %vm550, %v5065, %v5069
      %v5071 = vshrl.u32 %v4887, 16
      %v5073 = vrot.slane %v5071, 4
      %v5074 = vor.u32 %v5073, %v5069
      %v5075 = vrot.slane %v5074, 4
      %v5077 = vshll.u32 %v4888, 16
      %v5079 = vrot.slane %v5077, 5
      %v5080 = vsel %vm550, %v5075, %v5079
      %v5081 = vunpack.c.l.b16 %v4902
      %v5082 = vunpack.c.l.b16 %v4912
      %v5083 = vunpack.c.l.b16 %v4926
      %v5084 = vunpack.c.l.b16 %v4936
      %v5085 = vunpack.c.l.b16 %v4950
      %v5086 = vunpack.c.l.b16 %v4960
      %v5087 = vunpack.c.l.b16 %v4974
      %v5088 = vunpack.c.l.b16 %v4984
      %v5089 = vunpack.c.l.b16 %v4998
      %v5090 = vunpack.c.l.b16 %v5008
      %v5091 = vunpack.c.l.b16 %v5022
      %v5092 = vunpack.c.l.b16 %v5032
      %v5093 = vunpack.c.l.b16 %v5046
      %v5094 = vunpack.c.l.b16 %v5056
      %v5095 = vunpack.c.l.b16 %v5070
      %v5096 = vunpack.c.l.b16 %v5080
      %v5097 = vpack.c.b16 %v5082, %v5081
      %v5098 = vpack.c.b16 %v5084, %v5083
      %v5099 = vpack.c.b16 %v5086, %v5085
      %v5100 = vpack.c.b16 %v5088, %v5087
      %v5101 = vpack.c.b16 %v5090, %v5089
      %v5102 = vpack.c.b16 %v5092, %v5091
      %v5103 = vpack.c.b16 %v5094, %v5093
      %v5104 = vpack.c.b16 %v5096, %v5095
      %5105 = vrot.lane.b32.xlu0 %v5097, 96
      %v5106 = vpop.permute.xlu0 %5105
      %5107 = vrot.lane.b32.xlu0 %v5098, 96
      %v5108 = vpop.permute.xlu0 %5107
      %5109 = vrot.lane.b32.xlu0 %v5099, 96
      %v5110 = vpop.permute.xlu0 %5109
      %5111 = vrot.lane.b32.xlu0 %v5100, 96
      %v5112 = vpop.permute.xlu0 %5111
      %5113 = vrot.lane.b32.xlu0 %v5101, 96
      %v5114 = vpop.permute.xlu0 %5113
      %5115 = vrot.lane.b32.xlu0 %v5102, 96
      %v5116 = vpop.permute.xlu0 %5115
      %5117 = vrot.lane.b32.xlu0 %v5103, 96
      %v5118 = vpop.permute.xlu0 %5117
      %5119 = vrot.lane.b32.xlu0 %v5104, 96
      %v5120 = vpop.permute.xlu0 %5119
      %vm5129 = vcmask 818944
      %5130 = vst.msk [vmem:[#allocation2] sm:$0xff] %vm5129, %v5106
      %5131 = vst.msk [vmem:[#allocation2 + $0x10] sm:$0xff] %vm5129, %v5108
      %5132 = vst.msk [vmem:[#allocation2 + $0x20] sm:$0xff] %vm5129, %v5110
      %5133 = vst.msk [vmem:[#allocation2 + $0x30] sm:$0xff] %vm5129, %v5112
      %5134 = vst.msk [vmem:[#allocation2 + $0x40] sm:$0xff] %vm5129, %v5114
      %5135 = vst.msk [vmem:[#allocation2 + $0x50] sm:$0xff] %vm5129, %v5116
      %5136 = vst.msk [vmem:[#allocation2 + $0x60] sm:$0xff] %vm5129, %v5118
      %5137 = vst.msk [vmem:[#allocation2 + $0x70] sm:$0xff] %vm5129, %v5120
      %v5138 = vld [vmem:[%s4412] sm:$0xe]
      %v5139 = vld [vmem:[%s4412 + $0x4] sm:$0xf]
      %v5140 = vld [vmem:[%s4412 + $0x8] sm:$0x1]
      %v5141 = vld [vmem:[%s4412 + $0xc] sm:$0xe]
      %v5142 = vld [vmem:[%s4412 + $0x10] sm:$0xf]
      %v5143 = vld [vmem:[%s4412 + $0x14] sm:$0x1]
      %v5144 = vld [vmem:[%s4412 + $0x18] sm:$0xe]
      %v5145 = vld [vmem:[%s4412 + $0x1c] sm:$0xf]
      %v5146 = vld [vmem:[%s4412 + $0x20] sm:$0x1]
      %v5147 = vld [vmem:[%s4412 + $0x24] sm:$0xe]
      %v5148 = vld [vmem:[%s4412 + $0x28] sm:$0xf]
      %v5149 = vld [vmem:[%s4412 + $0x2c] sm:$0x1]
      %v5150 = vld [vmem:[%s4412 + $0x30] sm:$0xe]
      %v5151 = vld [vmem:[%s4412 + $0x34] sm:$0xf]
      %v5152 = vld [vmem:[%s4412 + $0x38] sm:$0x1]
      %v5153 = vld [vmem:[%s4412 + $0x3c] sm:$0xe]
      %v5154 = vld [vmem:[%s4412 + $0x40] sm:$0xf]
      %v5155 = vld [vmem:[%s4412 + $0x44] sm:$0x1]
      %v5156 = vld [vmem:[%s4412 + $0x48] sm:$0xe]
      %v5157 = vld [vmem:[%s4412 + $0x4c] sm:$0xf]
      %v5158 = vld [vmem:[%s4412 + $0x50] sm:$0x1]
      %v5159 = vld [vmem:[%s4412 + $0x54] sm:$0xe]
      %v5160 = vld [vmem:[%s4412 + $0x58] sm:$0xf]
      %v5161 = vld [vmem:[%s4412 + $0x5c] sm:$0x1]
      %v5186 = vrot.slane %v5138, 5
      %v5187 = vrot.slane %v5186, 4
      %v5188 = vrot.slane %v5139, 5
      %v5189 = vsel %vm1123, %v5187, %v5188
      %v5190 = vrot.slane %v5188, 4
      %v5191 = vrot.slane %v5140, 5
      %v5192 = vsel %vm1123, %v5190, %v5191
      %v5193 = vrot.slane %v5141, 5
      %v5194 = vrot.slane %v5193, 4
      %v5195 = vrot.slane %v5142, 5
      %v5196 = vsel %vm1123, %v5194, %v5195
      %v5197 = vrot.slane %v5195, 4
      %v5198 = vrot.slane %v5143, 5
      %v5199 = vsel %vm1123, %v5197, %v5198
      %v5200 = vrot.slane %v5144, 5
      %v5201 = vrot.slane %v5200, 4
      %v5202 = vrot.slane %v5145, 5
      %v5203 = vsel %vm1123, %v5201, %v5202
      %v5204 = vrot.slane %v5202, 4
      %v5205 = vrot.slane %v5146, 5
      %v5206 = vsel %vm1123, %v5204, %v5205
      %v5207 = vrot.slane %v5147, 5
      %v5208 = vrot.slane %v5207, 4
      %v5209 = vrot.slane %v5148, 5
      %v5210 = vsel %vm1123, %v5208, %v5209
      %v5211 = vrot.slane %v5209, 4
      %v5212 = vrot.slane %v5149, 5
      %v5213 = vsel %vm1123, %v5211, %v5212
      %v5214 = vrot.slane %v5150, 5
      %v5215 = vrot.slane %v5214, 4
      %v5216 = vrot.slane %v5151, 5
      %v5217 = vsel %vm1123, %v5215, %v5216
      %v5218 = vrot.slane %v5216, 4
      %v5219 = vrot.slane %v5152, 5
      %v5220 = vsel %vm1123, %v5218, %v5219
      %v5221 = vrot.slane %v5153, 5
      %v5222 = vrot.slane %v5221, 4
      %v5223 = vrot.slane %v5154, 5
      %v5224 = vsel %vm1123, %v5222, %v5223
      %v5225 = vrot.slane %v5223, 4
      %v5226 = vrot.slane %v5155, 5
      %v5227 = vsel %vm1123, %v5225, %v5226
      %v5228 = vrot.slane %v5156, 5
      %v5229 = vrot.slane %v5228, 4
      %v5230 = vrot.slane %v5157, 5
      %v5231 = vsel %vm1123, %v5229, %v5230
      %v5232 = vrot.slane %v5230, 4
      %v5233 = vrot.slane %v5158, 5
      %v5234 = vsel %vm1123, %v5232, %v5233
      %v5235 = vrot.slane %v5159, 5
      %v5236 = vrot.slane %v5235, 4
      %v5237 = vrot.slane %v5160, 5
      %v5238 = vsel %vm1123, %v5236, %v5237
      %v5239 = vrot.slane %v5237, 4
      %v5240 = vrot.slane %v5161, 5
      %v5241 = vsel %vm1123, %v5239, %v5240
      %v5242 = vunpack.c.l.b16 %v5189
      %v5243 = vunpack.c.l.b16 %v5192
      %v5244 = vunpack.c.l.b16 %v5196
      %v5245 = vunpack.c.l.b16 %v5199
      %v5246 = vunpack.c.l.b16 %v5203
      %v5247 = vunpack.c.l.b16 %v5206
      %v5248 = vunpack.c.l.b16 %v5210
      %v5249 = vunpack.c.l.b16 %v5213
      %v5250 = vunpack.c.l.b16 %v5217
      %v5251 = vunpack.c.l.b16 %v5220
      %v5252 = vunpack.c.l.b16 %v5224
      %v5253 = vunpack.c.l.b16 %v5227
      %v5254 = vunpack.c.l.b16 %v5231
      %v5255 = vunpack.c.l.b16 %v5234
      %v5256 = vunpack.c.l.b16 %v5238
      %v5257 = vunpack.c.l.b16 %v5241
      %v5258 = vpack.c.b16 %v5243, %v5242
      %v5259 = vpack.c.b16 %v5245, %v5244
      %v5260 = vpack.c.b16 %v5247, %v5246
      %v5261 = vpack.c.b16 %v5249, %v5248
      %v5262 = vpack.c.b16 %v5251, %v5250
      %v5263 = vpack.c.b16 %v5253, %v5252
      %v5264 = vpack.c.b16 %v5255, %v5254
      %v5265 = vpack.c.b16 %v5257, %v5256
      %5266 = vrot.lane.b32.xlu0 %v5258, 100
      %v5267 = vpop.permute.xlu0 %5266
      %5268 = vrot.lane.b32.xlu0 %v5259, 100
      %v5269 = vpop.permute.xlu0 %5268
      %5270 = vrot.lane.b32.xlu0 %v5260, 100
      %v5271 = vpop.permute.xlu0 %5270
      %5272 = vrot.lane.b32.xlu0 %v5261, 100
      %v5273 = vpop.permute.xlu0 %5272
      %5274 = vrot.lane.b32.xlu0 %v5262, 100
      %v5275 = vpop.permute.xlu0 %5274
      %5276 = vrot.lane.b32.xlu0 %v5263, 100
      %v5277 = vpop.permute.xlu0 %5276
      %5278 = vrot.lane.b32.xlu0 %v5264, 100
      %v5279 = vpop.permute.xlu0 %5278
      %5280 = vrot.lane.b32.xlu0 %v5265, 100
      %v5281 = vpop.permute.xlu0 %5280
      %vm5290 = vcmask 851744
      %5291 = vst.msk [vmem:[#allocation2] sm:$0xff] %vm5290, %v5267
      %5292 = vst.msk [vmem:[#allocation2 + $0x10] sm:$0xff] %vm5290, %v5269
      %5293 = vst.msk [vmem:[#allocation2 + $0x20] sm:$0xff] %vm5290, %v5271
      %5294 = vst.msk [vmem:[#allocation2 + $0x30] sm:$0xff] %vm5290, %v5273
      %5295 = vst.msk [vmem:[#allocation2 + $0x40] sm:$0xff] %vm5290, %v5275
      %5296 = vst.msk [vmem:[#allocation2 + $0x50] sm:$0xff] %vm5290, %v5277
      %5297 = vst.msk [vmem:[#allocation2 + $0x60] sm:$0xff] %vm5290, %v5279
      %5298 = vst.msk [vmem:[#allocation2 + $0x70] sm:$0xff] %vm5290, %v5281
      %v5299 = vld [vmem:[%s4502] sm:$0xe]
      %v5300 = vld [vmem:[%s4502 + $0x4] sm:$0xf]
      %v5301 = vld [vmem:[%s4502 + $0x8] sm:$0x1]
      %v5302 = vld [vmem:[%s4502 + $0xc] sm:$0xe]
      %v5303 = vld [vmem:[%s4502 + $0x10] sm:$0xf]
      %v5304 = vld [vmem:[%s4502 + $0x14] sm:$0x1]
      %v5305 = vld [vmem:[%s4502 + $0x18] sm:$0xe]
      %v5306 = vld [vmem:[%s4502 + $0x1c] sm:$0xf]
      %v5307 = vld [vmem:[%s4502 + $0x20] sm:$0x1]
      %v5308 = vld [vmem:[%s4502 + $0x24] sm:$0xe]
      %v5309 = vld [vmem:[%s4502 + $0x28] sm:$0xf]
      %v5310 = vld [vmem:[%s4502 + $0x2c] sm:$0x1]
      %v5311 = vld [vmem:[%s4502 + $0x30] sm:$0xe]
      %v5312 = vld [vmem:[%s4502 + $0x34] sm:$0xf]
      %v5313 = vld [vmem:[%s4502 + $0x38] sm:$0x1]
      %v5314 = vld [vmem:[%s4502 + $0x3c] sm:$0xe]
      %v5315 = vld [vmem:[%s4502 + $0x40] sm:$0xf]
      %v5316 = vld [vmem:[%s4502 + $0x44] sm:$0x1]
      %v5317 = vld [vmem:[%s4502 + $0x48] sm:$0xe]
      %v5318 = vld [vmem:[%s4502 + $0x4c] sm:$0xf]
      %v5319 = vld [vmem:[%s4502 + $0x50] sm:$0x1]
      %v5320 = vld [vmem:[%s4502 + $0x54] sm:$0xe]
      %v5321 = vld [vmem:[%s4502 + $0x58] sm:$0xf]
      %v5322 = vld [vmem:[%s4502 + $0x5c] sm:$0x1]
      %v5347 = vrot.slane %v5299, 5
      %v5348 = vrot.slane %v5347, 4
      %v5349 = vrot.slane %v5300, 5
      %v5350 = vsel %vm1123, %v5348, %v5349
      %v5351 = vrot.slane %v5349, 4
      %v5352 = vrot.slane %v5301, 5
      %v5353 = vsel %vm1123, %v5351, %v5352
      %v5354 = vrot.slane %v5302, 5
      %v5355 = vrot.slane %v5354, 4
      %v5356 = vrot.slane %v5303, 5
      %v5357 = vsel %vm1123, %v5355, %v5356
      %v5358 = vrot.slane %v5356, 4
      %v5359 = vrot.slane %v5304, 5
      %v5360 = vsel %vm1123, %v5358, %v5359
      %v5361 = vrot.slane %v5305, 5
      %v5362 = vrot.slane %v5361, 4
      %v5363 = vrot.slane %v5306, 5
      %v5364 = vsel %vm1123, %v5362, %v5363
      %v5365 = vrot.slane %v5363, 4
      %v5366 = vrot.slane %v5307, 5
      %v5367 = vsel %vm1123, %v5365, %v5366
      %v5368 = vrot.slane %v5308, 5
      %v5369 = vrot.slane %v5368, 4
      %v5370 = vrot.slane %v5309, 5
      %v5371 = vsel %vm1123, %v5369, %v5370
      %v5372 = vrot.slane %v5370, 4
      %v5373 = vrot.slane %v5310, 5
      %v5374 = vsel %vm1123, %v5372, %v5373
      %v5375 = vrot.slane %v5311, 5
      %v5376 = vrot.slane %v5375, 4
      %v5377 = vrot.slane %v5312, 5
      %v5378 = vsel %vm1123, %v5376, %v5377
      %v5379 = vrot.slane %v5377, 4
      %v5380 = vrot.slane %v5313, 5
      %v5381 = vsel %vm1123, %v5379, %v5380
      %v5382 = vrot.slane %v5314, 5
      %v5383 = vrot.slane %v5382, 4
      %v5384 = vrot.slane %v5315, 5
      %v5385 = vsel %vm1123, %v5383, %v5384
      %v5386 = vrot.slane %v5384, 4
      %v5387 = vrot.slane %v5316, 5
      %v5388 = vsel %vm1123, %v5386, %v5387
      %v5389 = vrot.slane %v5317, 5
      %v5390 = vrot.slane %v5389, 4
      %v5391 = vrot.slane %v5318, 5
      %v5392 = vsel %vm1123, %v5390, %v5391
      %v5393 = vrot.slane %v5391, 4
      %v5394 = vrot.slane %v5319, 5
      %v5395 = vsel %vm1123, %v5393, %v5394
      %v5396 = vrot.slane %v5320, 5
      %v5397 = vrot.slane %v5396, 4
      %v5398 = vrot.slane %v5321, 5
      %v5399 = vsel %vm1123, %v5397, %v5398
      %v5400 = vrot.slane %v5398, 4
      %v5401 = vrot.slane %v5322, 5
      %v5402 = vsel %vm1123, %v5400, %v5401
      %v5403 = vunpack.c.l.b16 %v5350
      %v5404 = vunpack.c.l.b16 %v5353
      %v5405 = vunpack.c.l.b16 %v5357
      %v5406 = vunpack.c.l.b16 %v5360
      %v5407 = vunpack.c.l.b16 %v5364
      %v5408 = vunpack.c.l.b16 %v5367
      %v5409 = vunpack.c.l.b16 %v5371
      %v5410 = vunpack.c.l.b16 %v5374
      %v5411 = vunpack.c.l.b16 %v5378
      %v5412 = vunpack.c.l.b16 %v5381
      %v5413 = vunpack.c.l.b16 %v5385
      %v5414 = vunpack.c.l.b16 %v5388
      %v5415 = vunpack.c.l.b16 %v5392
      %v5416 = vunpack.c.l.b16 %v5395
      %v5417 = vunpack.c.l.b16 %v5399
      %v5418 = vunpack.c.l.b16 %v5402
      %v5419 = vpack.c.b16 %v5404, %v5403
      %v5420 = vpack.c.b16 %v5406, %v5405
      %v5421 = vpack.c.b16 %v5408, %v5407
      %v5422 = vpack.c.b16 %v5410, %v5409
      %v5423 = vpack.c.b16 %v5412, %v5411
      %v5424 = vpack.c.b16 %v5414, %v5413
      %v5425 = vpack.c.b16 %v5416, %v5415
      %v5426 = vpack.c.b16 %v5418, %v5417
      %5427 = vrot.lane.b32.xlu0 %v5419, 104
      %v5428 = vpop.permute.xlu0 %5427
      %5429 = vrot.lane.b32.xlu0 %v5420, 104
      %v5430 = vpop.permute.xlu0 %5429
      %5431 = vrot.lane.b32.xlu0 %v5421, 104
      %v5432 = vpop.permute.xlu0 %5431
      %5433 = vrot.lane.b32.xlu0 %v5422, 104
      %v5434 = vpop.permute.xlu0 %5433
      %5435 = vrot.lane.b32.xlu0 %v5423, 104
      %v5436 = vpop.permute.xlu0 %5435
      %5437 = vrot.lane.b32.xlu0 %v5424, 104
      %v5438 = vpop.permute.xlu0 %5437
      %5439 = vrot.lane.b32.xlu0 %v5425, 104
      %v5440 = vpop.permute.xlu0 %5439
      %5441 = vrot.lane.b32.xlu0 %v5426, 104
      %v5442 = vpop.permute.xlu0 %5441
      %vm5451 = vcmask 884544
      %5452 = vst.msk [vmem:[#allocation2] sm:$0xff] %vm5451, %v5428
      %5453 = vst.msk [vmem:[#allocation2 + $0x10] sm:$0xff] %vm5451, %v5430
      %5454 = vst.msk [vmem:[#allocation2 + $0x20] sm:$0xff] %vm5451, %v5432
      %5455 = vst.msk [vmem:[#allocation2 + $0x30] sm:$0xff] %vm5451, %v5434
      %5456 = vst.msk [vmem:[#allocation2 + $0x40] sm:$0xff] %vm5451, %v5436
      %5457 = vst.msk [vmem:[#allocation2 + $0x50] sm:$0xff] %vm5451, %v5438
      %5458 = vst.msk [vmem:[#allocation2 + $0x60] sm:$0xff] %vm5451, %v5440
      %5459 = vst.msk [vmem:[#allocation2 + $0x70] sm:$0xff] %vm5451, %v5442
      %v5460 = vld [vmem:[%s4412] sm:$0xe]
      %v5461 = vld [vmem:[%s4412 + $0x4] sm:$0xf]
      %v5462 = vld [vmem:[%s4412 + $0x8] sm:$0x3]
      %v5463 = vld [vmem:[%s4412 + $0xc] sm:$0xe]
      %v5464 = vld [vmem:[%s4412 + $0x10] sm:$0xf]
      %v5465 = vld [vmem:[%s4412 + $0x14] sm:$0x3]
      %v5466 = vld [vmem:[%s4412 + $0x18] sm:$0xe]
      %v5467 = vld [vmem:[%s4412 + $0x1c] sm:$0xf]
      %v5468 = vld [vmem:[%s4412 + $0x20] sm:$0x3]
      %v5469 = vld [vmem:[%s4412 + $0x24] sm:$0xe]
      %v5470 = vld [vmem:[%s4412 + $0x28] sm:$0xf]
      %v5471 = vld [vmem:[%s4412 + $0x2c] sm:$0x3]
      %v5472 = vld [vmem:[%s4412 + $0x30] sm:$0xe]
      %v5473 = vld [vmem:[%s4412 + $0x34] sm:$0xf]
      %v5474 = vld [vmem:[%s4412 + $0x38] sm:$0x3]
      %v5475 = vld [vmem:[%s4412 + $0x3c] sm:$0xe]
      %v5476 = vld [vmem:[%s4412 + $0x40] sm:$0xf]
      %v5477 = vld [vmem:[%s4412 + $0x44] sm:$0x3]
      %v5478 = vld [vmem:[%s4412 + $0x48] sm:$0xe]
      %v5479 = vld [vmem:[%s4412 + $0x4c] sm:$0xf]
      %v5480 = vld [vmem:[%s4412 + $0x50] sm:$0x3]
      %v5481 = vld [vmem:[%s4412 + $0x54] sm:$0xe]
      %v5482 = vld [vmem:[%s4412 + $0x58] sm:$0xf]
      %v5483 = vld [vmem:[%s4412 + $0x5c] sm:$0x3]
      %v5485 = vshrl.u32 %v5460, 16
      %v5487 = vrot.slane %v5485, 5
      %v5488 = vshll.u32 %v5460, 16
      %v5490 = vrot.slane %v5488, 6
      %v5491 = vor.u32 %v5487, %v5490
      %v5492 = vrot.slane %v5491, 4
      %v5494 = vshrl.u32 %v5461, 16
      %v5496 = vrot.slane %v5494, 5
      %v5497 = vshll.u32 %v5461, 16
      %v5499 = vrot.slane %v5497, 6
      %v5500 = vor.u32 %v5496, %v5499
      %v5501 = vsel %vm1424, %v5492, %v5500
      %v5502 = vrot.slane %v5500, 4
      %v5504 = vshrl.u32 %v5462, 16
      %v5506 = vrot.slane %v5504, 5
      %v5507 = vshll.u32 %v5462, 16
      %v5509 = vrot.slane %v5507, 6
      %v5510 = vor.u32 %v5506, %v5509
      %v5511 = vsel %vm1424, %v5502, %v5510
      %v5513 = vshrl.u32 %v5463, 16
      %v5515 = vrot.slane %v5513, 5
      %v5516 = vshll.u32 %v5463, 16
      %v5518 = vrot.slane %v5516, 6
      %v5519 = vor.u32 %v5515, %v5518
      %v5520 = vrot.slane %v5519, 4
      %v5522 = vshrl.u32 %v5464, 16
      %v5524 = vrot.slane %v5522, 5
      %v5525 = vshll.u32 %v5464, 16
      %v5527 = vrot.slane %v5525, 6
      %v5528 = vor.u32 %v5524, %v5527
      %v5529 = vsel %vm1424, %v5520, %v5528
      %v5530 = vrot.slane %v5528, 4
      %v5532 = vshrl.u32 %v5465, 16
      %v5534 = vrot.slane %v5532, 5
      %v5535 = vshll.u32 %v5465, 16
      %v5537 = vrot.slane %v5535, 6
      %v5538 = vor.u32 %v5534, %v5537
      %v5539 = vsel %vm1424, %v5530, %v5538
      %v5541 = vshrl.u32 %v5466, 16
      %v5543 = vrot.slane %v5541, 5
      %v5544 = vshll.u32 %v5466, 16
      %v5546 = vrot.slane %v5544, 6
      %v5547 = vor.u32 %v5543, %v5546
      %v5548 = vrot.slane %v5547, 4
      %v5550 = vshrl.u32 %v5467, 16
      %v5552 = vrot.slane %v5550, 5
      %v5553 = vshll.u32 %v5467, 16
      %v5555 = vrot.slane %v5553, 6
      %v5556 = vor.u32 %v5552, %v5555
      %v5557 = vsel %vm1424, %v5548, %v5556
      %v5558 = vrot.slane %v5556, 4
      %v5560 = vshrl.u32 %v5468, 16
      %v5562 = vrot.slane %v5560, 5
      %v5563 = vshll.u32 %v5468, 16
      %v5565 = vrot.slane %v5563, 6
      %v5566 = vor.u32 %v5562, %v5565
      %v5567 = vsel %vm1424, %v5558, %v5566
      %v5569 = vshrl.u32 %v5469, 16
      %v5571 = vrot.slane %v5569, 5
      %v5572 = vshll.u32 %v5469, 16
      %v5574 = vrot.slane %v5572, 6
      %v5575 = vor.u32 %v5571, %v5574
      %v5576 = vrot.slane %v5575, 4
      %v5578 = vshrl.u32 %v5470, 16
      %v5580 = vrot.slane %v5578, 5
      %v5581 = vshll.u32 %v5470, 16
      %v5583 = vrot.slane %v5581, 6
      %v5584 = vor.u32 %v5580, %v5583
      %v5585 = vsel %vm1424, %v5576, %v5584
      %v5586 = vrot.slane %v5584, 4
      %v5588 = vshrl.u32 %v5471, 16
      %v5590 = vrot.slane %v5588, 5
      %v5591 = vshll.u32 %v5471, 16
      %v5593 = vrot.slane %v5591, 6
      %v5594 = vor.u32 %v5590, %v5593
      %v5595 = vsel %vm1424, %v5586, %v5594
      %v5597 = vshrl.u32 %v5472, 16
      %v5599 = vrot.slane %v5597, 5
      %v5600 = vshll.u32 %v5472, 16
      %v5602 = vrot.slane %v5600, 6
      %v5603 = vor.u32 %v5599, %v5602
      %v5604 = vrot.slane %v5603, 4
      %v5606 = vshrl.u32 %v5473, 16
      %v5608 = vrot.slane %v5606, 5
      %v5609 = vshll.u32 %v5473, 16
      %v5611 = vrot.slane %v5609, 6
      %v5612 = vor.u32 %v5608, %v5611
      %v5613 = vsel %vm1424, %v5604, %v5612
      %v5614 = vrot.slane %v5612, 4
      %v5616 = vshrl.u32 %v5474, 16
      %v5618 = vrot.slane %v5616, 5
      %v5619 = vshll.u32 %v5474, 16
      %v5621 = vrot.slane %v5619, 6
      %v5622 = vor.u32 %v5618, %v5621
      %v5623 = vsel %vm1424, %v5614, %v5622
      %v5625 = vshrl.u32 %v5475, 16
      %v5627 = vrot.slane %v5625, 5
      %v5628 = vshll.u32 %v5475, 16
      %v5630 = vrot.slane %v5628, 6
      %v5631 = vor.u32 %v5627, %v5630
      %v5632 = vrot.slane %v5631, 4
      %v5634 = vshrl.u32 %v5476, 16
      %v5636 = vrot.slane %v5634, 5
      %v5637 = vshll.u32 %v5476, 16
      %v5639 = vrot.slane %v5637, 6
      %v5640 = vor.u32 %v5636, %v5639
      %v5641 = vsel %vm1424, %v5632, %v5640
      %v5642 = vrot.slane %v5640, 4
      %v5644 = vshrl.u32 %v5477, 16
      %v5646 = vrot.slane %v5644, 5
      %v5647 = vshll.u32 %v5477, 16
      %v5649 = vrot.slane %v5647, 6
      %v5650 = vor.u32 %v5646, %v5649
      %v5651 = vsel %vm1424, %v5642, %v5650
      %v5653 = vshrl.u32 %v5478, 16
      %v5655 = vrot.slane %v5653, 5
      %v5656 = vshll.u32 %v5478, 16
      %v5658 = vrot.slane %v5656, 6
      %v5659 = vor.u32 %v5655, %v5658
      %v5660 = vrot.slane %v5659, 4
      %v5662 = vshrl.u32 %v5479, 16
      %v5664 = vrot.slane %v5662, 5
      %v5665 = vshll.u32 %v5479, 16
      %v5667 = vrot.slane %v5665, 6
      %v5668 = vor.u32 %v5664, %v5667
      %v5669 = vsel %vm1424, %v5660, %v5668
      %v5670 = vrot.slane %v5668, 4
      %v5672 = vshrl.u32 %v5480, 16
      %v5674 = vrot.slane %v5672, 5
      %v5675 = vshll.u32 %v5480, 16
      %v5677 = vrot.slane %v5675, 6
      %v5678 = vor.u32 %v5674, %v5677
      %v5679 = vsel %vm1424, %v5670, %v5678
      %v5681 = vshrl.u32 %v5481, 16
      %v5683 = vrot.slane %v5681, 5
      %v5684 = vshll.u32 %v5481, 16
      %v5686 = vrot.slane %v5684, 6
      %v5687 = vor.u32 %v5683, %v5686
      %v5688 = vrot.slane %v5687, 4
      %v5690 = vshrl.u32 %v5482, 16
      %v5692 = vrot.slane %v5690, 5
      %v5693 = vshll.u32 %v5482, 16
      %v5695 = vrot.slane %v5693, 6
      %v5696 = vor.u32 %v5692, %v5695
      %v5697 = vsel %vm1424, %v5688, %v5696
      %v5698 = vrot.slane %v5696, 4
      %v5700 = vshrl.u32 %v5483, 16
      %v5702 = vrot.slane %v5700, 5
      %v5703 = vshll.u32 %v5483, 16
      %v5705 = vrot.slane %v5703, 6
      %v5706 = vor.u32 %v5702, %v5705
      %v5707 = vsel %vm1424, %v5698, %v5706
      %v5708 = vunpack.c.l.b16 %v5501
      %v5709 = vunpack.c.l.b16 %v5511
      %v5710 = vunpack.c.l.b16 %v5529
      %v5711 = vunpack.c.l.b16 %v5539
      %v5712 = vunpack.c.l.b16 %v5557
      %v5713 = vunpack.c.l.b16 %v5567
      %v5714 = vunpack.c.l.b16 %v5585
      %v5715 = vunpack.c.l.b16 %v5595
      %v5716 = vunpack.c.l.b16 %v5613
      %v5717 = vunpack.c.l.b16 %v5623
      %v5718 = vunpack.c.l.b16 %v5641
      %v5719 = vunpack.c.l.b16 %v5651
      %v5720 = vunpack.c.l.b16 %v5669
      %v5721 = vunpack.c.l.b16 %v5679
      %v5722 = vunpack.c.l.b16 %v5697
      %v5723 = vunpack.c.l.b16 %v5707
      %v5724 = vpack.c.b16 %v5709, %v5708
      %v5725 = vpack.c.b16 %v5711, %v5710
      %v5726 = vpack.c.b16 %v5713, %v5712
      %v5727 = vpack.c.b16 %v5715, %v5714
      %v5728 = vpack.c.b16 %v5717, %v5716
      %v5729 = vpack.c.b16 %v5719, %v5718
      %v5730 = vpack.c.b16 %v5721, %v5720
      %v5731 = vpack.c.b16 %v5723, %v5722
      %5732 = vrot.lane.b32.xlu0 %v5724, 108
      %v5733 = vpop.permute.xlu0 %5732
      %5734 = vrot.lane.b32.xlu0 %v5725, 108
      %v5735 = vpop.permute.xlu0 %5734
      %5736 = vrot.lane.b32.xlu0 %v5726, 108
      %v5737 = vpop.permute.xlu0 %5736
      %5738 = vrot.lane.b32.xlu0 %v5727, 108
      %v5739 = vpop.permute.xlu0 %5738
      %5740 = vrot.lane.b32.xlu0 %v5728, 108
      %v5741 = vpop.permute.xlu0 %5740
      %5742 = vrot.lane.b32.xlu0 %v5729, 108
      %v5743 = vpop.permute.xlu0 %5742
      %5744 = vrot.lane.b32.xlu0 %v5730, 108
      %v5745 = vpop.permute.xlu0 %5744
      %5746 = vrot.lane.b32.xlu0 %v5731, 108
      %v5747 = vpop.permute.xlu0 %5746
      %vm5756 = vcmask 917344
      %5757 = vst.msk [vmem:[#allocation2] sm:$0xff] %vm5756, %v5733
      %5758 = vst.msk [vmem:[#allocation2 + $0x10] sm:$0xff] %vm5756, %v5735
      %5759 = vst.msk [vmem:[#allocation2 + $0x20] sm:$0xff] %vm5756, %v5737
      %5760 = vst.msk [vmem:[#allocation2 + $0x30] sm:$0xff] %vm5756, %v5739
      %5761 = vst.msk [vmem:[#allocation2 + $0x40] sm:$0xff] %vm5756, %v5741
      %5762 = vst.msk [vmem:[#allocation2 + $0x50] sm:$0xff] %vm5756, %v5743
      %5763 = vst.msk [vmem:[#allocation2 + $0x60] sm:$0xff] %vm5756, %v5745
      %5764 = vst.msk [vmem:[#allocation2 + $0x70] sm:$0xff] %vm5756, %v5747
      %s5765 = scalar_lea.vmem %s354, 24
      %v5766 = vld [vmem:[%s5765] sm:$0xf]
      %v5767 = vld [vmem:[%s5765 + $0x4] sm:$0xf]
      %v5768 = vld [vmem:[%s5765 + $0xc] sm:$0xf]
      %v5769 = vld [vmem:[%s5765 + $0x10] sm:$0xf]
      %v5770 = vld [vmem:[%s5765 + $0x18] sm:$0xf]
      %v5771 = vld [vmem:[%s5765 + $0x1c] sm:$0xf]
      %v5772 = vld [vmem:[%s5765 + $0x24] sm:$0xf]
      %v5773 = vld [vmem:[%s5765 + $0x28] sm:$0xf]
      %v5774 = vld [vmem:[%s5765 + $0x30] sm:$0xf]
      %v5775 = vld [vmem:[%s5765 + $0x34] sm:$0xf]
      %v5776 = vld [vmem:[%s5765 + $0x3c] sm:$0xf]
      %v5777 = vld [vmem:[%s5765 + $0x40] sm:$0xf]
      %v5778 = vld [vmem:[%s5765 + $0x48] sm:$0xf]
      %v5779 = vld [vmem:[%s5765 + $0x4c] sm:$0xf]
      %v5780 = vld [vmem:[%s5765 + $0x54] sm:$0xf]
      %v5781 = vld [vmem:[%s5765 + $0x58] sm:$0xf]
      %v5798 = vunpack.c.l.b16 %v5766
      %v5799 = vunpack.c.l.b16 %v5767
      %v5800 = vunpack.c.l.b16 %v5768
      %v5801 = vunpack.c.l.b16 %v5769
      %v5802 = vunpack.c.l.b16 %v5770
      %v5803 = vunpack.c.l.b16 %v5771
      %v5804 = vunpack.c.l.b16 %v5772
      %v5805 = vunpack.c.l.b16 %v5773
      %v5806 = vunpack.c.l.b16 %v5774
      %v5807 = vunpack.c.l.b16 %v5775
      %v5808 = vunpack.c.l.b16 %v5776
      %v5809 = vunpack.c.l.b16 %v5777
      %v5810 = vunpack.c.l.b16 %v5778
      %v5811 = vunpack.c.l.b16 %v5779
      %v5812 = vunpack.c.l.b16 %v5780
      %v5813 = vunpack.c.l.b16 %v5781
      %v5814 = vpack.c.b16 %v5799, %v5798
      %v5815 = vpack.c.b16 %v5801, %v5800
      %v5816 = vpack.c.b16 %v5803, %v5802
      %v5817 = vpack.c.b16 %v5805, %v5804
      %v5818 = vpack.c.b16 %v5807, %v5806
      %v5819 = vpack.c.b16 %v5809, %v5808
      %v5820 = vpack.c.b16 %v5811, %v5810
      %v5821 = vpack.c.b16 %v5813, %v5812
      %5822 = vrot.lane.b32.xlu0 %v5814, 112
      %v5823 = vpop.permute.xlu0 %5822
      %5824 = vrot.lane.b32.xlu0 %v5815, 112
      %v5825 = vpop.permute.xlu0 %5824
      %5826 = vrot.lane.b32.xlu0 %v5816, 112
      %v5827 = vpop.permute.xlu0 %5826
      %5828 = vrot.lane.b32.xlu0 %v5817, 112
      %v5829 = vpop.permute.xlu0 %5828
      %5830 = vrot.lane.b32.xlu0 %v5818, 112
      %v5831 = vpop.permute.xlu0 %5830
      %5832 = vrot.lane.b32.xlu0 %v5819, 112
      %v5833 = vpop.permute.xlu0 %5832
      %5834 = vrot.lane.b32.xlu0 %v5820, 112
      %v5835 = vpop.permute.xlu0 %5834
      %5836 = vrot.lane.b32.xlu0 %v5821, 112
      %v5837 = vpop.permute.xlu0 %5836
      %vm5846 = vcmask 950144
      %5847 = vst.msk [vmem:[#allocation2] sm:$0xff] %vm5846, %v5823
      %5848 = vst.msk [vmem:[#allocation2 + $0x10] sm:$0xff] %vm5846, %v5825
      %5849 = vst.msk [vmem:[#allocation2 + $0x20] sm:$0xff] %vm5846, %v5827
      %5850 = vst.msk [vmem:[#allocation2 + $0x30] sm:$0xff] %vm5846, %v5829
      %5851 = vst.msk [vmem:[#allocation2 + $0x40] sm:$0xff] %vm5846, %v5831
      %5852 = vst.msk [vmem:[#allocation2 + $0x50] sm:$0xff] %vm5846, %v5833
      %5853 = vst.msk [vmem:[#allocation2 + $0x60] sm:$0xff] %vm5846, %v5835
      %5854 = vst.msk [vmem:[#allocation2 + $0x70] sm:$0xff] %vm5846, %v5837
      %s5855 = scalar_lea.vmem %s354, 156
      %v5856 = vld [vmem:[%s5855] sm:$0xf]
      %v5857 = vld [vmem:[%s5855 + $0x4] sm:$0xf]
      %v5858 = vld [vmem:[%s5855 + $0xc] sm:$0xf]
      %v5859 = vld [vmem:[%s5855 + $0x10] sm:$0xf]
      %v5860 = vld [vmem:[%s5855 + $0x18] sm:$0xf]
      %v5861 = vld [vmem:[%s5855 + $0x1c] sm:$0xf]
      %v5862 = vld [vmem:[%s5855 + $0x24] sm:$0xf]
      %v5863 = vld [vmem:[%s5855 + $0x28] sm:$0xf]
      %v5864 = vld [vmem:[%s5855 + $0x30] sm:$0xf]
      %v5865 = vld [vmem:[%s5855 + $0x34] sm:$0xf]
      %v5866 = vld [vmem:[%s5855 + $0x3c] sm:$0xf]
      %v5867 = vld [vmem:[%s5855 + $0x40] sm:$0xf]
      %v5868 = vld [vmem:[%s5855 + $0x48] sm:$0xf]
      %v5869 = vld [vmem:[%s5855 + $0x4c] sm:$0xf]
      %v5870 = vld [vmem:[%s5855 + $0x54] sm:$0xf]
      %v5871 = vld [vmem:[%s5855 + $0x58] sm:$0xf]
      %v5888 = vunpack.c.l.b16 %v5856
      %v5889 = vunpack.c.l.b16 %v5857
      %v5890 = vunpack.c.l.b16 %v5858
      %v5891 = vunpack.c.l.b16 %v5859
      %v5892 = vunpack.c.l.b16 %v5860
      %v5893 = vunpack.c.l.b16 %v5861
      %v5894 = vunpack.c.l.b16 %v5862
      %v5895 = vunpack.c.l.b16 %v5863
      %v5896 = vunpack.c.l.b16 %v5864
      %v5897 = vunpack.c.l.b16 %v5865
      %v5898 = vunpack.c.l.b16 %v5866
      %v5899 = vunpack.c.l.b16 %v5867
      %v5900 = vunpack.c.l.b16 %v5868
      %v5901 = vunpack.c.l.b16 %v5869
      %v5902 = vunpack.c.l.b16 %v5870
      %v5903 = vunpack.c.l.b16 %v5871
      %v5904 = vpack.c.b16 %v5889, %v5888
      %v5905 = vpack.c.b16 %v5891, %v5890
      %v5906 = vpack.c.b16 %v5893, %v5892
      %v5907 = vpack.c.b16 %v5895, %v5894
      %v5908 = vpack.c.b16 %v5897, %v5896
      %v5909 = vpack.c.b16 %v5899, %v5898
      %v5910 = vpack.c.b16 %v5901, %v5900
      %v5911 = vpack.c.b16 %v5903, %v5902
      %5912 = vrot.lane.b32.xlu0 %v5904, 116
      %v5913 = vpop.permute.xlu0 %5912
      %5914 = vrot.lane.b32.xlu0 %v5905, 116
      %v5915 = vpop.permute.xlu0 %5914
      %5916 = vrot.lane.b32.xlu0 %v5906, 116
      %v5917 = vpop.permute.xlu0 %5916
      %5918 = vrot.lane.b32.xlu0 %v5907, 116
      %v5919 = vpop.permute.xlu0 %5918
      %5920 = vrot.lane.b32.xlu0 %v5908, 116
      %v5921 = vpop.permute.xlu0 %5920
      %5922 = vrot.lane.b32.xlu0 %v5909, 116
      %v5923 = vpop.permute.xlu0 %5922
      %5924 = vrot.lane.b32.xlu0 %v5910, 116
      %v5925 = vpop.permute.xlu0 %5924
      %5926 = vrot.lane.b32.xlu0 %v5911, 116
      %v5927 = vpop.permute.xlu0 %5926
      %vm5936 = vcmask 982944
      %5937 = vst.msk [vmem:[#allocation2] sm:$0xff] %vm5936, %v5913
      %5938 = vst.msk [vmem:[#allocation2 + $0x10] sm:$0xff] %vm5936, %v5915
      %5939 = vst.msk [vmem:[#allocation2 + $0x20] sm:$0xff] %vm5936, %v5917
      %5940 = vst.msk [vmem:[#allocation2 + $0x30] sm:$0xff] %vm5936, %v5919
      %5941 = vst.msk [vmem:[#allocation2 + $0x40] sm:$0xff] %vm5936, %v5921
      %5942 = vst.msk [vmem:[#allocation2 + $0x50] sm:$0xff] %vm5936, %v5923
      %5943 = vst.msk [vmem:[#allocation2 + $0x60] sm:$0xff] %vm5936, %v5925
      %5944 = vst.msk [vmem:[#allocation2 + $0x70] sm:$0xff] %vm5936, %v5927
      %v5945 = vld [vmem:[%s5765] sm:$0xf]
      %v5946 = vld [vmem:[%s5765 + $0x4] sm:$0xf]
      %v5947 = vld [vmem:[%s5765 + $0x8] sm:$0x1]
      %v5948 = vld [vmem:[%s5765 + $0xc] sm:$0xf]
      %v5949 = vld [vmem:[%s5765 + $0x10] sm:$0xf]
      %v5950 = vld [vmem:[%s5765 + $0x14] sm:$0x1]
      %v5951 = vld [vmem:[%s5765 + $0x18] sm:$0xf]
      %v5952 = vld [vmem:[%s5765 + $0x1c] sm:$0xf]
      %v5953 = vld [vmem:[%s5765 + $0x20] sm:$0x1]
      %v5954 = vld [vmem:[%s5765 + $0x24] sm:$0xf]
      %v5955 = vld [vmem:[%s5765 + $0x28] sm:$0xf]
      %v5956 = vld [vmem:[%s5765 + $0x2c] sm:$0x1]
      %v5957 = vld [vmem:[%s5765 + $0x30] sm:$0xf]
      %v5958 = vld [vmem:[%s5765 + $0x34] sm:$0xf]
      %v5959 = vld [vmem:[%s5765 + $0x38] sm:$0x1]
      %v5960 = vld [vmem:[%s5765 + $0x3c] sm:$0xf]
      %v5961 = vld [vmem:[%s5765 + $0x40] sm:$0xf]
      %v5962 = vld [vmem:[%s5765 + $0x44] sm:$0x1]
      %v5963 = vld [vmem:[%s5765 + $0x48] sm:$0xf]
      %v5964 = vld [vmem:[%s5765 + $0x4c] sm:$0xf]
      %v5965 = vld [vmem:[%s5765 + $0x50] sm:$0x1]
      %v5966 = vld [vmem:[%s5765 + $0x54] sm:$0xf]
      %v5967 = vld [vmem:[%s5765 + $0x58] sm:$0xf]
      %v5968 = vld [vmem:[%s5765 + $0x5c] sm:$0x1]
      %v5970 = vshrl.u32 %v5945, 16
      %v5972 = vrot.slane %v5970, 4
      %v5973 = vshll.u32 %v5945, 16
      %v5975 = vrot.slane %v5973, 5
      %v5976 = vor.u32 %v5972, %v5975
      %v5977 = vrot.slane %v5976, 4
      %v5979 = vshll.u32 %v5946, 16
      %v5981 = vrot.slane %v5979, 5
      %v5982 = vsel %vm550, %v5977, %v5981
      %v5983 = vshrl.u32 %v5946, 16
      %v5985 = vrot.slane %v5983, 4
      %v5986 = vor.u32 %v5985, %v5981
      %v5987 = vrot.slane %v5986, 4
      %v5989 = vshll.u32 %v5947, 16
      %v5991 = vrot.slane %v5989, 5
      %v5992 = vsel %vm550, %v5987, %v5991
      %v5994 = vshrl.u32 %v5948, 16
      %v5996 = vrot.slane %v5994, 4
      %v5997 = vshll.u32 %v5948, 16
      %v5999 = vrot.slane %v5997, 5
      %v6000 = vor.u32 %v5996, %v5999
      %v6001 = vrot.slane %v6000, 4
      %v6003 = vshll.u32 %v5949, 16
      %v6005 = vrot.slane %v6003, 5
      %v6006 = vsel %vm550, %v6001, %v6005
      %v6007 = vshrl.u32 %v5949, 16
      %v6009 = vrot.slane %v6007, 4
      %v6010 = vor.u32 %v6009, %v6005
      %v6011 = vrot.slane %v6010, 4
      %v6013 = vshll.u32 %v5950, 16
      %v6015 = vrot.slane %v6013, 5
      %v6016 = vsel %vm550, %v6011, %v6015
      %v6018 = vshrl.u32 %v5951, 16
      %v6020 = vrot.slane %v6018, 4
      %v6021 = vshll.u32 %v5951, 16
      %v6023 = vrot.slane %v6021, 5
      %v6024 = vor.u32 %v6020, %v6023
      %v6025 = vrot.slane %v6024, 4
      %v6027 = vshll.u32 %v5952, 16
      %v6029 = vrot.slane %v6027, 5
      %v6030 = vsel %vm550, %v6025, %v6029
      %v6031 = vshrl.u32 %v5952, 16
      %v6033 = vrot.slane %v6031, 4
      %v6034 = vor.u32 %v6033, %v6029
      %v6035 = vrot.slane %v6034, 4
      %v6037 = vshll.u32 %v5953, 16
      %v6039 = vrot.slane %v6037, 5
      %v6040 = vsel %vm550, %v6035, %v6039
      %v6042 = vshrl.u32 %v5954, 16
      %v6044 = vrot.slane %v6042, 4
      %v6045 = vshll.u32 %v5954, 16
      %v6047 = vrot.slane %v6045, 5
      %v6048 = vor.u32 %v6044, %v6047
      %v6049 = vrot.slane %v6048, 4
      %v6051 = vshll.u32 %v5955, 16
      %v6053 = vrot.slane %v6051, 5
      %v6054 = vsel %vm550, %v6049, %v6053
      %v6055 = vshrl.u32 %v5955, 16
      %v6057 = vrot.slane %v6055, 4
      %v6058 = vor.u32 %v6057, %v6053
      %v6059 = vrot.slane %v6058, 4
      %v6061 = vshll.u32 %v5956, 16
      %v6063 = vrot.slane %v6061, 5
      %v6064 = vsel %vm550, %v6059, %v6063
      %v6066 = vshrl.u32 %v5957, 16
      %v6068 = vrot.slane %v6066, 4
      %v6069 = vshll.u32 %v5957, 16
      %v6071 = vrot.slane %v6069, 5
      %v6072 = vor.u32 %v6068, %v6071
      %v6073 = vrot.slane %v6072, 4
      %v6075 = vshll.u32 %v5958, 16
      %v6077 = vrot.slane %v6075, 5
      %v6078 = vsel %vm550, %v6073, %v6077
      %v6079 = vshrl.u32 %v5958, 16
      %v6081 = vrot.slane %v6079, 4
      %v6082 = vor.u32 %v6081, %v6077
      %v6083 = vrot.slane %v6082, 4
      %v6085 = vshll.u32 %v5959, 16
      %v6087 = vrot.slane %v6085, 5
      %v6088 = vsel %vm550, %v6083, %v6087
      %v6090 = vshrl.u32 %v5960, 16
      %v6092 = vrot.slane %v6090, 4
      %v6093 = vshll.u32 %v5960, 16
      %v6095 = vrot.slane %v6093, 5
      %v6096 = vor.u32 %v6092, %v6095
      %v6097 = vrot.slane %v6096, 4
      %v6099 = vshll.u32 %v5961, 16
      %v6101 = vrot.slane %v6099, 5
      %v6102 = vsel %vm550, %v6097, %v6101
      %v6103 = vshrl.u32 %v5961, 16
      %v6105 = vrot.slane %v6103, 4
      %v6106 = vor.u32 %v6105, %v6101
      %v6107 = vrot.slane %v6106, 4
      %v6109 = vshll.u32 %v5962, 16
      %v6111 = vrot.slane %v6109, 5
      %v6112 = vsel %vm550, %v6107, %v6111
      %v6114 = vshrl.u32 %v5963, 16
      %v6116 = vrot.slane %v6114, 4
      %v6117 = vshll.u32 %v5963, 16
      %v6119 = vrot.slane %v6117, 5
      %v6120 = vor.u32 %v6116, %v6119
      %v6121 = vrot.slane %v6120, 4
      %v6123 = vshll.u32 %v5964, 16
      %v6125 = vrot.slane %v6123, 5
      %v6126 = vsel %vm550, %v6121, %v6125
      %v6127 = vshrl.u32 %v5964, 16
      %v6129 = vrot.slane %v6127, 4
      %v6130 = vor.u32 %v6129, %v6125
      %v6131 = vrot.slane %v6130, 4
      %v6133 = vshll.u32 %v5965, 16
      %v6135 = vrot.slane %v6133, 5
      %v6136 = vsel %vm550, %v6131, %v6135
      %v6138 = vshrl.u32 %v5966, 16
      %v6140 = vrot.slane %v6138, 4
      %v6141 = vshll.u32 %v5966, 16
      %v6143 = vrot.slane %v6141, 5
      %v6144 = vor.u32 %v6140, %v6143
      %v6145 = vrot.slane %v6144, 4
      %v6147 = vshll.u32 %v5967, 16
      %v6149 = vrot.slane %v6147, 5
      %v6150 = vsel %vm550, %v6145, %v6149
      %v6151 = vshrl.u32 %v5967, 16
      %v6153 = vrot.slane %v6151, 4
      %v6154 = vor.u32 %v6153, %v6149
      %v6155 = vrot.slane %v6154, 4
      %v6157 = vshll.u32 %v5968, 16
      %v6159 = vrot.slane %v6157, 5
      %v6160 = vsel %vm550, %v6155, %v6159
      %v6161 = vunpack.c.l.b16 %v5982
      %v6162 = vunpack.c.l.b16 %v5992
      %v6163 = vunpack.c.l.b16 %v6006
      %v6164 = vunpack.c.l.b16 %v6016
      %v6165 = vunpack.c.l.b16 %v6030
      %v6166 = vunpack.c.l.b16 %v6040
      %v6167 = vunpack.c.l.b16 %v6054
      %v6168 = vunpack.c.l.b16 %v6064
      %v6169 = vunpack.c.l.b16 %v6078
      %v6170 = vunpack.c.l.b16 %v6088
      %v6171 = vunpack.c.l.b16 %v6102
      %v6172 = vunpack.c.l.b16 %v6112
      %v6173 = vunpack.c.l.b16 %v6126
      %v6174 = vunpack.c.l.b16 %v6136
      %v6175 = vunpack.c.l.b16 %v6150
      %v6176 = vunpack.c.l.b16 %v6160
      %v6177 = vpack.c.b16 %v6162, %v6161
      %v6178 = vpack.c.b16 %v6164, %v6163
      %v6179 = vpack.c.b16 %v6166, %v6165
      %v6180 = vpack.c.b16 %v6168, %v6167
      %v6181 = vpack.c.b16 %v6170, %v6169
      %v6182 = vpack.c.b16 %v6172, %v6171
      %v6183 = vpack.c.b16 %v6174, %v6173
      %v6184 = vpack.c.b16 %v6176, %v6175
      %6185 = vrot.lane.b32.xlu0 %v6177, 120
      %v6186 = vpop.permute.xlu0 %6185
      %6187 = vrot.lane.b32.xlu0 %v6178, 120
      %v6188 = vpop.permute.xlu0 %6187
      %6189 = vrot.lane.b32.xlu0 %v6179, 120
      %v6190 = vpop.permute.xlu0 %6189
      %6191 = vrot.lane.b32.xlu0 %v6180, 120
      %v6192 = vpop.permute.xlu0 %6191
      %6193 = vrot.lane.b32.xlu0 %v6181, 120
      %v6194 = vpop.permute.xlu0 %6193
      %6195 = vrot.lane.b32.xlu0 %v6182, 120
      %v6196 = vpop.permute.xlu0 %6195
      %6197 = vrot.lane.b32.xlu0 %v6183, 120
      %v6198 = vpop.permute.xlu0 %6197
      %6199 = vrot.lane.b32.xlu0 %v6184, 120
      %v6200 = vpop.permute.xlu0 %6199
      %vm6209 = vcmask 1015744
      %6210 = vst.msk [vmem:[#allocation2] sm:$0xff] %vm6209, %v6186
      %6211 = vst.msk [vmem:[#allocation2 + $0x10] sm:$0xff] %vm6209, %v6188
      %6212 = vst.msk [vmem:[#allocation2 + $0x20] sm:$0xff] %vm6209, %v6190
      %6213 = vst.msk [vmem:[#allocation2 + $0x30] sm:$0xff] %vm6209, %v6192
      %6214 = vst.msk [vmem:[#allocation2 + $0x40] sm:$0xff] %vm6209, %v6194
      %6215 = vst.msk [vmem:[#allocation2 + $0x50] sm:$0xff] %vm6209, %v6196
      %6216 = vst.msk [vmem:[#allocation2 + $0x60] sm:$0xff] %vm6209, %v6198
      %6217 = vst.msk [vmem:[#allocation2 + $0x70] sm:$0xff] %vm6209, %v6200
      %v6218 = vld [vmem:[%s5855] sm:$0xf]
      %v6219 = vld [vmem:[%s5855 + $0x4] sm:$0xf]
      %v6220 = vld [vmem:[%s5855 + $0x8] sm:$0x1]
      %v6221 = vld [vmem:[%s5855 + $0xc] sm:$0xf]
      %v6222 = vld [vmem:[%s5855 + $0x10] sm:$0xf]
      %v6223 = vld [vmem:[%s5855 + $0x14] sm:$0x1]
      %v6224 = vld [vmem:[%s5855 + $0x18] sm:$0xf]
      %v6225 = vld [vmem:[%s5855 + $0x1c] sm:$0xf]
      %v6226 = vld [vmem:[%s5855 + $0x20] sm:$0x1]
      %v6227 = vld [vmem:[%s5855 + $0x24] sm:$0xf]
      %v6228 = vld [vmem:[%s5855 + $0x28] sm:$0xf]
      %v6229 = vld [vmem:[%s5855 + $0x2c] sm:$0x1]
      %v6230 = vld [vmem:[%s5855 + $0x30] sm:$0xf]
      %v6231 = vld [vmem:[%s5855 + $0x34] sm:$0xf]
      %v6232 = vld [vmem:[%s5855 + $0x38] sm:$0x1]
      %v6233 = vld [vmem:[%s5855 + $0x3c] sm:$0xf]
      %v6234 = vld [vmem:[%s5855 + $0x40] sm:$0xf]
      %v6235 = vld [vmem:[%s5855 + $0x44] sm:$0x1]
      %v6236 = vld [vmem:[%s5855 + $0x48] sm:$0xf]
      %v6237 = vld [vmem:[%s5855 + $0x4c] sm:$0xf]
      %v6238 = vld [vmem:[%s5855 + $0x50] sm:$0x1]
      %v6239 = vld [vmem:[%s5855 + $0x54] sm:$0xf]
      %v6240 = vld [vmem:[%s5855 + $0x58] sm:$0xf]
      %v6241 = vld [vmem:[%s5855 + $0x5c] sm:$0x1]
      %v6243 = vshrl.u32 %v6218, 16
      %v6245 = vrot.slane %v6243, 4
      %v6246 = vshll.u32 %v6218, 16
      %v6248 = vrot.slane %v6246, 5
      %v6249 = vor.u32 %v6245, %v6248
      %v6250 = vrot.slane %v6249, 4
      %v6252 = vshll.u32 %v6219, 16
      %v6254 = vrot.slane %v6252, 5
      %v6255 = vsel %vm550, %v6250, %v6254
      %v6256 = vshrl.u32 %v6219, 16
      %v6258 = vrot.slane %v6256, 4
      %v6259 = vor.u32 %v6258, %v6254
      %v6260 = vrot.slane %v6259, 4
      %v6262 = vshll.u32 %v6220, 16
      %v6264 = vrot.slane %v6262, 5
      %v6265 = vsel %vm550, %v6260, %v6264
      %v6267 = vshrl.u32 %v6221, 16
      %v6269 = vrot.slane %v6267, 4
      %v6270 = vshll.u32 %v6221, 16
      %v6272 = vrot.slane %v6270, 5
      %v6273 = vor.u32 %v6269, %v6272
      %v6274 = vrot.slane %v6273, 4
      %v6276 = vshll.u32 %v6222, 16
      %v6278 = vrot.slane %v6276, 5
      %v6279 = vsel %vm550, %v6274, %v6278
      %v6280 = vshrl.u32 %v6222, 16
      %v6282 = vrot.slane %v6280, 4
      %v6283 = vor.u32 %v6282, %v6278
      %v6284 = vrot.slane %v6283, 4
      %v6286 = vshll.u32 %v6223, 16
      %v6288 = vrot.slane %v6286, 5
      %v6289 = vsel %vm550, %v6284, %v6288
      %v6291 = vshrl.u32 %v6224, 16
      %v6293 = vrot.slane %v6291, 4
      %v6294 = vshll.u32 %v6224, 16
      %v6296 = vrot.slane %v6294, 5
      %v6297 = vor.u32 %v6293, %v6296
      %v6298 = vrot.slane %v6297, 4
      %v6300 = vshll.u32 %v6225, 16
      %v6302 = vrot.slane %v6300, 5
      %v6303 = vsel %vm550, %v6298, %v6302
      %v6304 = vshrl.u32 %v6225, 16
      %v6306 = vrot.slane %v6304, 4
      %v6307 = vor.u32 %v6306, %v6302
      %v6308 = vrot.slane %v6307, 4
      %v6310 = vshll.u32 %v6226, 16
      %v6312 = vrot.slane %v6310, 5
      %v6313 = vsel %vm550, %v6308, %v6312
      %v6315 = vshrl.u32 %v6227, 16
      %v6317 = vrot.slane %v6315, 4
      %v6318 = vshll.u32 %v6227, 16
      %v6320 = vrot.slane %v6318, 5
      %v6321 = vor.u32 %v6317, %v6320
      %v6322 = vrot.slane %v6321, 4
      %v6324 = vshll.u32 %v6228, 16
      %v6326 = vrot.slane %v6324, 5
      %v6327 = vsel %vm550, %v6322, %v6326
      %v6328 = vshrl.u32 %v6228, 16
      %v6330 = vrot.slane %v6328, 4
      %v6331 = vor.u32 %v6330, %v6326
      %v6332 = vrot.slane %v6331, 4
      %v6334 = vshll.u32 %v6229, 16
      %v6336 = vrot.slane %v6334, 5
      %v6337 = vsel %vm550, %v6332, %v6336
      %v6339 = vshrl.u32 %v6230, 16
      %v6341 = vrot.slane %v6339, 4
      %v6342 = vshll.u32 %v6230, 16
      %v6344 = vrot.slane %v6342, 5
      %v6345 = vor.u32 %v6341, %v6344
      %v6346 = vrot.slane %v6345, 4
      %v6348 = vshll.u32 %v6231, 16
      %v6350 = vrot.slane %v6348, 5
      %v6351 = vsel %vm550, %v6346, %v6350
      %v6352 = vshrl.u32 %v6231, 16
      %v6354 = vrot.slane %v6352, 4
      %v6355 = vor.u32 %v6354, %v6350
      %v6356 = vrot.slane %v6355, 4
      %v6358 = vshll.u32 %v6232, 16
      %v6360 = vrot.slane %v6358, 5
      %v6361 = vsel %vm550, %v6356, %v6360
      %v6363 = vshrl.u32 %v6233, 16
      %v6365 = vrot.slane %v6363, 4
      %v6366 = vshll.u32 %v6233, 16
      %v6368 = vrot.slane %v6366, 5
      %v6369 = vor.u32 %v6365, %v6368
      %v6370 = vrot.slane %v6369, 4
      %v6372 = vshll.u32 %v6234, 16
      %v6374 = vrot.slane %v6372, 5
      %v6375 = vsel %vm550, %v6370, %v6374
      %v6376 = vshrl.u32 %v6234, 16
      %v6378 = vrot.slane %v6376, 4
      %v6379 = vor.u32 %v6378, %v6374
      %v6380 = vrot.slane %v6379, 4
      %v6382 = vshll.u32 %v6235, 16
      %v6384 = vrot.slane %v6382, 5
      %v6385 = vsel %vm550, %v6380, %v6384
      %v6387 = vshrl.u32 %v6236, 16
      %v6389 = vrot.slane %v6387, 4
      %v6390 = vshll.u32 %v6236, 16
      %v6392 = vrot.slane %v6390, 5
      %v6393 = vor.u32 %v6389, %v6392
      %v6394 = vrot.slane %v6393, 4
      %v6396 = vshll.u32 %v6237, 16
      %v6398 = vrot.slane %v6396, 5
      %v6399 = vsel %vm550, %v6394, %v6398
      %v6400 = vshrl.u32 %v6237, 16
      %v6402 = vrot.slane %v6400, 4
      %v6403 = vor.u32 %v6402, %v6398
      %v6404 = vrot.slane %v6403, 4
      %v6406 = vshll.u32 %v6238, 16
      %v6408 = vrot.slane %v6406, 5
      %v6409 = vsel %vm550, %v6404, %v6408
      %v6411 = vshrl.u32 %v6239, 16
      %v6413 = vrot.slane %v6411, 4
      %v6414 = vshll.u32 %v6239, 16
      %v6416 = vrot.slane %v6414, 5
      %v6417 = vor.u32 %v6413, %v6416
      %v6418 = vrot.slane %v6417, 4
      %v6420 = vshll.u32 %v6240, 16
      %v6422 = vrot.slane %v6420, 5
      %v6423 = vsel %vm550, %v6418, %v6422
      %v6424 = vshrl.u32 %v6240, 16
      %v6426 = vrot.slane %v6424, 4
      %v6427 = vor.u32 %v6426, %v6422
      %v6428 = vrot.slane %v6427, 4
      %v6430 = vshll.u32 %v6241, 16
      %v6432 = vrot.slane %v6430, 5
      %v6433 = vsel %vm550, %v6428, %v6432
      %v6434 = vunpack.c.l.b16 %v6255
      %v6435 = vunpack.c.l.b16 %v6265
      %v6436 = vunpack.c.l.b16 %v6279
      %v6437 = vunpack.c.l.b16 %v6289
      %v6438 = vunpack.c.l.b16 %v6303
      %v6439 = vunpack.c.l.b16 %v6313
      %v6440 = vunpack.c.l.b16 %v6327
      %v6441 = vunpack.c.l.b16 %v6337
      %v6442 = vunpack.c.l.b16 %v6351
      %v6443 = vunpack.c.l.b16 %v6361
      %v6444 = vunpack.c.l.b16 %v6375
      %v6445 = vunpack.c.l.b16 %v6385
      %v6446 = vunpack.c.l.b16 %v6399
      %v6447 = vunpack.c.l.b16 %v6409
      %v6448 = vunpack.c.l.b16 %v6423
      %v6449 = vunpack.c.l.b16 %v6433
      %v6450 = vpack.c.b16 %v6435, %v6434
      %v6451 = vpack.c.b16 %v6437, %v6436
      %v6452 = vpack.c.b16 %v6439, %v6438
      %v6453 = vpack.c.b16 %v6441, %v6440
      %v6454 = vpack.c.b16 %v6443, %v6442
      %v6455 = vpack.c.b16 %v6445, %v6444
      %v6456 = vpack.c.b16 %v6447, %v6446
      %v6457 = vpack.c.b16 %v6449, %v6448
      %6458 = vrot.lane.b32.xlu0 %v6450, 124
      %v6459 = vpop.permute.xlu0 %6458
      %6460 = vrot.lane.b32.xlu0 %v6451, 124
      %v6461 = vpop.permute.xlu0 %6460
      %6462 = vrot.lane.b32.xlu0 %v6452, 124
      %v6463 = vpop.permute.xlu0 %6462
      %6464 = vrot.lane.b32.xlu0 %v6453, 124
      %v6465 = vpop.permute.xlu0 %6464
      %6466 = vrot.lane.b32.xlu0 %v6454, 124
      %v6467 = vpop.permute.xlu0 %6466
      %6468 = vrot.lane.b32.xlu0 %v6455, 124
      %v6469 = vpop.permute.xlu0 %6468
      %6470 = vrot.lane.b32.xlu0 %v6456, 124
      %v6471 = vpop.permute.xlu0 %6470
      %6472 = vrot.lane.b32.xlu0 %v6457, 124
      %v6473 = vpop.permute.xlu0 %6472
      %vm6482 = vcmask 1048544
      %6483 = vst.msk [vmem:[#allocation2] sm:$0xff] %vm6482, %v6459
      %6484 = vst.msk [vmem:[#allocation2 + $0x10] sm:$0xff] %vm6482, %v6461
      %6485 = vst.msk [vmem:[#allocation2 + $0x20] sm:$0xff] %vm6482, %v6463
      %6486 = vst.msk [vmem:[#allocation2 + $0x30] sm:$0xff] %vm6482, %v6465
      %6487 = vst.msk [vmem:[#allocation2 + $0x40] sm:$0xff] %vm6482, %v6467
      %6488 = vst.msk [vmem:[#allocation2 + $0x50] sm:$0xff] %vm6482, %v6469
      %6489 = vst.msk [vmem:[#allocation2 + $0x60] sm:$0xff] %vm6482, %v6471
      %6490 = vst.msk [vmem:[#allocation2 + $0x70] sm:$0xff] %vm6482, %v6473
      %v6491 = vld [vmem:[%s5765] sm:$0xe]
      %v6492 = vld [vmem:[%s5765 + $0x4] sm:$0xf]
      %v6493 = vld [vmem:[%s5765 + $0x8] sm:$0x1]
      %v6494 = vld [vmem:[%s5765 + $0xc] sm:$0xe]
      %v6495 = vld [vmem:[%s5765 + $0x10] sm:$0xf]
      %v6496 = vld [vmem:[%s5765 + $0x14] sm:$0x1]
      %v6497 = vld [vmem:[%s5765 + $0x18] sm:$0xe]
      %v6498 = vld [vmem:[%s5765 + $0x1c] sm:$0xf]
      %v6499 = vld [vmem:[%s5765 + $0x20] sm:$0x1]
      %v6500 = vld [vmem:[%s5765 + $0x24] sm:$0xe]
      %v6501 = vld [vmem:[%s5765 + $0x28] sm:$0xf]
      %v6502 = vld [vmem:[%s5765 + $0x2c] sm:$0x1]
      %v6503 = vld [vmem:[%s5765 + $0x30] sm:$0xe]
      %v6504 = vld [vmem:[%s5765 + $0x34] sm:$0xf]
      %v6505 = vld [vmem:[%s5765 + $0x38] sm:$0x1]
      %v6506 = vld [vmem:[%s5765 + $0x3c] sm:$0xe]
      %v6507 = vld [vmem:[%s5765 + $0x40] sm:$0xf]
      %v6508 = vld [vmem:[%s5765 + $0x44] sm:$0x1]
      %v6509 = vld [vmem:[%s5765 + $0x48] sm:$0xe]
      %v6510 = vld [vmem:[%s5765 + $0x4c] sm:$0xf]
      %v6511 = vld [vmem:[%s5765 + $0x50] sm:$0x1]
      %v6512 = vld [vmem:[%s5765 + $0x54] sm:$0xe]
      %v6513 = vld [vmem:[%s5765 + $0x58] sm:$0xf]
      %v6514 = vld [vmem:[%s5765 + $0x5c] sm:$0x1]
      %v6539 = vrot.slane %v6491, 5
      %v6540 = vrot.slane %v6539, 4
      %v6541 = vrot.slane %v6492, 5
      %v6542 = vsel %vm1123, %v6540, %v6541
      %v6543 = vrot.slane %v6541, 4
      %v6544 = vrot.slane %v6493, 5
      %v6545 = vsel %vm1123, %v6543, %v6544
      %v6546 = vrot.slane %v6494, 5
      %v6547 = vrot.slane %v6546, 4
      %v6548 = vrot.slane %v6495, 5
      %v6549 = vsel %vm1123, %v6547, %v6548
      %v6550 = vrot.slane %v6548, 4
      %v6551 = vrot.slane %v6496, 5
      %v6552 = vsel %vm1123, %v6550, %v6551
      %v6553 = vrot.slane %v6497, 5
      %v6554 = vrot.slane %v6553, 4
      %v6555 = vrot.slane %v6498, 5
      %v6556 = vsel %vm1123, %v6554, %v6555
      %v6557 = vrot.slane %v6555, 4
      %v6558 = vrot.slane %v6499, 5
      %v6559 = vsel %vm1123, %v6557, %v6558
      %v6560 = vrot.slane %v6500, 5
      %v6561 = vrot.slane %v6560, 4
      %v6562 = vrot.slane %v6501, 5
      %v6563 = vsel %vm1123, %v6561, %v6562
      %v6564 = vrot.slane %v6562, 4
      %v6565 = vrot.slane %v6502, 5
      %v6566 = vsel %vm1123, %v6564, %v6565
      %v6567 = vrot.slane %v6503, 5
      %v6568 = vrot.slane %v6567, 4
      %v6569 = vrot.slane %v6504, 5
      %v6570 = vsel %vm1123, %v6568, %v6569
      %v6571 = vrot.slane %v6569, 4
      %v6572 = vrot.slane %v6505, 5
      %v6573 = vsel %vm1123, %v6571, %v6572
      %v6574 = vrot.slane %v6506, 5
      %v6575 = vrot.slane %v6574, 4
      %v6576 = vrot.slane %v6507, 5
      %v6577 = vsel %vm1123, %v6575, %v6576
      %v6578 = vrot.slane %v6576, 4
      %v6579 = vrot.slane %v6508, 5
      %v6580 = vsel %vm1123, %v6578, %v6579
      %v6581 = vrot.slane %v6509, 5
      %v6582 = vrot.slane %v6581, 4
      %v6583 = vrot.slane %v6510, 5
      %v6584 = vsel %vm1123, %v6582, %v6583
      %v6585 = vrot.slane %v6583, 4
      %v6586 = vrot.slane %v6511, 5
      %v6587 = vsel %vm1123, %v6585, %v6586
      %v6588 = vrot.slane %v6512, 5
      %v6589 = vrot.slane %v6588, 4
      %v6590 = vrot.slane %v6513, 5
      %v6591 = vsel %vm1123, %v6589, %v6590
      %v6592 = vrot.slane %v6590, 4
      %v6593 = vrot.slane %v6514, 5
      %v6594 = vsel %vm1123, %v6592, %v6593
      %v6595 = vunpack.c.l.b16 %v6542
      %v6596 = vunpack.c.l.b16 %v6545
      %v6597 = vunpack.c.l.b16 %v6549
      %v6598 = vunpack.c.l.b16 %v6552
      %v6599 = vunpack.c.l.b16 %v6556
      %v6600 = vunpack.c.l.b16 %v6559
      %v6601 = vunpack.c.l.b16 %v6563
      %v6602 = vunpack.c.l.b16 %v6566
      %v6603 = vunpack.c.l.b16 %v6570
      %v6604 = vunpack.c.l.b16 %v6573
      %v6605 = vunpack.c.l.b16 %v6577
      %v6606 = vunpack.c.l.b16 %v6580
      %v6607 = vunpack.c.l.b16 %v6584
      %v6608 = vunpack.c.l.b16 %v6587
      %v6609 = vunpack.c.l.b16 %v6591
      %v6610 = vunpack.c.l.b16 %v6594
      %v6611 = vpack.c.b16 %v6596, %v6595
      %v6612 = vpack.c.b16 %v6598, %v6597
      %v6613 = vpack.c.b16 %v6600, %v6599
      %v6614 = vpack.c.b16 %v6602, %v6601
      %v6615 = vpack.c.b16 %v6604, %v6603
      %v6616 = vpack.c.b16 %v6606, %v6605
      %v6617 = vpack.c.b16 %v6608, %v6607
      %v6618 = vpack.c.b16 %v6610, %v6609
      %6627 = vst.msk [vmem:[#allocation2 + $0x8] sm:$0xff] %vm425, %v6611
      %6628 = vst.msk [vmem:[#allocation2 + $0x18] sm:$0xff] %vm425, %v6612
      %6629 = vst.msk [vmem:[#allocation2 + $0x28] sm:$0xff] %vm425, %v6613
      %6630 = vst.msk [vmem:[#allocation2 + $0x38] sm:$0xff] %vm425, %v6614
      %6631 = vst.msk [vmem:[#allocation2 + $0x48] sm:$0xff] %vm425, %v6615
      %6632 = vst.msk [vmem:[#allocation2 + $0x58] sm:$0xff] %vm425, %v6616
      %6633 = vst.msk [vmem:[#allocation2 + $0x68] sm:$0xff] %vm425, %v6617
      %6634 = vst.msk [vmem:[#allocation2 + $0x78] sm:$0xff] %vm425, %v6618
      %v6635 = vld [vmem:[%s5855] sm:$0xe]
      %v6636 = vld [vmem:[%s5855 + $0x4] sm:$0xf]
      %v6637 = vld [vmem:[%s5855 + $0x8] sm:$0x1]
      %v6638 = vld [vmem:[%s5855 + $0xc] sm:$0xe]
      %v6639 = vld [vmem:[%s5855 + $0x10] sm:$0xf]
      %v6640 = vld [vmem:[%s5855 + $0x14] sm:$0x1]
      %v6641 = vld [vmem:[%s5855 + $0x18] sm:$0xe]
      %v6642 = vld [vmem:[%s5855 + $0x1c] sm:$0xf]
      %v6643 = vld [vmem:[%s5855 + $0x20] sm:$0x1]
      %v6644 = vld [vmem:[%s5855 + $0x24] sm:$0xe]
      %v6645 = vld [vmem:[%s5855 + $0x28] sm:$0xf]
      %v6646 = vld [vmem:[%s5855 + $0x2c] sm:$0x1]
      %v6647 = vld [vmem:[%s5855 + $0x30] sm:$0xe]
      %v6648 = vld [vmem:[%s5855 + $0x34] sm:$0xf]
      %v6649 = vld [vmem:[%s5855 + $0x38] sm:$0x1]
      %v6650 = vld [vmem:[%s5855 + $0x3c] sm:$0xe]
      %v6651 = vld [vmem:[%s5855 + $0x40] sm:$0xf]
      %v6652 = vld [vmem:[%s5855 + $0x44] sm:$0x1]
      %v6653 = vld [vmem:[%s5855 + $0x48] sm:$0xe]
      %v6654 = vld [vmem:[%s5855 + $0x4c] sm:$0xf]
      %v6655 = vld [vmem:[%s5855 + $0x50] sm:$0x1]
      %v6656 = vld [vmem:[%s5855 + $0x54] sm:$0xe]
      %v6657 = vld [vmem:[%s5855 + $0x58] sm:$0xf]
      %v6658 = vld [vmem:[%s5855 + $0x5c] sm:$0x1]
      %v6683 = vrot.slane %v6635, 5
      %v6684 = vrot.slane %v6683, 4
      %v6685 = vrot.slane %v6636, 5
      %v6686 = vsel %vm1123, %v6684, %v6685
      %v6687 = vrot.slane %v6685, 4
      %v6688 = vrot.slane %v6637, 5
      %v6689 = vsel %vm1123, %v6687, %v6688
      %v6690 = vrot.slane %v6638, 5
      %v6691 = vrot.slane %v6690, 4
      %v6692 = vrot.slane %v6639, 5
      %v6693 = vsel %vm1123, %v6691, %v6692
      %v6694 = vrot.slane %v6692, 4
      %v6695 = vrot.slane %v6640, 5
      %v6696 = vsel %vm1123, %v6694, %v6695
      %v6697 = vrot.slane %v6641, 5
      %v6698 = vrot.slane %v6697, 4
      %v6699 = vrot.slane %v6642, 5
      %v6700 = vsel %vm1123, %v6698, %v6699
      %v6701 = vrot.slane %v6699, 4
      %v6702 = vrot.slane %v6643, 5
      %v6703 = vsel %vm1123, %v6701, %v6702
      %v6704 = vrot.slane %v6644, 5
      %v6705 = vrot.slane %v6704, 4
      %v6706 = vrot.slane %v6645, 5
      %v6707 = vsel %vm1123, %v6705, %v6706
      %v6708 = vrot.slane %v6706, 4
      %v6709 = vrot.slane %v6646, 5
      %v6710 = vsel %vm1123, %v6708, %v6709
      %v6711 = vrot.slane %v6647, 5
      %v6712 = vrot.slane %v6711, 4
      %v6713 = vrot.slane %v6648, 5
      %v6714 = vsel %vm1123, %v6712, %v6713
      %v6715 = vrot.slane %v6713, 4
      %v6716 = vrot.slane %v6649, 5
      %v6717 = vsel %vm1123, %v6715, %v6716
      %v6718 = vrot.slane %v6650, 5
      %v6719 = vrot.slane %v6718, 4
      %v6720 = vrot.slane %v6651, 5
      %v6721 = vsel %vm1123, %v6719, %v6720
      %v6722 = vrot.slane %v6720, 4
      %v6723 = vrot.slane %v6652, 5
      %v6724 = vsel %vm1123, %v6722, %v6723
      %v6725 = vrot.slane %v6653, 5
      %v6726 = vrot.slane %v6725, 4
      %v6727 = vrot.slane %v6654, 5
      %v6728 = vsel %vm1123, %v6726, %v6727
      %v6729 = vrot.slane %v6727, 4
      %v6730 = vrot.slane %v6655, 5
      %v6731 = vsel %vm1123, %v6729, %v6730
      %v6732 = vrot.slane %v6656, 5
      %v6733 = vrot.slane %v6732, 4
      %v6734 = vrot.slane %v6657, 5
      %v6735 = vsel %vm1123, %v6733, %v6734
      %v6736 = vrot.slane %v6734, 4
      %v6737 = vrot.slane %v6658, 5
      %v6738 = vsel %vm1123, %v6736, %v6737
      %v6739 = vunpack.c.l.b16 %v6686
      %v6740 = vunpack.c.l.b16 %v6689
      %v6741 = vunpack.c.l.b16 %v6693
      %v6742 = vunpack.c.l.b16 %v6696
      %v6743 = vunpack.c.l.b16 %v6700
      %v6744 = vunpack.c.l.b16 %v6703
      %v6745 = vunpack.c.l.b16 %v6707
      %v6746 = vunpack.c.l.b16 %v6710
      %v6747 = vunpack.c.l.b16 %v6714
      %v6748 = vunpack.c.l.b16 %v6717
      %v6749 = vunpack.c.l.b16 %v6721
      %v6750 = vunpack.c.l.b16 %v6724
      %v6751 = vunpack.c.l.b16 %v6728
      %v6752 = vunpack.c.l.b16 %v6731
      %v6753 = vunpack.c.l.b16 %v6735
      %v6754 = vunpack.c.l.b16 %v6738
      %v6755 = vpack.c.b16 %v6740, %v6739
      %v6756 = vpack.c.b16 %v6742, %v6741
      %v6757 = vpack.c.b16 %v6744, %v6743
      %v6758 = vpack.c.b16 %v6746, %v6745
      %v6759 = vpack.c.b16 %v6748, %v6747
      %v6760 = vpack.c.b16 %v6750, %v6749
      %v6761 = vpack.c.b16 %v6752, %v6751
      %v6762 = vpack.c.b16 %v6754, %v6753
      %6763 = vrot.lane.b32.xlu0 %v6755, 4
      %v6764 = vpop.permute.xlu0 %6763
      %6765 = vrot.lane.b32.xlu0 %v6756, 4
      %v6766 = vpop.permute.xlu0 %6765
      %6767 = vrot.lane.b32.xlu0 %v6757, 4
      %v6768 = vpop.permute.xlu0 %6767
      %6769 = vrot.lane.b32.xlu0 %v6758, 4
      %v6770 = vpop.permute.xlu0 %6769
      %6771 = vrot.lane.b32.xlu0 %v6759, 4
      %v6772 = vpop.permute.xlu0 %6771
      %6773 = vrot.lane.b32.xlu0 %v6760, 4
      %v6774 = vpop.permute.xlu0 %6773
      %6775 = vrot.lane.b32.xlu0 %v6761, 4
      %v6776 = vpop.permute.xlu0 %6775
      %6777 = vrot.lane.b32.xlu0 %v6762, 4
      %v6778 = vpop.permute.xlu0 %6777
      %6787 = vst.msk [vmem:[#allocation2 + $0x8] sm:$0xff] %vm515, %v6764
      %6788 = vst.msk [vmem:[#allocation2 + $0x18] sm:$0xff] %vm515, %v6766
      %6789 = vst.msk [vmem:[#allocation2 + $0x28] sm:$0xff] %vm515, %v6768
      %6790 = vst.msk [vmem:[#allocation2 + $0x38] sm:$0xff] %vm515, %v6770
      %6791 = vst.msk [vmem:[#allocation2 + $0x48] sm:$0xff] %vm515, %v6772
      %6792 = vst.msk [vmem:[#allocation2 + $0x58] sm:$0xff] %vm515, %v6774
      %6793 = vst.msk [vmem:[#allocation2 + $0x68] sm:$0xff] %vm515, %v6776
      %6794 = vst.msk [vmem:[#allocation2 + $0x78] sm:$0xff] %vm515, %v6778
      %v6795 = vld [vmem:[%s5765] sm:$0xe]
      %v6796 = vld [vmem:[%s5765 + $0x4] sm:$0xf]
      %v6797 = vld [vmem:[%s5765 + $0x8] sm:$0x3]
      %v6798 = vld [vmem:[%s5765 + $0xc] sm:$0xe]
      %v6799 = vld [vmem:[%s5765 + $0x10] sm:$0xf]
      %v6800 = vld [vmem:[%s5765 + $0x14] sm:$0x3]
      %v6801 = vld [vmem:[%s5765 + $0x18] sm:$0xe]
      %v6802 = vld [vmem:[%s5765 + $0x1c] sm:$0xf]
      %v6803 = vld [vmem:[%s5765 + $0x20] sm:$0x3]
      %v6804 = vld [vmem:[%s5765 + $0x24] sm:$0xe]
      %v6805 = vld [vmem:[%s5765 + $0x28] sm:$0xf]
      %v6806 = vld [vmem:[%s5765 + $0x2c] sm:$0x3]
      %v6807 = vld [vmem:[%s5765 + $0x30] sm:$0xe]
      %v6808 = vld [vmem:[%s5765 + $0x34] sm:$0xf]
      %v6809 = vld [vmem:[%s5765 + $0x38] sm:$0x3]
      %v6810 = vld [vmem:[%s5765 + $0x3c] sm:$0xe]
      %v6811 = vld [vmem:[%s5765 + $0x40] sm:$0xf]
      %v6812 = vld [vmem:[%s5765 + $0x44] sm:$0x3]
      %v6813 = vld [vmem:[%s5765 + $0x48] sm:$0xe]
      %v6814 = vld [vmem:[%s5765 + $0x4c] sm:$0xf]
      %v6815 = vld [vmem:[%s5765 + $0x50] sm:$0x3]
      %v6816 = vld [vmem:[%s5765 + $0x54] sm:$0xe]
      %v6817 = vld [vmem:[%s5765 + $0x58] sm:$0xf]
      %v6818 = vld [vmem:[%s5765 + $0x5c] sm:$0x3]
      %v6820 = vshrl.u32 %v6795, 16
      %v6822 = vrot.slane %v6820, 5
      %v6823 = vshll.u32 %v6795, 16
      %v6825 = vrot.slane %v6823, 6
      %v6826 = vor.u32 %v6822, %v6825
      %v6827 = vrot.slane %v6826, 4
      %v6829 = vshrl.u32 %v6796, 16
      %v6831 = vrot.slane %v6829, 5
      %v6832 = vshll.u32 %v6796, 16
      %v6834 = vrot.slane %v6832, 6
      %v6835 = vor.u32 %v6831, %v6834
      %v6836 = vsel %vm1424, %v6827, %v6835
      %v6837 = vrot.slane %v6835, 4
      %v6839 = vshrl.u32 %v6797, 16
      %v6841 = vrot.slane %v6839, 5
      %v6842 = vshll.u32 %v6797, 16
      %v6844 = vrot.slane %v6842, 6
      %v6845 = vor.u32 %v6841, %v6844
      %v6846 = vsel %vm1424, %v6837, %v6845
      %v6848 = vshrl.u32 %v6798, 16
      %v6850 = vrot.slane %v6848, 5
      %v6851 = vshll.u32 %v6798, 16
      %v6853 = vrot.slane %v6851, 6
      %v6854 = vor.u32 %v6850, %v6853
      %v6855 = vrot.slane %v6854, 4
      %v6857 = vshrl.u32 %v6799, 16
      %v6859 = vrot.slane %v6857, 5
      %v6860 = vshll.u32 %v6799, 16
      %v6862 = vrot.slane %v6860, 6
      %v6863 = vor.u32 %v6859, %v6862
      %v6864 = vsel %vm1424, %v6855, %v6863
      %v6865 = vrot.slane %v6863, 4
      %v6867 = vshrl.u32 %v6800, 16
      %v6869 = vrot.slane %v6867, 5
      %v6870 = vshll.u32 %v6800, 16
      %v6872 = vrot.slane %v6870, 6
      %v6873 = vor.u32 %v6869, %v6872
      %v6874 = vsel %vm1424, %v6865, %v6873
      %v6876 = vshrl.u32 %v6801, 16
      %v6878 = vrot.slane %v6876, 5
      %v6879 = vshll.u32 %v6801, 16
      %v6881 = vrot.slane %v6879, 6
      %v6882 = vor.u32 %v6878, %v6881
      %v6883 = vrot.slane %v6882, 4
      %v6885 = vshrl.u32 %v6802, 16
      %v6887 = vrot.slane %v6885, 5
      %v6888 = vshll.u32 %v6802, 16
      %v6890 = vrot.slane %v6888, 6
      %v6891 = vor.u32 %v6887, %v6890
      %v6892 = vsel %vm1424, %v6883, %v6891
      %v6893 = vrot.slane %v6891, 4
      %v6895 = vshrl.u32 %v6803, 16
      %v6897 = vrot.slane %v6895, 5
      %v6898 = vshll.u32 %v6803, 16
      %v6900 = vrot.slane %v6898, 6
      %v6901 = vor.u32 %v6897, %v6900
      %v6902 = vsel %vm1424, %v6893, %v6901
      %v6904 = vshrl.u32 %v6804, 16
      %v6906 = vrot.slane %v6904, 5
      %v6907 = vshll.u32 %v6804, 16
      %v6909 = vrot.slane %v6907, 6
      %v6910 = vor.u32 %v6906, %v6909
      %v6911 = vrot.slane %v6910, 4
      %v6913 = vshrl.u32 %v6805, 16
      %v6915 = vrot.slane %v6913, 5
      %v6916 = vshll.u32 %v6805, 16
      %v6918 = vrot.slane %v6916, 6
      %v6919 = vor.u32 %v6915, %v6918
      %v6920 = vsel %vm1424, %v6911, %v6919
      %v6921 = vrot.slane %v6919, 4
      %v6923 = vshrl.u32 %v6806, 16
      %v6925 = vrot.slane %v6923, 5
      %v6926 = vshll.u32 %v6806, 16
      %v6928 = vrot.slane %v6926, 6
      %v6929 = vor.u32 %v6925, %v6928
      %v6930 = vsel %vm1424, %v6921, %v6929
      %v6932 = vshrl.u32 %v6807, 16
      %v6934 = vrot.slane %v6932, 5
      %v6935 = vshll.u32 %v6807, 16
      %v6937 = vrot.slane %v6935, 6
      %v6938 = vor.u32 %v6934, %v6937
      %v6939 = vrot.slane %v6938, 4
      %v6941 = vshrl.u32 %v6808, 16
      %v6943 = vrot.slane %v6941, 5
      %v6944 = vshll.u32 %v6808, 16
      %v6946 = vrot.slane %v6944, 6
      %v6947 = vor.u32 %v6943, %v6946
      %v6948 = vsel %vm1424, %v6939, %v6947
      %v6949 = vrot.slane %v6947, 4
      %v6951 = vshrl.u32 %v6809, 16
      %v6953 = vrot.slane %v6951, 5
      %v6954 = vshll.u32 %v6809, 16
      %v6956 = vrot.slane %v6954, 6
      %v6957 = vor.u32 %v6953, %v6956
      %v6958 = vsel %vm1424, %v6949, %v6957
      %v6960 = vshrl.u32 %v6810, 16
      %v6962 = vrot.slane %v6960, 5
      %v6963 = vshll.u32 %v6810, 16
      %v6965 = vrot.slane %v6963, 6
      %v6966 = vor.u32 %v6962, %v6965
      %v6967 = vrot.slane %v6966, 4
      %v6969 = vshrl.u32 %v6811, 16
      %v6971 = vrot.slane %v6969, 5
      %v6972 = vshll.u32 %v6811, 16
      %v6974 = vrot.slane %v6972, 6
      %v6975 = vor.u32 %v6971, %v6974
      %v6976 = vsel %vm1424, %v6967, %v6975
      %v6977 = vrot.slane %v6975, 4
      %v6979 = vshrl.u32 %v6812, 16
      %v6981 = vrot.slane %v6979, 5
      %v6982 = vshll.u32 %v6812, 16
      %v6984 = vrot.slane %v6982, 6
      %v6985 = vor.u32 %v6981, %v6984
      %v6986 = vsel %vm1424, %v6977, %v6985
      %v6988 = vshrl.u32 %v6813, 16
      %v6990 = vrot.slane %v6988, 5
      %v6991 = vshll.u32 %v6813, 16
      %v6993 = vrot.slane %v6991, 6
      %v6994 = vor.u32 %v6990, %v6993
      %v6995 = vrot.slane %v6994, 4
      %v6997 = vshrl.u32 %v6814, 16
      %v6999 = vrot.slane %v6997, 5
      %v7000 = vshll.u32 %v6814, 16
      %v7002 = vrot.slane %v7000, 6
      %v7003 = vor.u32 %v6999, %v7002
      %v7004 = vsel %vm1424, %v6995, %v7003
      %v7005 = vrot.slane %v7003, 4
      %v7007 = vshrl.u32 %v6815, 16
      %v7009 = vrot.slane %v7007, 5
      %v7010 = vshll.u32 %v6815, 16
      %v7012 = vrot.slane %v7010, 6
      %v7013 = vor.u32 %v7009, %v7012
      %v7014 = vsel %vm1424, %v7005, %v7013
      %v7016 = vshrl.u32 %v6816, 16
      %v7018 = vrot.slane %v7016, 5
      %v7019 = vshll.u32 %v6816, 16
      %v7021 = vrot.slane %v7019, 6
      %v7022 = vor.u32 %v7018, %v7021
      %v7023 = vrot.slane %v7022, 4
      %v7025 = vshrl.u32 %v6817, 16
      %v7027 = vrot.slane %v7025, 5
      %v7028 = vshll.u32 %v6817, 16
      %v7030 = vrot.slane %v7028, 6
      %v7031 = vor.u32 %v7027, %v7030
      %v7032 = vsel %vm1424, %v7023, %v7031
      %v7033 = vrot.slane %v7031, 4
      %v7035 = vshrl.u32 %v6818, 16
      %v7037 = vrot.slane %v7035, 5
      %v7038 = vshll.u32 %v6818, 16
      %v7040 = vrot.slane %v7038, 6
      %v7041 = vor.u32 %v7037, %v7040
      %v7042 = vsel %vm1424, %v7033, %v7041
      %v7043 = vunpack.c.l.b16 %v6836
      %v7044 = vunpack.c.l.b16 %v6846
      %v7045 = vunpack.c.l.b16 %v6864
      %v7046 = vunpack.c.l.b16 %v6874
      %v7047 = vunpack.c.l.b16 %v6892
      %v7048 = vunpack.c.l.b16 %v6902
      %v7049 = vunpack.c.l.b16 %v6920
      %v7050 = vunpack.c.l.b16 %v6930
      %v7051 = vunpack.c.l.b16 %v6948
      %v7052 = vunpack.c.l.b16 %v6958
      %v7053 = vunpack.c.l.b16 %v6976
      %v7054 = vunpack.c.l.b16 %v6986
      %v7055 = vunpack.c.l.b16 %v7004
      %v7056 = vunpack.c.l.b16 %v7014
      %v7057 = vunpack.c.l.b16 %v7032
      %v7058 = vunpack.c.l.b16 %v7042
      %v7059 = vpack.c.b16 %v7044, %v7043
      %v7060 = vpack.c.b16 %v7046, %v7045
      %v7061 = vpack.c.b16 %v7048, %v7047
      %v7062 = vpack.c.b16 %v7050, %v7049
      %v7063 = vpack.c.b16 %v7052, %v7051
      %v7064 = vpack.c.b16 %v7054, %v7053
      %v7065 = vpack.c.b16 %v7056, %v7055
      %v7066 = vpack.c.b16 %v7058, %v7057
      %7067 = vrot.lane.b32.xlu0 %v7059, 8
      %v7068 = vpop.permute.xlu0 %7067
      %7069 = vrot.lane.b32.xlu0 %v7060, 8
      %v7070 = vpop.permute.xlu0 %7069
      %7071 = vrot.lane.b32.xlu0 %v7061, 8
      %v7072 = vpop.permute.xlu0 %7071
      %7073 = vrot.lane.b32.xlu0 %v7062, 8
      %v7074 = vpop.permute.xlu0 %7073
      %7075 = vrot.lane.b32.xlu0 %v7063, 8
      %v7076 = vpop.permute.xlu0 %7075
      %7077 = vrot.lane.b32.xlu0 %v7064, 8
      %v7078 = vpop.permute.xlu0 %7077
      %7079 = vrot.lane.b32.xlu0 %v7065, 8
      %v7080 = vpop.permute.xlu0 %7079
      %7081 = vrot.lane.b32.xlu0 %v7066, 8
      %v7082 = vpop.permute.xlu0 %7081
      %7091 = vst.msk [vmem:[#allocation2 + $0x8] sm:$0xff] %vm791, %v7068
      %7092 = vst.msk [vmem:[#allocation2 + $0x18] sm:$0xff] %vm791, %v7070
      %7093 = vst.msk [vmem:[#allocation2 + $0x28] sm:$0xff] %vm791, %v7072
      %7094 = vst.msk [vmem:[#allocation2 + $0x38] sm:$0xff] %vm791, %v7074
      %7095 = vst.msk [vmem:[#allocation2 + $0x48] sm:$0xff] %vm791, %v7076
      %7096 = vst.msk [vmem:[#allocation2 + $0x58] sm:$0xff] %vm791, %v7078
      %7097 = vst.msk [vmem:[#allocation2 + $0x68] sm:$0xff] %vm791, %v7080
      %7098 = vst.msk [vmem:[#allocation2 + $0x78] sm:$0xff] %vm791, %v7082
      %s7099 = scalar_lea.vmem %s354, 288
      %v7100 = vld [vmem:[%s7099] sm:$0xf]
      %v7101 = vld [vmem:[%s7099 + $0x4] sm:$0xf]
      %v7102 = vld [vmem:[%s7099 + $0xc] sm:$0xf]
      %v7103 = vld [vmem:[%s7099 + $0x10] sm:$0xf]
      %v7104 = vld [vmem:[%s7099 + $0x18] sm:$0xf]
      %v7105 = vld [vmem:[%s7099 + $0x1c] sm:$0xf]
      %v7106 = vld [vmem:[%s7099 + $0x24] sm:$0xf]
      %v7107 = vld [vmem:[%s7099 + $0x28] sm:$0xf]
      %v7108 = vld [vmem:[%s7099 + $0x30] sm:$0xf]
      %v7109 = vld [vmem:[%s7099 + $0x34] sm:$0xf]
      %v7110 = vld [vmem:[%s7099 + $0x3c] sm:$0xf]
      %v7111 = vld [vmem:[%s7099 + $0x40] sm:$0xf]
      %v7112 = vld [vmem:[%s7099 + $0x48] sm:$0xf]
      %v7113 = vld [vmem:[%s7099 + $0x4c] sm:$0xf]
      %v7114 = vld [vmem:[%s7099 + $0x54] sm:$0xf]
      %v7115 = vld [vmem:[%s7099 + $0x58] sm:$0xf]
      %v7132 = vunpack.c.l.b16 %v7100
      %v7133 = vunpack.c.l.b16 %v7101
      %v7134 = vunpack.c.l.b16 %v7102
      %v7135 = vunpack.c.l.b16 %v7103
      %v7136 = vunpack.c.l.b16 %v7104
      %v7137 = vunpack.c.l.b16 %v7105
      %v7138 = vunpack.c.l.b16 %v7106
      %v7139 = vunpack.c.l.b16 %v7107
      %v7140 = vunpack.c.l.b16 %v7108
      %v7141 = vunpack.c.l.b16 %v7109
      %v7142 = vunpack.c.l.b16 %v7110
      %v7143 = vunpack.c.l.b16 %v7111
      %v7144 = vunpack.c.l.b16 %v7112
      %v7145 = vunpack.c.l.b16 %v7113
      %v7146 = vunpack.c.l.b16 %v7114
      %v7147 = vunpack.c.l.b16 %v7115
      %v7148 = vpack.c.b16 %v7133, %v7132
      %v7149 = vpack.c.b16 %v7135, %v7134
      %v7150 = vpack.c.b16 %v7137, %v7136
      %v7151 = vpack.c.b16 %v7139, %v7138
      %v7152 = vpack.c.b16 %v7141, %v7140
      %v7153 = vpack.c.b16 %v7143, %v7142
      %v7154 = vpack.c.b16 %v7145, %v7144
      %v7155 = vpack.c.b16 %v7147, %v7146
      %7156 = vrot.lane.b32.xlu0 %v7148, 12
      %v7157 = vpop.permute.xlu0 %7156
      %7158 = vrot.lane.b32.xlu0 %v7149, 12
      %v7159 = vpop.permute.xlu0 %7158
      %7160 = vrot.lane.b32.xlu0 %v7150, 12
      %v7161 = vpop.permute.xlu0 %7160
      %7162 = vrot.lane.b32.xlu0 %v7151, 12
      %v7163 = vpop.permute.xlu0 %7162
      %7164 = vrot.lane.b32.xlu0 %v7152, 12
      %v7165 = vpop.permute.xlu0 %7164
      %7166 = vrot.lane.b32.xlu0 %v7153, 12
      %v7167 = vpop.permute.xlu0 %7166
      %7168 = vrot.lane.b32.xlu0 %v7154, 12
      %v7169 = vpop.permute.xlu0 %7168
      %7170 = vrot.lane.b32.xlu0 %v7155, 12
      %v7171 = vpop.permute.xlu0 %7170
      %7180 = vst.msk [vmem:[#allocation2 + $0x8] sm:$0xff] %vm1064, %v7157
      %7181 = vst.msk [vmem:[#allocation2 + $0x18] sm:$0xff] %vm1064, %v7159
      %7182 = vst.msk [vmem:[#allocation2 + $0x28] sm:$0xff] %vm1064, %v7161
      %7183 = vst.msk [vmem:[#allocation2 + $0x38] sm:$0xff] %vm1064, %v7163
      %7184 = vst.msk [vmem:[#allocation2 + $0x48] sm:$0xff] %vm1064, %v7165
      %7185 = vst.msk [vmem:[#allocation2 + $0x58] sm:$0xff] %vm1064, %v7167
      %7186 = vst.msk [vmem:[#allocation2 + $0x68] sm:$0xff] %vm1064, %v7169
      %7187 = vst.msk [vmem:[#allocation2 + $0x78] sm:$0xff] %vm1064, %v7171
      %s7188 = scalar_lea.vmem %s354, 420
      %v7189 = vld [vmem:[%s7188] sm:$0xf]
      %v7190 = vld [vmem:[%s7188 + $0x4] sm:$0xf]
      %v7191 = vld [vmem:[%s7188 + $0xc] sm:$0xf]
      %v7192 = vld [vmem:[%s7188 + $0x10] sm:$0xf]
      %v7193 = vld [vmem:[%s7188 + $0x18] sm:$0xf]
      %v7194 = vld [vmem:[%s7188 + $0x1c] sm:$0xf]
      %v7195 = vld [vmem:[%s7188 + $0x24] sm:$0xf]
      %v7196 = vld [vmem:[%s7188 + $0x28] sm:$0xf]
      %v7197 = vld [vmem:[%s7188 + $0x30] sm:$0xf]
      %v7198 = vld [vmem:[%s7188 + $0x34] sm:$0xf]
      %v7199 = vld [vmem:[%s7188 + $0x3c] sm:$0xf]
      %v7200 = vld [vmem:[%s7188 + $0x40] sm:$0xf]
      %v7201 = vld [vmem:[%s7188 + $0x48] sm:$0xf]
      %v7202 = vld [vmem:[%s7188 + $0x4c] sm:$0xf]
      %v7203 = vld [vmem:[%s7188 + $0x54] sm:$0xf]
      %v7204 = vld [vmem:[%s7188 + $0x58] sm:$0xf]
      %v7221 = vunpack.c.l.b16 %v7189
      %v7222 = vunpack.c.l.b16 %v7190
      %v7223 = vunpack.c.l.b16 %v7191
      %v7224 = vunpack.c.l.b16 %v7192
      %v7225 = vunpack.c.l.b16 %v7193
      %v7226 = vunpack.c.l.b16 %v7194
      %v7227 = vunpack.c.l.b16 %v7195
      %v7228 = vunpack.c.l.b16 %v7196
      %v7229 = vunpack.c.l.b16 %v7197
      %v7230 = vunpack.c.l.b16 %v7198
      %v7231 = vunpack.c.l.b16 %v7199
      %v7232 = vunpack.c.l.b16 %v7200
      %v7233 = vunpack.c.l.b16 %v7201
      %v7234 = vunpack.c.l.b16 %v7202
      %v7235 = vunpack.c.l.b16 %v7203
      %v7236 = vunpack.c.l.b16 %v7204
      %v7237 = vpack.c.b16 %v7222, %v7221
      %v7238 = vpack.c.b16 %v7224, %v7223
      %v7239 = vpack.c.b16 %v7226, %v7225
      %v7240 = vpack.c.b16 %v7228, %v7227
      %v7241 = vpack.c.b16 %v7230, %v7229
      %v7242 = vpack.c.b16 %v7232, %v7231
      %v7243 = vpack.c.b16 %v7234, %v7233
      %v7244 = vpack.c.b16 %v7236, %v7235
      %7245 = vrot.lane.b32.xlu0 %v7237, 16
      %v7246 = vpop.permute.xlu0 %7245
      %7247 = vrot.lane.b32.xlu0 %v7238, 16
      %v7248 = vpop.permute.xlu0 %7247
      %7249 = vrot.lane.b32.xlu0 %v7239, 16
      %v7250 = vpop.permute.xlu0 %7249
      %7251 = vrot.lane.b32.xlu0 %v7240, 16
      %v7252 = vpop.permute.xlu0 %7251
      %7253 = vrot.lane.b32.xlu0 %v7241, 16
      %v7254 = vpop.permute.xlu0 %7253
      %7255 = vrot.lane.b32.xlu0 %v7242, 16
      %v7256 = vpop.permute.xlu0 %7255
      %7257 = vrot.lane.b32.xlu0 %v7243, 16
      %v7258 = vpop.permute.xlu0 %7257
      %7259 = vrot.lane.b32.xlu0 %v7244, 16
      %v7260 = vpop.permute.xlu0 %7259
      %7269 = vst.msk [vmem:[#allocation2 + $0x8] sm:$0xff] %vm1228, %v7246
      %7270 = vst.msk [vmem:[#allocation2 + $0x18] sm:$0xff] %vm1228, %v7248
      %7271 = vst.msk [vmem:[#allocation2 + $0x28] sm:$0xff] %vm1228, %v7250
      %7272 = vst.msk [vmem:[#allocation2 + $0x38] sm:$0xff] %vm1228, %v7252
      %7273 = vst.msk [vmem:[#allocation2 + $0x48] sm:$0xff] %vm1228, %v7254
      %7274 = vst.msk [vmem:[#allocation2 + $0x58] sm:$0xff] %vm1228, %v7256
      %7275 = vst.msk [vmem:[#allocation2 + $0x68] sm:$0xff] %vm1228, %v7258
      %7276 = vst.msk [vmem:[#allocation2 + $0x78] sm:$0xff] %vm1228, %v7260
      %v7277 = vld [vmem:[%s7099] sm:$0xf]
      %v7278 = vld [vmem:[%s7099 + $0x4] sm:$0xf]
      %v7279 = vld [vmem:[%s7099 + $0x8] sm:$0x1]
      %v7280 = vld [vmem:[%s7099 + $0xc] sm:$0xf]
      %v7281 = vld [vmem:[%s7099 + $0x10] sm:$0xf]
      %v7282 = vld [vmem:[%s7099 + $0x14] sm:$0x1]
      %v7283 = vld [vmem:[%s7099 + $0x18] sm:$0xf]
      %v7284 = vld [vmem:[%s7099 + $0x1c] sm:$0xf]
      %v7285 = vld [vmem:[%s7099 + $0x20] sm:$0x1]
      %v7286 = vld [vmem:[%s7099 + $0x24] sm:$0xf]
      %v7287 = vld [vmem:[%s7099 + $0x28] sm:$0xf]
      %v7288 = vld [vmem:[%s7099 + $0x2c] sm:$0x1]
      %v7289 = vld [vmem:[%s7099 + $0x30] sm:$0xf]
      %v7290 = vld [vmem:[%s7099 + $0x34] sm:$0xf]
      %v7291 = vld [vmem:[%s7099 + $0x38] sm:$0x1]
      %v7292 = vld [vmem:[%s7099 + $0x3c] sm:$0xf]
      %v7293 = vld [vmem:[%s7099 + $0x40] sm:$0xf]
      %v7294 = vld [vmem:[%s7099 + $0x44] sm:$0x1]
      %v7295 = vld [vmem:[%s7099 + $0x48] sm:$0xf]
      %v7296 = vld [vmem:[%s7099 + $0x4c] sm:$0xf]
      %v7297 = vld [vmem:[%s7099 + $0x50] sm:$0x1]
      %v7298 = vld [vmem:[%s7099 + $0x54] sm:$0xf]
      %v7299 = vld [vmem:[%s7099 + $0x58] sm:$0xf]
      %v7300 = vld [vmem:[%s7099 + $0x5c] sm:$0x1]
      %v7302 = vshrl.u32 %v7277, 16
      %v7304 = vrot.slane %v7302, 4
      %v7305 = vshll.u32 %v7277, 16
      %v7307 = vrot.slane %v7305, 5
      %v7308 = vor.u32 %v7304, %v7307
      %v7309 = vrot.slane %v7308, 4
      %v7311 = vshll.u32 %v7278, 16
      %v7313 = vrot.slane %v7311, 5
      %v7314 = vsel %vm550, %v7309, %v7313
      %v7315 = vshrl.u32 %v7278, 16
      %v7317 = vrot.slane %v7315, 4
      %v7318 = vor.u32 %v7317, %v7313
      %v7319 = vrot.slane %v7318, 4
      %v7321 = vshll.u32 %v7279, 16
      %v7323 = vrot.slane %v7321, 5
      %v7324 = vsel %vm550, %v7319, %v7323
      %v7326 = vshrl.u32 %v7280, 16
      %v7328 = vrot.slane %v7326, 4
      %v7329 = vshll.u32 %v7280, 16
      %v7331 = vrot.slane %v7329, 5
      %v7332 = vor.u32 %v7328, %v7331
      %v7333 = vrot.slane %v7332, 4
      %v7335 = vshll.u32 %v7281, 16
      %v7337 = vrot.slane %v7335, 5
      %v7338 = vsel %vm550, %v7333, %v7337
      %v7339 = vshrl.u32 %v7281, 16
      %v7341 = vrot.slane %v7339, 4
      %v7342 = vor.u32 %v7341, %v7337
      %v7343 = vrot.slane %v7342, 4
      %v7345 = vshll.u32 %v7282, 16
      %v7347 = vrot.slane %v7345, 5
      %v7348 = vsel %vm550, %v7343, %v7347
      %v7350 = vshrl.u32 %v7283, 16
      %v7352 = vrot.slane %v7350, 4
      %v7353 = vshll.u32 %v7283, 16
      %v7355 = vrot.slane %v7353, 5
      %v7356 = vor.u32 %v7352, %v7355
      %v7357 = vrot.slane %v7356, 4
      %v7359 = vshll.u32 %v7284, 16
      %v7361 = vrot.slane %v7359, 5
      %v7362 = vsel %vm550, %v7357, %v7361
      %v7363 = vshrl.u32 %v7284, 16
      %v7365 = vrot.slane %v7363, 4
      %v7366 = vor.u32 %v7365, %v7361
      %v7367 = vrot.slane %v7366, 4
      %v7369 = vshll.u32 %v7285, 16
      %v7371 = vrot.slane %v7369, 5
      %v7372 = vsel %vm550, %v7367, %v7371
      %v7374 = vshrl.u32 %v7286, 16
      %v7376 = vrot.slane %v7374, 4
      %v7377 = vshll.u32 %v7286, 16
      %v7379 = vrot.slane %v7377, 5
      %v7380 = vor.u32 %v7376, %v7379
      %v7381 = vrot.slane %v7380, 4
      %v7383 = vshll.u32 %v7287, 16
      %v7385 = vrot.slane %v7383, 5
      %v7386 = vsel %vm550, %v7381, %v7385
      %v7387 = vshrl.u32 %v7287, 16
      %v7389 = vrot.slane %v7387, 4
      %v7390 = vor.u32 %v7389, %v7385
      %v7391 = vrot.slane %v7390, 4
      %v7393 = vshll.u32 %v7288, 16
      %v7395 = vrot.slane %v7393, 5
      %v7396 = vsel %vm550, %v7391, %v7395
      %v7398 = vshrl.u32 %v7289, 16
      %v7400 = vrot.slane %v7398, 4
      %v7401 = vshll.u32 %v7289, 16
      %v7403 = vrot.slane %v7401, 5
      %v7404 = vor.u32 %v7400, %v7403
      %v7405 = vrot.slane %v7404, 4
      %v7407 = vshll.u32 %v7290, 16
      %v7409 = vrot.slane %v7407, 5
      %v7410 = vsel %vm550, %v7405, %v7409
      %v7411 = vshrl.u32 %v7290, 16
      %v7413 = vrot.slane %v7411, 4
      %v7414 = vor.u32 %v7413, %v7409
      %v7415 = vrot.slane %v7414, 4
      %v7417 = vshll.u32 %v7291, 16
      %v7419 = vrot.slane %v7417, 5
      %v7420 = vsel %vm550, %v7415, %v7419
      %v7422 = vshrl.u32 %v7292, 16
      %v7424 = vrot.slane %v7422, 4
      %v7425 = vshll.u32 %v7292, 16
      %v7427 = vrot.slane %v7425, 5
      %v7428 = vor.u32 %v7424, %v7427
      %v7429 = vrot.slane %v7428, 4
      %v7431 = vshll.u32 %v7293, 16
      %v7433 = vrot.slane %v7431, 5
      %v7434 = vsel %vm550, %v7429, %v7433
      %v7435 = vshrl.u32 %v7293, 16
      %v7437 = vrot.slane %v7435, 4
      %v7438 = vor.u32 %v7437, %v7433
      %v7439 = vrot.slane %v7438, 4
      %v7441 = vshll.u32 %v7294, 16
      %v7443 = vrot.slane %v7441, 5
      %v7444 = vsel %vm550, %v7439, %v7443
      %v7446 = vshrl.u32 %v7295, 16
      %v7448 = vrot.slane %v7446, 4
      %v7449 = vshll.u32 %v7295, 16
      %v7451 = vrot.slane %v7449, 5
      %v7452 = vor.u32 %v7448, %v7451
      %v7453 = vrot.slane %v7452, 4
      %v7455 = vshll.u32 %v7296, 16
      %v7457 = vrot.slane %v7455, 5
      %v7458 = vsel %vm550, %v7453, %v7457
      %v7459 = vshrl.u32 %v7296, 16
      %v7461 = vrot.slane %v7459, 4
      %v7462 = vor.u32 %v7461, %v7457
      %v7463 = vrot.slane %v7462, 4
      %v7465 = vshll.u32 %v7297, 16
      %v7467 = vrot.slane %v7465, 5
      %v7468 = vsel %vm550, %v7463, %v7467
      %v7470 = vshrl.u32 %v7298, 16
      %v7472 = vrot.slane %v7470, 4
      %v7473 = vshll.u32 %v7298, 16
      %v7475 = vrot.slane %v7473, 5
      %v7476 = vor.u32 %v7472, %v7475
      %v7477 = vrot.slane %v7476, 4
      %v7479 = vshll.u32 %v7299, 16
      %v7481 = vrot.slane %v7479, 5
      %v7482 = vsel %vm550, %v7477, %v7481
      %v7483 = vshrl.u32 %v7299, 16
      %v7485 = vrot.slane %v7483, 4
      %v7486 = vor.u32 %v7485, %v7481
      %v7487 = vrot.slane %v7486, 4
      %v7489 = vshll.u32 %v7300, 16
      %v7491 = vrot.slane %v7489, 5
      %v7492 = vsel %vm550, %v7487, %v7491
      %v7493 = vunpack.c.l.b16 %v7314
      %v7494 = vunpack.c.l.b16 %v7324
      %v7495 = vunpack.c.l.b16 %v7338
      %v7496 = vunpack.c.l.b16 %v7348
      %v7497 = vunpack.c.l.b16 %v7362
      %v7498 = vunpack.c.l.b16 %v7372
      %v7499 = vunpack.c.l.b16 %v7386
      %v7500 = vunpack.c.l.b16 %v7396
      %v7501 = vunpack.c.l.b16 %v7410
      %v7502 = vunpack.c.l.b16 %v7420
      %v7503 = vunpack.c.l.b16 %v7434
      %v7504 = vunpack.c.l.b16 %v7444
      %v7505 = vunpack.c.l.b16 %v7458
      %v7506 = vunpack.c.l.b16 %v7468
      %v7507 = vunpack.c.l.b16 %v7482
      %v7508 = vunpack.c.l.b16 %v7492
      %v7509 = vpack.c.b16 %v7494, %v7493
      %v7510 = vpack.c.b16 %v7496, %v7495
      %v7511 = vpack.c.b16 %v7498, %v7497
      %v7512 = vpack.c.b16 %v7500, %v7499
      %v7513 = vpack.c.b16 %v7502, %v7501
      %v7514 = vpack.c.b16 %v7504, %v7503
      %v7515 = vpack.c.b16 %v7506, %v7505
      %v7516 = vpack.c.b16 %v7508, %v7507
      %7517 = vrot.lane.b32.xlu0 %v7509, 20
      %v7518 = vpop.permute.xlu0 %7517
      %7519 = vrot.lane.b32.xlu0 %v7510, 20
      %v7520 = vpop.permute.xlu0 %7519
      %7521 = vrot.lane.b32.xlu0 %v7511, 20
      %v7522 = vpop.permute.xlu0 %7521
      %7523 = vrot.lane.b32.xlu0 %v7512, 20
      %v7524 = vpop.permute.xlu0 %7523
      %7525 = vrot.lane.b32.xlu0 %v7513, 20
      %v7526 = vpop.permute.xlu0 %7525
      %7527 = vrot.lane.b32.xlu0 %v7514, 20
      %v7528 = vpop.permute.xlu0 %7527
      %7529 = vrot.lane.b32.xlu0 %v7515, 20
      %v7530 = vpop.permute.xlu0 %7529
      %7531 = vrot.lane.b32.xlu0 %v7516, 20
      %v7532 = vpop.permute.xlu0 %7531
      %7541 = vst.msk [vmem:[#allocation2 + $0x8] sm:$0xff] %vm1389, %v7518
      %7542 = vst.msk [vmem:[#allocation2 + $0x18] sm:$0xff] %vm1389, %v7520
      %7543 = vst.msk [vmem:[#allocation2 + $0x28] sm:$0xff] %vm1389, %v7522
      %7544 = vst.msk [vmem:[#allocation2 + $0x38] sm:$0xff] %vm1389, %v7524
      %7545 = vst.msk [vmem:[#allocation2 + $0x48] sm:$0xff] %vm1389, %v7526
      %7546 = vst.msk [vmem:[#allocation2 + $0x58] sm:$0xff] %vm1389, %v7528
      %7547 = vst.msk [vmem:[#allocation2 + $0x68] sm:$0xff] %vm1389, %v7530
      %7548 = vst.msk [vmem:[#allocation2 + $0x78] sm:$0xff] %vm1389, %v7532
      %v7549 = vld [vmem:[%s7188] sm:$0xf]
      %v7550 = vld [vmem:[%s7188 + $0x4] sm:$0xf]
      %v7551 = vld [vmem:[%s7188 + $0x8] sm:$0x1]
      %v7552 = vld [vmem:[%s7188 + $0xc] sm:$0xf]
      %v7553 = vld [vmem:[%s7188 + $0x10] sm:$0xf]
      %v7554 = vld [vmem:[%s7188 + $0x14] sm:$0x1]
      %v7555 = vld [vmem:[%s7188 + $0x18] sm:$0xf]
      %v7556 = vld [vmem:[%s7188 + $0x1c] sm:$0xf]
      %v7557 = vld [vmem:[%s7188 + $0x20] sm:$0x1]
      %v7558 = vld [vmem:[%s7188 + $0x24] sm:$0xf]
      %v7559 = vld [vmem:[%s7188 + $0x28] sm:$0xf]
      %v7560 = vld [vmem:[%s7188 + $0x2c] sm:$0x1]
      %v7561 = vld [vmem:[%s7188 + $0x30] sm:$0xf]
      %v7562 = vld [vmem:[%s7188 + $0x34] sm:$0xf]
      %v7563 = vld [vmem:[%s7188 + $0x38] sm:$0x1]
      %v7564 = vld [vmem:[%s7188 + $0x3c] sm:$0xf]
      %v7565 = vld [vmem:[%s7188 + $0x40] sm:$0xf]
      %v7566 = vld [vmem:[%s7188 + $0x44] sm:$0x1]
      %v7567 = vld [vmem:[%s7188 + $0x48] sm:$0xf]
      %v7568 = vld [vmem:[%s7188 + $0x4c] sm:$0xf]
      %v7569 = vld [vmem:[%s7188 + $0x50] sm:$0x1]
      %v7570 = vld [vmem:[%s7188 + $0x54] sm:$0xf]
      %v7571 = vld [vmem:[%s7188 + $0x58] sm:$0xf]
      %v7572 = vld [vmem:[%s7188 + $0x5c] sm:$0x1]
      %v7574 = vshrl.u32 %v7549, 16
      %v7576 = vrot.slane %v7574, 4
      %v7577 = vshll.u32 %v7549, 16
      %v7579 = vrot.slane %v7577, 5
      %v7580 = vor.u32 %v7576, %v7579
      %v7581 = vrot.slane %v7580, 4
      %v7583 = vshll.u32 %v7550, 16
      %v7585 = vrot.slane %v7583, 5
      %v7586 = vsel %vm550, %v7581, %v7585
      %v7587 = vshrl.u32 %v7550, 16
      %v7589 = vrot.slane %v7587, 4
      %v7590 = vor.u32 %v7589, %v7585
      %v7591 = vrot.slane %v7590, 4
      %v7593 = vshll.u32 %v7551, 16
      %v7595 = vrot.slane %v7593, 5
      %v7596 = vsel %vm550, %v7591, %v7595
      %v7598 = vshrl.u32 %v7552, 16
      %v7600 = vrot.slane %v7598, 4
      %v7601 = vshll.u32 %v7552, 16
      %v7603 = vrot.slane %v7601, 5
      %v7604 = vor.u32 %v7600, %v7603
      %v7605 = vrot.slane %v7604, 4
      %v7607 = vshll.u32 %v7553, 16
      %v7609 = vrot.slane %v7607, 5
      %v7610 = vsel %vm550, %v7605, %v7609
      %v7611 = vshrl.u32 %v7553, 16
      %v7613 = vrot.slane %v7611, 4
      %v7614 = vor.u32 %v7613, %v7609
      %v7615 = vrot.slane %v7614, 4
      %v7617 = vshll.u32 %v7554, 16
      %v7619 = vrot.slane %v7617, 5
      %v7620 = vsel %vm550, %v7615, %v7619
      %v7622 = vshrl.u32 %v7555, 16
      %v7624 = vrot.slane %v7622, 4
      %v7625 = vshll.u32 %v7555, 16
      %v7627 = vrot.slane %v7625, 5
      %v7628 = vor.u32 %v7624, %v7627
      %v7629 = vrot.slane %v7628, 4
      %v7631 = vshll.u32 %v7556, 16
      %v7633 = vrot.slane %v7631, 5
      %v7634 = vsel %vm550, %v7629, %v7633
      %v7635 = vshrl.u32 %v7556, 16
      %v7637 = vrot.slane %v7635, 4
      %v7638 = vor.u32 %v7637, %v7633
      %v7639 = vrot.slane %v7638, 4
      %v7641 = vshll.u32 %v7557, 16
      %v7643 = vrot.slane %v7641, 5
      %v7644 = vsel %vm550, %v7639, %v7643
      %v7646 = vshrl.u32 %v7558, 16
      %v7648 = vrot.slane %v7646, 4
      %v7649 = vshll.u32 %v7558, 16
      %v7651 = vrot.slane %v7649, 5
      %v7652 = vor.u32 %v7648, %v7651
      %v7653 = vrot.slane %v7652, 4
      %v7655 = vshll.u32 %v7559, 16
      %v7657 = vrot.slane %v7655, 5
      %v7658 = vsel %vm550, %v7653, %v7657
      %v7659 = vshrl.u32 %v7559, 16
      %v7661 = vrot.slane %v7659, 4
      %v7662 = vor.u32 %v7661, %v7657
      %v7663 = vrot.slane %v7662, 4
      %v7665 = vshll.u32 %v7560, 16
      %v7667 = vrot.slane %v7665, 5
      %v7668 = vsel %vm550, %v7663, %v7667
      %v7670 = vshrl.u32 %v7561, 16
      %v7672 = vrot.slane %v7670, 4
      %v7673 = vshll.u32 %v7561, 16
      %v7675 = vrot.slane %v7673, 5
      %v7676 = vor.u32 %v7672, %v7675
      %v7677 = vrot.slane %v7676, 4
      %v7679 = vshll.u32 %v7562, 16
      %v7681 = vrot.slane %v7679, 5
      %v7682 = vsel %vm550, %v7677, %v7681
      %v7683 = vshrl.u32 %v7562, 16
      %v7685 = vrot.slane %v7683, 4
      %v7686 = vor.u32 %v7685, %v7681
      %v7687 = vrot.slane %v7686, 4
      %v7689 = vshll.u32 %v7563, 16
      %v7691 = vrot.slane %v7689, 5
      %v7692 = vsel %vm550, %v7687, %v7691
      %v7694 = vshrl.u32 %v7564, 16
      %v7696 = vrot.slane %v7694, 4
      %v7697 = vshll.u32 %v7564, 16
      %v7699 = vrot.slane %v7697, 5
      %v7700 = vor.u32 %v7696, %v7699
      %v7701 = vrot.slane %v7700, 4
      %v7703 = vshll.u32 %v7565, 16
      %v7705 = vrot.slane %v7703, 5
      %v7706 = vsel %vm550, %v7701, %v7705
      %v7707 = vshrl.u32 %v7565, 16
      %v7709 = vrot.slane %v7707, 4
      %v7710 = vor.u32 %v7709, %v7705
      %v7711 = vrot.slane %v7710, 4
      %v7713 = vshll.u32 %v7566, 16
      %v7715 = vrot.slane %v7713, 5
      %v7716 = vsel %vm550, %v7711, %v7715
      %v7718 = vshrl.u32 %v7567, 16
      %v7720 = vrot.slane %v7718, 4
      %v7721 = vshll.u32 %v7567, 16
      %v7723 = vrot.slane %v7721, 5
      %v7724 = vor.u32 %v7720, %v7723
      %v7725 = vrot.slane %v7724, 4
      %v7727 = vshll.u32 %v7568, 16
      %v7729 = vrot.slane %v7727, 5
      %v7730 = vsel %vm550, %v7725, %v7729
      %v7731 = vshrl.u32 %v7568, 16
      %v7733 = vrot.slane %v7731, 4
      %v7734 = vor.u32 %v7733, %v7729
      %v7735 = vrot.slane %v7734, 4
      %v7737 = vshll.u32 %v7569, 16
      %v7739 = vrot.slane %v7737, 5
      %v7740 = vsel %vm550, %v7735, %v7739
      %v7742 = vshrl.u32 %v7570, 16
      %v7744 = vrot.slane %v7742, 4
      %v7745 = vshll.u32 %v7570, 16
      %v7747 = vrot.slane %v7745, 5
      %v7748 = vor.u32 %v7744, %v7747
      %v7749 = vrot.slane %v7748, 4
      %v7751 = vshll.u32 %v7571, 16
      %v7753 = vrot.slane %v7751, 5
      %v7754 = vsel %vm550, %v7749, %v7753
      %v7755 = vshrl.u32 %v7571, 16
      %v7757 = vrot.slane %v7755, 4
      %v7758 = vor.u32 %v7757, %v7753
      %v7759 = vrot.slane %v7758, 4
      %v7761 = vshll.u32 %v7572, 16
      %v7763 = vrot.slane %v7761, 5
      %v7764 = vsel %vm550, %v7759, %v7763
      %v7765 = vunpack.c.l.b16 %v7586
      %v7766 = vunpack.c.l.b16 %v7596
      %v7767 = vunpack.c.l.b16 %v7610
      %v7768 = vunpack.c.l.b16 %v7620
      %v7769 = vunpack.c.l.b16 %v7634
      %v7770 = vunpack.c.l.b16 %v7644
      %v7771 = vunpack.c.l.b16 %v7658
      %v7772 = vunpack.c.l.b16 %v7668
      %v7773 = vunpack.c.l.b16 %v7682
      %v7774 = vunpack.c.l.b16 %v7692
      %v7775 = vunpack.c.l.b16 %v7706
      %v7776 = vunpack.c.l.b16 %v7716
      %v7777 = vunpack.c.l.b16 %v7730
      %v7778 = vunpack.c.l.b16 %v7740
      %v7779 = vunpack.c.l.b16 %v7754
      %v7780 = vunpack.c.l.b16 %v7764
      %v7781 = vpack.c.b16 %v7766, %v7765
      %v7782 = vpack.c.b16 %v7768, %v7767
      %v7783 = vpack.c.b16 %v7770, %v7769
      %v7784 = vpack.c.b16 %v7772, %v7771
      %v7785 = vpack.c.b16 %v7774, %v7773
      %v7786 = vpack.c.b16 %v7776, %v7775
      %v7787 = vpack.c.b16 %v7778, %v7777
      %v7788 = vpack.c.b16 %v7780, %v7779
      %7789 = vrot.lane.b32.xlu0 %v7781, 24
      %v7790 = vpop.permute.xlu0 %7789
      %7791 = vrot.lane.b32.xlu0 %v7782, 24
      %v7792 = vpop.permute.xlu0 %7791
      %7793 = vrot.lane.b32.xlu0 %v7783, 24
      %v7794 = vpop.permute.xlu0 %7793
      %7795 = vrot.lane.b32.xlu0 %v7784, 24
      %v7796 = vpop.permute.xlu0 %7795
      %7797 = vrot.lane.b32.xlu0 %v7785, 24
      %v7798 = vpop.permute.xlu0 %7797
      %7799 = vrot.lane.b32.xlu0 %v7786, 24
      %v7800 = vpop.permute.xlu0 %7799
      %7801 = vrot.lane.b32.xlu0 %v7787, 24
      %v7802 = vpop.permute.xlu0 %7801
      %7803 = vrot.lane.b32.xlu0 %v7788, 24
      %v7804 = vpop.permute.xlu0 %7803
      %7813 = vst.msk [vmem:[#allocation2 + $0x8] sm:$0xff] %vm1697, %v7790
      %7814 = vst.msk [vmem:[#allocation2 + $0x18] sm:$0xff] %vm1697, %v7792
      %7815 = vst.msk [vmem:[#allocation2 + $0x28] sm:$0xff] %vm1697, %v7794
      %7816 = vst.msk [vmem:[#allocation2 + $0x38] sm:$0xff] %vm1697, %v7796
      %7817 = vst.msk [vmem:[#allocation2 + $0x48] sm:$0xff] %vm1697, %v7798
      %7818 = vst.msk [vmem:[#allocation2 + $0x58] sm:$0xff] %vm1697, %v7800
      %7819 = vst.msk [vmem:[#allocation2 + $0x68] sm:$0xff] %vm1697, %v7802
      %7820 = vst.msk [vmem:[#allocation2 + $0x78] sm:$0xff] %vm1697, %v7804
      %v7821 = vld [vmem:[%s7099] sm:$0xe]
      %v7822 = vld [vmem:[%s7099 + $0x4] sm:$0xf]
      %v7823 = vld [vmem:[%s7099 + $0x8] sm:$0x1]
      %v7824 = vld [vmem:[%s7099 + $0xc] sm:$0xe]
      %v7825 = vld [vmem:[%s7099 + $0x10] sm:$0xf]
      %v7826 = vld [vmem:[%s7099 + $0x14] sm:$0x1]
      %v7827 = vld [vmem:[%s7099 + $0x18] sm:$0xe]
      %v7828 = vld [vmem:[%s7099 + $0x1c] sm:$0xf]
      %v7829 = vld [vmem:[%s7099 + $0x20] sm:$0x1]
      %v7830 = vld [vmem:[%s7099 + $0x24] sm:$0xe]
      %v7831 = vld [vmem:[%s7099 + $0x28] sm:$0xf]
      %v7832 = vld [vmem:[%s7099 + $0x2c] sm:$0x1]
      %v7833 = vld [vmem:[%s7099 + $0x30] sm:$0xe]
      %v7834 = vld [vmem:[%s7099 + $0x34] sm:$0xf]
      %v7835 = vld [vmem:[%s7099 + $0x38] sm:$0x1]
      %v7836 = vld [vmem:[%s7099 + $0x3c] sm:$0xe]
      %v7837 = vld [vmem:[%s7099 + $0x40] sm:$0xf]
      %v7838 = vld [vmem:[%s7099 + $0x44] sm:$0x1]
      %v7839 = vld [vmem:[%s7099 + $0x48] sm:$0xe]
      %v7840 = vld [vmem:[%s7099 + $0x4c] sm:$0xf]
      %v7841 = vld [vmem:[%s7099 + $0x50] sm:$0x1]
      %v7842 = vld [vmem:[%s7099 + $0x54] sm:$0xe]
      %v7843 = vld [vmem:[%s7099 + $0x58] sm:$0xf]
      %v7844 = vld [vmem:[%s7099 + $0x5c] sm:$0x1]
      %v7869 = vrot.slane %v7821, 5
      %v7870 = vrot.slane %v7869, 4
      %v7871 = vrot.slane %v7822, 5
      %v7872 = vsel %vm1123, %v7870, %v7871
      %v7873 = vrot.slane %v7871, 4
      %v7874 = vrot.slane %v7823, 5
      %v7875 = vsel %vm1123, %v7873, %v7874
      %v7876 = vrot.slane %v7824, 5
      %v7877 = vrot.slane %v7876, 4
      %v7878 = vrot.slane %v7825, 5
      %v7879 = vsel %vm1123, %v7877, %v7878
      %v7880 = vrot.slane %v7878, 4
      %v7881 = vrot.slane %v7826, 5
      %v7882 = vsel %vm1123, %v7880, %v7881
      %v7883 = vrot.slane %v7827, 5
      %v7884 = vrot.slane %v7883, 4
      %v7885 = vrot.slane %v7828, 5
      %v7886 = vsel %vm1123, %v7884, %v7885
      %v7887 = vrot.slane %v7885, 4
      %v7888 = vrot.slane %v7829, 5
      %v7889 = vsel %vm1123, %v7887, %v7888
      %v7890 = vrot.slane %v7830, 5
      %v7891 = vrot.slane %v7890, 4
      %v7892 = vrot.slane %v7831, 5
      %v7893 = vsel %vm1123, %v7891, %v7892
      %v7894 = vrot.slane %v7892, 4
      %v7895 = vrot.slane %v7832, 5
      %v7896 = vsel %vm1123, %v7894, %v7895
      %v7897 = vrot.slane %v7833, 5
      %v7898 = vrot.slane %v7897, 4
      %v7899 = vrot.slane %v7834, 5
      %v7900 = vsel %vm1123, %v7898, %v7899
      %v7901 = vrot.slane %v7899, 4
      %v7902 = vrot.slane %v7835, 5
      %v7903 = vsel %vm1123, %v7901, %v7902
      %v7904 = vrot.slane %v7836, 5
      %v7905 = vrot.slane %v7904, 4
      %v7906 = vrot.slane %v7837, 5
      %v7907 = vsel %vm1123, %v7905, %v7906
      %v7908 = vrot.slane %v7906, 4
      %v7909 = vrot.slane %v7838, 5
      %v7910 = vsel %vm1123, %v7908, %v7909
      %v7911 = vrot.slane %v7839, 5
      %v7912 = vrot.slane %v7911, 4
      %v7913 = vrot.slane %v7840, 5
      %v7914 = vsel %vm1123, %v7912, %v7913
      %v7915 = vrot.slane %v7913, 4
      %v7916 = vrot.slane %v7841, 5
      %v7917 = vsel %vm1123, %v7915, %v7916
      %v7918 = vrot.slane %v7842, 5
      %v7919 = vrot.slane %v7918, 4
      %v7920 = vrot.slane %v7843, 5
      %v7921 = vsel %vm1123, %v7919, %v7920
      %v7922 = vrot.slane %v7920, 4
      %v7923 = vrot.slane %v7844, 5
      %v7924 = vsel %vm1123, %v7922, %v7923
      %v7925 = vunpack.c.l.b16 %v7872
      %v7926 = vunpack.c.l.b16 %v7875
      %v7927 = vunpack.c.l.b16 %v7879
      %v7928 = vunpack.c.l.b16 %v7882
      %v7929 = vunpack.c.l.b16 %v7886
      %v7930 = vunpack.c.l.b16 %v7889
      %v7931 = vunpack.c.l.b16 %v7893
      %v7932 = vunpack.c.l.b16 %v7896
      %v7933 = vunpack.c.l.b16 %v7900
      %v7934 = vunpack.c.l.b16 %v7903
      %v7935 = vunpack.c.l.b16 %v7907
      %v7936 = vunpack.c.l.b16 %v7910
      %v7937 = vunpack.c.l.b16 %v7914
      %v7938 = vunpack.c.l.b16 %v7917
      %v7939 = vunpack.c.l.b16 %v7921
      %v7940 = vunpack.c.l.b16 %v7924
      %v7941 = vpack.c.b16 %v7926, %v7925
      %v7942 = vpack.c.b16 %v7928, %v7927
      %v7943 = vpack.c.b16 %v7930, %v7929
      %v7944 = vpack.c.b16 %v7932, %v7931
      %v7945 = vpack.c.b16 %v7934, %v7933
      %v7946 = vpack.c.b16 %v7936, %v7935
      %v7947 = vpack.c.b16 %v7938, %v7937
      %v7948 = vpack.c.b16 %v7940, %v7939
      %7949 = vrot.lane.b32.xlu0 %v7941, 28
      %v7950 = vpop.permute.xlu0 %7949
      %7951 = vrot.lane.b32.xlu0 %v7942, 28
      %v7952 = vpop.permute.xlu0 %7951
      %7953 = vrot.lane.b32.xlu0 %v7943, 28
      %v7954 = vpop.permute.xlu0 %7953
      %7955 = vrot.lane.b32.xlu0 %v7944, 28
      %v7956 = vpop.permute.xlu0 %7955
      %7957 = vrot.lane.b32.xlu0 %v7945, 28
      %v7958 = vpop.permute.xlu0 %7957
      %7959 = vrot.lane.b32.xlu0 %v7946, 28
      %v7960 = vpop.permute.xlu0 %7959
      %7961 = vrot.lane.b32.xlu0 %v7947, 28
      %v7962 = vpop.permute.xlu0 %7961
      %7963 = vrot.lane.b32.xlu0 %v7948, 28
      %v7964 = vpop.permute.xlu0 %7963
      %7973 = vst.msk [vmem:[#allocation2 + $0x8] sm:$0xff] %vm1787, %v7950
      %7974 = vst.msk [vmem:[#allocation2 + $0x18] sm:$0xff] %vm1787, %v7952
      %7975 = vst.msk [vmem:[#allocation2 + $0x28] sm:$0xff] %vm1787, %v7954
      %7976 = vst.msk [vmem:[#allocation2 + $0x38] sm:$0xff] %vm1787, %v7956
      %7977 = vst.msk [vmem:[#allocation2 + $0x48] sm:$0xff] %vm1787, %v7958
      %7978 = vst.msk [vmem:[#allocation2 + $0x58] sm:$0xff] %vm1787, %v7960
      %7979 = vst.msk [vmem:[#allocation2 + $0x68] sm:$0xff] %vm1787, %v7962
      %7980 = vst.msk [vmem:[#allocation2 + $0x78] sm:$0xff] %vm1787, %v7964
      %v7981 = vld [vmem:[%s7188] sm:$0xe]
      %v7982 = vld [vmem:[%s7188 + $0x4] sm:$0xf]
      %v7983 = vld [vmem:[%s7188 + $0x8] sm:$0x1]
      %v7984 = vld [vmem:[%s7188 + $0xc] sm:$0xe]
      %v7985 = vld [vmem:[%s7188 + $0x10] sm:$0xf]
      %v7986 = vld [vmem:[%s7188 + $0x14] sm:$0x1]
      %v7987 = vld [vmem:[%s7188 + $0x18] sm:$0xe]
      %v7988 = vld [vmem:[%s7188 + $0x1c] sm:$0xf]
      %v7989 = vld [vmem:[%s7188 + $0x20] sm:$0x1]
      %v7990 = vld [vmem:[%s7188 + $0x24] sm:$0xe]
      %v7991 = vld [vmem:[%s7188 + $0x28] sm:$0xf]
      %v7992 = vld [vmem:[%s7188 + $0x2c] sm:$0x1]
      %v7993 = vld [vmem:[%s7188 + $0x30] sm:$0xe]
      %v7994 = vld [vmem:[%s7188 + $0x34] sm:$0xf]
      %v7995 = vld [vmem:[%s7188 + $0x38] sm:$0x1]
      %v7996 = vld [vmem:[%s7188 + $0x3c] sm:$0xe]
      %v7997 = vld [vmem:[%s7188 + $0x40] sm:$0xf]
      %v7998 = vld [vmem:[%s7188 + $0x44] sm:$0x1]
      %v7999 = vld [vmem:[%s7188 + $0x48] sm:$0xe]
      %v8000 = vld [vmem:[%s7188 + $0x4c] sm:$0xf]
      %v8001 = vld [vmem:[%s7188 + $0x50] sm:$0x1]
      %v8002 = vld [vmem:[%s7188 + $0x54] sm:$0xe]
      %v8003 = vld [vmem:[%s7188 + $0x58] sm:$0xf]
      %v8004 = vld [vmem:[%s7188 + $0x5c] sm:$0x1]
      %v8029 = vrot.slane %v7981, 5
      %v8030 = vrot.slane %v8029, 4
      %v8031 = vrot.slane %v7982, 5
      %v8032 = vsel %vm1123, %v8030, %v8031
      %v8033 = vrot.slane %v8031, 4
      %v8034 = vrot.slane %v7983, 5
      %v8035 = vsel %vm1123, %v8033, %v8034
      %v8036 = vrot.slane %v7984, 5
      %v8037 = vrot.slane %v8036, 4
      %v8038 = vrot.slane %v7985, 5
      %v8039 = vsel %vm1123, %v8037, %v8038
      %v8040 = vrot.slane %v8038, 4
      %v8041 = vrot.slane %v7986, 5
      %v8042 = vsel %vm1123, %v8040, %v8041
      %v8043 = vrot.slane %v7987, 5
      %v8044 = vrot.slane %v8043, 4
      %v8045 = vrot.slane %v7988, 5
      %v8046 = vsel %vm1123, %v8044, %v8045
      %v8047 = vrot.slane %v8045, 4
      %v8048 = vrot.slane %v7989, 5
      %v8049 = vsel %vm1123, %v8047, %v8048
      %v8050 = vrot.slane %v7990, 5
      %v8051 = vrot.slane %v8050, 4
      %v8052 = vrot.slane %v7991, 5
      %v8053 = vsel %vm1123, %v8051, %v8052
      %v8054 = vrot.slane %v8052, 4
      %v8055 = vrot.slane %v7992, 5
      %v8056 = vsel %vm1123, %v8054, %v8055
      %v8057 = vrot.slane %v7993, 5
      %v8058 = vrot.slane %v8057, 4
      %v8059 = vrot.slane %v7994, 5
      %v8060 = vsel %vm1123, %v8058, %v8059
      %v8061 = vrot.slane %v8059, 4
      %v8062 = vrot.slane %v7995, 5
      %v8063 = vsel %vm1123, %v8061, %v8062
      %v8064 = vrot.slane %v7996, 5
      %v8065 = vrot.slane %v8064, 4
      %v8066 = vrot.slane %v7997, 5
      %v8067 = vsel %vm1123, %v8065, %v8066
      %v8068 = vrot.slane %v8066, 4
      %v8069 = vrot.slane %v7998, 5
      %v8070 = vsel %vm1123, %v8068, %v8069
      %v8071 = vrot.slane %v7999, 5
      %v8072 = vrot.slane %v8071, 4
      %v8073 = vrot.slane %v8000, 5
      %v8074 = vsel %vm1123, %v8072, %v8073
      %v8075 = vrot.slane %v8073, 4
      %v8076 = vrot.slane %v8001, 5
      %v8077 = vsel %vm1123, %v8075, %v8076
      %v8078 = vrot.slane %v8002, 5
      %v8079 = vrot.slane %v8078, 4
      %v8080 = vrot.slane %v8003, 5
      %v8081 = vsel %vm1123, %v8079, %v8080
      %v8082 = vrot.slane %v8080, 4
      %v8083 = vrot.slane %v8004, 5
      %v8084 = vsel %vm1123, %v8082, %v8083
      %v8085 = vunpack.c.l.b16 %v8032
      %v8086 = vunpack.c.l.b16 %v8035
      %v8087 = vunpack.c.l.b16 %v8039
      %v8088 = vunpack.c.l.b16 %v8042
      %v8089 = vunpack.c.l.b16 %v8046
      %v8090 = vunpack.c.l.b16 %v8049
      %v8091 = vunpack.c.l.b16 %v8053
      %v8092 = vunpack.c.l.b16 %v8056
      %v8093 = vunpack.c.l.b16 %v8060
      %v8094 = vunpack.c.l.b16 %v8063
      %v8095 = vunpack.c.l.b16 %v8067
      %v8096 = vunpack.c.l.b16 %v8070
      %v8097 = vunpack.c.l.b16 %v8074
      %v8098 = vunpack.c.l.b16 %v8077
      %v8099 = vunpack.c.l.b16 %v8081
      %v8100 = vunpack.c.l.b16 %v8084
      %v8101 = vpack.c.b16 %v8086, %v8085
      %v8102 = vpack.c.b16 %v8088, %v8087
      %v8103 = vpack.c.b16 %v8090, %v8089
      %v8104 = vpack.c.b16 %v8092, %v8091
      %v8105 = vpack.c.b16 %v8094, %v8093
      %v8106 = vpack.c.b16 %v8096, %v8095
      %v8107 = vpack.c.b16 %v8098, %v8097
      %v8108 = vpack.c.b16 %v8100, %v8099
      %8109 = vrot.lane.b32.xlu0 %v8101, 32
      %v8110 = vpop.permute.xlu0 %8109
      %8111 = vrot.lane.b32.xlu0 %v8102, 32
      %v8112 = vpop.permute.xlu0 %8111
      %8113 = vrot.lane.b32.xlu0 %v8103, 32
      %v8114 = vpop.permute.xlu0 %8113
      %8115 = vrot.lane.b32.xlu0 %v8104, 32
      %v8116 = vpop.permute.xlu0 %8115
      %8117 = vrot.lane.b32.xlu0 %v8105, 32
      %v8118 = vpop.permute.xlu0 %8117
      %8119 = vrot.lane.b32.xlu0 %v8106, 32
      %v8120 = vpop.permute.xlu0 %8119
      %8121 = vrot.lane.b32.xlu0 %v8107, 32
      %v8122 = vpop.permute.xlu0 %8121
      %8123 = vrot.lane.b32.xlu0 %v8108, 32
      %v8124 = vpop.permute.xlu0 %8123
      %8133 = vst.msk [vmem:[#allocation2 + $0x8] sm:$0xff] %vm1877, %v8110
      %8134 = vst.msk [vmem:[#allocation2 + $0x18] sm:$0xff] %vm1877, %v8112
      %8135 = vst.msk [vmem:[#allocation2 + $0x28] sm:$0xff] %vm1877, %v8114
      %8136 = vst.msk [vmem:[#allocation2 + $0x38] sm:$0xff] %vm1877, %v8116
      %8137 = vst.msk [vmem:[#allocation2 + $0x48] sm:$0xff] %vm1877, %v8118
      %8138 = vst.msk [vmem:[#allocation2 + $0x58] sm:$0xff] %vm1877, %v8120
      %8139 = vst.msk [vmem:[#allocation2 + $0x68] sm:$0xff] %vm1877, %v8122
      %8140 = vst.msk [vmem:[#allocation2 + $0x78] sm:$0xff] %vm1877, %v8124
      %v8141 = vld [vmem:[%s7099] sm:$0xe]
      %v8142 = vld [vmem:[%s7099 + $0x4] sm:$0xf]
      %v8143 = vld [vmem:[%s7099 + $0x8] sm:$0x3]
      %v8144 = vld [vmem:[%s7099 + $0xc] sm:$0xe]
      %v8145 = vld [vmem:[%s7099 + $0x10] sm:$0xf]
      %v8146 = vld [vmem:[%s7099 + $0x14] sm:$0x3]
      %v8147 = vld [vmem:[%s7099 + $0x18] sm:$0xe]
      %v8148 = vld [vmem:[%s7099 + $0x1c] sm:$0xf]
      %v8149 = vld [vmem:[%s7099 + $0x20] sm:$0x3]
      %v8150 = vld [vmem:[%s7099 + $0x24] sm:$0xe]
      %v8151 = vld [vmem:[%s7099 + $0x28] sm:$0xf]
      %v8152 = vld [vmem:[%s7099 + $0x2c] sm:$0x3]
      %v8153 = vld [vmem:[%s7099 + $0x30] sm:$0xe]
      %v8154 = vld [vmem:[%s7099 + $0x34] sm:$0xf]
      %v8155 = vld [vmem:[%s7099 + $0x38] sm:$0x3]
      %v8156 = vld [vmem:[%s7099 + $0x3c] sm:$0xe]
      %v8157 = vld [vmem:[%s7099 + $0x40] sm:$0xf]
      %v8158 = vld [vmem:[%s7099 + $0x44] sm:$0x3]
      %v8159 = vld [vmem:[%s7099 + $0x48] sm:$0xe]
      %v8160 = vld [vmem:[%s7099 + $0x4c] sm:$0xf]
      %v8161 = vld [vmem:[%s7099 + $0x50] sm:$0x3]
      %v8162 = vld [vmem:[%s7099 + $0x54] sm:$0xe]
      %v8163 = vld [vmem:[%s7099 + $0x58] sm:$0xf]
      %v8164 = vld [vmem:[%s7099 + $0x5c] sm:$0x3]
      %v8166 = vshrl.u32 %v8141, 16
      %v8168 = vrot.slane %v8166, 5
      %v8169 = vshll.u32 %v8141, 16
      %v8171 = vrot.slane %v8169, 6
      %v8172 = vor.u32 %v8168, %v8171
      %v8173 = vrot.slane %v8172, 4
      %v8175 = vshrl.u32 %v8142, 16
      %v8177 = vrot.slane %v8175, 5
      %v8178 = vshll.u32 %v8142, 16
      %v8180 = vrot.slane %v8178, 6
      %v8181 = vor.u32 %v8177, %v8180
      %v8182 = vsel %vm1424, %v8173, %v8181
      %v8183 = vrot.slane %v8181, 4
      %v8185 = vshrl.u32 %v8143, 16
      %v8187 = vrot.slane %v8185, 5
      %v8188 = vshll.u32 %v8143, 16
      %v8190 = vrot.slane %v8188, 6
      %v8191 = vor.u32 %v8187, %v8190
      %v8192 = vsel %vm1424, %v8183, %v8191
      %v8194 = vshrl.u32 %v8144, 16
      %v8196 = vrot.slane %v8194, 5
      %v8197 = vshll.u32 %v8144, 16
      %v8199 = vrot.slane %v8197, 6
      %v8200 = vor.u32 %v8196, %v8199
      %v8201 = vrot.slane %v8200, 4
      %v8203 = vshrl.u32 %v8145, 16
      %v8205 = vrot.slane %v8203, 5
      %v8206 = vshll.u32 %v8145, 16
      %v8208 = vrot.slane %v8206, 6
      %v8209 = vor.u32 %v8205, %v8208
      %v8210 = vsel %vm1424, %v8201, %v8209
      %v8211 = vrot.slane %v8209, 4
      %v8213 = vshrl.u32 %v8146, 16
      %v8215 = vrot.slane %v8213, 5
      %v8216 = vshll.u32 %v8146, 16
      %v8218 = vrot.slane %v8216, 6
      %v8219 = vor.u32 %v8215, %v8218
      %v8220 = vsel %vm1424, %v8211, %v8219
      %v8222 = vshrl.u32 %v8147, 16
      %v8224 = vrot.slane %v8222, 5
      %v8225 = vshll.u32 %v8147, 16
      %v8227 = vrot.slane %v8225, 6
      %v8228 = vor.u32 %v8224, %v8227
      %v8229 = vrot.slane %v8228, 4
      %v8231 = vshrl.u32 %v8148, 16
      %v8233 = vrot.slane %v8231, 5
      %v8234 = vshll.u32 %v8148, 16
      %v8236 = vrot.slane %v8234, 6
      %v8237 = vor.u32 %v8233, %v8236
      %v8238 = vsel %vm1424, %v8229, %v8237
      %v8239 = vrot.slane %v8237, 4
      %v8241 = vshrl.u32 %v8149, 16
      %v8243 = vrot.slane %v8241, 5
      %v8244 = vshll.u32 %v8149, 16
      %v8246 = vrot.slane %v8244, 6
      %v8247 = vor.u32 %v8243, %v8246
      %v8248 = vsel %vm1424, %v8239, %v8247
      %v8250 = vshrl.u32 %v8150, 16
      %v8252 = vrot.slane %v8250, 5
      %v8253 = vshll.u32 %v8150, 16
      %v8255 = vrot.slane %v8253, 6
      %v8256 = vor.u32 %v8252, %v8255
      %v8257 = vrot.slane %v8256, 4
      %v8259 = vshrl.u32 %v8151, 16
      %v8261 = vrot.slane %v8259, 5
      %v8262 = vshll.u32 %v8151, 16
      %v8264 = vrot.slane %v8262, 6
      %v8265 = vor.u32 %v8261, %v8264
      %v8266 = vsel %vm1424, %v8257, %v8265
      %v8267 = vrot.slane %v8265, 4
      %v8269 = vshrl.u32 %v8152, 16
      %v8271 = vrot.slane %v8269, 5
      %v8272 = vshll.u32 %v8152, 16
      %v8274 = vrot.slane %v8272, 6
      %v8275 = vor.u32 %v8271, %v8274
      %v8276 = vsel %vm1424, %v8267, %v8275
      %v8278 = vshrl.u32 %v8153, 16
      %v8280 = vrot.slane %v8278, 5
      %v8281 = vshll.u32 %v8153, 16
      %v8283 = vrot.slane %v8281, 6
      %v8284 = vor.u32 %v8280, %v8283
      %v8285 = vrot.slane %v8284, 4
      %v8287 = vshrl.u32 %v8154, 16
      %v8289 = vrot.slane %v8287, 5
      %v8290 = vshll.u32 %v8154, 16
      %v8292 = vrot.slane %v8290, 6
      %v8293 = vor.u32 %v8289, %v8292
      %v8294 = vsel %vm1424, %v8285, %v8293
      %v8295 = vrot.slane %v8293, 4
      %v8297 = vshrl.u32 %v8155, 16
      %v8299 = vrot.slane %v8297, 5
      %v8300 = vshll.u32 %v8155, 16
      %v8302 = vrot.slane %v8300, 6
      %v8303 = vor.u32 %v8299, %v8302
      %v8304 = vsel %vm1424, %v8295, %v8303
      %v8306 = vshrl.u32 %v8156, 16
      %v8308 = vrot.slane %v8306, 5
      %v8309 = vshll.u32 %v8156, 16
      %v8311 = vrot.slane %v8309, 6
      %v8312 = vor.u32 %v8308, %v8311
      %v8313 = vrot.slane %v8312, 4
      %v8315 = vshrl.u32 %v8157, 16
      %v8317 = vrot.slane %v8315, 5
      %v8318 = vshll.u32 %v8157, 16
      %v8320 = vrot.slane %v8318, 6
      %v8321 = vor.u32 %v8317, %v8320
      %v8322 = vsel %vm1424, %v8313, %v8321
      %v8323 = vrot.slane %v8321, 4
      %v8325 = vshrl.u32 %v8158, 16
      %v8327 = vrot.slane %v8325, 5
      %v8328 = vshll.u32 %v8158, 16
      %v8330 = vrot.slane %v8328, 6
      %v8331 = vor.u32 %v8327, %v8330
      %v8332 = vsel %vm1424, %v8323, %v8331
      %v8334 = vshrl.u32 %v8159, 16
      %v8336 = vrot.slane %v8334, 5
      %v8337 = vshll.u32 %v8159, 16
      %v8339 = vrot.slane %v8337, 6
      %v8340 = vor.u32 %v8336, %v8339
      %v8341 = vrot.slane %v8340, 4
      %v8343 = vshrl.u32 %v8160, 16
      %v8345 = vrot.slane %v8343, 5
      %v8346 = vshll.u32 %v8160, 16
      %v8348 = vrot.slane %v8346, 6
      %v8349 = vor.u32 %v8345, %v8348
      %v8350 = vsel %vm1424, %v8341, %v8349
      %v8351 = vrot.slane %v8349, 4
      %v8353 = vshrl.u32 %v8161, 16
      %v8355 = vrot.slane %v8353, 5
      %v8356 = vshll.u32 %v8161, 16
      %v8358 = vrot.slane %v8356, 6
      %v8359 = vor.u32 %v8355, %v8358
      %v8360 = vsel %vm1424, %v8351, %v8359
      %v8362 = vshrl.u32 %v8162, 16
      %v8364 = vrot.slane %v8362, 5
      %v8365 = vshll.u32 %v8162, 16
      %v8367 = vrot.slane %v8365, 6
      %v8368 = vor.u32 %v8364, %v8367
      %v8369 = vrot.slane %v8368, 4
      %v8371 = vshrl.u32 %v8163, 16
      %v8373 = vrot.slane %v8371, 5
      %v8374 = vshll.u32 %v8163, 16
      %v8376 = vrot.slane %v8374, 6
      %v8377 = vor.u32 %v8373, %v8376
      %v8378 = vsel %vm1424, %v8369, %v8377
      %v8379 = vrot.slane %v8377, 4
      %v8381 = vshrl.u32 %v8164, 16
      %v8383 = vrot.slane %v8381, 5
      %v8384 = vshll.u32 %v8164, 16
      %v8386 = vrot.slane %v8384, 6
      %v8387 = vor.u32 %v8383, %v8386
      %v8388 = vsel %vm1424, %v8379, %v8387
      %v8389 = vunpack.c.l.b16 %v8182
      %v8390 = vunpack.c.l.b16 %v8192
      %v8391 = vunpack.c.l.b16 %v8210
      %v8392 = vunpack.c.l.b16 %v8220
      %v8393 = vunpack.c.l.b16 %v8238
      %v8394 = vunpack.c.l.b16 %v8248
      %v8395 = vunpack.c.l.b16 %v8266
      %v8396 = vunpack.c.l.b16 %v8276
      %v8397 = vunpack.c.l.b16 %v8294
      %v8398 = vunpack.c.l.b16 %v8304
      %v8399 = vunpack.c.l.b16 %v8322
      %v8400 = vunpack.c.l.b16 %v8332
      %v8401 = vunpack.c.l.b16 %v8350
      %v8402 = vunpack.c.l.b16 %v8360
      %v8403 = vunpack.c.l.b16 %v8378
      %v8404 = vunpack.c.l.b16 %v8388
      %v8405 = vpack.c.b16 %v8390, %v8389
      %v8406 = vpack.c.b16 %v8392, %v8391
      %v8407 = vpack.c.b16 %v8394, %v8393
      %v8408 = vpack.c.b16 %v8396, %v8395
      %v8409 = vpack.c.b16 %v8398, %v8397
      %v8410 = vpack.c.b16 %v8400, %v8399
      %v8411 = vpack.c.b16 %v8402, %v8401
      %v8412 = vpack.c.b16 %v8404, %v8403
      %8413 = vrot.lane.b32.xlu0 %v8405, 36
      %v8414 = vpop.permute.xlu0 %8413
      %8415 = vrot.lane.b32.xlu0 %v8406, 36
      %v8416 = vpop.permute.xlu0 %8415
      %8417 = vrot.lane.b32.xlu0 %v8407, 36
      %v8418 = vpop.permute.xlu0 %8417
      %8419 = vrot.lane.b32.xlu0 %v8408, 36
      %v8420 = vpop.permute.xlu0 %8419
      %8421 = vrot.lane.b32.xlu0 %v8409, 36
      %v8422 = vpop.permute.xlu0 %8421
      %8423 = vrot.lane.b32.xlu0 %v8410, 36
      %v8424 = vpop.permute.xlu0 %8423
      %8425 = vrot.lane.b32.xlu0 %v8411, 36
      %v8426 = vpop.permute.xlu0 %8425
      %8427 = vrot.lane.b32.xlu0 %v8412, 36
      %v8428 = vpop.permute.xlu0 %8427
      %8437 = vst.msk [vmem:[#allocation2 + $0x8] sm:$0xff] %vm2150, %v8414
      %8438 = vst.msk [vmem:[#allocation2 + $0x18] sm:$0xff] %vm2150, %v8416
      %8439 = vst.msk [vmem:[#allocation2 + $0x28] sm:$0xff] %vm2150, %v8418
      %8440 = vst.msk [vmem:[#allocation2 + $0x38] sm:$0xff] %vm2150, %v8420
      %8441 = vst.msk [vmem:[#allocation2 + $0x48] sm:$0xff] %vm2150, %v8422
      %8442 = vst.msk [vmem:[#allocation2 + $0x58] sm:$0xff] %vm2150, %v8424
      %8443 = vst.msk [vmem:[#allocation2 + $0x68] sm:$0xff] %vm2150, %v8426
      %8444 = vst.msk [vmem:[#allocation2 + $0x78] sm:$0xff] %vm2150, %v8428
      %s8445 = scalar_lea.vmem %s354, 36
      %v8446 = vld [vmem:[%s8445] sm:$0xf]
      %v8447 = vld [vmem:[%s8445 + $0x4] sm:$0xf]
      %v8448 = vld [vmem:[%s8445 + $0xc] sm:$0xf]
      %v8449 = vld [vmem:[%s8445 + $0x10] sm:$0xf]
      %v8450 = vld [vmem:[%s8445 + $0x18] sm:$0xf]
      %v8451 = vld [vmem:[%s8445 + $0x1c] sm:$0xf]
      %v8452 = vld [vmem:[%s8445 + $0x24] sm:$0xf]
      %v8453 = vld [vmem:[%s8445 + $0x28] sm:$0xf]
      %v8454 = vld [vmem:[%s8445 + $0x30] sm:$0xf]
      %v8455 = vld [vmem:[%s8445 + $0x34] sm:$0xf]
      %v8456 = vld [vmem:[%s8445 + $0x3c] sm:$0xf]
      %v8457 = vld [vmem:[%s8445 + $0x40] sm:$0xf]
      %v8458 = vld [vmem:[%s8445 + $0x48] sm:$0xf]
      %v8459 = vld [vmem:[%s8445 + $0x4c] sm:$0xf]
      %v8460 = vld [vmem:[%s8445 + $0x54] sm:$0xf]
      %v8461 = vld [vmem:[%s8445 + $0x58] sm:$0xf]
      %v8478 = vunpack.c.l.b16 %v8446
      %v8479 = vunpack.c.l.b16 %v8447
      %v8480 = vunpack.c.l.b16 %v8448
      %v8481 = vunpack.c.l.b16 %v8449
      %v8482 = vunpack.c.l.b16 %v8450
      %v8483 = vunpack.c.l.b16 %v8451
      %v8484 = vunpack.c.l.b16 %v8452
      %v8485 = vunpack.c.l.b16 %v8453
      %v8486 = vunpack.c.l.b16 %v8454
      %v8487 = vunpack.c.l.b16 %v8455
      %v8488 = vunpack.c.l.b16 %v8456
      %v8489 = vunpack.c.l.b16 %v8457
      %v8490 = vunpack.c.l.b16 %v8458
      %v8491 = vunpack.c.l.b16 %v8459
      %v8492 = vunpack.c.l.b16 %v8460
      %v8493 = vunpack.c.l.b16 %v8461
      %v8494 = vpack.c.b16 %v8479, %v8478
      %v8495 = vpack.c.b16 %v8481, %v8480
      %v8496 = vpack.c.b16 %v8483, %v8482
      %v8497 = vpack.c.b16 %v8485, %v8484
      %v8498 = vpack.c.b16 %v8487, %v8486
      %v8499 = vpack.c.b16 %v8489, %v8488
      %v8500 = vpack.c.b16 %v8491, %v8490
      %v8501 = vpack.c.b16 %v8493, %v8492
      %8502 = vrot.lane.b32.xlu0 %v8494, 40
      %v8503 = vpop.permute.xlu0 %8502
      %8504 = vrot.lane.b32.xlu0 %v8495, 40
      %v8505 = vpop.permute.xlu0 %8504
      %8506 = vrot.lane.b32.xlu0 %v8496, 40
      %v8507 = vpop.permute.xlu0 %8506
      %8508 = vrot.lane.b32.xlu0 %v8497, 40
      %v8509 = vpop.permute.xlu0 %8508
      %8510 = vrot.lane.b32.xlu0 %v8498, 40
      %v8511 = vpop.permute.xlu0 %8510
      %8512 = vrot.lane.b32.xlu0 %v8499, 40
      %v8513 = vpop.permute.xlu0 %8512
      %8514 = vrot.lane.b32.xlu0 %v8500, 40
      %v8515 = vpop.permute.xlu0 %8514
      %8516 = vrot.lane.b32.xlu0 %v8501, 40
      %v8517 = vpop.permute.xlu0 %8516
      %8526 = vst.msk [vmem:[#allocation2 + $0x8] sm:$0xff] %vm2423, %v8503
      %8527 = vst.msk [vmem:[#allocation2 + $0x18] sm:$0xff] %vm2423, %v8505
      %8528 = vst.msk [vmem:[#allocation2 + $0x28] sm:$0xff] %vm2423, %v8507
      %8529 = vst.msk [vmem:[#allocation2 + $0x38] sm:$0xff] %vm2423, %v8509
      %8530 = vst.msk [vmem:[#allocation2 + $0x48] sm:$0xff] %vm2423, %v8511
      %8531 = vst.msk [vmem:[#allocation2 + $0x58] sm:$0xff] %vm2423, %v8513
      %8532 = vst.msk [vmem:[#allocation2 + $0x68] sm:$0xff] %vm2423, %v8515
      %8533 = vst.msk [vmem:[#allocation2 + $0x78] sm:$0xff] %vm2423, %v8517
      %s8534 = scalar_lea.vmem %s354, 168
      %v8535 = vld [vmem:[%s8534] sm:$0xf]
      %v8536 = vld [vmem:[%s8534 + $0x4] sm:$0xf]
      %v8537 = vld [vmem:[%s8534 + $0xc] sm:$0xf]
      %v8538 = vld [vmem:[%s8534 + $0x10] sm:$0xf]
      %v8539 = vld [vmem:[%s8534 + $0x18] sm:$0xf]
      %v8540 = vld [vmem:[%s8534 + $0x1c] sm:$0xf]
      %v8541 = vld [vmem:[%s8534 + $0x24] sm:$0xf]
      %v8542 = vld [vmem:[%s8534 + $0x28] sm:$0xf]
      %v8543 = vld [vmem:[%s8534 + $0x30] sm:$0xf]
      %v8544 = vld [vmem:[%s8534 + $0x34] sm:$0xf]
      %v8545 = vld [vmem:[%s8534 + $0x3c] sm:$0xf]
      %v8546 = vld [vmem:[%s8534 + $0x40] sm:$0xf]
      %v8547 = vld [vmem:[%s8534 + $0x48] sm:$0xf]
      %v8548 = vld [vmem:[%s8534 + $0x4c] sm:$0xf]
      %v8549 = vld [vmem:[%s8534 + $0x54] sm:$0xf]
      %v8550 = vld [vmem:[%s8534 + $0x58] sm:$0xf]
      %v8567 = vunpack.c.l.b16 %v8535
      %v8568 = vunpack.c.l.b16 %v8536
      %v8569 = vunpack.c.l.b16 %v8537
      %v8570 = vunpack.c.l.b16 %v8538
      %v8571 = vunpack.c.l.b16 %v8539
      %v8572 = vunpack.c.l.b16 %v8540
      %v8573 = vunpack.c.l.b16 %v8541
      %v8574 = vunpack.c.l.b16 %v8542
      %v8575 = vunpack.c.l.b16 %v8543
      %v8576 = vunpack.c.l.b16 %v8544
      %v8577 = vunpack.c.l.b16 %v8545
      %v8578 = vunpack.c.l.b16 %v8546
      %v8579 = vunpack.c.l.b16 %v8547
      %v8580 = vunpack.c.l.b16 %v8548
      %v8581 = vunpack.c.l.b16 %v8549
      %v8582 = vunpack.c.l.b16 %v8550
      %v8583 = vpack.c.b16 %v8568, %v8567
      %v8584 = vpack.c.b16 %v8570, %v8569
      %v8585 = vpack.c.b16 %v8572, %v8571
      %v8586 = vpack.c.b16 %v8574, %v8573
      %v8587 = vpack.c.b16 %v8576, %v8575
      %v8588 = vpack.c.b16 %v8578, %v8577
      %v8589 = vpack.c.b16 %v8580, %v8579
      %v8590 = vpack.c.b16 %v8582, %v8581
      %8591 = vrot.lane.b32.xlu0 %v8583, 44
      %v8592 = vpop.permute.xlu0 %8591
      %8593 = vrot.lane.b32.xlu0 %v8584, 44
      %v8594 = vpop.permute.xlu0 %8593
      %8595 = vrot.lane.b32.xlu0 %v8585, 44
      %v8596 = vpop.permute.xlu0 %8595
      %8597 = vrot.lane.b32.xlu0 %v8586, 44
      %v8598 = vpop.permute.xlu0 %8597
      %8599 = vrot.lane.b32.xlu0 %v8587, 44
      %v8600 = vpop.permute.xlu0 %8599
      %8601 = vrot.lane.b32.xlu0 %v8588, 44
      %v8602 = vpop.permute.xlu0 %8601
      %8603 = vrot.lane.b32.xlu0 %v8589, 44
      %v8604 = vpop.permute.xlu0 %8603
      %8605 = vrot.lane.b32.xlu0 %v8590, 44
      %v8606 = vpop.permute.xlu0 %8605
      %8615 = vst.msk [vmem:[#allocation2 + $0x8] sm:$0xff] %vm2584, %v8592
      %8616 = vst.msk [vmem:[#allocation2 + $0x18] sm:$0xff] %vm2584, %v8594
      %8617 = vst.msk [vmem:[#allocation2 + $0x28] sm:$0xff] %vm2584, %v8596
      %8618 = vst.msk [vmem:[#allocation2 + $0x38] sm:$0xff] %vm2584, %v8598
      %8619 = vst.msk [vmem:[#allocation2 + $0x48] sm:$0xff] %vm2584, %v8600
      %8620 = vst.msk [vmem:[#allocation2 + $0x58] sm:$0xff] %vm2584, %v8602
      %8621 = vst.msk [vmem:[#allocation2 + $0x68] sm:$0xff] %vm2584, %v8604
      %8622 = vst.msk [vmem:[#allocation2 + $0x78] sm:$0xff] %vm2584, %v8606
      %v8623 = vld [vmem:[%s8445] sm:$0xf]
      %v8624 = vld [vmem:[%s8445 + $0x4] sm:$0xf]
      %v8625 = vld [vmem:[%s8445 + $0x8] sm:$0x1]
      %v8626 = vld [vmem:[%s8445 + $0xc] sm:$0xf]
      %v8627 = vld [vmem:[%s8445 + $0x10] sm:$0xf]
      %v8628 = vld [vmem:[%s8445 + $0x14] sm:$0x1]
      %v8629 = vld [vmem:[%s8445 + $0x18] sm:$0xf]
      %v8630 = vld [vmem:[%s8445 + $0x1c] sm:$0xf]
      %v8631 = vld [vmem:[%s8445 + $0x20] sm:$0x1]
      %v8632 = vld [vmem:[%s8445 + $0x24] sm:$0xf]
      %v8633 = vld [vmem:[%s8445 + $0x28] sm:$0xf]
      %v8634 = vld [vmem:[%s8445 + $0x2c] sm:$0x1]
      %v8635 = vld [vmem:[%s8445 + $0x30] sm:$0xf]
      %v8636 = vld [vmem:[%s8445 + $0x34] sm:$0xf]
      %v8637 = vld [vmem:[%s8445 + $0x38] sm:$0x1]
      %v8638 = vld [vmem:[%s8445 + $0x3c] sm:$0xf]
      %v8639 = vld [vmem:[%s8445 + $0x40] sm:$0xf]
      %v8640 = vld [vmem:[%s8445 + $0x44] sm:$0x1]
      %v8641 = vld [vmem:[%s8445 + $0x48] sm:$0xf]
      %v8642 = vld [vmem:[%s8445 + $0x4c] sm:$0xf]
      %v8643 = vld [vmem:[%s8445 + $0x50] sm:$0x1]
      %v8644 = vld [vmem:[%s8445 + $0x54] sm:$0xf]
      %v8645 = vld [vmem:[%s8445 + $0x58] sm:$0xf]
      %v8646 = vld [vmem:[%s8445 + $0x5c] sm:$0x1]
      %v8648 = vshrl.u32 %v8623, 16
      %v8650 = vrot.slane %v8648, 4
      %v8651 = vshll.u32 %v8623, 16
      %v8653 = vrot.slane %v8651, 5
      %v8654 = vor.u32 %v8650, %v8653
      %v8655 = vrot.slane %v8654, 4
      %v8657 = vshll.u32 %v8624, 16
      %v8659 = vrot.slane %v8657, 5
      %v8660 = vsel %vm550, %v8655, %v8659
      %v8661 = vshrl.u32 %v8624, 16
      %v8663 = vrot.slane %v8661, 4
      %v8664 = vor.u32 %v8663, %v8659
      %v8665 = vrot.slane %v8664, 4
      %v8667 = vshll.u32 %v8625, 16
      %v8669 = vrot.slane %v8667, 5
      %v8670 = vsel %vm550, %v8665, %v8669
      %v8672 = vshrl.u32 %v8626, 16
      %v8674 = vrot.slane %v8672, 4
      %v8675 = vshll.u32 %v8626, 16
      %v8677 = vrot.slane %v8675, 5
      %v8678 = vor.u32 %v8674, %v8677
      %v8679 = vrot.slane %v8678, 4
      %v8681 = vshll.u32 %v8627, 16
      %v8683 = vrot.slane %v8681, 5
      %v8684 = vsel %vm550, %v8679, %v8683
      %v8685 = vshrl.u32 %v8627, 16
      %v8687 = vrot.slane %v8685, 4
      %v8688 = vor.u32 %v8687, %v8683
      %v8689 = vrot.slane %v8688, 4
      %v8691 = vshll.u32 %v8628, 16
      %v8693 = vrot.slane %v8691, 5
      %v8694 = vsel %vm550, %v8689, %v8693
      %v8696 = vshrl.u32 %v8629, 16
      %v8698 = vrot.slane %v8696, 4
      %v8699 = vshll.u32 %v8629, 16
      %v8701 = vrot.slane %v8699, 5
      %v8702 = vor.u32 %v8698, %v8701
      %v8703 = vrot.slane %v8702, 4
      %v8705 = vshll.u32 %v8630, 16
      %v8707 = vrot.slane %v8705, 5
      %v8708 = vsel %vm550, %v8703, %v8707
      %v8709 = vshrl.u32 %v8630, 16
      %v8711 = vrot.slane %v8709, 4
      %v8712 = vor.u32 %v8711, %v8707
      %v8713 = vrot.slane %v8712, 4
      %v8715 = vshll.u32 %v8631, 16
      %v8717 = vrot.slane %v8715, 5
      %v8718 = vsel %vm550, %v8713, %v8717
      %v8720 = vshrl.u32 %v8632, 16
      %v8722 = vrot.slane %v8720, 4
      %v8723 = vshll.u32 %v8632, 16
      %v8725 = vrot.slane %v8723, 5
      %v8726 = vor.u32 %v8722, %v8725
      %v8727 = vrot.slane %v8726, 4
      %v8729 = vshll.u32 %v8633, 16
      %v8731 = vrot.slane %v8729, 5
      %v8732 = vsel %vm550, %v8727, %v8731
      %v8733 = vshrl.u32 %v8633, 16
      %v8735 = vrot.slane %v8733, 4
      %v8736 = vor.u32 %v8735, %v8731
      %v8737 = vrot.slane %v8736, 4
      %v8739 = vshll.u32 %v8634, 16
      %v8741 = vrot.slane %v8739, 5
      %v8742 = vsel %vm550, %v8737, %v8741
      %v8744 = vshrl.u32 %v8635, 16
      %v8746 = vrot.slane %v8744, 4
      %v8747 = vshll.u32 %v8635, 16
      %v8749 = vrot.slane %v8747, 5
      %v8750 = vor.u32 %v8746, %v8749
      %v8751 = vrot.slane %v8750, 4
      %v8753 = vshll.u32 %v8636, 16
      %v8755 = vrot.slane %v8753, 5
      %v8756 = vsel %vm550, %v8751, %v8755
      %v8757 = vshrl.u32 %v8636, 16
      %v8759 = vrot.slane %v8757, 4
      %v8760 = vor.u32 %v8759, %v8755
      %v8761 = vrot.slane %v8760, 4
      %v8763 = vshll.u32 %v8637, 16
      %v8765 = vrot.slane %v8763, 5
      %v8766 = vsel %vm550, %v8761, %v8765
      %v8768 = vshrl.u32 %v8638, 16
      %v8770 = vrot.slane %v8768, 4
      %v8771 = vshll.u32 %v8638, 16
      %v8773 = vrot.slane %v8771, 5
      %v8774 = vor.u32 %v8770, %v8773
      %v8775 = vrot.slane %v8774, 4
      %v8777 = vshll.u32 %v8639, 16
      %v8779 = vrot.slane %v8777, 5
      %v8780 = vsel %vm550, %v8775, %v8779
      %v8781 = vshrl.u32 %v8639, 16
      %v8783 = vrot.slane %v8781, 4
      %v8784 = vor.u32 %v8783, %v8779
      %v8785 = vrot.slane %v8784, 4
      %v8787 = vshll.u32 %v8640, 16
      %v8789 = vrot.slane %v8787, 5
      %v8790 = vsel %vm550, %v8785, %v8789
      %v8792 = vshrl.u32 %v8641, 16
      %v8794 = vrot.slane %v8792, 4
      %v8795 = vshll.u32 %v8641, 16
      %v8797 = vrot.slane %v8795, 5
      %v8798 = vor.u32 %v8794, %v8797
      %v8799 = vrot.slane %v8798, 4
      %v8801 = vshll.u32 %v8642, 16
      %v8803 = vrot.slane %v8801, 5
      %v8804 = vsel %vm550, %v8799, %v8803
      %v8805 = vshrl.u32 %v8642, 16
      %v8807 = vrot.slane %v8805, 4
      %v8808 = vor.u32 %v8807, %v8803
      %v8809 = vrot.slane %v8808, 4
      %v8811 = vshll.u32 %v8643, 16
      %v8813 = vrot.slane %v8811, 5
      %v8814 = vsel %vm550, %v8809, %v8813
      %v8816 = vshrl.u32 %v8644, 16
      %v8818 = vrot.slane %v8816, 4
      %v8819 = vshll.u32 %v8644, 16
      %v8821 = vrot.slane %v8819, 5
      %v8822 = vor.u32 %v8818, %v8821
      %v8823 = vrot.slane %v8822, 4
      %v8825 = vshll.u32 %v8645, 16
      %v8827 = vrot.slane %v8825, 5
      %v8828 = vsel %vm550, %v8823, %v8827
      %v8829 = vshrl.u32 %v8645, 16
      %v8831 = vrot.slane %v8829, 4
      %v8832 = vor.u32 %v8831, %v8827
      %v8833 = vrot.slane %v8832, 4
      %v8835 = vshll.u32 %v8646, 16
      %v8837 = vrot.slane %v8835, 5
      %v8838 = vsel %vm550, %v8833, %v8837
      %v8839 = vunpack.c.l.b16 %v8660
      %v8840 = vunpack.c.l.b16 %v8670
      %v8841 = vunpack.c.l.b16 %v8684
      %v8842 = vunpack.c.l.b16 %v8694
      %v8843 = vunpack.c.l.b16 %v8708
      %v8844 = vunpack.c.l.b16 %v8718
      %v8845 = vunpack.c.l.b16 %v8732
      %v8846 = vunpack.c.l.b16 %v8742
      %v8847 = vunpack.c.l.b16 %v8756
      %v8848 = vunpack.c.l.b16 %v8766
      %v8849 = vunpack.c.l.b16 %v8780
      %v8850 = vunpack.c.l.b16 %v8790
      %v8851 = vunpack.c.l.b16 %v8804
      %v8852 = vunpack.c.l.b16 %v8814
      %v8853 = vunpack.c.l.b16 %v8828
      %v8854 = vunpack.c.l.b16 %v8838
      %v8855 = vpack.c.b16 %v8840, %v8839
      %v8856 = vpack.c.b16 %v8842, %v8841
      %v8857 = vpack.c.b16 %v8844, %v8843
      %v8858 = vpack.c.b16 %v8846, %v8845
      %v8859 = vpack.c.b16 %v8848, %v8847
      %v8860 = vpack.c.b16 %v8850, %v8849
      %v8861 = vpack.c.b16 %v8852, %v8851
      %v8862 = vpack.c.b16 %v8854, %v8853
      %8863 = vrot.lane.b32.xlu0 %v8855, 48
      %v8864 = vpop.permute.xlu0 %8863
      %8865 = vrot.lane.b32.xlu0 %v8856, 48
      %v8866 = vpop.permute.xlu0 %8865
      %8867 = vrot.lane.b32.xlu0 %v8857, 48
      %v8868 = vpop.permute.xlu0 %8867
      %8869 = vrot.lane.b32.xlu0 %v8858, 48
      %v8870 = vpop.permute.xlu0 %8869
      %8871 = vrot.lane.b32.xlu0 %v8859, 48
      %v8872 = vpop.permute.xlu0 %8871
      %8873 = vrot.lane.b32.xlu0 %v8860, 48
      %v8874 = vpop.permute.xlu0 %8873
      %8875 = vrot.lane.b32.xlu0 %v8861, 48
      %v8876 = vpop.permute.xlu0 %8875
      %8877 = vrot.lane.b32.xlu0 %v8862, 48
      %v8878 = vpop.permute.xlu0 %8877
      %8887 = vst.msk [vmem:[#allocation2 + $0x8] sm:$0xff] %vm2745, %v8864
      %8888 = vst.msk [vmem:[#allocation2 + $0x18] sm:$0xff] %vm2745, %v8866
      %8889 = vst.msk [vmem:[#allocation2 + $0x28] sm:$0xff] %vm2745, %v8868
      %8890 = vst.msk [vmem:[#allocation2 + $0x38] sm:$0xff] %vm2745, %v8870
      %8891 = vst.msk [vmem:[#allocation2 + $0x48] sm:$0xff] %vm2745, %v8872
      %8892 = vst.msk [vmem:[#allocation2 + $0x58] sm:$0xff] %vm2745, %v8874
      %8893 = vst.msk [vmem:[#allocation2 + $0x68] sm:$0xff] %vm2745, %v8876
      %8894 = vst.msk [vmem:[#allocation2 + $0x78] sm:$0xff] %vm2745, %v8878
      %v8895 = vld [vmem:[%s8534] sm:$0xf]
      %v8896 = vld [vmem:[%s8534 + $0x4] sm:$0xf]
      %v8897 = vld [vmem:[%s8534 + $0x8] sm:$0x1]
      %v8898 = vld [vmem:[%s8534 + $0xc] sm:$0xf]
      %v8899 = vld [vmem:[%s8534 + $0x10] sm:$0xf]
      %v8900 = vld [vmem:[%s8534 + $0x14] sm:$0x1]
      %v8901 = vld [vmem:[%s8534 + $0x18] sm:$0xf]
      %v8902 = vld [vmem:[%s8534 + $0x1c] sm:$0xf]
      %v8903 = vld [vmem:[%s8534 + $0x20] sm:$0x1]
      %v8904 = vld [vmem:[%s8534 + $0x24] sm:$0xf]
      %v8905 = vld [vmem:[%s8534 + $0x28] sm:$0xf]
      %v8906 = vld [vmem:[%s8534 + $0x2c] sm:$0x1]
      %v8907 = vld [vmem:[%s8534 + $0x30] sm:$0xf]
      %v8908 = vld [vmem:[%s8534 + $0x34] sm:$0xf]
      %v8909 = vld [vmem:[%s8534 + $0x38] sm:$0x1]
      %v8910 = vld [vmem:[%s8534 + $0x3c] sm:$0xf]
      %v8911 = vld [vmem:[%s8534 + $0x40] sm:$0xf]
      %v8912 = vld [vmem:[%s8534 + $0x44] sm:$0x1]
      %v8913 = vld [vmem:[%s8534 + $0x48] sm:$0xf]
      %v8914 = vld [vmem:[%s8534 + $0x4c] sm:$0xf]
      %v8915 = vld [vmem:[%s8534 + $0x50] sm:$0x1]
      %v8916 = vld [vmem:[%s8534 + $0x54] sm:$0xf]
      %v8917 = vld [vmem:[%s8534 + $0x58] sm:$0xf]
      %v8918 = vld [vmem:[%s8534 + $0x5c] sm:$0x1]
      %v8920 = vshrl.u32 %v8895, 16
      %v8922 = vrot.slane %v8920, 4
      %v8923 = vshll.u32 %v8895, 16
      %v8925 = vrot.slane %v8923, 5
      %v8926 = vor.u32 %v8922, %v8925
      %v8927 = vrot.slane %v8926, 4
      %v8929 = vshll.u32 %v8896, 16
      %v8931 = vrot.slane %v8929, 5
      %v8932 = vsel %vm550, %v8927, %v8931
      %v8933 = vshrl.u32 %v8896, 16
      %v8935 = vrot.slane %v8933, 4
      %v8936 = vor.u32 %v8935, %v8931
      %v8937 = vrot.slane %v8936, 4
      %v8939 = vshll.u32 %v8897, 16
      %v8941 = vrot.slane %v8939, 5
      %v8942 = vsel %vm550, %v8937, %v8941
      %v8944 = vshrl.u32 %v8898, 16
      %v8946 = vrot.slane %v8944, 4
      %v8947 = vshll.u32 %v8898, 16
      %v8949 = vrot.slane %v8947, 5
      %v8950 = vor.u32 %v8946, %v8949
      %v8951 = vrot.slane %v8950, 4
      %v8953 = vshll.u32 %v8899, 16
      %v8955 = vrot.slane %v8953, 5
      %v8956 = vsel %vm550, %v8951, %v8955
      %v8957 = vshrl.u32 %v8899, 16
      %v8959 = vrot.slane %v8957, 4
      %v8960 = vor.u32 %v8959, %v8955
      %v8961 = vrot.slane %v8960, 4
      %v8963 = vshll.u32 %v8900, 16
      %v8965 = vrot.slane %v8963, 5
      %v8966 = vsel %vm550, %v8961, %v8965
      %v8968 = vshrl.u32 %v8901, 16
      %v8970 = vrot.slane %v8968, 4
      %v8971 = vshll.u32 %v8901, 16
      %v8973 = vrot.slane %v8971, 5
      %v8974 = vor.u32 %v8970, %v8973
      %v8975 = vrot.slane %v8974, 4
      %v8977 = vshll.u32 %v8902, 16
      %v8979 = vrot.slane %v8977, 5
      %v8980 = vsel %vm550, %v8975, %v8979
      %v8981 = vshrl.u32 %v8902, 16
      %v8983 = vrot.slane %v8981, 4
      %v8984 = vor.u32 %v8983, %v8979
      %v8985 = vrot.slane %v8984, 4
      %v8987 = vshll.u32 %v8903, 16
      %v8989 = vrot.slane %v8987, 5
      %v8990 = vsel %vm550, %v8985, %v8989
      %v8992 = vshrl.u32 %v8904, 16
      %v8994 = vrot.slane %v8992, 4
      %v8995 = vshll.u32 %v8904, 16
      %v8997 = vrot.slane %v8995, 5
      %v8998 = vor.u32 %v8994, %v8997
      %v8999 = vrot.slane %v8998, 4
      %v9001 = vshll.u32 %v8905, 16
      %v9003 = vrot.slane %v9001, 5
      %v9004 = vsel %vm550, %v8999, %v9003
      %v9005 = vshrl.u32 %v8905, 16
      %v9007 = vrot.slane %v9005, 4
      %v9008 = vor.u32 %v9007, %v9003
      %v9009 = vrot.slane %v9008, 4
      %v9011 = vshll.u32 %v8906, 16
      %v9013 = vrot.slane %v9011, 5
      %v9014 = vsel %vm550, %v9009, %v9013
      %v9016 = vshrl.u32 %v8907, 16
      %v9018 = vrot.slane %v9016, 4
      %v9019 = vshll.u32 %v8907, 16
      %v9021 = vrot.slane %v9019, 5
      %v9022 = vor.u32 %v9018, %v9021
      %v9023 = vrot.slane %v9022, 4
      %v9025 = vshll.u32 %v8908, 16
      %v9027 = vrot.slane %v9025, 5
      %v9028 = vsel %vm550, %v9023, %v9027
      %v9029 = vshrl.u32 %v8908, 16
      %v9031 = vrot.slane %v9029, 4
      %v9032 = vor.u32 %v9031, %v9027
      %v9033 = vrot.slane %v9032, 4
      %v9035 = vshll.u32 %v8909, 16
      %v9037 = vrot.slane %v9035, 5
      %v9038 = vsel %vm550, %v9033, %v9037
      %v9040 = vshrl.u32 %v8910, 16
      %v9042 = vrot.slane %v9040, 4
      %v9043 = vshll.u32 %v8910, 16
      %v9045 = vrot.slane %v9043, 5
      %v9046 = vor.u32 %v9042, %v9045
      %v9047 = vrot.slane %v9046, 4
      %v9049 = vshll.u32 %v8911, 16
      %v9051 = vrot.slane %v9049, 5
      %v9052 = vsel %vm550, %v9047, %v9051
      %v9053 = vshrl.u32 %v8911, 16
      %v9055 = vrot.slane %v9053, 4
      %v9056 = vor.u32 %v9055, %v9051
      %v9057 = vrot.slane %v9056, 4
      %v9059 = vshll.u32 %v8912, 16
      %v9061 = vrot.slane %v9059, 5
      %v9062 = vsel %vm550, %v9057, %v9061
      %v9064 = vshrl.u32 %v8913, 16
      %v9066 = vrot.slane %v9064, 4
      %v9067 = vshll.u32 %v8913, 16
      %v9069 = vrot.slane %v9067, 5
      %v9070 = vor.u32 %v9066, %v9069
      %v9071 = vrot.slane %v9070, 4
      %v9073 = vshll.u32 %v8914, 16
      %v9075 = vrot.slane %v9073, 5
      %v9076 = vsel %vm550, %v9071, %v9075
      %v9077 = vshrl.u32 %v8914, 16
      %v9079 = vrot.slane %v9077, 4
      %v9080 = vor.u32 %v9079, %v9075
      %v9081 = vrot.slane %v9080, 4
      %v9083 = vshll.u32 %v8915, 16
      %v9085 = vrot.slane %v9083, 5
      %v9086 = vsel %vm550, %v9081, %v9085
      %v9088 = vshrl.u32 %v8916, 16
      %v9090 = vrot.slane %v9088, 4
      %v9091 = vshll.u32 %v8916, 16
      %v9093 = vrot.slane %v9091, 5
      %v9094 = vor.u32 %v9090, %v9093
      %v9095 = vrot.slane %v9094, 4
      %v9097 = vshll.u32 %v8917, 16
      %v9099 = vrot.slane %v9097, 5
      %v9100 = vsel %vm550, %v9095, %v9099
      %v9101 = vshrl.u32 %v8917, 16
      %v9103 = vrot.slane %v9101, 4
      %v9104 = vor.u32 %v9103, %v9099
      %v9105 = vrot.slane %v9104, 4
      %v9107 = vshll.u32 %v8918, 16
      %v9109 = vrot.slane %v9107, 5
      %v9110 = vsel %vm550, %v9105, %v9109
      %v9111 = vunpack.c.l.b16 %v8932
      %v9112 = vunpack.c.l.b16 %v8942
      %v9113 = vunpack.c.l.b16 %v8956
      %v9114 = vunpack.c.l.b16 %v8966
      %v9115 = vunpack.c.l.b16 %v8980
      %v9116 = vunpack.c.l.b16 %v8990
      %v9117 = vunpack.c.l.b16 %v9004
      %v9118 = vunpack.c.l.b16 %v9014
      %v9119 = vunpack.c.l.b16 %v9028
      %v9120 = vunpack.c.l.b16 %v9038
      %v9121 = vunpack.c.l.b16 %v9052
      %v9122 = vunpack.c.l.b16 %v9062
      %v9123 = vunpack.c.l.b16 %v9076
      %v9124 = vunpack.c.l.b16 %v9086
      %v9125 = vunpack.c.l.b16 %v9100
      %v9126 = vunpack.c.l.b16 %v9110
      %v9127 = vpack.c.b16 %v9112, %v9111
      %v9128 = vpack.c.b16 %v9114, %v9113
      %v9129 = vpack.c.b16 %v9116, %v9115
      %v9130 = vpack.c.b16 %v9118, %v9117
      %v9131 = vpack.c.b16 %v9120, %v9119
      %v9132 = vpack.c.b16 %v9122, %v9121
      %v9133 = vpack.c.b16 %v9124, %v9123
      %v9134 = vpack.c.b16 %v9126, %v9125
      %9135 = vrot.lane.b32.xlu0 %v9127, 52
      %v9136 = vpop.permute.xlu0 %9135
      %9137 = vrot.lane.b32.xlu0 %v9128, 52
      %v9138 = vpop.permute.xlu0 %9137
      %9139 = vrot.lane.b32.xlu0 %v9129, 52
      %v9140 = vpop.permute.xlu0 %9139
      %9141 = vrot.lane.b32.xlu0 %v9130, 52
      %v9142 = vpop.permute.xlu0 %9141
      %9143 = vrot.lane.b32.xlu0 %v9131, 52
      %v9144 = vpop.permute.xlu0 %9143
      %9145 = vrot.lane.b32.xlu0 %v9132, 52
      %v9146 = vpop.permute.xlu0 %9145
      %9147 = vrot.lane.b32.xlu0 %v9133, 52
      %v9148 = vpop.permute.xlu0 %9147
      %9149 = vrot.lane.b32.xlu0 %v9134, 52
      %v9150 = vpop.permute.xlu0 %9149
      %9159 = vst.msk [vmem:[#allocation2 + $0x8] sm:$0xff] %vm3050, %v9136
      %9160 = vst.msk [vmem:[#allocation2 + $0x18] sm:$0xff] %vm3050, %v9138
      %9161 = vst.msk [vmem:[#allocation2 + $0x28] sm:$0xff] %vm3050, %v9140
      %9162 = vst.msk [vmem:[#allocation2 + $0x38] sm:$0xff] %vm3050, %v9142
      %9163 = vst.msk [vmem:[#allocation2 + $0x48] sm:$0xff] %vm3050, %v9144
      %9164 = vst.msk [vmem:[#allocation2 + $0x58] sm:$0xff] %vm3050, %v9146
      %9165 = vst.msk [vmem:[#allocation2 + $0x68] sm:$0xff] %vm3050, %v9148
      %9166 = vst.msk [vmem:[#allocation2 + $0x78] sm:$0xff] %vm3050, %v9150
      %v9167 = vld [vmem:[%s8445] sm:$0xe]
      %v9168 = vld [vmem:[%s8445 + $0x4] sm:$0xf]
      %v9169 = vld [vmem:[%s8445 + $0x8] sm:$0x1]
      %v9170 = vld [vmem:[%s8445 + $0xc] sm:$0xe]
      %v9171 = vld [vmem:[%s8445 + $0x10] sm:$0xf]
      %v9172 = vld [vmem:[%s8445 + $0x14] sm:$0x1]
      %v9173 = vld [vmem:[%s8445 + $0x18] sm:$0xe]
      %v9174 = vld [vmem:[%s8445 + $0x1c] sm:$0xf]
      %v9175 = vld [vmem:[%s8445 + $0x20] sm:$0x1]
      %v9176 = vld [vmem:[%s8445 + $0x24] sm:$0xe]
      %v9177 = vld [vmem:[%s8445 + $0x28] sm:$0xf]
      %v9178 = vld [vmem:[%s8445 + $0x2c] sm:$0x1]
      %v9179 = vld [vmem:[%s8445 + $0x30] sm:$0xe]
      %v9180 = vld [vmem:[%s8445 + $0x34] sm:$0xf]
      %v9181 = vld [vmem:[%s8445 + $0x38] sm:$0x1]
      %v9182 = vld [vmem:[%s8445 + $0x3c] sm:$0xe]
      %v9183 = vld [vmem:[%s8445 + $0x40] sm:$0xf]
      %v9184 = vld [vmem:[%s8445 + $0x44] sm:$0x1]
      %v9185 = vld [vmem:[%s8445 + $0x48] sm:$0xe]
      %v9186 = vld [vmem:[%s8445 + $0x4c] sm:$0xf]
      %v9187 = vld [vmem:[%s8445 + $0x50] sm:$0x1]
      %v9188 = vld [vmem:[%s8445 + $0x54] sm:$0xe]
      %v9189 = vld [vmem:[%s8445 + $0x58] sm:$0xf]
      %v9190 = vld [vmem:[%s8445 + $0x5c] sm:$0x1]
      %v9215 = vrot.slane %v9167, 5
      %v9216 = vrot.slane %v9215, 4
      %v9217 = vrot.slane %v9168, 5
      %v9218 = vsel %vm1123, %v9216, %v9217
      %v9219 = vrot.slane %v9217, 4
      %v9220 = vrot.slane %v9169, 5
      %v9221 = vsel %vm1123, %v9219, %v9220
      %v9222 = vrot.slane %v9170, 5
      %v9223 = vrot.slane %v9222, 4
      %v9224 = vrot.slane %v9171, 5
      %v9225 = vsel %vm1123, %v9223, %v9224
      %v9226 = vrot.slane %v9224, 4
      %v9227 = vrot.slane %v9172, 5
      %v9228 = vsel %vm1123, %v9226, %v9227
      %v9229 = vrot.slane %v9173, 5
      %v9230 = vrot.slane %v9229, 4
      %v9231 = vrot.slane %v9174, 5
      %v9232 = vsel %vm1123, %v9230, %v9231
      %v9233 = vrot.slane %v9231, 4
      %v9234 = vrot.slane %v9175, 5
      %v9235 = vsel %vm1123, %v9233, %v9234
      %v9236 = vrot.slane %v9176, 5
      %v9237 = vrot.slane %v9236, 4
      %v9238 = vrot.slane %v9177, 5
      %v9239 = vsel %vm1123, %v9237, %v9238
      %v9240 = vrot.slane %v9238, 4
      %v9241 = vrot.slane %v9178, 5
      %v9242 = vsel %vm1123, %v9240, %v9241
      %v9243 = vrot.slane %v9179, 5
      %v9244 = vrot.slane %v9243, 4
      %v9245 = vrot.slane %v9180, 5
      %v9246 = vsel %vm1123, %v9244, %v9245
      %v9247 = vrot.slane %v9245, 4
      %v9248 = vrot.slane %v9181, 5
      %v9249 = vsel %vm1123, %v9247, %v9248
      %v9250 = vrot.slane %v9182, 5
      %v9251 = vrot.slane %v9250, 4
      %v9252 = vrot.slane %v9183, 5
      %v9253 = vsel %vm1123, %v9251, %v9252
      %v9254 = vrot.slane %v9252, 4
      %v9255 = vrot.slane %v9184, 5
      %v9256 = vsel %vm1123, %v9254, %v9255
      %v9257 = vrot.slane %v9185, 5
      %v9258 = vrot.slane %v9257, 4
      %v9259 = vrot.slane %v9186, 5
      %v9260 = vsel %vm1123, %v9258, %v9259
      %v9261 = vrot.slane %v9259, 4
      %v9262 = vrot.slane %v9187, 5
      %v9263 = vsel %vm1123, %v9261, %v9262
      %v9264 = vrot.slane %v9188, 5
      %v9265 = vrot.slane %v9264, 4
      %v9266 = vrot.slane %v9189, 5
      %v9267 = vsel %vm1123, %v9265, %v9266
      %v9268 = vrot.slane %v9266, 4
      %v9269 = vrot.slane %v9190, 5
      %v9270 = vsel %vm1123, %v9268, %v9269
      %v9271 = vunpack.c.l.b16 %v9218
      %v9272 = vunpack.c.l.b16 %v9221
      %v9273 = vunpack.c.l.b16 %v9225
      %v9274 = vunpack.c.l.b16 %v9228
      %v9275 = vunpack.c.l.b16 %v9232
      %v9276 = vunpack.c.l.b16 %v9235
      %v9277 = vunpack.c.l.b16 %v9239
      %v9278 = vunpack.c.l.b16 %v9242
      %v9279 = vunpack.c.l.b16 %v9246
      %v9280 = vunpack.c.l.b16 %v9249
      %v9281 = vunpack.c.l.b16 %v9253
      %v9282 = vunpack.c.l.b16 %v9256
      %v9283 = vunpack.c.l.b16 %v9260
      %v9284 = vunpack.c.l.b16 %v9263
      %v9285 = vunpack.c.l.b16 %v9267
      %v9286 = vunpack.c.l.b16 %v9270
      %v9287 = vpack.c.b16 %v9272, %v9271
      %v9288 = vpack.c.b16 %v9274, %v9273
      %v9289 = vpack.c.b16 %v9276, %v9275
      %v9290 = vpack.c.b16 %v9278, %v9277
      %v9291 = vpack.c.b16 %v9280, %v9279
      %v9292 = vpack.c.b16 %v9282, %v9281
      %v9293 = vpack.c.b16 %v9284, %v9283
      %v9294 = vpack.c.b16 %v9286, %v9285
      %9295 = vrot.lane.b32.xlu0 %v9287, 56
      %v9296 = vpop.permute.xlu0 %9295
      %9297 = vrot.lane.b32.xlu0 %v9288, 56
      %v9298 = vpop.permute.xlu0 %9297
      %9299 = vrot.lane.b32.xlu0 %v9289, 56
      %v9300 = vpop.permute.xlu0 %9299
      %9301 = vrot.lane.b32.xlu0 %v9290, 56
      %v9302 = vpop.permute.xlu0 %9301
      %9303 = vrot.lane.b32.xlu0 %v9291, 56
      %v9304 = vpop.permute.xlu0 %9303
      %9305 = vrot.lane.b32.xlu0 %v9292, 56
      %v9306 = vpop.permute.xlu0 %9305
      %9307 = vrot.lane.b32.xlu0 %v9293, 56
      %v9308 = vpop.permute.xlu0 %9307
      %9309 = vrot.lane.b32.xlu0 %v9294, 56
      %v9310 = vpop.permute.xlu0 %9309
      %9319 = vst.msk [vmem:[#allocation2 + $0x8] sm:$0xff] %vm3140, %v9296
      %9320 = vst.msk [vmem:[#allocation2 + $0x18] sm:$0xff] %vm3140, %v9298
      %9321 = vst.msk [vmem:[#allocation2 + $0x28] sm:$0xff] %vm3140, %v9300
      %9322 = vst.msk [vmem:[#allocation2 + $0x38] sm:$0xff] %vm3140, %v9302
      %9323 = vst.msk [vmem:[#allocation2 + $0x48] sm:$0xff] %vm3140, %v9304
      %9324 = vst.msk [vmem:[#allocation2 + $0x58] sm:$0xff] %vm3140, %v9306
      %9325 = vst.msk [vmem:[#allocation2 + $0x68] sm:$0xff] %vm3140, %v9308
      %9326 = vst.msk [vmem:[#allocation2 + $0x78] sm:$0xff] %vm3140, %v9310
      %v9327 = vld [vmem:[%s8534] sm:$0xe]
      %v9328 = vld [vmem:[%s8534 + $0x4] sm:$0xf]
      %v9329 = vld [vmem:[%s8534 + $0x8] sm:$0x1]
      %v9330 = vld [vmem:[%s8534 + $0xc] sm:$0xe]
      %v9331 = vld [vmem:[%s8534 + $0x10] sm:$0xf]
      %v9332 = vld [vmem:[%s8534 + $0x14] sm:$0x1]
      %v9333 = vld [vmem:[%s8534 + $0x18] sm:$0xe]
      %v9334 = vld [vmem:[%s8534 + $0x1c] sm:$0xf]
      %v9335 = vld [vmem:[%s8534 + $0x20] sm:$0x1]
      %v9336 = vld [vmem:[%s8534 + $0x24] sm:$0xe]
      %v9337 = vld [vmem:[%s8534 + $0x28] sm:$0xf]
      %v9338 = vld [vmem:[%s8534 + $0x2c] sm:$0x1]
      %v9339 = vld [vmem:[%s8534 + $0x30] sm:$0xe]
      %v9340 = vld [vmem:[%s8534 + $0x34] sm:$0xf]
      %v9341 = vld [vmem:[%s8534 + $0x38] sm:$0x1]
      %v9342 = vld [vmem:[%s8534 + $0x3c] sm:$0xe]
      %v9343 = vld [vmem:[%s8534 + $0x40] sm:$0xf]
      %v9344 = vld [vmem:[%s8534 + $0x44] sm:$0x1]
      %v9345 = vld [vmem:[%s8534 + $0x48] sm:$0xe]
      %v9346 = vld [vmem:[%s8534 + $0x4c] sm:$0xf]
      %v9347 = vld [vmem:[%s8534 + $0x50] sm:$0x1]
      %v9348 = vld [vmem:[%s8534 + $0x54] sm:$0xe]
      %v9349 = vld [vmem:[%s8534 + $0x58] sm:$0xf]
      %v9350 = vld [vmem:[%s8534 + $0x5c] sm:$0x1]
      %v9375 = vrot.slane %v9327, 5
      %v9376 = vrot.slane %v9375, 4
      %v9377 = vrot.slane %v9328, 5
      %v9378 = vsel %vm1123, %v9376, %v9377
      %v9379 = vrot.slane %v9377, 4
      %v9380 = vrot.slane %v9329, 5
      %v9381 = vsel %vm1123, %v9379, %v9380
      %v9382 = vrot.slane %v9330, 5
      %v9383 = vrot.slane %v9382, 4
      %v9384 = vrot.slane %v9331, 5
      %v9385 = vsel %vm1123, %v9383, %v9384
      %v9386 = vrot.slane %v9384, 4
      %v9387 = vrot.slane %v9332, 5
      %v9388 = vsel %vm1123, %v9386, %v9387
      %v9389 = vrot.slane %v9333, 5
      %v9390 = vrot.slane %v9389, 4
      %v9391 = vrot.slane %v9334, 5
      %v9392 = vsel %vm1123, %v9390, %v9391
      %v9393 = vrot.slane %v9391, 4
      %v9394 = vrot.slane %v9335, 5
      %v9395 = vsel %vm1123, %v9393, %v9394
      %v9396 = vrot.slane %v9336, 5
      %v9397 = vrot.slane %v9396, 4
      %v9398 = vrot.slane %v9337, 5
      %v9399 = vsel %vm1123, %v9397, %v9398
      %v9400 = vrot.slane %v9398, 4
      %v9401 = vrot.slane %v9338, 5
      %v9402 = vsel %vm1123, %v9400, %v9401
      %v9403 = vrot.slane %v9339, 5
      %v9404 = vrot.slane %v9403, 4
      %v9405 = vrot.slane %v9340, 5
      %v9406 = vsel %vm1123, %v9404, %v9405
      %v9407 = vrot.slane %v9405, 4
      %v9408 = vrot.slane %v9341, 5
      %v9409 = vsel %vm1123, %v9407, %v9408
      %v9410 = vrot.slane %v9342, 5
      %v9411 = vrot.slane %v9410, 4
      %v9412 = vrot.slane %v9343, 5
      %v9413 = vsel %vm1123, %v9411, %v9412
      %v9414 = vrot.slane %v9412, 4
      %v9415 = vrot.slane %v9344, 5
      %v9416 = vsel %vm1123, %v9414, %v9415
      %v9417 = vrot.slane %v9345, 5
      %v9418 = vrot.slane %v9417, 4
      %v9419 = vrot.slane %v9346, 5
      %v9420 = vsel %vm1123, %v9418, %v9419
      %v9421 = vrot.slane %v9419, 4
      %v9422 = vrot.slane %v9347, 5
      %v9423 = vsel %vm1123, %v9421, %v9422
      %v9424 = vrot.slane %v9348, 5
      %v9425 = vrot.slane %v9424, 4
      %v9426 = vrot.slane %v9349, 5
      %v9427 = vsel %vm1123, %v9425, %v9426
      %v9428 = vrot.slane %v9426, 4
      %v9429 = vrot.slane %v9350, 5
      %v9430 = vsel %vm1123, %v9428, %v9429
      %v9431 = vunpack.c.l.b16 %v9378
      %v9432 = vunpack.c.l.b16 %v9381
      %v9433 = vunpack.c.l.b16 %v9385
      %v9434 = vunpack.c.l.b16 %v9388
      %v9435 = vunpack.c.l.b16 %v9392
      %v9436 = vunpack.c.l.b16 %v9395
      %v9437 = vunpack.c.l.b16 %v9399
      %v9438 = vunpack.c.l.b16 %v9402
      %v9439 = vunpack.c.l.b16 %v9406
      %v9440 = vunpack.c.l.b16 %v9409
      %v9441 = vunpack.c.l.b16 %v9413
      %v9442 = vunpack.c.l.b16 %v9416
      %v9443 = vunpack.c.l.b16 %v9420
      %v9444 = vunpack.c.l.b16 %v9423
      %v9445 = vunpack.c.l.b16 %v9427
      %v9446 = vunpack.c.l.b16 %v9430
      %v9447 = vpack.c.b16 %v9432, %v9431
      %v9448 = vpack.c.b16 %v9434, %v9433
      %v9449 = vpack.c.b16 %v9436, %v9435
      %v9450 = vpack.c.b16 %v9438, %v9437
      %v9451 = vpack.c.b16 %v9440, %v9439
      %v9452 = vpack.c.b16 %v9442, %v9441
      %v9453 = vpack.c.b16 %v9444, %v9443
      %v9454 = vpack.c.b16 %v9446, %v9445
      %9455 = vrot.lane.b32.xlu0 %v9447, 60
      %v9456 = vpop.permute.xlu0 %9455
      %9457 = vrot.lane.b32.xlu0 %v9448, 60
      %v9458 = vpop.permute.xlu0 %9457
      %9459 = vrot.lane.b32.xlu0 %v9449, 60
      %v9460 = vpop.permute.xlu0 %9459
      %9461 = vrot.lane.b32.xlu0 %v9450, 60
      %v9462 = vpop.permute.xlu0 %9461
      %9463 = vrot.lane.b32.xlu0 %v9451, 60
      %v9464 = vpop.permute.xlu0 %9463
      %9465 = vrot.lane.b32.xlu0 %v9452, 60
      %v9466 = vpop.permute.xlu0 %9465
      %9467 = vrot.lane.b32.xlu0 %v9453, 60
      %v9468 = vpop.permute.xlu0 %9467
      %9469 = vrot.lane.b32.xlu0 %v9454, 60
      %v9470 = vpop.permute.xlu0 %9469
      %9479 = vst.msk [vmem:[#allocation2 + $0x8] sm:$0xff] %vm3230, %v9456
      %9480 = vst.msk [vmem:[#allocation2 + $0x18] sm:$0xff] %vm3230, %v9458
      %9481 = vst.msk [vmem:[#allocation2 + $0x28] sm:$0xff] %vm3230, %v9460
      %9482 = vst.msk [vmem:[#allocation2 + $0x38] sm:$0xff] %vm3230, %v9462
      %9483 = vst.msk [vmem:[#allocation2 + $0x48] sm:$0xff] %vm3230, %v9464
      %9484 = vst.msk [vmem:[#allocation2 + $0x58] sm:$0xff] %vm3230, %v9466
      %9485 = vst.msk [vmem:[#allocation2 + $0x68] sm:$0xff] %vm3230, %v9468
      %9486 = vst.msk [vmem:[#allocation2 + $0x78] sm:$0xff] %vm3230, %v9470
      %v9487 = vld [vmem:[%s8445] sm:$0xe]
      %v9488 = vld [vmem:[%s8445 + $0x4] sm:$0xf]
      %v9489 = vld [vmem:[%s8445 + $0x8] sm:$0x3]
      %v9490 = vld [vmem:[%s8445 + $0xc] sm:$0xe]
      %v9491 = vld [vmem:[%s8445 + $0x10] sm:$0xf]
      %v9492 = vld [vmem:[%s8445 + $0x14] sm:$0x3]
      %v9493 = vld [vmem:[%s8445 + $0x18] sm:$0xe]
      %v9494 = vld [vmem:[%s8445 + $0x1c] sm:$0xf]
      %v9495 = vld [vmem:[%s8445 + $0x20] sm:$0x3]
      %v9496 = vld [vmem:[%s8445 + $0x24] sm:$0xe]
      %v9497 = vld [vmem:[%s8445 + $0x28] sm:$0xf]
      %v9498 = vld [vmem:[%s8445 + $0x2c] sm:$0x3]
      %v9499 = vld [vmem:[%s8445 + $0x30] sm:$0xe]
      %v9500 = vld [vmem:[%s8445 + $0x34] sm:$0xf]
      %v9501 = vld [vmem:[%s8445 + $0x38] sm:$0x3]
      %v9502 = vld [vmem:[%s8445 + $0x3c] sm:$0xe]
      %v9503 = vld [vmem:[%s8445 + $0x40] sm:$0xf]
      %v9504 = vld [vmem:[%s8445 + $0x44] sm:$0x3]
      %v9505 = vld [vmem:[%s8445 + $0x48] sm:$0xe]
      %v9506 = vld [vmem:[%s8445 + $0x4c] sm:$0xf]
      %v9507 = vld [vmem:[%s8445 + $0x50] sm:$0x3]
      %v9508 = vld [vmem:[%s8445 + $0x54] sm:$0xe]
      %v9509 = vld [vmem:[%s8445 + $0x58] sm:$0xf]
      %v9510 = vld [vmem:[%s8445 + $0x5c] sm:$0x3]
      %v9512 = vshrl.u32 %v9487, 16
      %v9514 = vrot.slane %v9512, 5
      %v9515 = vshll.u32 %v9487, 16
      %v9517 = vrot.slane %v9515, 6
      %v9518 = vor.u32 %v9514, %v9517
      %v9519 = vrot.slane %v9518, 4
      %v9521 = vshrl.u32 %v9488, 16
      %v9523 = vrot.slane %v9521, 5
      %v9524 = vshll.u32 %v9488, 16
      %v9526 = vrot.slane %v9524, 6
      %v9527 = vor.u32 %v9523, %v9526
      %v9528 = vsel %vm1424, %v9519, %v9527
      %v9529 = vrot.slane %v9527, 4
      %v9531 = vshrl.u32 %v9489, 16
      %v9533 = vrot.slane %v9531, 5
      %v9534 = vshll.u32 %v9489, 16
      %v9536 = vrot.slane %v9534, 6
      %v9537 = vor.u32 %v9533, %v9536
      %v9538 = vsel %vm1424, %v9529, %v9537
      %v9540 = vshrl.u32 %v9490, 16
      %v9542 = vrot.slane %v9540, 5
      %v9543 = vshll.u32 %v9490, 16
      %v9545 = vrot.slane %v9543, 6
      %v9546 = vor.u32 %v9542, %v9545
      %v9547 = vrot.slane %v9546, 4
      %v9549 = vshrl.u32 %v9491, 16
      %v9551 = vrot.slane %v9549, 5
      %v9552 = vshll.u32 %v9491, 16
      %v9554 = vrot.slane %v9552, 6
      %v9555 = vor.u32 %v9551, %v9554
      %v9556 = vsel %vm1424, %v9547, %v9555
      %v9557 = vrot.slane %v9555, 4
      %v9559 = vshrl.u32 %v9492, 16
      %v9561 = vrot.slane %v9559, 5
      %v9562 = vshll.u32 %v9492, 16
      %v9564 = vrot.slane %v9562, 6
      %v9565 = vor.u32 %v9561, %v9564
      %v9566 = vsel %vm1424, %v9557, %v9565
      %v9568 = vshrl.u32 %v9493, 16
      %v9570 = vrot.slane %v9568, 5
      %v9571 = vshll.u32 %v9493, 16
      %v9573 = vrot.slane %v9571, 6
      %v9574 = vor.u32 %v9570, %v9573
      %v9575 = vrot.slane %v9574, 4
      %v9577 = vshrl.u32 %v9494, 16
      %v9579 = vrot.slane %v9577, 5
      %v9580 = vshll.u32 %v9494, 16
      %v9582 = vrot.slane %v9580, 6
      %v9583 = vor.u32 %v9579, %v9582
      %v9584 = vsel %vm1424, %v9575, %v9583
      %v9585 = vrot.slane %v9583, 4
      %v9587 = vshrl.u32 %v9495, 16
      %v9589 = vrot.slane %v9587, 5
      %v9590 = vshll.u32 %v9495, 16
      %v9592 = vrot.slane %v9590, 6
      %v9593 = vor.u32 %v9589, %v9592
      %v9594 = vsel %vm1424, %v9585, %v9593
      %v9596 = vshrl.u32 %v9496, 16
      %v9598 = vrot.slane %v9596, 5
      %v9599 = vshll.u32 %v9496, 16
      %v9601 = vrot.slane %v9599, 6
      %v9602 = vor.u32 %v9598, %v9601
      %v9603 = vrot.slane %v9602, 4
      %v9605 = vshrl.u32 %v9497, 16
      %v9607 = vrot.slane %v9605, 5
      %v9608 = vshll.u32 %v9497, 16
      %v9610 = vrot.slane %v9608, 6
      %v9611 = vor.u32 %v9607, %v9610
      %v9612 = vsel %vm1424, %v9603, %v9611
      %v9613 = vrot.slane %v9611, 4
      %v9615 = vshrl.u32 %v9498, 16
      %v9617 = vrot.slane %v9615, 5
      %v9618 = vshll.u32 %v9498, 16
      %v9620 = vrot.slane %v9618, 6
      %v9621 = vor.u32 %v9617, %v9620
      %v9622 = vsel %vm1424, %v9613, %v9621
      %v9624 = vshrl.u32 %v9499, 16
      %v9626 = vrot.slane %v9624, 5
      %v9627 = vshll.u32 %v9499, 16
      %v9629 = vrot.slane %v9627, 6
      %v9630 = vor.u32 %v9626, %v9629
      %v9631 = vrot.slane %v9630, 4
      %v9633 = vshrl.u32 %v9500, 16
      %v9635 = vrot.slane %v9633, 5
      %v9636 = vshll.u32 %v9500, 16
      %v9638 = vrot.slane %v9636, 6
      %v9639 = vor.u32 %v9635, %v9638
      %v9640 = vsel %vm1424, %v9631, %v9639
      %v9641 = vrot.slane %v9639, 4
      %v9643 = vshrl.u32 %v9501, 16
      %v9645 = vrot.slane %v9643, 5
      %v9646 = vshll.u32 %v9501, 16
      %v9648 = vrot.slane %v9646, 6
      %v9649 = vor.u32 %v9645, %v9648
      %v9650 = vsel %vm1424, %v9641, %v9649
      %v9652 = vshrl.u32 %v9502, 16
      %v9654 = vrot.slane %v9652, 5
      %v9655 = vshll.u32 %v9502, 16
      %v9657 = vrot.slane %v9655, 6
      %v9658 = vor.u32 %v9654, %v9657
      %v9659 = vrot.slane %v9658, 4
      %v9661 = vshrl.u32 %v9503, 16
      %v9663 = vrot.slane %v9661, 5
      %v9664 = vshll.u32 %v9503, 16
      %v9666 = vrot.slane %v9664, 6
      %v9667 = vor.u32 %v9663, %v9666
      %v9668 = vsel %vm1424, %v9659, %v9667
      %v9669 = vrot.slane %v9667, 4
      %v9671 = vshrl.u32 %v9504, 16
      %v9673 = vrot.slane %v9671, 5
      %v9674 = vshll.u32 %v9504, 16
      %v9676 = vrot.slane %v9674, 6
      %v9677 = vor.u32 %v9673, %v9676
      %v9678 = vsel %vm1424, %v9669, %v9677
      %v9680 = vshrl.u32 %v9505, 16
      %v9682 = vrot.slane %v9680, 5
      %v9683 = vshll.u32 %v9505, 16
      %v9685 = vrot.slane %v9683, 6
      %v9686 = vor.u32 %v9682, %v9685
      %v9687 = vrot.slane %v9686, 4
      %v9689 = vshrl.u32 %v9506, 16
      %v9691 = vrot.slane %v9689, 5
      %v9692 = vshll.u32 %v9506, 16
      %v9694 = vrot.slane %v9692, 6
      %v9695 = vor.u32 %v9691, %v9694
      %v9696 = vsel %vm1424, %v9687, %v9695
      %v9697 = vrot.slane %v9695, 4
      %v9699 = vshrl.u32 %v9507, 16
      %v9701 = vrot.slane %v9699, 5
      %v9702 = vshll.u32 %v9507, 16
      %v9704 = vrot.slane %v9702, 6
      %v9705 = vor.u32 %v9701, %v9704
      %v9706 = vsel %vm1424, %v9697, %v9705
      %v9708 = vshrl.u32 %v9508, 16
      %v9710 = vrot.slane %v9708, 5
      %v9711 = vshll.u32 %v9508, 16
      %v9713 = vrot.slane %v9711, 6
      %v9714 = vor.u32 %v9710, %v9713
      %v9715 = vrot.slane %v9714, 4
      %v9717 = vshrl.u32 %v9509, 16
      %v9719 = vrot.slane %v9717, 5
      %v9720 = vshll.u32 %v9509, 16
      %v9722 = vrot.slane %v9720, 6
      %v9723 = vor.u32 %v9719, %v9722
      %v9724 = vsel %vm1424, %v9715, %v9723
      %v9725 = vrot.slane %v9723, 4
      %v9727 = vshrl.u32 %v9510, 16
      %v9729 = vrot.slane %v9727, 5
      %v9730 = vshll.u32 %v9510, 16
      %v9732 = vrot.slane %v9730, 6
      %v9733 = vor.u32 %v9729, %v9732
      %v9734 = vsel %vm1424, %v9725, %v9733
      %v9735 = vunpack.c.l.b16 %v9528
      %v9736 = vunpack.c.l.b16 %v9538
      %v9737 = vunpack.c.l.b16 %v9556
      %v9738 = vunpack.c.l.b16 %v9566
      %v9739 = vunpack.c.l.b16 %v9584
      %v9740 = vunpack.c.l.b16 %v9594
      %v9741 = vunpack.c.l.b16 %v9612
      %v9742 = vunpack.c.l.b16 %v9622
      %v9743 = vunpack.c.l.b16 %v9640
      %v9744 = vunpack.c.l.b16 %v9650
      %v9745 = vunpack.c.l.b16 %v9668
      %v9746 = vunpack.c.l.b16 %v9678
      %v9747 = vunpack.c.l.b16 %v9696
      %v9748 = vunpack.c.l.b16 %v9706
      %v9749 = vunpack.c.l.b16 %v9724
      %v9750 = vunpack.c.l.b16 %v9734
      %v9751 = vpack.c.b16 %v9736, %v9735
      %v9752 = vpack.c.b16 %v9738, %v9737
      %v9753 = vpack.c.b16 %v9740, %v9739
      %v9754 = vpack.c.b16 %v9742, %v9741
      %v9755 = vpack.c.b16 %v9744, %v9743
      %v9756 = vpack.c.b16 %v9746, %v9745
      %v9757 = vpack.c.b16 %v9748, %v9747
      %v9758 = vpack.c.b16 %v9750, %v9749
      %9759 = vrot.lane.b32.xlu0 %v9751, 64
      %v9760 = vpop.permute.xlu0 %9759
      %9761 = vrot.lane.b32.xlu0 %v9752, 64
      %v9762 = vpop.permute.xlu0 %9761
      %9763 = vrot.lane.b32.xlu0 %v9753, 64
      %v9764 = vpop.permute.xlu0 %9763
      %9765 = vrot.lane.b32.xlu0 %v9754, 64
      %v9766 = vpop.permute.xlu0 %9765
      %9767 = vrot.lane.b32.xlu0 %v9755, 64
      %v9768 = vpop.permute.xlu0 %9767
      %9769 = vrot.lane.b32.xlu0 %v9756, 64
      %v9770 = vpop.permute.xlu0 %9769
      %9771 = vrot.lane.b32.xlu0 %v9757, 64
      %v9772 = vpop.permute.xlu0 %9771
      %9773 = vrot.lane.b32.xlu0 %v9758, 64
      %v9774 = vpop.permute.xlu0 %9773
      %9783 = vst.msk [vmem:[#allocation2 + $0x8] sm:$0xff] %vm3503, %v9760
      %9784 = vst.msk [vmem:[#allocation2 + $0x18] sm:$0xff] %vm3503, %v9762
      %9785 = vst.msk [vmem:[#allocation2 + $0x28] sm:$0xff] %vm3503, %v9764
      %9786 = vst.msk [vmem:[#allocation2 + $0x38] sm:$0xff] %vm3503, %v9766
      %9787 = vst.msk [vmem:[#allocation2 + $0x48] sm:$0xff] %vm3503, %v9768
      %9788 = vst.msk [vmem:[#allocation2 + $0x58] sm:$0xff] %vm3503, %v9770
      %9789 = vst.msk [vmem:[#allocation2 + $0x68] sm:$0xff] %vm3503, %v9772
      %9790 = vst.msk [vmem:[#allocation2 + $0x78] sm:$0xff] %vm3503, %v9774
      %v9791 = vld [vmem:[#allocation2] sm:$0xff]
      %v9792 = vld [vmem:[#allocation2 + $0x8] sm:$0xff]
      %v9793 = vld [vmem:[#allocation2 + $0x10] sm:$0xff]
      %v9794 = vld [vmem:[#allocation2 + $0x18] sm:$0xff]
      %v9795 = vld [vmem:[#allocation2 + $0x20] sm:$0xff]
      %v9796 = vld [vmem:[#allocation2 + $0x28] sm:$0xff]
      %v9797 = vld [vmem:[#allocation2 + $0x30] sm:$0xff]
      %v9798 = vld [vmem:[#allocation2 + $0x38] sm:$0xff]
      %v9799 = vld [vmem:[#allocation2 + $0x40] sm:$0xff]
      %v9800 = vld [vmem:[#allocation2 + $0x48] sm:$0xff]
      %v9801 = vld [vmem:[#allocation2 + $0x50] sm:$0xff]
      %v9802 = vld [vmem:[#allocation2 + $0x58] sm:$0xff]
      %v9803 = vld [vmem:[#allocation2 + $0x60] sm:$0xff]
      %v9804 = vld [vmem:[#allocation2 + $0x68] sm:$0xff]
      %v9805 = vld [vmem:[#allocation2 + $0x70] sm:$0xff]
      %v9806 = vld [vmem:[#allocation2 + $0x78] sm:$0xff]
      %v9807 = vld [vmem:[%s1] sm:$0xf]
      %v9808 = vld [vmem:[%s1 + $0x4] sm:$0xf]
      %v9809 = vld [vmem:[%s1 + $0x8] sm:$0xf]
      %v9810 = vld [vmem:[%s1 + $0xc] sm:$0xf]
      %v9811 = vld [vmem:[%s1 + $0x10] sm:$0xf]
      %v9812 = vld [vmem:[%s1 + $0x14] sm:$0xf]
      %v9813 = vld [vmem:[%s1 + $0x18] sm:$0xf]
      %v9814 = vld [vmem:[%s1 + $0x1c] sm:$0xf]
      %v9815 = vld [vmem:[%s1 + $0x20] sm:$0xf]
      %v9816 = vld [vmem:[%s1 + $0x24] sm:$0xf]
      %v9817 = vld [vmem:[%s1 + $0x28] sm:$0xf]
      %v9818 = vld [vmem:[%s1 + $0x2c] sm:$0xf]
      %v9819 = vld [vmem:[%s1 + $0x30] sm:$0xf]
      %v9820 = vld [vmem:[%s1 + $0x34] sm:$0xf]
      %v9821 = vld [vmem:[%s1 + $0x38] sm:$0xf]
      %v9822 = vld [vmem:[%s1 + $0x3c] sm:$0xf]
      %v9823 = vld [vmem:[%s1 + $0x40] sm:$0xf]
      %v9824 = vld [vmem:[%s1 + $0x44] sm:$0xf]
      %v9825 = vld [vmem:[%s1 + $0x48] sm:$0xf]
      %v9826 = vld [vmem:[%s1 + $0x4c] sm:$0xf]
      %v9827 = vld [vmem:[%s1 + $0x50] sm:$0xf]
      %v9828 = vld [vmem:[%s1 + $0x54] sm:$0xf]
      %v9829 = vld [vmem:[%s1 + $0x58] sm:$0xf]
      %v9830 = vld [vmem:[%s1 + $0x5c] sm:$0xf]
      %v9831 = vld [vmem:[%s1 + $0x60] sm:$0x3]
      %v9832 = vld [vmem:[%s2] sm:$0x1]
      %v9834 = vlaneseq
      %v9835 = vshrl.u32 %v9834, 7
      %v9836 = vsub.s32 0, %v9835
      %v9837 = vrot.slane %v9832, %v9836
      %v9864 = vunpack.c.l.b16 %v9807
      %v9865 = vunpack.c.l.b16 %v9808
      %v9866 = vunpack.c.l.b16 %v9809
      %v9867 = vunpack.c.l.b16 %v9810
      %v9868 = vunpack.c.l.b16 %v9811
      %v9869 = vunpack.c.l.b16 %v9812
      %v9870 = vunpack.c.l.b16 %v9813
      %v9871 = vunpack.c.l.b16 %v9814
      %v9872 = vunpack.c.l.b16 %v9815
      %v9873 = vunpack.c.l.b16 %v9816
      %v9874 = vunpack.c.l.b16 %v9817
      %v9875 = vunpack.c.l.b16 %v9818
      %v9876 = vunpack.c.l.b16 %v9819
      %v9877 = vunpack.c.l.b16 %v9820
      %v9878 = vunpack.c.l.b16 %v9821
      %v9879 = vunpack.c.l.b16 %v9822
      %v9880 = vunpack.c.l.b16 %v9823
      %v9881 = vunpack.c.l.b16 %v9824
      %v9882 = vunpack.c.l.b16 %v9825
      %v9883 = vunpack.c.l.b16 %v9826
      %v9884 = vunpack.c.l.b16 %v9827
      %v9885 = vunpack.c.l.b16 %v9828
      %v9886 = vunpack.c.l.b16 %v9829
      %v9887 = vunpack.c.l.b16 %v9830
      %v9888 = vunpack.c.l.b16 %v9831
      %v9889 = vpack.c.b16 %v9865, %v9864
      %v9890 = vpack.c.b16 %v9867, %v9866
      %v9891 = vpack.c.b16 %v9869, %v9868
      %v9892 = vpack.c.b16 %v9871, %v9870
      %v9893 = vpack.c.b16 %v9873, %v9872
      %v9894 = vpack.c.b16 %v9875, %v9874
      %v9895 = vpack.c.b16 %v9877, %v9876
      %v9896 = vpack.c.b16 %v9879, %v9878
      %v9897 = vpack.c.b16 %v9881, %v9880
      %v9898 = vpack.c.b16 %v9883, %v9882
      %v9899 = vpack.c.b16 %v9885, %v9884
      %v9900 = vpack.c.b16 %v9887, %v9886
      %v9901 = vpack.c.b16 %v9888, %v9888
      %vm9914 = vcmask 556032
      %v9916 = vsel %vm9914, %v9792, 0
      %v9919 = vsel %vm9914, %v9794, 0
      %v9922 = vsel %vm9914, %v9796, 0
      %v9925 = vsel %vm9914, %v9798, 0
      %v9928 = vsel %vm9914, %v9800, 0
      %v9931 = vsel %vm9914, %v9802, 0
      %v9934 = vsel %vm9914, %v9804, 0
      %v9937 = vsel %vm9914, %v9806, 0
      %vm9939 = vcmask 1041408
      %v9941 = vsel %vm9939, %v9901, 0
      %9943 = vmatprep.subr.bf16.mxu0 0
      %9944 = vmatpush1.bf16.msra.mxu0 %v9889
      %9945 = vmatprep.subr.bf16.mxu0 0
      %9946 = vmatpush1.bf16.msra.mxu0 %v9890
      %9947 = vmatprep.subr.bf16.mxu0 0
      %9948 = vmatpush1.bf16.msra.mxu0 %v9891
      %9949 = vmatprep.subr.bf16.mxu0 0
      %9950 = vmatpush1.bf16.msra.mxu0 %v9892
      %9951 = vmatprep.subr.bf16.mxu0 0
      %9952 = vmatpush1.bf16.msra.mxu0 %v9893
      %9953 = vmatprep.subr.bf16.mxu0 0
      %9954 = vmatpush1.bf16.msra.mxu0 %v9894
      %9955 = vmatprep.subr.bf16.mxu0 0
      %9956 = vmatpush1.bf16.msra.mxu0 %v9895
      %9957 = vmatprep.subr.bf16.mxu0 0
      %9958 = vmatpush1.bf16.msra.mxu0 %v9896
      %9959 = vmatprep.subr.bf16.mxu0 0
      %9960 = vmatpush1.bf16.msra.mxu0 %v9897
      %9961 = vmatprep.subr.bf16.mxu0 0
      %9962 = vmatpush1.bf16.msra.mxu0 %v9898
      %9963 = vmatprep.subr.bf16.mxu0 0
      %9964 = vmatpush1.bf16.msra.mxu0 %v9899
      %9965 = vmatprep.subr.bf16.mxu0 0
      %9966 = vmatpush1.bf16.msra.mxu0 %v9900
      %9967 = vmatprep.subr.bf16.mxu0 0
      %9968 = vmatpush1.bf16.msra.mxu0 %v9941
      %9969 = vmatprep.subr.bf16.mxu0 0
      %9970 = vmatpush1.bf16.msra.mxu0 0
      %9971 = vmatprep.subr.bf16.mxu0 0
      %9972 = vmatpush1.bf16.msra.mxu0 0
      %9973 = vmatprep.subr.bf16.mxu0 0
      %9974 = vmatpush1.bf16.msra.mxu0 0
      %9975 = vmatprep.mubr.bf16.mxu0 %v9916
      %9976 = vmatmul.mubr.bf16.gmra.mrb[0].mxu0 %v9791
      %v9977 = vpop.f32.mrb[0].mxu0
      %v9978 = vadd.f32 %v9837, %v9977
      %v9979 = vpop.f32.mrb[0].mxu0
      %v9980 = vpop.f32.mrb[0].mxu0
      %v9981 = vadd.f32 %v9837, %v9980
      %v9982 = vpop.f32.mrb[0].mxu0
      %9983 = vmatprep.mubr.bf16.mxu0 %v9919
      %9984 = vmatmul.mubr.bf16.gmra.mrb[0].mxu0 %v9793
      %v9985 = vpop.f32.mrb[0].mxu0
      %v9986 = vadd.f32 %v9837, %v9985
      %v9987 = vpop.f32.mrb[0].mxu0
      %v9988 = vpop.f32.mrb[0].mxu0
      %v9989 = vadd.f32 %v9837, %v9988
      %v9990 = vpop.f32.mrb[0].mxu0
      %9991 = vmatprep.mubr.bf16.mxu0 %v9922
      %9992 = vmatmul.mubr.bf16.gmra.mrb[0].mxu0 %v9795
      %v9993 = vpop.f32.mrb[0].mxu0
      %v9994 = vadd.f32 %v9837, %v9993
      %v9995 = vpop.f32.mrb[0].mxu0
      %v9996 = vpop.f32.mrb[0].mxu0
      %v9997 = vadd.f32 %v9837, %v9996
      %v9998 = vpop.f32.mrb[0].mxu0
      %9999 = vmatprep.mubr.bf16.mxu0 %v9925
      %10000 = vmatmul.mubr.bf16.gmra.mrb[0].mxu0 %v9797
      %v10001 = vpop.f32.mrb[0].mxu0
      %v10002 = vadd.f32 %v9837, %v10001
      %v10003 = vpop.f32.mrb[0].mxu0
      %v10004 = vpop.f32.mrb[0].mxu0
      %v10005 = vadd.f32 %v9837, %v10004
      %v10006 = vpop.f32.mrb[0].mxu0
      %10007 = vmatprep.mubr.bf16.mxu0 %v9928
      %10008 = vmatmul.mubr.bf16.gmra.mrb[0].mxu0 %v9799
      %v10009 = vpop.f32.mrb[0].mxu0
      %v10010 = vadd.f32 %v9837, %v10009
      %v10011 = vpop.f32.mrb[0].mxu0
      %v10012 = vpop.f32.mrb[0].mxu0
      %v10013 = vadd.f32 %v9837, %v10012
      %v10014 = vpop.f32.mrb[0].mxu0
      %10015 = vmatprep.mubr.bf16.mxu0 %v9931
      %10016 = vmatmul.mubr.bf16.gmra.mrb[0].mxu0 %v9801
      %v10017 = vpop.f32.mrb[0].mxu0
      %v10018 = vadd.f32 %v9837, %v10017
      %v10019 = vpop.f32.mrb[0].mxu0
      %v10020 = vpop.f32.mrb[0].mxu0
      %v10021 = vadd.f32 %v9837, %v10020
      %v10022 = vpop.f32.mrb[0].mxu0
      %10023 = vmatprep.mubr.bf16.mxu0 %v9934
      %10024 = vmatmul.mubr.bf16.gmra.mrb[0].mxu0 %v9803
      %v10025 = vpop.f32.mrb[0].mxu0
      %v10026 = vadd.f32 %v9837, %v10025
      %v10027 = vpop.f32.mrb[0].mxu0
      %v10028 = vpop.f32.mrb[0].mxu0
      %v10029 = vadd.f32 %v9837, %v10028
      %v10030 = vpop.f32.mrb[0].mxu0
      %10031 = vmatprep.mubr.bf16.mxu0 %v9937
      %10032 = vmatmul.mubr.bf16.gmra.mrb[0].mxu0 %v9805
      %v10033 = vpop.f32.mrb[0].mxu0
      %v10034 = vadd.f32 %v9837, %v10033
      %v10035 = vpop.f32.mrb[0].mxu0
      %v10036 = vpop.f32.mrb[0].mxu0
      %v10037 = vadd.f32 %v9837, %v10036
      %v10038 = vpop.f32.mrb[0].mxu0
      %10039 = vdwg.mxu0
      %v10040 = vld [vmem:[%s3] sm:$0xff]
      %v10041 = vld [vmem:[%s3 + $0x8] sm:$0xff]
      %v10042 = vld [vmem:[%s3 + $0x10] sm:$0xff]
      %v10043 = vld [vmem:[%s3 + $0x18] sm:$0xff]
      %v10044 = vld [vmem:[%s3 + $0x20] sm:$0xff]
      %v10045 = vld [vmem:[%s3 + $0x28] sm:$0xff]
      %v10046 = vld [vmem:[%s3 + $0x30] sm:$0xff]
      %v10047 = vld [vmem:[%s3 + $0x38] sm:$0xff]
      %v10048 = vld [vmem:[%s3 + $0x40] sm:$0xff]
      %v10049 = vld [vmem:[%s3 + $0x48] sm:$0xff]
      %v10050 = vld [vmem:[%s3 + $0x50] sm:$0xff]
      %v10051 = vld [vmem:[%s3 + $0x58] sm:$0xff]
      %v10052 = vld [vmem:[%s3 + $0x60] sm:$0xff]
      %v10053 = vld [vmem:[%s3 + $0x68] sm:$0xff]
      %v10054 = vld [vmem:[%s3 + $0x70] sm:$0xff]
      %v10055 = vld [vmem:[%s3 + $0x78] sm:$0xff]
      %10057 = vset.pattern.permute.xlu0 2
      %10058 = vperm.xlu0 %10057, %v10040
      %v10059 = vpop.permute.xlu0 %10058
      %10062 = vset.pattern.permute.xlu0 2
      %10063 = vperm.xlu0 %10062, %v10041
      %v10064 = vpop.permute.xlu0 %10063
      %10067 = vset.pattern.permute.xlu0 2
      %10068 = vperm.xlu0 %10067, %v10042
      %v10069 = vpop.permute.xlu0 %10068
      %10072 = vset.pattern.permute.xlu0 2
      %10073 = vperm.xlu0 %10072, %v10043
      %v10074 = vpop.permute.xlu0 %10073
      %10077 = vset.pattern.permute.xlu0 2
      %10078 = vperm.xlu0 %10077, %v10044
      %v10079 = vpop.permute.xlu0 %10078
      %10082 = vset.pattern.permute.xlu0 2
      %10083 = vperm.xlu0 %10082, %v10045
      %v10084 = vpop.permute.xlu0 %10083
      %10087 = vset.pattern.permute.xlu0 2
      %10088 = vperm.xlu0 %10087, %v10046
      %v10089 = vpop.permute.xlu0 %10088
      %10092 = vset.pattern.permute.xlu0 2
      %10093 = vperm.xlu0 %10092, %v10047
      %v10094 = vpop.permute.xlu0 %10093
      %10097 = vset.pattern.permute.xlu0 2
      %10098 = vperm.xlu0 %10097, %v10048
      %v10099 = vpop.permute.xlu0 %10098
      %10102 = vset.pattern.permute.xlu0 2
      %10103 = vperm.xlu0 %10102, %v10049
      %v10104 = vpop.permute.xlu0 %10103
      %10107 = vset.pattern.permute.xlu0 2
      %10108 = vperm.xlu0 %10107, %v10050
      %v10109 = vpop.permute.xlu0 %10108
      %10112 = vset.pattern.permute.xlu0 2
      %10113 = vperm.xlu0 %10112, %v10051
      %v10114 = vpop.permute.xlu0 %10113
      %10117 = vset.pattern.permute.xlu0 2
      %10118 = vperm.xlu0 %10117, %v10052
      %v10119 = vpop.permute.xlu0 %10118
      %10122 = vset.pattern.permute.xlu0 2
      %10123 = vperm.xlu0 %10122, %v10053
      %v10124 = vpop.permute.xlu0 %10123
      %10127 = vset.pattern.permute.xlu0 2
      %10128 = vperm.xlu0 %10127, %v10054
      %v10129 = vpop.permute.xlu0 %10128
      %10132 = vset.pattern.permute.xlu0 2
      %10133 = vperm.xlu0 %10132, %v10055
      %v10134 = vpop.permute.xlu0 %10133
      %v10136 = vmul.f32 %v9978, %v10059
      %v10137 = vmul.f32 %v9981, %v10064
      %v10138 = vmul.f32 %v9986, %v10069
      %v10139 = vmul.f32 %v9989, %v10074
      %v10140 = vmul.f32 %v9994, %v10079
      %v10141 = vmul.f32 %v9997, %v10084
      %v10142 = vmul.f32 %v10002, %v10089
      %v10143 = vmul.f32 %v10005, %v10094
      %v10144 = vmul.f32 %v10010, %v10099
      %v10145 = vmul.f32 %v10013, %v10104
      %v10146 = vmul.f32 %v10018, %v10109
      %v10147 = vmul.f32 %v10021, %v10114
      %v10148 = vmul.f32 %v10026, %v10119
      %v10149 = vmul.f32 %v10029, %v10124
      %v10150 = vmul.f32 %v10034, %v10129
      %v10151 = vmul.f32 %v10037, %v10134
      %v10152 = vsel %vm425, %v10136, 0.0
      %v10153 = vsel %vm425, %v10137, 0.0
      %v10154 = vadd.f32 %v10152, %v10153
      %v10155 = vsel %vm425, %v10138, 0.0
      %v10156 = vadd.f32 %v10154, %v10155
      %v10157 = vsel %vm425, %v10139, 0.0
      %v10158 = vadd.f32 %v10156, %v10157
      %v10159 = vsel %vm425, %v10140, 0.0
      %v10160 = vadd.f32 %v10158, %v10159
      %v10161 = vsel %vm425, %v10141, 0.0
      %v10162 = vadd.f32 %v10160, %v10161
      %v10163 = vsel %vm425, %v10142, 0.0
      %v10164 = vadd.f32 %v10162, %v10163
      %v10165 = vsel %vm425, %v10143, 0.0
      %v10166 = vadd.f32 %v10164, %v10165
      %v10167 = vsel %vm425, %v10144, 0.0
      %v10168 = vadd.f32 %v10166, %v10167
      %v10169 = vsel %vm425, %v10145, 0.0
      %v10170 = vadd.f32 %v10168, %v10169
      %v10171 = vsel %vm425, %v10146, 0.0
      %v10172 = vadd.f32 %v10170, %v10171
      %v10173 = vsel %vm425, %v10147, 0.0
      %v10174 = vadd.f32 %v10172, %v10173
      %v10175 = vsel %vm425, %v10148, 0.0
      %v10176 = vadd.f32 %v10174, %v10175
      %v10177 = vsel %vm425, %v10149, 0.0
      %v10178 = vadd.f32 %v10176, %v10177
      %v10179 = vsel %vm425, %v10150, 0.0
      %v10180 = vadd.f32 %v10178, %v10179
      %v10181 = vsel %vm425, %v10151, 0.0
      %v10182 = vadd.f32 %v10180, %v10181
      %v10183 = vrot.slane %v10182, 4
      %v10184 = vadd.f32 %v10182, %v10183
      %v10185 = vrot.slane %v10184, 2
      %v10186 = vadd.f32 %v10184, %v10185
      %v10187 = vrot.slane %v10186, 1
      %v10188 = vadd.f32 %v10186, %v10187
      %v10189 = vmul.f32 %v10136, %v10136
      %v10190 = vmul.f32 %v10137, %v10137
      %v10191 = vmul.f32 %v10138, %v10138
      %v10192 = vmul.f32 %v10139, %v10139
      %v10193 = vmul.f32 %v10140, %v10140
      %v10194 = vmul.f32 %v10141, %v10141
      %v10195 = vmul.f32 %v10142, %v10142
      %v10196 = vmul.f32 %v10143, %v10143
      %v10197 = vmul.f32 %v10144, %v10144
      %v10198 = vmul.f32 %v10145, %v10145
      %v10199 = vmul.f32 %v10146, %v10146
      %v10200 = vmul.f32 %v10147, %v10147
      %v10201 = vmul.f32 %v10148, %v10148
      %v10202 = vmul.f32 %v10149, %v10149
      %v10203 = vmul.f32 %v10150, %v10150
      %v10204 = vmul.f32 %v10151, %v10151
      %v10205 = vsel %vm425, %v10189, 0.0
      %v10206 = vsel %vm425, %v10190, 0.0
      %v10207 = vadd.f32 %v10205, %v10206
      %v10208 = vsel %vm425, %v10191, 0.0
      %v10209 = vadd.f32 %v10207, %v10208
      %v10210 = vsel %vm425, %v10192, 0.0
      %v10211 = vadd.f32 %v10209, %v10210
      %v10212 = vsel %vm425, %v10193, 0.0
      %v10213 = vadd.f32 %v10211, %v10212
      %v10214 = vsel %vm425, %v10194, 0.0
      %v10215 = vadd.f32 %v10213, %v10214
      %v10216 = vsel %vm425, %v10195, 0.0
      %v10217 = vadd.f32 %v10215, %v10216
      %v10218 = vsel %vm425, %v10196, 0.0
      %v10219 = vadd.f32 %v10217, %v10218
      %v10220 = vsel %vm425, %v10197, 0.0
      %v10221 = vadd.f32 %v10219, %v10220
      %v10222 = vsel %vm425, %v10198, 0.0
      %v10223 = vadd.f32 %v10221, %v10222
      %v10224 = vsel %vm425, %v10199, 0.0
      %v10225 = vadd.f32 %v10223, %v10224
      %v10226 = vsel %vm425, %v10200, 0.0
      %v10227 = vadd.f32 %v10225, %v10226
      %v10228 = vsel %vm425, %v10201, 0.0
      %v10229 = vadd.f32 %v10227, %v10228
      %v10230 = vsel %vm425, %v10202, 0.0
      %v10231 = vadd.f32 %v10229, %v10230
      %v10232 = vsel %vm425, %v10203, 0.0
      %v10233 = vadd.f32 %v10231, %v10232
      %v10234 = vsel %vm425, %v10204, 0.0
      %v10235 = vadd.f32 %v10233, %v10234
      %v10236 = vrot.slane %v10235, 4
      %v10237 = vadd.f32 %v10235, %v10236
      %v10238 = vrot.slane %v10237, 2
      %v10239 = vadd.f32 %v10237, %v10238
      %v10240 = vrot.slane %v10239, 1
      %v10241 = vadd.f32 %v10239, %v10240
      %v10242 = vmul.f32 %v10188, 0.015625
      %v10243 = vmul.f32 %v10241, 0.015625
      %v10244 = vmul.f32 %v10242, %v10242
      %v10245 = vsub.f32 %v10243, %v10244
      %v10246 = vsub.f32 %v9978, %v10242
      %v10247 = vsub.f32 %v9981, %v10242
      %v10248 = vsub.f32 %v9986, %v10242
      %v10249 = vsub.f32 %v9989, %v10242
      %v10250 = vsub.f32 %v9994, %v10242
      %v10251 = vsub.f32 %v9997, %v10242
      %v10252 = vsub.f32 %v10002, %v10242
      %v10253 = vsub.f32 %v10005, %v10242
      %v10254 = vsub.f32 %v10010, %v10242
      %v10255 = vsub.f32 %v10013, %v10242
      %v10256 = vsub.f32 %v10018, %v10242
      %v10257 = vsub.f32 %v10021, %v10242
      %v10258 = vsub.f32 %v10026, %v10242
      %v10259 = vsub.f32 %v10029, %v10242
      %v10260 = vsub.f32 %v10034, %v10242
      %v10261 = vsub.f32 %v10037, %v10242
      %v10262 = vadd.f32 %v10245, 1e-05
      %v10263 = vrsqrt.pop %v10262
      %v10264 = vmul.f32 %v10246, %v10263
      %v10265 = vmul.f32 %v10247, %v10263
      %v10266 = vmul.f32 %v10248, %v10263
      %v10267 = vmul.f32 %v10249, %v10263
      %v10268 = vmul.f32 %v10250, %v10263
      %v10269 = vmul.f32 %v10251, %v10263
      %v10270 = vmul.f32 %v10252, %v10263
      %v10271 = vmul.f32 %v10253, %v10263
      %v10272 = vmul.f32 %v10254, %v10263
      %v10273 = vmul.f32 %v10255, %v10263
      %v10274 = vmul.f32 %v10256, %v10263
      %v10275 = vmul.f32 %v10257, %v10263
      %v10276 = vmul.f32 %v10258, %v10263
      %v10277 = vmul.f32 %v10259, %v10263
      %v10278 = vmul.f32 %v10260, %v10263
      %v10279 = vmul.f32 %v10261, %v10263
      %10280 = vset.pattern.permute.xlu0 0
      %10281 = vperm.xlu0 %10280, %v10040
      %v10282 = vpop.permute.xlu0 %10281
      %10284 = vset.pattern.permute.xlu0 0
      %10285 = vperm.xlu0 %10284, %v10041
      %v10286 = vpop.permute.xlu0 %10285
      %10288 = vset.pattern.permute.xlu0 0
      %10289 = vperm.xlu0 %10288, %v10042
      %v10290 = vpop.permute.xlu0 %10289
      %10292 = vset.pattern.permute.xlu0 0
      %10293 = vperm.xlu0 %10292, %v10043
      %v10294 = vpop.permute.xlu0 %10293
      %10296 = vset.pattern.permute.xlu0 0
      %10297 = vperm.xlu0 %10296, %v10044
      %v10298 = vpop.permute.xlu0 %10297
      %10300 = vset.pattern.permute.xlu0 0
      %10301 = vperm.xlu0 %10300, %v10045
      %v10302 = vpop.permute.xlu0 %10301
      %10304 = vset.pattern.permute.xlu0 0
      %10305 = vperm.xlu0 %10304, %v10046
      %v10306 = vpop.permute.xlu0 %10305
      %10308 = vset.pattern.permute.xlu0 0
      %10309 = vperm.xlu0 %10308, %v10047
      %v10310 = vpop.permute.xlu0 %10309
      %10312 = vset.pattern.permute.xlu0 0
      %10313 = vperm.xlu0 %10312, %v10048
      %v10314 = vpop.permute.xlu0 %10313
      %10316 = vset.pattern.permute.xlu0 0
      %10317 = vperm.xlu0 %10316, %v10049
      %v10318 = vpop.permute.xlu0 %10317
      %10320 = vset.pattern.permute.xlu0 0
      %10321 = vperm.xlu0 %10320, %v10050
      %v10322 = vpop.permute.xlu0 %10321
      %10324 = vset.pattern.permute.xlu0 0
      %10325 = vperm.xlu0 %10324, %v10051
      %v10326 = vpop.permute.xlu0 %10325
      %10328 = vset.pattern.permute.xlu0 0
      %10329 = vperm.xlu0 %10328, %v10052
      %v10330 = vpop.permute.xlu0 %10329
      %10332 = vset.pattern.permute.xlu0 0
      %10333 = vperm.xlu0 %10332, %v10053
      %v10334 = vpop.permute.xlu0 %10333
      %10336 = vset.pattern.permute.xlu0 0
      %10337 = vperm.xlu0 %10336, %v10054
      %v10338 = vpop.permute.xlu0 %10337
      %10340 = vset.pattern.permute.xlu0 0
      %10341 = vperm.xlu0 %10340, %v10055
      %v10342 = vpop.permute.xlu0 %10341
      %v10344 = vmul.f32 %v10264, %v10282
      %v10345 = vmul.f32 %v10265, %v10286
      %v10346 = vmul.f32 %v10266, %v10290
      %v10347 = vmul.f32 %v10267, %v10294
      %v10348 = vmul.f32 %v10268, %v10298
      %v10349 = vmul.f32 %v10269, %v10302
      %v10350 = vmul.f32 %v10270, %v10306
      %v10351 = vmul.f32 %v10271, %v10310
      %v10352 = vmul.f32 %v10272, %v10314
      %v10353 = vmul.f32 %v10273, %v10318
      %v10354 = vmul.f32 %v10274, %v10322
      %v10355 = vmul.f32 %v10275, %v10326
      %v10356 = vmul.f32 %v10276, %v10330
      %v10357 = vmul.f32 %v10277, %v10334
      %v10358 = vmul.f32 %v10278, %v10338
      %v10359 = vmul.f32 %v10279, %v10342
      %10360 = vset.pattern.permute.xlu0 1
      %10361 = vperm.xlu0 %10360, %v10040
      %v10362 = vpop.permute.xlu0 %10361
      %10364 = vset.pattern.permute.xlu0 1
      %10365 = vperm.xlu0 %10364, %v10041
      %v10366 = vpop.permute.xlu0 %10365
      %10368 = vset.pattern.permute.xlu0 1
      %10369 = vperm.xlu0 %10368, %v10042
      %v10370 = vpop.permute.xlu0 %10369
      %10372 = vset.pattern.permute.xlu0 1
      %10373 = vperm.xlu0 %10372, %v10043
      %v10374 = vpop.permute.xlu0 %10373
      %10376 = vset.pattern.permute.xlu0 1
      %10377 = vperm.xlu0 %10376, %v10044
      %v10378 = vpop.permute.xlu0 %10377
      %10380 = vset.pattern.permute.xlu0 1
      %10381 = vperm.xlu0 %10380, %v10045
      %v10382 = vpop.permute.xlu0 %10381
      %10384 = vset.pattern.permute.xlu0 1
      %10385 = vperm.xlu0 %10384, %v10046
      %v10386 = vpop.permute.xlu0 %10385
      %10388 = vset.pattern.permute.xlu0 1
      %10389 = vperm.xlu0 %10388, %v10047
      %v10390 = vpop.permute.xlu0 %10389
      %10392 = vset.pattern.permute.xlu0 1
      %10393 = vperm.xlu0 %10392, %v10048
      %v10394 = vpop.permute.xlu0 %10393
      %10396 = vset.pattern.permute.xlu0 1
      %10397 = vperm.xlu0 %10396, %v10049
      %v10398 = vpop.permute.xlu0 %10397
      %10400 = vset.pattern.permute.xlu0 1
      %10401 = vperm.xlu0 %10400, %v10050
      %v10402 = vpop.permute.xlu0 %10401
      %10404 = vset.pattern.permute.xlu0 1
      %10405 = vperm.xlu0 %10404, %v10051
      %v10406 = vpop.permute.xlu0 %10405
      %10408 = vset.pattern.permute.xlu0 1
      %10409 = vperm.xlu0 %10408, %v10052
      %v10410 = vpop.permute.xlu0 %10409
      %10412 = vset.pattern.permute.xlu0 1
      %10413 = vperm.xlu0 %10412, %v10053
      %v10414 = vpop.permute.xlu0 %10413
      %10416 = vset.pattern.permute.xlu0 1
      %10417 = vperm.xlu0 %10416, %v10054
      %v10418 = vpop.permute.xlu0 %10417
      %10420 = vset.pattern.permute.xlu0 1
      %10421 = vperm.xlu0 %10420, %v10055
      %v10422 = vpop.permute.xlu0 %10421
      %v10424 = vadd.f32 %v10344, %v10362
      %v10425 = vadd.f32 %v10345, %v10366
      %v10426 = vadd.f32 %v10346, %v10370
      %v10427 = vadd.f32 %v10347, %v10374
      %v10428 = vadd.f32 %v10348, %v10378
      %v10429 = vadd.f32 %v10349, %v10382
      %v10430 = vadd.f32 %v10350, %v10386
      %v10431 = vadd.f32 %v10351, %v10390
      %v10432 = vadd.f32 %v10352, %v10394
      %v10433 = vadd.f32 %v10353, %v10398
      %v10434 = vadd.f32 %v10354, %v10402
      %v10435 = vadd.f32 %v10355, %v10406
      %v10436 = vadd.f32 %v10356, %v10410
      %v10437 = vadd.f32 %v10357, %v10414
      %v10438 = vadd.f32 %v10358, %v10418
      %v10439 = vadd.f32 %v10359, %v10422
      %v10440 = vpack.c.bf16 %v10425, %v10424
      %v10441 = vpack.c.bf16 %v10427, %v10426
      %v10442 = vpack.c.bf16 %v10429, %v10428
      %v10443 = vpack.c.bf16 %v10431, %v10430
      %v10444 = vpack.c.bf16 %v10433, %v10432
      %v10445 = vpack.c.bf16 %v10435, %v10434
      %v10446 = vpack.c.bf16 %v10437, %v10436
      %v10447 = vpack.c.bf16 %v10439, %v10438
      %v10448 = vld [vmem:[%s4] sm:$0x3]
      %v10449 = vld [vmem:[%s5] sm:$0x1]
      %v10451 = vlaneseq
      %v10452 = vshrl.u32 %v10451, 7
      %v10453 = vsub.s32 0, %v10452
      %v10454 = vrot.slane %v10449, %v10453
      %v10457 = vsel %vm425, %v10440, 0
      %v10460 = vsel %vm425, %v10441, 0
      %v10463 = vsel %vm425, %v10442, 0
      %v10466 = vsel %vm425, %v10443, 0
      %v10469 = vsel %vm425, %v10444, 0
      %v10472 = vsel %vm425, %v10445, 0
      %v10475 = vsel %vm425, %v10446, 0
      %v10478 = vsel %vm425, %v10447, 0
      %v10481 = vsel %vm9939, %v10448, 0
      %10483 = vmatprep.subr.bf16.mxu0 0
      %10484 = vmatpush1.bf16.msra.mxu0 %v10481
      %10485 = vmatprep.subr.bf16.mxu0 0
      %10486 = vmatpush1.bf16.msra.mxu0 0
      %10487 = vmatprep.subr.bf16.mxu0 0
      %10488 = vmatpush1.bf16.msra.mxu0 0
      %10489 = vmatprep.subr.bf16.mxu0 0
      %10490 = vmatpush1.bf16.msra.mxu0 0
      %10491 = vmatprep.subr.bf16.mxu0 0
      %10492 = vmatpush1.bf16.msra.mxu0 0
      %10493 = vmatprep.subr.bf16.mxu0 0
      %10494 = vmatpush1.bf16.msra.mxu0 0
      %10495 = vmatprep.subr.bf16.mxu0 0
      %10496 = vmatpush1.bf16.msra.mxu0 0
      %10497 = vmatprep.subr.bf16.mxu0 0
      %10498 = vmatpush1.bf16.msra.mxu0 0
      %10499 = vmatprep.subr.bf16.mxu0 0
      %10500 = vmatpush1.bf16.msra.mxu0 0
      %10501 = vmatprep.subr.bf16.mxu0 0
      %10502 = vmatpush1.bf16.msra.mxu0 0
      %10503 = vmatprep.subr.bf16.mxu0 0
      %10504 = vmatpush1.bf16.msra.mxu0 0
      %10505 = vmatprep.subr.bf16.mxu0 0
      %10506 = vmatpush1.bf16.msra.mxu0 0
      %10507 = vmatprep.subr.bf16.mxu0 0
      %10508 = vmatpush1.bf16.msra.mxu0 0
      %10509 = vmatprep.subr.bf16.mxu0 0
      %10510 = vmatpush1.bf16.msra.mxu0 0
      %10511 = vmatprep.subr.bf16.mxu0 0
      %10512 = vmatpush1.bf16.msra.mxu0 0
      %10513 = vmatprep.subr.bf16.mxu0 0
      %10514 = vmatpush1.bf16.msra.mxu0 0
      %10515 = vmatprep.mubr.bf16.mxu0 0
      %10516 = vmatmul.mubr.bf16.gmra.mrb[0].mxu0 %v10457
      %v10517 = vpop.f32.mrb[0].mxu0
      %v10518 = vadd.f32 %v10454, %v10517
      %v10519 = vpop.f32.mrb[0].mxu0
      %v10520 = vpop.f32.mrb[0].mxu0
      %v10521 = vadd.f32 %v10454, %v10520
      %v10522 = vpop.f32.mrb[0].mxu0
      %10523 = vmatprep.mubr.bf16.mxu0 0
      %10524 = vmatmul.mubr.bf16.gmra.mrb[0].mxu0 %v10460
      %v10525 = vpop.f32.mrb[0].mxu0
      %v10526 = vadd.f32 %v10454, %v10525
      %v10527 = vpop.f32.mrb[0].mxu0
      %v10528 = vpop.f32.mrb[0].mxu0
      %v10529 = vadd.f32 %v10454, %v10528
      %v10530 = vpop.f32.mrb[0].mxu0
      %10531 = vmatprep.mubr.bf16.mxu0 0
      %10532 = vmatmul.mubr.bf16.gmra.mrb[0].mxu0 %v10463
      %v10533 = vpop.f32.mrb[0].mxu0
      %v10534 = vadd.f32 %v10454, %v10533
      %v10535 = vpop.f32.mrb[0].mxu0
      %v10536 = vpop.f32.mrb[0].mxu0
      %v10537 = vadd.f32 %v10454, %v10536
      %v10538 = vpop.f32.mrb[0].mxu0
      %10539 = vmatprep.mubr.bf16.mxu0 0
      %10540 = vmatmul.mubr.bf16.gmra.mrb[0].mxu0 %v10466
      %v10541 = vpop.f32.mrb[0].mxu0
      %v10542 = vadd.f32 %v10454, %v10541
      %v10543 = vpop.f32.mrb[0].mxu0
      %v10544 = vpop.f32.mrb[0].mxu0
      %v10545 = vadd.f32 %v10454, %v10544
      %v10546 = vpop.f32.mrb[0].mxu0
      %10547 = vmatprep.mubr.bf16.mxu0 0
      %10548 = vmatmul.mubr.bf16.gmra.mrb[0].mxu0 %v10469
      %v10549 = vpop.f32.mrb[0].mxu0
      %v10550 = vadd.f32 %v10454, %v10549
      %v10551 = vpop.f32.mrb[0].mxu0
      %v10552 = vpop.f32.mrb[0].mxu0
      %v10553 = vadd.f32 %v10454, %v10552
      %v10554 = vpop.f32.mrb[0].mxu0
      %10555 = vmatprep.mubr.bf16.mxu0 0
      %10556 = vmatmul.mubr.bf16.gmra.mrb[0].mxu0 %v10472
      %v10557 = vpop.f32.mrb[0].mxu0
      %v10558 = vadd.f32 %v10454, %v10557
      %v10559 = vpop.f32.mrb[0].mxu0
      %v10560 = vpop.f32.mrb[0].mxu0
      %v10561 = vadd.f32 %v10454, %v10560
      %v10562 = vpop.f32.mrb[0].mxu0
      %10563 = vmatprep.mubr.bf16.mxu0 0
      %10564 = vmatmul.mubr.bf16.gmra.mrb[0].mxu0 %v10475
      %v10565 = vpop.f32.mrb[0].mxu0
      %v10566 = vadd.f32 %v10454, %v10565
      %v10567 = vpop.f32.mrb[0].mxu0
      %v10568 = vpop.f32.mrb[0].mxu0
      %v10569 = vadd.f32 %v10454, %v10568
      %v10570 = vpop.f32.mrb[0].mxu0
      %10571 = vmatprep.mubr.bf16.mxu0 0
      %10572 = vmatmul.mubr.bf16.gmra.mrb[0].mxu0 %v10478
      %v10573 = vpop.f32.mrb[0].mxu0
      %v10574 = vadd.f32 %v10454, %v10573
      %v10575 = vpop.f32.mrb[0].mxu0
      %v10576 = vpop.f32.mrb[0].mxu0
      %v10577 = vadd.f32 %v10454, %v10576
      %v10578 = vpop.f32.mrb[0].mxu0
      %10579 = vdwg.mxu0
      %v10580 = vmul.f32 %v10518, 0.5
      %v10581 = vmul.f32 %v10521, 0.5
      %v10582 = vmul.f32 %v10526, 0.5
      %v10583 = vmul.f32 %v10529, 0.5
      %v10584 = vmul.f32 %v10534, 0.5
      %v10585 = vmul.f32 %v10537, 0.5
      %v10586 = vmul.f32 %v10542, 0.5
      %v10587 = vmul.f32 %v10545, 0.5
      %v10588 = vmul.f32 %v10550, 0.5
      %v10589 = vmul.f32 %v10553, 0.5
      %v10590 = vmul.f32 %v10558, 0.5
      %v10591 = vmul.f32 %v10561, 0.5
      %v10592 = vmul.f32 %v10566, 0.5
      %v10593 = vmul.f32 %v10569, 0.5
      %v10594 = vmul.f32 %v10574, 0.5
      %v10595 = vmul.f32 %v10577, 0.5
      %v10596 = vmul.f32 %v10518, 0.044715
      %v10597 = vmul.f32 %v10521, 0.044715
      %v10598 = vmul.f32 %v10526, 0.044715
      %v10599 = vmul.f32 %v10529, 0.044715
      %v10600 = vmul.f32 %v10534, 0.044715
      %v10601 = vmul.f32 %v10537, 0.044715
      %v10602 = vmul.f32 %v10542, 0.044715
      %v10603 = vmul.f32 %v10545, 0.044715
      %v10604 = vmul.f32 %v10550, 0.044715
      %v10605 = vmul.f32 %v10553, 0.044715
      %v10606 = vmul.f32 %v10558, 0.044715
      %v10607 = vmul.f32 %v10561, 0.044715
      %v10608 = vmul.f32 %v10566, 0.044715
      %v10609 = vmul.f32 %v10569, 0.044715
      %v10610 = vmul.f32 %v10574, 0.044715
      %v10611 = vmul.f32 %v10577, 0.044715
      %v10612 = vmul.f32 %v10596, %v10518
      %v10613 = vmul.f32 %v10597, %v10521
      %v10614 = vmul.f32 %v10598, %v10526
      %v10615 = vmul.f32 %v10599, %v10529
      %v10616 = vmul.f32 %v10600, %v10534
      %v10617 = vmul.f32 %v10601, %v10537
      %v10618 = vmul.f32 %v10602, %v10542
      %v10619 = vmul.f32 %v10603, %v10545
      %v10620 = vmul.f32 %v10604, %v10550
      %v10621 = vmul.f32 %v10605, %v10553
      %v10622 = vmul.f32 %v10606, %v10558
      %v10623 = vmul.f32 %v10607, %v10561
      %v10624 = vmul.f32 %v10608, %v10566
      %v10625 = vmul.f32 %v10609, %v10569
      %v10626 = vmul.f32 %v10610, %v10574
      %v10627 = vmul.f32 %v10611, %v10577
      %v10628 = vmul.f32 %v10612, %v10518
      %v10629 = vmul.f32 %v10613, %v10521
      %v10630 = vmul.f32 %v10614, %v10526
      %v10631 = vmul.f32 %v10615, %v10529
      %v10632 = vmul.f32 %v10616, %v10534
      %v10633 = vmul.f32 %v10617, %v10537
      %v10634 = vmul.f32 %v10618, %v10542
      %v10635 = vmul.f32 %v10619, %v10545
      %v10636 = vmul.f32 %v10620, %v10550
      %v10637 = vmul.f32 %v10621, %v10553
      %v10638 = vmul.f32 %v10622, %v10558
      %v10639 = vmul.f32 %v10623, %v10561
      %v10640 = vmul.f32 %v10624, %v10566
      %v10641 = vmul.f32 %v10625, %v10569
      %v10642 = vmul.f32 %v10626, %v10574
      %v10643 = vmul.f32 %v10627, %v10577
      %v10644 = vadd.f32 %v10518, %v10628
      %v10645 = vadd.f32 %v10521, %v10629
      %v10646 = vadd.f32 %v10526, %v10630
      %v10647 = vadd.f32 %v10529, %v10631
      %v10648 = vadd.f32 %v10534, %v10632
      %v10649 = vadd.f32 %v10537, %v10633
      %v10650 = vadd.f32 %v10542, %v10634
      %v10651 = vadd.f32 %v10545, %v10635
      %v10652 = vadd.f32 %v10550, %v10636
      %v10653 = vadd.f32 %v10553, %v10637
      %v10654 = vadd.f32 %v10558, %v10638
      %v10655 = vadd.f32 %v10561, %v10639
      %v10656 = vadd.f32 %v10566, %v10640
      %v10657 = vadd.f32 %v10569, %v10641
      %v10658 = vadd.f32 %v10574, %v10642
      %v10659 = vadd.f32 %v10577, %v10643
      %v10660 = vmul.f32 %v10644, 0.7978846
      %v10661 = vmul.f32 %v10645, 0.7978846
      %v10662 = vmul.f32 %v10646, 0.7978846
      %v10663 = vmul.f32 %v10647, 0.7978846
      %v10664 = vmul.f32 %v10648, 0.7978846
      %v10665 = vmul.f32 %v10649, 0.7978846
      %v10666 = vmul.f32 %v10650, 0.7978846
      %v10667 = vmul.f32 %v10651, 0.7978846
      %v10668 = vmul.f32 %v10652, 0.7978846
      %v10669 = vmul.f32 %v10653, 0.7978846
      %v10670 = vmul.f32 %v10654, 0.7978846
      %v10671 = vmul.f32 %v10655, 0.7978846
      %v10672 = vmul.f32 %v10656, 0.7978846
      %v10673 = vmul.f32 %v10657, 0.7978846
      %v10674 = vmul.f32 %v10658, 0.7978846
      %v10675 = vmul.f32 %v10659, 0.7978846
      %v10676 = vtanh.pop %v10660
      %v10677 = vtanh.pop %v10661
      %v10678 = vtanh.pop %v10662
      %v10679 = vtanh.pop %v10663
      %v10680 = vtanh.pop %v10664
      %v10681 = vtanh.pop %v10665
      %v10682 = vtanh.pop %v10666
      %v10683 = vtanh.pop %v10667
      %v10684 = vtanh.pop %v10668
      %v10685 = vtanh.pop %v10669
      %v10686 = vtanh.pop %v10670
      %v10687 = vtanh.pop %v10671
      %v10688 = vtanh.pop %v10672
      %v10689 = vtanh.pop %v10673
      %v10690 = vtanh.pop %v10674
      %v10691 = vtanh.pop %v10675
      %v10692 = vadd.f32 %v10676, 1.0
      %v10693 = vadd.f32 %v10677, 1.0
      %v10694 = vadd.f32 %v10678, 1.0
      %v10695 = vadd.f32 %v10679, 1.0
      %v10696 = vadd.f32 %v10680, 1.0
      %v10697 = vadd.f32 %v10681, 1.0
      %v10698 = vadd.f32 %v10682, 1.0
      %v10699 = vadd.f32 %v10683, 1.0
      %v10700 = vadd.f32 %v10684, 1.0
      %v10701 = vadd.f32 %v10685, 1.0
      %v10702 = vadd.f32 %v10686, 1.0
      %v10703 = vadd.f32 %v10687, 1.0
      %v10704 = vadd.f32 %v10688, 1.0
      %v10705 = vadd.f32 %v10689, 1.0
      %v10706 = vadd.f32 %v10690, 1.0
      %v10707 = vadd.f32 %v10691, 1.0
      %v10708 = vmul.f32 %v10580, %v10692
      %v10709 = vmul.f32 %v10581, %v10693
      %v10710 = vmul.f32 %v10582, %v10694
      %v10711 = vmul.f32 %v10583, %v10695
      %v10712 = vmul.f32 %v10584, %v10696
      %v10713 = vmul.f32 %v10585, %v10697
      %v10714 = vmul.f32 %v10586, %v10698
      %v10715 = vmul.f32 %v10587, %v10699
      %v10716 = vmul.f32 %v10588, %v10700
      %v10717 = vmul.f32 %v10589, %v10701
      %v10718 = vmul.f32 %v10590, %v10702
      %v10719 = vmul.f32 %v10591, %v10703
      %v10720 = vmul.f32 %v10592, %v10704
      %v10721 = vmul.f32 %v10593, %v10705
      %v10722 = vmul.f32 %v10594, %v10706
      %v10723 = vmul.f32 %v10595, %v10707
      %v10724 = vpack.c.bf16 %v10709, %v10708
      %v10725 = vpack.c.bf16 %v10711, %v10710
      %v10726 = vpack.c.bf16 %v10713, %v10712
      %v10727 = vpack.c.bf16 %v10715, %v10714
      %v10728 = vpack.c.bf16 %v10717, %v10716
      %v10729 = vpack.c.bf16 %v10719, %v10718
      %v10730 = vpack.c.bf16 %v10721, %v10720
      %v10731 = vpack.c.bf16 %v10723, %v10722
      %v10732 = vld [vmem:[%s6] sm:$0xf]
      %v10733 = vld [vmem:[%s6 + $0x4] sm:$0xf]
      %v10734 = vld [vmem:[%s7] sm:$0x1]
      %v10736 = vlaneseq
      %v10737 = vshrl.u32 %v10736, 7
      %v10738 = vsub.s32 0, %v10737
      %v10739 = vrot.slane %v10734, %v10738
      %v10743 = vunpack.c.l.b16 %v10732
      %v10744 = vunpack.c.l.b16 %v10733
      %v10745 = vpack.c.b16 %v10744, %v10743
      %vm10747 = vcmask 130048
      %v10749 = vsel %vm10747, %v10724, 0
      %v10752 = vsel %vm10747, %v10725, 0
      %v10755 = vsel %vm10747, %v10726, 0
      %v10758 = vsel %vm10747, %v10727, 0
      %v10761 = vsel %vm10747, %v10728, 0
      %v10764 = vsel %vm10747, %v10729, 0
      %v10767 = vsel %vm10747, %v10730, 0
      %v10770 = vsel %vm10747, %v10731, 0
      %10772 = vmatprep.subr.bf16.mxu0 0
      %10773 = vmatpush1.bf16.msra.mxu0 %v10745
      %10774 = vmatprep.subr.bf16.mxu0 0
      %10775 = vmatpush1.bf16.msra.mxu0 0
      %10776 = vmatprep.subr.bf16.mxu0 0
      %10777 = vmatpush1.bf16.msra.mxu0 0
      %10778 = vmatprep.subr.bf16.mxu0 0
      %10779 = vmatpush1.bf16.msra.mxu0 0
      %10780 = vmatprep.subr.bf16.mxu0 0
      %10781 = vmatpush1.bf16.msra.mxu0 0
      %10782 = vmatprep.subr.bf16.mxu0 0
      %10783 = vmatpush1.bf16.msra.mxu0 0
      %10784 = vmatprep.subr.bf16.mxu0 0
      %10785 = vmatpush1.bf16.msra.mxu0 0
      %10786 = vmatprep.subr.bf16.mxu0 0
      %10787 = vmatpush1.bf16.msra.mxu0 0
      %10788 = vmatprep.subr.bf16.mxu0 0
      %10789 = vmatpush1.bf16.msra.mxu0 0
      %10790 = vmatprep.subr.bf16.mxu0 0
      %10791 = vmatpush1.bf16.msra.mxu0 0
      %10792 = vmatprep.subr.bf16.mxu0 0
      %10793 = vmatpush1.bf16.msra.mxu0 0
      %10794 = vmatprep.subr.bf16.mxu0 0
      %10795 = vmatpush1.bf16.msra.mxu0 0
      %10796 = vmatprep.subr.bf16.mxu0 0
      %10797 = vmatpush1.bf16.msra.mxu0 0
      %10798 = vmatprep.subr.bf16.mxu0 0
      %10799 = vmatpush1.bf16.msra.mxu0 0
      %10800 = vmatprep.subr.bf16.mxu0 0
      %10801 = vmatpush1.bf16.msra.mxu0 0
      %10802 = vmatprep.subr.bf16.mxu0 0
      %10803 = vmatpush1.bf16.msra.mxu0 0
      %10804 = vmatprep.mubr.bf16.mxu0 0
      %10805 = vmatmul.mubr.bf16.gmra.mrb[0].mxu0 %v10749
      %v10806 = vpop.f32.mrb[0].mxu0
      %v10807 = vadd.f32 %v10739, %v10806
      %v10808 = vpop.f32.mrb[0].mxu0
      %v10809 = vpop.f32.mrb[0].mxu0
      %v10810 = vadd.f32 %v10739, %v10809
      %v10811 = vpop.f32.mrb[0].mxu0
      %10812 = vmatprep.mubr.bf16.mxu0 0
      %10813 = vmatmul.mubr.bf16.gmra.mrb[0].mxu0 %v10752
      %v10814 = vpop.f32.mrb[0].mxu0
      %v10815 = vadd.f32 %v10739, %v10814
      %v10816 = vpop.f32.mrb[0].mxu0
      %v10817 = vpop.f32.mrb[0].mxu0
      %v10818 = vadd.f32 %v10739, %v10817
      %v10819 = vpop.f32.mrb[0].mxu0
      %10820 = vmatprep.mubr.bf16.mxu0 0
      %10821 = vmatmul.mubr.bf16.gmra.mrb[0].mxu0 %v10755
      %v10822 = vpop.f32.mrb[0].mxu0
      %v10823 = vadd.f32 %v10739, %v10822
      %v10824 = vpop.f32.mrb[0].mxu0
      %v10825 = vpop.f32.mrb[0].mxu0
      %v10826 = vadd.f32 %v10739, %v10825
      %v10827 = vpop.f32.mrb[0].mxu0
      %10828 = vmatprep.mubr.bf16.mxu0 0
      %10829 = vmatmul.mubr.bf16.gmra.mrb[0].mxu0 %v10758
      %v10830 = vpop.f32.mrb[0].mxu0
      %v10831 = vadd.f32 %v10739, %v10830
      %v10832 = vpop.f32.mrb[0].mxu0
      %v10833 = vpop.f32.mrb[0].mxu0
      %v10834 = vadd.f32 %v10739, %v10833
      %v10835 = vpop.f32.mrb[0].mxu0
      %10836 = vmatprep.mubr.bf16.mxu0 0
      %10837 = vmatmul.mubr.bf16.gmra.mrb[0].mxu0 %v10761
      %v10838 = vpop.f32.mrb[0].mxu0
      %v10839 = vadd.f32 %v10739, %v10838
      %v10840 = vpop.f32.mrb[0].mxu0
      %v10841 = vpop.f32.mrb[0].mxu0
      %v10842 = vadd.f32 %v10739, %v10841
      %v10843 = vpop.f32.mrb[0].mxu0
      %10844 = vmatprep.mubr.bf16.mxu0 0
      %10845 = vmatmul.mubr.bf16.gmra.mrb[0].mxu0 %v10764
      %v10846 = vpop.f32.mrb[0].mxu0
      %v10847 = vadd.f32 %v10739, %v10846
      %v10848 = vpop.f32.mrb[0].mxu0
      %v10849 = vpop.f32.mrb[0].mxu0
      %v10850 = vadd.f32 %v10739, %v10849
      %v10851 = vpop.f32.mrb[0].mxu0
      %10852 = vmatprep.mubr.bf16.mxu0 0
      %10853 = vmatmul.mubr.bf16.gmra.mrb[0].mxu0 %v10767
      %v10854 = vpop.f32.mrb[0].mxu0
      %v10855 = vadd.f32 %v10739, %v10854
      %v10856 = vpop.f32.mrb[0].mxu0
      %v10857 = vpop.f32.mrb[0].mxu0
      %v10858 = vadd.f32 %v10739, %v10857
      %v10859 = vpop.f32.mrb[0].mxu0
      %10860 = vmatprep.mubr.bf16.mxu0 0
      %10861 = vmatmul.mubr.bf16.gmra.mrb[0].mxu0 %v10770
      %v10862 = vpop.f32.mrb[0].mxu0
      %v10863 = vadd.f32 %v10739, %v10862
      %v10864 = vpop.f32.mrb[0].mxu0
      %v10865 = vpop.f32.mrb[0].mxu0
      %v10866 = vadd.f32 %v10739, %v10865
      %v10867 = vpop.f32.mrb[0].mxu0
      %10868 = vdwg.mxu0
      %v10869 = vmul.f32 %v10807, 0.5
      %v10870 = vmul.f32 %v10810, 0.5
      %v10871 = vmul.f32 %v10815, 0.5
      %v10872 = vmul.f32 %v10818, 0.5
      %v10873 = vmul.f32 %v10823, 0.5
      %v10874 = vmul.f32 %v10826, 0.5
      %v10875 = vmul.f32 %v10831, 0.5
      %v10876 = vmul.f32 %v10834, 0.5
      %v10877 = vmul.f32 %v10839, 0.5
      %v10878 = vmul.f32 %v10842, 0.5
      %v10879 = vmul.f32 %v10847, 0.5
      %v10880 = vmul.f32 %v10850, 0.5
      %v10881 = vmul.f32 %v10855, 0.5
      %v10882 = vmul.f32 %v10858, 0.5
      %v10883 = vmul.f32 %v10863, 0.5
      %v10884 = vmul.f32 %v10866, 0.5
      %v10885 = vmul.f32 %v10807, 0.044715
      %v10886 = vmul.f32 %v10810, 0.044715
      %v10887 = vmul.f32 %v10815, 0.044715
      %v10888 = vmul.f32 %v10818, 0.044715
      %v10889 = vmul.f32 %v10823, 0.044715
      %v10890 = vmul.f32 %v10826, 0.044715
      %v10891 = vmul.f32 %v10831, 0.044715
      %v10892 = vmul.f32 %v10834, 0.044715
      %v10893 = vmul.f32 %v10839, 0.044715
      %v10894 = vmul.f32 %v10842, 0.044715
      %v10895 = vmul.f32 %v10847, 0.044715
      %v10896 = vmul.f32 %v10850, 0.044715
      %v10897 = vmul.f32 %v10855, 0.044715
      %v10898 = vmul.f32 %v10858, 0.044715
      %v10899 = vmul.f32 %v10863, 0.044715
      %v10900 = vmul.f32 %v10866, 0.044715
      %v10901 = vmul.f32 %v10885, %v10807
      %v10902 = vmul.f32 %v10886, %v10810
      %v10903 = vmul.f32 %v10887, %v10815
      %v10904 = vmul.f32 %v10888, %v10818
      %v10905 = vmul.f32 %v10889, %v10823
      %v10906 = vmul.f32 %v10890, %v10826
      %v10907 = vmul.f32 %v10891, %v10831
      %v10908 = vmul.f32 %v10892, %v10834
      %v10909 = vmul.f32 %v10893, %v10839
      %v10910 = vmul.f32 %v10894, %v10842
      %v10911 = vmul.f32 %v10895, %v10847
      %v10912 = vmul.f32 %v10896, %v10850
      %v10913 = vmul.f32 %v10897, %v10855
      %v10914 = vmul.f32 %v10898, %v10858
      %v10915 = vmul.f32 %v10899, %v10863
      %v10916 = vmul.f32 %v10900, %v10866
      %v10917 = vmul.f32 %v10901, %v10807
      %v10918 = vmul.f32 %v10902, %v10810
      %v10919 = vmul.f32 %v10903, %v10815
      %v10920 = vmul.f32 %v10904, %v10818
      %v10921 = vmul.f32 %v10905, %v10823
      %v10922 = vmul.f32 %v10906, %v10826
      %v10923 = vmul.f32 %v10907, %v10831
      %v10924 = vmul.f32 %v10908, %v10834
      %v10925 = vmul.f32 %v10909, %v10839
      %v10926 = vmul.f32 %v10910, %v10842
      %v10927 = vmul.f32 %v10911, %v10847
      %v10928 = vmul.f32 %v10912, %v10850
      %v10929 = vmul.f32 %v10913, %v10855
      %v10930 = vmul.f32 %v10914, %v10858
      %v10931 = vmul.f32 %v10915, %v10863
      %v10932 = vmul.f32 %v10916, %v10866
      %v10933 = vadd.f32 %v10807, %v10917
      %v10934 = vadd.f32 %v10810, %v10918
      %v10935 = vadd.f32 %v10815, %v10919
      %v10936 = vadd.f32 %v10818, %v10920
      %v10937 = vadd.f32 %v10823, %v10921
      %v10938 = vadd.f32 %v10826, %v10922
      %v10939 = vadd.f32 %v10831, %v10923
      %v10940 = vadd.f32 %v10834, %v10924
      %v10941 = vadd.f32 %v10839, %v10925
      %v10942 = vadd.f32 %v10842, %v10926
      %v10943 = vadd.f32 %v10847, %v10927
      %v10944 = vadd.f32 %v10850, %v10928
      %v10945 = vadd.f32 %v10855, %v10929
      %v10946 = vadd.f32 %v10858, %v10930
      %v10947 = vadd.f32 %v10863, %v10931
      %v10948 = vadd.f32 %v10866, %v10932
      %v10949 = vmul.f32 %v10933, 0.7978846
      %v10950 = vmul.f32 %v10934, 0.7978846
      %v10951 = vmul.f32 %v10935, 0.7978846
      %v10952 = vmul.f32 %v10936, 0.7978846
      %v10953 = vmul.f32 %v10937, 0.7978846
      %v10954 = vmul.f32 %v10938, 0.7978846
      %v10955 = vmul.f32 %v10939, 0.7978846
      %v10956 = vmul.f32 %v10940, 0.7978846
      %v10957 = vmul.f32 %v10941, 0.7978846
      %v10958 = vmul.f32 %v10942, 0.7978846
      %v10959 = vmul.f32 %v10943, 0.7978846
      %v10960 = vmul.f32 %v10944, 0.7978846
      %v10961 = vmul.f32 %v10945, 0.7978846
      %v10962 = vmul.f32 %v10946, 0.7978846
      %v10963 = vmul.f32 %v10947, 0.7978846
      %v10964 = vmul.f32 %v10948, 0.7978846
      %v10965 = vtanh.pop %v10949
      %v10966 = vtanh.pop %v10950
      %v10967 = vtanh.pop %v10951
      %v10968 = vtanh.pop %v10952
      %v10969 = vtanh.pop %v10953
      %v10970 = vtanh.pop %v10954
      %v10971 = vtanh.pop %v10955
      %v10972 = vtanh.pop %v10956
      %v10973 = vtanh.pop %v10957
      %v10974 = vtanh.pop %v10958
      %v10975 = vtanh.pop %v10959
      %v10976 = vtanh.pop %v10960
      %v10977 = vtanh.pop %v10961
      %v10978 = vtanh.pop %v10962
      %v10979 = vtanh.pop %v10963
      %v10980 = vtanh.pop %v10964
      %v10981 = vadd.f32 %v10965, 1.0
      %v10982 = vadd.f32 %v10966, 1.0
      %v10983 = vadd.f32 %v10967, 1.0
      %v10984 = vadd.f32 %v10968, 1.0
      %v10985 = vadd.f32 %v10969, 1.0
      %v10986 = vadd.f32 %v10970, 1.0
      %v10987 = vadd.f32 %v10971, 1.0
      %v10988 = vadd.f32 %v10972, 1.0
      %v10989 = vadd.f32 %v10973, 1.0
      %v10990 = vadd.f32 %v10974, 1.0
      %v10991 = vadd.f32 %v10975, 1.0
      %v10992 = vadd.f32 %v10976, 1.0
      %v10993 = vadd.f32 %v10977, 1.0
      %v10994 = vadd.f32 %v10978, 1.0
      %v10995 = vadd.f32 %v10979, 1.0
      %v10996 = vadd.f32 %v10980, 1.0
      %v10997 = vmul.f32 %v10869, %v10981
      %v10998 = vmul.f32 %v10870, %v10982
      %v10999 = vmul.f32 %v10871, %v10983
      %v11000 = vmul.f32 %v10872, %v10984
      %v11001 = vmul.f32 %v10873, %v10985
      %v11002 = vmul.f32 %v10874, %v10986
      %v11003 = vmul.f32 %v10875, %v10987
      %v11004 = vmul.f32 %v10876, %v10988
      %v11005 = vmul.f32 %v10877, %v10989
      %v11006 = vmul.f32 %v10878, %v10990
      %v11007 = vmul.f32 %v10879, %v10991
      %v11008 = vmul.f32 %v10880, %v10992
      %v11009 = vmul.f32 %v10881, %v10993
      %v11010 = vmul.f32 %v10882, %v10994
      %v11011 = vmul.f32 %v10883, %v10995
      %v11012 = vmul.f32 %v10884, %v10996
      %v11013 = vld [vmem:[#allocation2] sm:$0xff]
      %v11014 = vld [vmem:[#allocation2 + $0x10] sm:$0xff]
      %v11015 = vld [vmem:[#allocation2 + $0x20] sm:$0xff]
      %v11016 = vld [vmem:[#allocation2 + $0x30] sm:$0xff]
      %v11017 = vld [vmem:[#allocation2 + $0x40] sm:$0xff]
      %v11018 = vld [vmem:[#allocation2 + $0x50] sm:$0xff]
      %v11019 = vld [vmem:[#allocation2 + $0x60] sm:$0xff]
      %v11020 = vld [vmem:[#allocation2 + $0x70] sm:$0xff]
      %v11021 = vld [vmem:[%s8] sm:$0x3]
      %v11022 = vld [vmem:[%s9] sm:$0x1]
      %v11024 = vlaneseq
      %v11025 = vshrl.u32 %v11024, 7
      %v11026 = vsub.s32 0, %v11025
      %v11027 = vrot.slane %v11022, %v11026
      %11037 = vrot.lane.b32.xlu0 %v11013, 32
      %v11038 = vpop.permute.xlu0 %11037
      %11039 = vrot.lane.b32.xlu0 %v11014, 32
      %v11040 = vpop.permute.xlu0 %11039
      %11041 = vrot.lane.b32.xlu0 %v11015, 32
      %v11042 = vpop.permute.xlu0 %11041
      %11043 = vrot.lane.b32.xlu0 %v11016, 32
      %v11044 = vpop.permute.xlu0 %11043
      %11045 = vrot.lane.b32.xlu0 %v11017, 32
      %v11046 = vpop.permute.xlu0 %11045
      %11047 = vrot.lane.b32.xlu0 %v11018, 32
      %v11048 = vpop.permute.xlu0 %11047
      %11049 = vrot.lane.b32.xlu0 %v11019, 32
      %v11050 = vpop.permute.xlu0 %11049
      %11051 = vrot.lane.b32.xlu0 %v11020, 32
      %v11052 = vpop.permute.xlu0 %11051
      %v11054 = vsel %vm425, %v11038, 0
      %v11057 = vsel %vm425, %v11040, 0
      %v11060 = vsel %vm425, %v11042, 0
      %v11063 = vsel %vm425, %v11044, 0
      %v11066 = vsel %vm425, %v11046, 0
      %v11069 = vsel %vm425, %v11048, 0
      %v11072 = vsel %vm425, %v11050, 0
      %v11075 = vsel %vm425, %v11052, 0
      %v11078 = vsel %vm9939, %v11021, 0
      %11080 = vmatprep.subr.bf16.mxu0 0
      %11081 = vmatpush1.bf16.msra.mxu0 %v11078
      %11082 = vmatprep.subr.bf16.mxu0 0
      %11083 = vmatpush1.bf16.msra.mxu0 0
      %11084 = vmatprep.subr.bf16.mxu0 0
      %11085 = vmatpush1.bf16.msra.mxu0 0
      %11086 = vmatprep.subr.bf16.mxu0 0
      %11087 = vmatpush1.bf16.msra.mxu0 0
      %11088 = vmatprep.subr.bf16.mxu0 0
      %11089 = vmatpush1.bf16.msra.mxu0 0
      %11090 = vmatprep.subr.bf16.mxu0 0
      %11091 = vmatpush1.bf16.msra.mxu0 0
      %11092 = vmatprep.subr.bf16.mxu0 0
      %11093 = vmatpush1.bf16.msra.mxu0 0
      %11094 = vmatprep.subr.bf16.mxu0 0
      %11095 = vmatpush1.bf16.msra.mxu0 0
      %11096 = vmatprep.subr.bf16.mxu0 0
      %11097 = vmatpush1.bf16.msra.mxu0 0
      %11098 = vmatprep.subr.bf16.mxu0 0
      %11099 = vmatpush1.bf16.msra.mxu0 0
      %11100 = vmatprep.subr.bf16.mxu0 0
      %11101 = vmatpush1.bf16.msra.mxu0 0
      %11102 = vmatprep.subr.bf16.mxu0 0
      %11103 = vmatpush1.bf16.msra.mxu0 0
      %11104 = vmatprep.subr.bf16.mxu0 0
      %11105 = vmatpush1.bf16.msra.mxu0 0
      %11106 = vmatprep.subr.bf16.mxu0 0
      %11107 = vmatpush1.bf16.msra.mxu0 0
      %11108 = vmatprep.subr.bf16.mxu0 0
      %11109 = vmatpush1.bf16.msra.mxu0 0
      %11110 = vmatprep.subr.bf16.mxu0 0
      %11111 = vmatpush1.bf16.msra.mxu0 0
      %11112 = vmatprep.mubr.bf16.mxu0 0
      %11113 = vmatmul.mubr.bf16.gmra.mrb[0].mxu0 %v11054
      %v11114 = vpop.f32.mrb[0].mxu0
      %v11115 = vadd.f32 %v11027, %v11114
      %v11116 = vpop.f32.mrb[0].mxu0
      %v11117 = vpop.f32.mrb[0].mxu0
      %v11118 = vadd.f32 %v11027, %v11117
      %v11119 = vpop.f32.mrb[0].mxu0
      %11120 = vmatprep.mubr.bf16.mxu0 0
      %11121 = vmatmul.mubr.bf16.gmra.mrb[0].mxu0 %v11057
      %v11122 = vpop.f32.mrb[0].mxu0
      %v11123 = vadd.f32 %v11027, %v11122
      %v11124 = vpop.f32.mrb[0].mxu0
      %v11125 = vpop.f32.mrb[0].mxu0
      %v11126 = vadd.f32 %v11027, %v11125
      %v11127 = vpop.f32.mrb[0].mxu0
      %11128 = vmatprep.mubr.bf16.mxu0 0
      %11129 = vmatmul.mubr.bf16.gmra.mrb[0].mxu0 %v11060
      %v11130 = vpop.f32.mrb[0].mxu0
      %v11131 = vadd.f32 %v11027, %v11130
      %v11132 = vpop.f32.mrb[0].mxu0
      %v11133 = vpop.f32.mrb[0].mxu0
      %v11134 = vadd.f32 %v11027, %v11133
      %v11135 = vpop.f32.mrb[0].mxu0
      %11136 = vmatprep.mubr.bf16.mxu0 0
      %11137 = vmatmul.mubr.bf16.gmra.mrb[0].mxu0 %v11063
      %v11138 = vpop.f32.mrb[0].mxu0
      %v11139 = vadd.f32 %v11027, %v11138
      %v11140 = vpop.f32.mrb[0].mxu0
      %v11141 = vpop.f32.mrb[0].mxu0
      %v11142 = vadd.f32 %v11027, %v11141
      %v11143 = vpop.f32.mrb[0].mxu0
      %11144 = vmatprep.mubr.bf16.mxu0 0
      %11145 = vmatmul.mubr.bf16.gmra.mrb[0].mxu0 %v11066
      %v11146 = vpop.f32.mrb[0].mxu0
      %v11147 = vadd.f32 %v11027, %v11146
      %v11148 = vpop.f32.mrb[0].mxu0
      %v11149 = vpop.f32.mrb[0].mxu0
      %v11150 = vadd.f32 %v11027, %v11149
      %v11151 = vpop.f32.mrb[0].mxu0
      %11152 = vmatprep.mubr.bf16.mxu0 0
      %11153 = vmatmul.mubr.bf16.gmra.mrb[0].mxu0 %v11069
      %v11154 = vpop.f32.mrb[0].mxu0
      %v11155 = vadd.f32 %v11027, %v11154
      %v11156 = vpop.f32.mrb[0].mxu0
      %v11157 = vpop.f32.mrb[0].mxu0
      %v11158 = vadd.f32 %v11027, %v11157
      %v11159 = vpop.f32.mrb[0].mxu0
      %11160 = vmatprep.mubr.bf16.mxu0 0
      %11161 = vmatmul.mubr.bf16.gmra.mrb[0].mxu0 %v11072
      %v11162 = vpop.f32.mrb[0].mxu0
      %v11163 = vadd.f32 %v11027, %v11162
      %v11164 = vpop.f32.mrb[0].mxu0
      %v11165 = vpop.f32.mrb[0].mxu0
      %v11166 = vadd.f32 %v11027, %v11165
      %v11167 = vpop.f32.mrb[0].mxu0
      %11168 = vmatprep.mubr.bf16.mxu0 0
      %11169 = vmatmul.mubr.bf16.gmra.mrb[0].mxu0 %v11075
      %v11170 = vpop.f32.mrb[0].mxu0
      %v11171 = vadd.f32 %v11027, %v11170
      %v11172 = vpop.f32.mrb[0].mxu0
      %v11173 = vpop.f32.mrb[0].mxu0
      %v11174 = vadd.f32 %v11027, %v11173
      %v11175 = vpop.f32.mrb[0].mxu0
      %11176 = vdwg.mxu0
      %v11177 = vadd.f32 %v10997, %v11115
      %v11178 = vadd.f32 %v10998, %v11118
      %v11179 = vadd.f32 %v10999, %v11123
      %v11180 = vadd.f32 %v11000, %v11126
      %v11181 = vadd.f32 %v11001, %v11131
      %v11182 = vadd.f32 %v11002, %v11134
      %v11183 = vadd.f32 %v11003, %v11139
      %v11184 = vadd.f32 %v11004, %v11142
      %v11185 = vadd.f32 %v11005, %v11147
      %v11186 = vadd.f32 %v11006, %v11150
      %v11187 = vadd.f32 %v11007, %v11155
      %v11188 = vadd.f32 %v11008, %v11158
      %v11189 = vadd.f32 %v11009, %v11163
      %v11190 = vadd.f32 %v11010, %v11166
      %v11191 = vadd.f32 %v11011, %v11171
      %v11192 = vadd.f32 %v11012, %v11174
      %vm11193 = vcmask 64512
      %11194 = vst.msk [vmem:[%s359] sm:$0xff] %vm11193, %v11177
      %11195 = vst.msk [vmem:[%s359 + $0x8] sm:$0xff] %vm11193, %v11178
      %11196 = vst.msk [vmem:[%s359 + $0x10] sm:$0xff] %vm11193, %v11179
      %11197 = vst.msk [vmem:[%s359 + $0x18] sm:$0xff] %vm11193, %v11180
      %11198 = vst.msk [vmem:[%s359 + $0x20] sm:$0xff] %vm11193, %v11181
      %11199 = vst.msk [vmem:[%s359 + $0x28] sm:$0xff] %vm11193, %v11182
      %11200 = vst.msk [vmem:[%s359 + $0x30] sm:$0xff] %vm11193, %v11183
      %11201 = vst.msk [vmem:[%s359 + $0x38] sm:$0xff] %vm11193, %v11184
      %11202 = vst.msk [vmem:[%s359 + $0x40] sm:$0xff] %vm11193, %v11185
      %11203 = vst.msk [vmem:[%s359 + $0x48] sm:$0xff] %vm11193, %v11186
      %11204 = vst.msk [vmem:[%s359 + $0x50] sm:$0xff] %vm11193, %v11187
      %11205 = vst.msk [vmem:[%s359 + $0x58] sm:$0xff] %vm11193, %v11188
      %11206 = vst.msk [vmem:[%s359 + $0x60] sm:$0xff] %vm11193, %v11189
      %11207 = vst.msk [vmem:[%s359 + $0x68] sm:$0xff] %vm11193, %v11190
      %11208 = vst.msk [vmem:[%s359 + $0x70] sm:$0xff] %vm11193, %v11191
      %11209 = vst.msk [vmem:[%s359 + $0x78] sm:$0xff] %vm11193, %v11192
      %p11210 = scmp.lt.s32.totalorder %s21, 1
      %s11211 = scalar_select %p11210, %s21, 1
      %s11212 = smul.addr %s11211, 16
      %s11213 = smul.addr %s11212, 8
      %s11214 = scalar_lea.vmem %s10, %s11213
      // Predicated region
      $region61: #{convnext_block_forward.1} parent=59 // pred_check
        %p11215 = pneg %p254
      $region62: #{convnext_block_forward.1} parent=59 // pred_check_branch
        %11217 = sbr.rel (%p11215) target = $region64
      $region63: #{convnext_block_forward.1} parent=59 // pred_region
        _
      $region64: #{convnext_block_forward.1} parent=59 // pred_fallthru
        _
    $region60: #{convnext_block_forward.1} parent=5 // pred_fallthru
      _
    %p11218 = scmp.le.s32.totalorder 2, %s16
    // Predicated region
    $region65: #{convnext_block_forward.1} parent=5 // pred_check
      %p11219 = pneg %p11218
    $region66: #{convnext_block_forward.1} parent=5 // pred_check_branch
      %11221 = sbr.rel (%p11219) target = $region68
    $region67: #{convnext_block_forward.1} parent=5 // pred_region
      %s11222 = ssub.s32 %s16, 2
      // Predicated region
      $region69: #{convnext_block_forward.1} parent=67 // pred_check
        %p11223 = pneg %p260
      $region70: #{convnext_block_forward.1} parent=67 // pred_check_branch
        %11225 = sbr.rel (%p11223) target = $region72
      $region71: #{convnext_block_forward.1} parent=67 // pred_region
        %p11226 = scmp.lt.s32.totalorder %s22, 1
        %s11227 = scalar_select %p11226, %s22, 1
        %s11228 = smul.addr %s11227, 16
        %s11229 = smul.addr %s11228, 8
        %s11230 = scalar_lea.vmem %s10, %s11229
      $region72: #{convnext_block_forward.1} parent=67 // pred_fallthru
        _
    $region68: #{convnext_block_forward.1} parent=5 // pred_fallthru
      _
  $region6: #{convnext_block_forward.1} parent=0 // loop_footer
    %s20 = sadd.s32 1, %s16
  $region7: #{convnext_block_forward.1} parent=0 // loop_footer_branch
    %15 = sbr.rel target = $region3
  $region8: #{convnext_block_forward.1} parent=0 // loop_exit
    _

</llo_original>
